<compile_context>
chip_gen: v5e
topology: v5e:2x2
jax: 0.10.0
libtpu: 0.0.40
codegen_flags: <defaults>
</compile_context>

<pallas_src>
import functools
import math

import numpy as np
import jax
import jax.numpy as jnp
from jax.experimental import pallas as pl
from jax.experimental.pallas import tpu as pltpu


# dtype fed to the MXU. Kept f32 to stay numerically faithful to the PyTorch reference;
# flip to jnp.bfloat16 on v6e/v7x for higher MXU throughput (accumulation stays f32 via
# preferred_element_type). Non-matmul math (LayerNorm/softmax/residuals) is always f32.
_MXU_IN_DTYPE = jnp.float32

_DIMS_NT = (((1,), (1,)), ((), ()))   # [M,K] x [N,K] -> [M,N]  (second operand transposed)
_DIMS_NN = (((1,), (0,)), ((), ()))   # [M,K] x [K,N] -> [M,N]


# ----------------------------------------------------------------------------
# In-kernel math helpers (traced inside the Pallas kernel body).
# ----------------------------------------------------------------------------
def _mm(a, b, dims):
    return jax.lax.dot_general(
        a.astype(_MXU_IN_DTYPE), b.astype(_MXU_IN_DTYPE),
        dimension_numbers=dims, preferred_element_type=jnp.float32)


def _linear(x, w):
    """x: [L, Cin], w: [Cout, Cin] (PyTorch nn.Linear weight layout) -> [L, Cout]."""
    return _mm(x, w, _DIMS_NT)


def _layer_norm(x, gamma, beta, eps=1e-6):
    """Matches the custom LayerNorm: unbiased std (ddof=1), eps added to std (not var).
    One-pass variance halves the cross-lane reductions."""
    n = x.shape[-1]
    s = jnp.sum(x, axis=-1, keepdims=True)
    s2 = jnp.sum(x * x, axis=-1, keepdims=True)
    mean = s * (1.0 / n)
    var = jnp.maximum(s2 - s * mean, 0.0) * (1.0 / (n - 1))
    std = jnp.sqrt(var)
    return gamma * (x - mean) / (std + eps) + beta


def _shift_rows_down(x, n):
    """x[t, :] -> x[t-n, :] with zero fill (causal left padding). XLU roll + VPU select."""
    rolled = pltpu.roll(x, shift=n, axis=0)
    rows = jax.lax.broadcasted_iota(jnp.int32, x.shape, 0)
    return jnp.where(rows < n, jnp.zeros_like(x), rolled)


def _causal_conv(x, w_cat, b):
    """ConstantPad1d((2,0)) + Conv1d(k=3) as ONE fused matmul.
    x: [L, C]; w_cat: [Cout, 3C] = [w[:,:,0] | w[:,:,1] | w[:,:,2]]; b: [1, Cout]."""
    xcat = jnp.concatenate(
        [_shift_rows_down(x, 2), _shift_rows_down(x, 1), x], axis=-1)  # [L, 3C]
    return _linear(xcat, w_cat) + b


def _mha(q_in, k_in, v_in, masked, wq_ref, wk_ref, wv_ref, wo_ref, l, *,
         num_heads, key_depth, want_attn):
    """Faithful to the reference MultiHeadAttention (no-bias linears, masked_fill(-1e18),
    returned 'distribution' = masked logits summed over heads / num_heads).
    Per-head weights are pre-split host-side ([layers, heads, d, H] / [layers, heads, H, d])
    so no lane-axis slicing happens in the kernel."""
    dk = key_depth // num_heads
    scale = dk ** (-0.5)
    Lq, Lk = q_in.shape[0], k_in.shape[0]
    hidden = wo_ref.shape[2]

    out = jnp.zeros((Lq, hidden), jnp.float32)
    logit_sum = jnp.zeros((Lq, Lk), jnp.float32) if want_attn else None
    for h in range(num_heads):                       # static unroll, num_heads is small
        qh = _linear(q_in, wq_ref[l, h]) * scale     # [Lq, dk]
        kh = _linear(k_in, wk_ref[l, h])             # [Lk, dk]
        vh = _linear(v_in, wv_ref[l, h])             # [Lk, dv]
        logits = _mm(qh, kh, _DIMS_NT)               # [Lq, Lk]
        logits = jnp.where(masked, -1e18, logits)
        if want_attn:
            logit_sum = logit_sum + logits
        weights = jax.nn.softmax(logits, axis=-1)
        ctx = _mm(weights, vh, _DIMS_NN)             # [Lq, dv]
        out = out + _linear(ctx, wo_ref[l, h])       # merge_heads + output_linear, per head
    if want_attn:
        logit_sum = logit_sum * (1.0 / num_heads)
    return out, logit_sum


# ----------------------------------------------------------------------------
# Single fused Pallas kernel: embed -> num_layers decoder layers -> final LN.
# ----------------------------------------------------------------------------
def _decoder_kernel(x_ref, enc_ref, dec_mask_ref, src_mask_ref, ts_ref, wp_ref,
                    ln1_g, ln1_b, wq1, wk1, wv1, wo1,
                    ln2_g, ln2_b, wq2, wk2, wv2, wo2,
                    ln3_g, ln3_b, c1w, c1b, c2w, c2b,
                    fin_g, fin_b,
                    y_ref, attn_ref, *, num_heads, key_depth, num_layers):
    # One batch element per grid step; `x` stays resident in VMEM across all layers.
    x = _linear(x_ref[0], wp_ref[...]) + ts_ref[0]       # embedding_proj + timing signal
    enc = enc_ref[0]                                     # [Ls, H]
    dec_masked = dec_mask_ref[0] > 0.5                   # [L, L]
    src_masked = src_mask_ref[0] > 0.5                   # [1, Ls] (broadcast over queries)

    attn_dist = None
    for l in range(num_layers):                          # static unroll over layers
        # masked multi-head self attention (pre-LN, residual; dropout == identity at eval)
        xn = _layer_norm(x, ln1_g[l], ln1_b[l])
        y_sa, _ = _mha(xn, xn, xn, dec_masked, wq1, wk1, wv1, wo1, l,
                       num_heads=num_heads, key_depth=key_depth, want_attn=False)
        x = x + y_sa

        # encoder-decoder attention (attn_dist only needed from the last layer)
        xn = _layer_norm(x, ln2_g[l], ln2_b[l])
        want = (l == num_layers - 1)
        y_ca, attn = _mha(xn, enc, enc, src_masked, wq2, wk2, wv2, wo2, l,
                          num_heads=num_heads, key_depth=key_depth, want_attn=want)
        x = x + y_ca
        if want:
            attn_dist = attn

        # position-wise FFN: causal Conv1d(k=3) -> ReLU -> causal Conv1d(k=3)
        xn = _layer_norm(x, ln3_g[l], ln3_b[l])
        h = jnp.maximum(_causal_conv(xn, c1w[l], c1b[l]), 0.0)
        h = _causal_conv(h, c2w[l], c2b[l])
        x = x + h

    y_ref[0] = _layer_norm(x, fin_g[...], fin_b[...])
    attn_ref[0] = attn_dist


# ----------------------------------------------------------------------------
# pallas_call wrapper
# ----------------------------------------------------------------------------
def _batch_spec(shape):
    nd = len(shape)
    return pl.BlockSpec((1,) + tuple(shape[1:]),
                        lambda b, _nd=nd: (b,) + (0,) * (_nd - 1))


def _shared_spec(shape):
    nd = len(shape)
    return pl.BlockSpec(tuple(shape), lambda b, _nd=nd: (0,) * _nd)


def decoder_forward(inputs, encoder_output, mask_src, mask_trg, packed, *,
                    num_heads, total_key_depth):
    """Non-universal path, config.act == False, eval mode (all dropouts identity)."""
    # TODO(synk): universal / ACT_basic adaptive-computation branch not implemented.
    B, L, _ = inputs.shape
    Ls = encoder_output.shape[1]
    H = packed["wp"].shape[0]
    num_layers = packed["ln1_g"].shape[0]

    # dec_mask = (mask_trg + subsequent_mask) > 0   (tiny host-side elementwise glue)
    dec_mask = ((mask_trg + packed["subsequent"][:, :L, :L]) > 0).astype(jnp.float32)
    dec_mask = jnp.broadcast_to(dec_mask, (B, L, L))
    timing = packed["timing"][:, :L, :]

    operands = [
        inputs, encoder_output, dec_mask, mask_src,            # per-batch
        timing, packed["wp"],                                  # shared
        packed["ln1_g"], packed["ln1_b"], packed["wq1"], packed["wk1"],
        packed["wv1"], packed["wo1"],
        packed["ln2_g"], packed["ln2_b"], packed["wq2"], packed["wk2"],
        packed["wv2"], packed["wo2"],
        packed["ln3_g"], packed["ln3_b"], packed["c1w"], packed["c1b"],
        packed["c2w"], packed["c2b"],
        packed["final_g"], packed["final_b"],
    ]
    n_batch_ops = 4
    in_specs = [_batch_spec(op.shape) for op in operands[:n_batch_ops]]
    in_specs += [_shared_spec(op.shape) for op in operands[n_batch_ops:]]

    kernel = functools.partial(_decoder_kernel, num_heads=num_heads,
                               key_depth=total_key_depth, num_layers=num_layers)
    y, attn_dist = pl.pallas_call(
        kernel,
        out_shape=(jax.ShapeDtypeStruct((B, L, H), jnp.float32),
                   jax.ShapeDtypeStruct((B, L, Ls), jnp.float32)),
        grid=(B,),
        in_specs=in_specs,
        out_specs=(_batch_spec((B, L, H)), _batch_spec((B, L, Ls))),
        compiler_params=pltpu.CompilerParams(
            dimension_semantics=("parallel",)),   # batch axis can shard over v7x's 2 TCs
    )(*operands)
    return y, attn_dist


# ----------------------------------------------------------------------------
# Module constants / parameters (deterministic, in-script)
# ----------------------------------------------------------------------------
def gen_timing_signal(length, channels, min_timescale=1.0, max_timescale=1.0e4):
    position = np.arange(length, dtype=np.float64)
    num_timescales = channels // 2
    log_timescale_increment = (math.log(float(max_timescale) / float(min_timescale))
                               / max(num_timescales - 1, 1))
    inv_timescales = min_timescale * np.exp(
        np.arange(num_timescales, dtype=np.float64) * -log_timescale_increment)
    scaled_time = position[:, None] * inv_timescales[None, :]
    signal = np.concatenate([np.sin(scaled_time), np.cos(scaled_time)], axis=1)
    signal = np.pad(signal, [[0, 0], [0, channels % 2]], mode="constant")
    return jnp.asarray(signal.reshape(1, length, channels), dtype=jnp.float32)


def gen_subsequent_mask(max_length):
    return jnp.asarray(np.triu(np.ones((1, max_length, max_length)), k=1),
                       dtype=jnp.float32)


def init_decoder_params(key, *, embedding_size, hidden_size, num_layers,
                        total_key_depth, total_value_depth, filter_size, max_length):
    """Raw parameters in PyTorch layouts (nn.Linear [out,in], Conv1d [out,in,k])."""
    def nrm(k, shape, scale=0.05):
        return scale * jax.random.normal(k, shape, dtype=jnp.float32)

    keys = list(jax.random.split(key, num_layers * 12 + 1))
    ki = iter(keys)
    ones = lambda n: jnp.ones((1, n), jnp.float32)
    zeros = lambda n: jnp.zeros((1, n), jnp.float32)

    params = {
        "wp": nrm(next(ki), (hidden_size, embedding_size)),   # embedding_proj (no bias)
        "timing": gen_timing_signal(max_length, hidden_size),
        "subsequent": gen_subsequent_mask(max_length),
        "final_g": ones(hidden_size),
        "final_b": zeros(hidden_size),
        "layers": [],
    }
    for _ in range(num_layers):
        lp = {
            "ln1_g": ones(hidden_size), "ln1_b": zeros(hidden_size),
            "wq1": nrm(next(ki), (total_key_depth, hidden_size)),
            "wk1": nrm(next(ki), (total_key_depth, hidden_size)),
            "wv1": nrm(next(ki), (total_value_depth, hidden_size)),
            "wo1": nrm(next(ki), (hidden_size, total_value_depth)),
            "ln2_g": ones(hidden_size), "ln2_b": zeros(hidden_size),
            "wq2": nrm(next(ki), (total_key_depth, hidden_size)),
            "wk2": nrm(next(ki), (total_key_depth, hidden_size)),
            "wv2": nrm(next(ki), (total_value_depth, hidden_size)),
            "wo2": nrm(next(ki), (hidden_size, total_value_depth)),
            "ln3_g": ones(hidden_size), "ln3_b": zeros(hidden_size),
            "c1w": nrm(next(ki), (filter_size, hidden_size, 3)),   # Conv1d weight [out,in,k]
            "c1b": nrm(next(ki), (1, filter_size)),
            "c2w": nrm(next(ki), (hidden_size, filter_size, 3)),
            "c2b": nrm(next(ki), (1, hidden_size)),
        }
        params["layers"].append(lp)
    return params


def pack_decoder_params(raw, *, num_heads, total_key_depth, total_value_depth):
    """Host-side, once at init: split attention weights per head, pre-concatenate conv taps,
    and stack layers on a leading axis so the fused kernel indexes them statically."""
    dk = total_key_depth // num_heads
    dv = total_value_depth // num_heads

    def split_qkv(w, d):   # [heads*d, H] -> [heads, d, H]
        return w.reshape(num_heads, d, w.shape[-1])

    def split_out(w, d):   # [H, heads*d] -> [heads, H, d]  (Wo[:, h*d:(h+1)*d] per head)
        return jnp.transpose(w.reshape(w.shape[0], num_heads, d), (1, 0, 2))

    def cat_taps(w):       # [Cout, Cin, 3] -> [Cout, 3*Cin], tap order (t-2, t-1, t)
        return jnp.concatenate([w[:, :, 0], w[:, :, 1], w[:, :, 2]], axis=-1)

    ident = lambda a: a

    def stack(fn, name):
        return jnp.stack([fn(lp[name]) for lp in raw["layers"]], axis=0)

    packed = {k: raw[k] for k in ("wp", "timing", "subsequent", "final_g", "final_b")}
    packed.update({
        "ln1_g": stack(ident, "ln1_g"), "ln1_b": stack(ident, "ln1_b"),
        "wq1": stack(lambda w: split_qkv(w, dk), "wq1"),
        "wk1": stack(lambda w: split_qkv(w, dk), "wk1"),
        "wv1": stack(lambda w: split_qkv(w, dv), "wv1"),
        "wo1": stack(lambda w: split_out(w, dv), "wo1"),
        "ln2_g": stack(ident, "ln2_g"), "ln2_b": stack(ident, "ln2_b"),
        "wq2": stack(lambda w: split_qkv(w, dk), "wq2"),
        "wk2": stack(lambda w: split_qkv(w, dk), "wk2"),
        "wv2": stack(lambda w: split_qkv(w, dv), "wv2"),
        "wo2": stack(lambda w: split_out(w, dv), "wo2"),
        "ln3_g": stack(ident, "ln3_g"), "ln3_b": stack(ident, "ln3_b"),
        "c1w": stack(cat_taps, "c1w"), "c1b": stack(ident, "c1b"),
        "c2w": stack(cat_taps, "c2w"), "c2b": stack(ident, "c2b"),
    })
    return packed


if __name__ == "__main__":
    B, L_TRG, L_SRC = 2, 8, 16
    EMB, HID, HEADS = 32, 32, 4
    KD, VD, FILT = 32, 32, 64
    LAYERS, MAXLEN = 2, 16

    key = jax.random.PRNGKey(0)
    k_inp, k_enc, k_par = jax.random.split(key, 3)
    inputs = jax.random.normal(k_inp, (B, L_TRG, EMB), dtype=jnp.float32)
    encoder_output = jax.random.normal(k_enc, (B, L_SRC, HID), dtype=jnp.float32)

    # padding masks (1.0 == padded / masked), shapes match the PyTorch [B, 1, L] masks
    src_len = jnp.array([L_SRC, L_SRC - 4])
    trg_len = jnp.array([L_TRG, L_TRG - 2])
    mask_src = (jnp.arange(L_SRC)[None, :] >= src_len[:, None]).astype(jnp.float32)[:, None, :]
    mask_trg = (jnp.arange(L_TRG)[None, :] >= trg_len[:, None]).astype(jnp.float32)[:, None, :]

    raw = init_decoder_params(k_par, embedding_size=EMB, hidden_size=HID,
                              num_layers=LAYERS, total_key_depth=KD,
                              total_value_depth=VD, filter_size=FILT,
                              max_length=MAXLEN)
    params = pack_decoder_params(raw, num_heads=HEADS, total_key_depth=KD,
                                 total_value_depth=VD)

    y, attn_dist = decoder_forward(inputs, encoder_output, mask_src, mask_trg, params,
                                   num_heads=HEADS, total_key_depth=KD)
    jax.block_until_ready((y, attn_dist))
    assert y.shape == (B, L_TRG, HID) and y.dtype == jnp.float32
    assert attn_dist.shape == (B, L_TRG, L_SRC)
    print("KERNEL_OK")
</pallas_src>

<mosaic_0001>
module attributes {stable_mosaic.version = 11 : i64} {
  func.func @_decoder_kernel(%arg0: i32, %arg1: memref<1x8x32xf32, #tpu.memory_space<vmem>>, %arg2: memref<1x16x32xf32, #tpu.memory_space<vmem>>, %arg3: memref<1x8x8xf32, #tpu.memory_space<vmem>>, %arg4: memref<1x1x16xf32, #tpu.memory_space<vmem>>, %arg5: memref<1x8x32xf32, #tpu.memory_space<vmem>>, %arg6: memref<32x32xf32, #tpu.memory_space<vmem>>, %arg7: memref<2x1x32xf32, #tpu.memory_space<vmem>>, %arg8: memref<2x1x32xf32, #tpu.memory_space<vmem>>, %arg9: memref<2x4x8x32xf32, #tpu.memory_space<vmem>>, %arg10: memref<2x4x8x32xf32, #tpu.memory_space<vmem>>, %arg11: memref<2x4x8x32xf32, #tpu.memory_space<vmem>>, %arg12: memref<2x4x32x8xf32, #tpu.memory_space<vmem>>, %arg13: memref<2x1x32xf32, #tpu.memory_space<vmem>>, %arg14: memref<2x1x32xf32, #tpu.memory_space<vmem>>, %arg15: memref<2x4x8x32xf32, #tpu.memory_space<vmem>>, %arg16: memref<2x4x8x32xf32, #tpu.memory_space<vmem>>, %arg17: memref<2x4x8x32xf32, #tpu.memory_space<vmem>>, %arg18: memref<2x4x32x8xf32, #tpu.memory_space<vmem>>, %arg19: memref<2x1x32xf32, #tpu.memory_space<vmem>>, %arg20: memref<2x1x32xf32, #tpu.memory_space<vmem>>, %arg21: memref<2x64x96xf32, #tpu.memory_space<vmem>>, %arg22: memref<2x1x64xf32, #tpu.memory_space<vmem>>, %arg23: memref<2x32x192xf32, #tpu.memory_space<vmem>>, %arg24: memref<2x1x32xf32, #tpu.memory_space<vmem>>, %arg25: memref<1x32xf32, #tpu.memory_space<vmem>>, %arg26: memref<1x32xf32, #tpu.memory_space<vmem>>, %arg27: memref<1x8x32xf32, #tpu.memory_space<vmem>>, %arg28: memref<1x8x16xf32, #tpu.memory_space<vmem>>) attributes {dimension_semantics = [#tpu.dimension_semantics<parallel>], iteration_bounds = array<i64: 2>, scalar_prefetch = 0 : i64, scratch_operands = 0 : i64, tpu.core_type = #tpu.core_type<tc>, window_params = [{transform_indices = @transform_0, window_bounds = array<i64: 1, 8, 32>}, {transform_indices = @transform_1, window_bounds = array<i64: 1, 16, 32>}, {transform_indices = @transform_2, window_bounds = array<i64: 1, 8, 8>}, {transform_indices = @transform_3, window_bounds = array<i64: 1, 1, 16>}, {pipeline_mode = #tpu.pipeline_mode<synchronous>, transform_indices = @transform_4, window_bounds = array<i64: 1, 8, 32>}, {pipeline_mode = #tpu.pipeline_mode<synchronous>, transform_indices = @transform_5, window_bounds = array<i64: 32, 32>}, {pipeline_mode = #tpu.pipeline_mode<synchronous>, transform_indices = @transform_6, window_bounds = array<i64: 2, 1, 32>}, {pipeline_mode = #tpu.pipeline_mode<synchronous>, transform_indices = @transform_7, window_bounds = array<i64: 2, 1, 32>}, {pipeline_mode = #tpu.pipeline_mode<synchronous>, transform_indices = @transform_8, window_bounds = array<i64: 2, 4, 8, 32>}, {pipeline_mode = #tpu.pipeline_mode<synchronous>, transform_indices = @transform_9, window_bounds = array<i64: 2, 4, 8, 32>}, {pipeline_mode = #tpu.pipeline_mode<synchronous>, transform_indices = @transform_10, window_bounds = array<i64: 2, 4, 8, 32>}, {pipeline_mode = #tpu.pipeline_mode<synchronous>, transform_indices = @transform_11, window_bounds = array<i64: 2, 4, 32, 8>}, {pipeline_mode = #tpu.pipeline_mode<synchronous>, transform_indices = @transform_12, window_bounds = array<i64: 2, 1, 32>}, {pipeline_mode = #tpu.pipeline_mode<synchronous>, transform_indices = @transform_13, window_bounds = array<i64: 2, 1, 32>}, {pipeline_mode = #tpu.pipeline_mode<synchronous>, transform_indices = @transform_14, window_bounds = array<i64: 2, 4, 8, 32>}, {pipeline_mode = #tpu.pipeline_mode<synchronous>, transform_indices = @transform_15, window_bounds = array<i64: 2, 4, 8, 32>}, {pipeline_mode = #tpu.pipeline_mode<synchronous>, transform_indices = @transform_16, window_bounds = array<i64: 2, 4, 8, 32>}, {pipeline_mode = #tpu.pipeline_mode<synchronous>, transform_indices = @transform_17, window_bounds = array<i64: 2, 4, 32, 8>}, {pipeline_mode = #tpu.pipeline_mode<synchronous>, transform_indices = @transform_18, window_bounds = array<i64: 2, 1, 32>}, {pipeline_mode = #tpu.pipeline_mode<synchronous>, transform_indices = @transform_19, window_bounds = array<i64: 2, 1, 32>}, {pipeline_mode = #tpu.pipeline_mode<synchronous>, transform_indices = @transform_20, window_bounds = array<i64: 2, 64, 96>}, {pipeline_mode = #tpu.pipeline_mode<synchronous>, transform_indices = @transform_21, window_bounds = array<i64: 2, 1, 64>}, {pipeline_mode = #tpu.pipeline_mode<synchronous>, transform_indices = @transform_22, window_bounds = array<i64: 2, 32, 192>}, {pipeline_mode = #tpu.pipeline_mode<synchronous>, transform_indices = @transform_23, window_bounds = array<i64: 2, 1, 32>}, {pipeline_mode = #tpu.pipeline_mode<synchronous>, transform_indices = @transform_24, window_bounds = array<i64: 1, 32>}, {pipeline_mode = #tpu.pipeline_mode<synchronous>, transform_indices = @transform_25, window_bounds = array<i64: 1, 32>}, {transform_indices = @transform_26, window_bounds = array<i64: 1, 8, 32>}, {transform_indices = @transform_27, window_bounds = array<i64: 1, 8, 16>}]} {
    %c0 = arith.constant 0 : index
    %c0_0 = arith.constant 0 : index
    %c0_1 = arith.constant 0 : index
    %0 = vector.load %arg1[%c0, %c0_0, %c0_1] : memref<1x8x32xf32, #tpu.memory_space<vmem>>, vector<1x8x32xf32>
    %1 = vector.shape_cast %0 : vector<1x8x32xf32> to vector<8x32xf32>
    %c0_2 = arith.constant 0 : index
    %c0_3 = arith.constant 0 : index
    %2 = vector.load %arg6[%c0_2, %c0_3] : memref<32x32xf32, #tpu.memory_space<vmem>>, vector<32x32xf32>
    %cst = arith.constant dense<0.000000e+00> : vector<8x32xf32>
    %3 = tpu.matmul %1, %2, %cst {dimension_numbers = #tpu.dot_dimension_numbers<[1], [1], [0], [0], [0, 0, 1, 0], [], []>} : vector<8x32xf32>, vector<32x32xf32>, vector<8x32xf32> -> vector<8x32xf32>
    %c0_4 = arith.constant 0 : index
    %c0_5 = arith.constant 0 : index
    %c0_6 = arith.constant 0 : index
    %4 = vector.load %arg5[%c0_4, %c0_5, %c0_6] : memref<1x8x32xf32, #tpu.memory_space<vmem>>, vector<1x8x32xf32>
    %5 = vector.shape_cast %4 : vector<1x8x32xf32> to vector<8x32xf32>
    %6 = arith.addf %3, %5 : vector<8x32xf32>
    %c0_7 = arith.constant 0 : index
    %c0_8 = arith.constant 0 : index
    %c0_9 = arith.constant 0 : index
    %7 = vector.load %arg2[%c0_7, %c0_8, %c0_9] : memref<1x16x32xf32, #tpu.memory_space<vmem>>, vector<1x16x32xf32>
    %8 = vector.shape_cast %7 : vector<1x16x32xf32> to vector<16x32xf32>
    %c0_10 = arith.constant 0 : index
    %c0_11 = arith.constant 0 : index
    %c0_12 = arith.constant 0 : index
    %9 = vector.load %arg3[%c0_10, %c0_11, %c0_12] : memref<1x8x8xf32, #tpu.memory_space<vmem>>, vector<1x8x8xf32>
    %10 = vector.shape_cast %9 : vector<1x8x8xf32> to vector<8x8xf32>
    %cst_13 = arith.constant 5.000000e-01 : f32
    %11 = vector.broadcast %cst_13 : f32 to vector<8x8xf32>
    %12 = arith.cmpf ogt, %10, %11 : vector<8x8xf32>
    %c0_14 = arith.constant 0 : index
    %c0_15 = arith.constant 0 : index
    %c0_16 = arith.constant 0 : index
    %13 = vector.load %arg4[%c0_14, %c0_15, %c0_16] : memref<1x1x16xf32, #tpu.memory_space<vmem>>, vector<1x1x16xf32>
    %14 = vector.shape_cast %13 : vector<1x1x16xf32> to vector<1x16xf32>
    %cst_17 = arith.constant 5.000000e-01 : f32
    %15 = vector.broadcast %cst_17 : f32 to vector<1x16xf32>
    %16 = arith.cmpf ogt, %14, %15 : vector<1x16xf32>
    %c0_18 = arith.constant 0 : index
    %c0_19 = arith.constant 0 : index
    %c0_20 = arith.constant 0 : index
    %17 = vector.load %arg7[%c0_18, %c0_19, %c0_20] : memref<2x1x32xf32, #tpu.memory_space<vmem>>, vector<1x1x32xf32>
    %18 = vector.shape_cast %17 : vector<1x1x32xf32> to vector<1x32xf32>
    %c0_21 = arith.constant 0 : index
    %c0_22 = arith.constant 0 : index
    %c0_23 = arith.constant 0 : index
    %19 = vector.load %arg8[%c0_21, %c0_22, %c0_23] : memref<2x1x32xf32, #tpu.memory_space<vmem>>, vector<1x1x32xf32>
    %20 = vector.shape_cast %19 : vector<1x1x32xf32> to vector<1x32xf32>
    %cst_24 = arith.constant dense<0.000000e+00> : vector<8xf32>
    %21 = vector.multi_reduction <add>, %6, %cst_24 [1] : vector<8x32xf32> to vector<8xf32>
    %22 = vector.shape_cast %21 : vector<8xf32> to vector<8x1xf32>
    %23 = arith.mulf %6, %6 : vector<8x32xf32>
    %cst_25 = arith.constant dense<0.000000e+00> : vector<8xf32>
    %24 = vector.multi_reduction <add>, %23, %cst_25 [1] : vector<8x32xf32> to vector<8xf32>
    %25 = vector.shape_cast %24 : vector<8xf32> to vector<8x1xf32>
    %cst_26 = arith.constant 3.125000e-02 : f32
    %26 = vector.broadcast %cst_26 : f32 to vector<8x1xf32>
    %27 = arith.mulf %22, %26 : vector<8x1xf32>
    %28 = arith.mulf %22, %27 : vector<8x1xf32>
    %29 = arith.subf %25, %28 : vector<8x1xf32>
    %cst_27 = arith.constant 0.000000e+00 : f32
    %30 = vector.broadcast %cst_27 : f32 to vector<8x1xf32>
    %31 = arith.maximumf %29, %30 : vector<8x1xf32>
    %cst_28 = arith.constant 0.0322580636 : f32
    %32 = vector.broadcast %cst_28 : f32 to vector<8x1xf32>
    %33 = arith.mulf %31, %32 : vector<8x1xf32>
    %34 = math.sqrt %33 : vector<8x1xf32>
    %35 = vector.broadcast %27 : vector<8x1xf32> to vector<8x32xf32>
    %36 = arith.subf %6, %35 : vector<8x32xf32>
    %37 = vector.broadcast %18 : vector<1x32xf32> to vector<8x32xf32>
    %38 = arith.mulf %37, %36 : vector<8x32xf32>
    %cst_29 = arith.constant 9.99999997E-7 : f32
    %39 = vector.broadcast %cst_29 : f32 to vector<8x1xf32>
    %40 = arith.addf %34, %39 : vector<8x1xf32>
    %41 = vector.broadcast %40 : vector<8x1xf32> to vector<8x32xf32>
    %42 = arith.divf %38, %41 : vector<8x32xf32>
    %43 = vector.broadcast %20 : vector<1x32xf32> to vector<8x32xf32>
    %44 = arith.addf %42, %43 : vector<8x32xf32>
    %cst_30 = arith.constant 0.000000e+00 : f32
    %45 = vector.broadcast %cst_30 : f32 to vector<8x32xf32>
    %c0_31 = arith.constant 0 : index
    %c0_32 = arith.constant 0 : index
    %c0_33 = arith.constant 0 : index
    %c0_34 = arith.constant 0 : index
    %46 = vector.load %arg9[%c0_31, %c0_32, %c0_33, %c0_34] : memref<2x4x8x32xf32, #tpu.memory_space<vmem>>, vector<1x1x8x32xf32>
    %47 = vector.shape_cast %46 : vector<1x1x8x32xf32> to vector<8x32xf32>
    %cst_35 = arith.constant dense<0.000000e+00> : vector<8x8xf32>
    %48 = tpu.matmul %44, %47, %cst_35 {dimension_numbers = #tpu.dot_dimension_numbers<[1], [1], [0], [0], [0, 0, 1, 0], [], []>} : vector<8x32xf32>, vector<8x32xf32>, vector<8x8xf32> -> vector<8x8xf32>
    %cst_36 = arith.constant 0.353553385 : f32
    %49 = vector.broadcast %cst_36 : f32 to vector<8x8xf32>
    %50 = arith.mulf %48, %49 : vector<8x8xf32>
    %c0_37 = arith.constant 0 : index
    %c0_38 = arith.constant 0 : index
    %c0_39 = arith.constant 0 : index
    %c0_40 = arith.constant 0 : index
    %51 = vector.load %arg10[%c0_37, %c0_38, %c0_39, %c0_40] : memref<2x4x8x32xf32, #tpu.memory_space<vmem>>, vector<1x1x8x32xf32>
    %52 = vector.shape_cast %51 : vector<1x1x8x32xf32> to vector<8x32xf32>
    %cst_41 = arith.constant dense<0.000000e+00> : vector<8x8xf32>
    %53 = tpu.matmul %44, %52, %cst_41 {dimension_numbers = #tpu.dot_dimension_numbers<[1], [1], [0], [0], [0, 0, 1, 0], [], []>} : vector<8x32xf32>, vector<8x32xf32>, vector<8x8xf32> -> vector<8x8xf32>
    %c0_42 = arith.constant 0 : index
    %c0_43 = arith.constant 0 : index
    %c0_44 = arith.constant 0 : index
    %c0_45 = arith.constant 0 : index
    %54 = vector.load %arg11[%c0_42, %c0_43, %c0_44, %c0_45] : memref<2x4x8x32xf32, #tpu.memory_space<vmem>>, vector<1x1x8x32xf32>
    %55 = vector.shape_cast %54 : vector<1x1x8x32xf32> to vector<8x32xf32>
    %cst_46 = arith.constant dense<0.000000e+00> : vector<8x8xf32>
    %56 = tpu.matmul %44, %55, %cst_46 {dimension_numbers = #tpu.dot_dimension_numbers<[1], [1], [0], [0], [0, 0, 1, 0], [], []>} : vector<8x32xf32>, vector<8x32xf32>, vector<8x8xf32> -> vector<8x8xf32>
    %cst_47 = arith.constant dense<0.000000e+00> : vector<8x8xf32>
    %57 = tpu.matmul %50, %53, %cst_47 {dimension_numbers = #tpu.dot_dimension_numbers<[1], [1], [0], [0], [0, 0, 1, 0], [], []>} : vector<8x8xf32>, vector<8x8xf32>, vector<8x8xf32> -> vector<8x8xf32>
    %cst_48 = arith.constant -9.99999984E+17 : f32
    %58 = vector.broadcast %cst_48 : f32 to vector<8x8xf32>
    %59 = arith.select %12, %58, %57 : vector<8x8xi1>, vector<8x8xf32>
    %cst_49 = arith.constant dense<0xFF800000> : vector<8xf32>
    %60 = vector.multi_reduction <maximumf>, %59, %cst_49 [1] : vector<8x8xf32> to vector<8xf32>
    %cst_50 = arith.constant 0xFF800000 : f32
    %61 = vector.broadcast %cst_50 : f32 to vector<8xf32>
    %62 = arith.maximumf %61, %60 : vector<8xf32>
    %63 = vector.shape_cast %62 : vector<8xf32> to vector<8x1xf32>
    %64 = vector.broadcast %63 : vector<8x1xf32> to vector<8x8xf32>
    %65 = arith.subf %59, %64 : vector<8x8xf32>
    %66 = math.exp %65 : vector<8x8xf32>
    %cst_51 = arith.constant dense<0.000000e+00> : vector<8xf32>
    %67 = vector.multi_reduction <add>, %66, %cst_51 [1] : vector<8x8xf32> to vector<8xf32>
    %68 = vector.shape_cast %67 : vector<8xf32> to vector<8x1xf32>
    %69 = vector.broadcast %68 : vector<8x1xf32> to vector<8x8xf32>
    %70 = arith.divf %66, %69 : vector<8x8xf32>
    %cst_52 = arith.constant dense<0.000000e+00> : vector<8x8xf32>
    %71 = tpu.matmul %70, %56, %cst_52 {dimension_numbers = #tpu.dot_dimension_numbers<[1], [0], [0], [1], [0, 0, 1, 1], [], []>} : vector<8x8xf32>, vector<8x8xf32>, vector<8x8xf32> -> vector<8x8xf32>
    %c0_53 = arith.constant 0 : index
    %c0_54 = arith.constant 0 : index
    %c0_55 = arith.constant 0 : index
    %c0_56 = arith.constant 0 : index
    %72 = vector.load %arg12[%c0_53, %c0_54, %c0_55, %c0_56] : memref<2x4x32x8xf32, #tpu.memory_space<vmem>>, vector<1x1x32x8xf32>
    %73 = vector.shape_cast %72 : vector<1x1x32x8xf32> to vector<32x8xf32>
    %cst_57 = arith.constant dense<0.000000e+00> : vector<8x32xf32>
    %74 = tpu.matmul %71, %73, %cst_57 {dimension_numbers = #tpu.dot_dimension_numbers<[1], [1], [0], [0], [0, 0, 1, 0], [], []>} : vector<8x8xf32>, vector<32x8xf32>, vector<8x32xf32> -> vector<8x32xf32>
    %75 = arith.addf %45, %74 : vector<8x32xf32>
    %c0_58 = arith.constant 0 : index
    %c1 = arith.constant 1 : index
    %c0_59 = arith.constant 0 : index
    %c0_60 = arith.constant 0 : index
    %76 = vector.load %arg9[%c0_58, %c1, %c0_59, %c0_60] : memref<2x4x8x32xf32, #tpu.memory_space<vmem>>, vector<1x1x8x32xf32>
    %77 = vector.shape_cast %76 : vector<1x1x8x32xf32> to vector<8x32xf32>
    %cst_61 = arith.constant dense<0.000000e+00> : vector<8x8xf32>
    %78 = tpu.matmul %44, %77, %cst_61 {dimension_numbers = #tpu.dot_dimension_numbers<[1], [1], [0], [0], [0, 0, 1, 0], [], []>} : vector<8x32xf32>, vector<8x32xf32>, vector<8x8xf32> -> vector<8x8xf32>
    %cst_62 = arith.constant 0.353553385 : f32
    %79 = vector.broadcast %cst_62 : f32 to vector<8x8xf32>
    %80 = arith.mulf %78, %79 : vector<8x8xf32>
    %c0_63 = arith.constant 0 : index
    %c1_64 = arith.constant 1 : index
    %c0_65 = arith.constant 0 : index
    %c0_66 = arith.constant 0 : index
    %81 = vector.load %arg10[%c0_63, %c1_64, %c0_65, %c0_66] : memref<2x4x8x32xf32, #tpu.memory_space<vmem>>, vector<1x1x8x32xf32>
    %82 = vector.shape_cast %81 : vector<1x1x8x32xf32> to vector<8x32xf32>
    %cst_67 = arith.constant dense<0.000000e+00> : vector<8x8xf32>
    %83 = tpu.matmul %44, %82, %cst_67 {dimension_numbers = #tpu.dot_dimension_numbers<[1], [1], [0], [0], [0, 0, 1, 0], [], []>} : vector<8x32xf32>, vector<8x32xf32>, vector<8x8xf32> -> vector<8x8xf32>
    %c0_68 = arith.constant 0 : index
    %c1_69 = arith.constant 1 : index
    %c0_70 = arith.constant 0 : index
    %c0_71 = arith.constant 0 : index
    %84 = vector.load %arg11[%c0_68, %c1_69, %c0_70, %c0_71] : memref<2x4x8x32xf32, #tpu.memory_space<vmem>>, vector<1x1x8x32xf32>
    %85 = vector.shape_cast %84 : vector<1x1x8x32xf32> to vector<8x32xf32>
    %cst_72 = arith.constant dense<0.000000e+00> : vector<8x8xf32>
    %86 = tpu.matmul %44, %85, %cst_72 {dimension_numbers = #tpu.dot_dimension_numbers<[1], [1], [0], [0], [0, 0, 1, 0], [], []>} : vector<8x32xf32>, vector<8x32xf32>, vector<8x8xf32> -> vector<8x8xf32>
    %cst_73 = arith.constant dense<0.000000e+00> : vector<8x8xf32>
    %87 = tpu.matmul %80, %83, %cst_73 {dimension_numbers = #tpu.dot_dimension_numbers<[1], [1], [0], [0], [0, 0, 1, 0], [], []>} : vector<8x8xf32>, vector<8x8xf32>, vector<8x8xf32> -> vector<8x8xf32>
    %cst_74 = arith.constant -9.99999984E+17 : f32
    %88 = vector.broadcast %cst_74 : f32 to vector<8x8xf32>
    %89 = arith.select %12, %88, %87 : vector<8x8xi1>, vector<8x8xf32>
    %cst_75 = arith.constant dense<0xFF800000> : vector<8xf32>
    %90 = vector.multi_reduction <maximumf>, %89, %cst_75 [1] : vector<8x8xf32> to vector<8xf32>
    %cst_76 = arith.constant 0xFF800000 : f32
    %91 = vector.broadcast %cst_76 : f32 to vector<8xf32>
    %92 = arith.maximumf %91, %90 : vector<8xf32>
    %93 = vector.shape_cast %92 : vector<8xf32> to vector<8x1xf32>
    %94 = vector.broadcast %93 : vector<8x1xf32> to vector<8x8xf32>
    %95 = arith.subf %89, %94 : vector<8x8xf32>
    %96 = math.exp %95 : vector<8x8xf32>
    %cst_77 = arith.constant dense<0.000000e+00> : vector<8xf32>
    %97 = vector.multi_reduction <add>, %96, %cst_77 [1] : vector<8x8xf32> to vector<8xf32>
    %98 = vector.shape_cast %97 : vector<8xf32> to vector<8x1xf32>
    %99 = vector.broadcast %98 : vector<8x1xf32> to vector<8x8xf32>
    %100 = arith.divf %96, %99 : vector<8x8xf32>
    %cst_78 = arith.constant dense<0.000000e+00> : vector<8x8xf32>
    %101 = tpu.matmul %100, %86, %cst_78 {dimension_numbers = #tpu.dot_dimension_numbers<[1], [0], [0], [1], [0, 0, 1, 1], [], []>} : vector<8x8xf32>, vector<8x8xf32>, vector<8x8xf32> -> vector<8x8xf32>
    %c0_79 = arith.constant 0 : index
    %c1_80 = arith.constant 1 : index
    %c0_81 = arith.constant 0 : index
    %c0_82 = arith.constant 0 : index
    %102 = vector.load %arg12[%c0_79, %c1_80, %c0_81, %c0_82] : memref<2x4x32x8xf32, #tpu.memory_space<vmem>>, vector<1x1x32x8xf32>
    %103 = vector.shape_cast %102 : vector<1x1x32x8xf32> to vector<32x8xf32>
    %cst_83 = arith.constant dense<0.000000e+00> : vector<8x32xf32>
    %104 = tpu.matmul %101, %103, %cst_83 {dimension_numbers = #tpu.dot_dimension_numbers<[1], [1], [0], [0], [0, 0, 1, 0], [], []>} : vector<8x8xf32>, vector<32x8xf32>, vector<8x32xf32> -> vector<8x32xf32>
    %105 = arith.addf %75, %104 : vector<8x32xf32>
    %c0_84 = arith.constant 0 : index
    %c2 = arith.constant 2 : index
    %c0_85 = arith.constant 0 : index
    %c0_86 = arith.constant 0 : index
    %106 = vector.load %arg9[%c0_84, %c2, %c0_85, %c0_86] : memref<2x4x8x32xf32, #tpu.memory_space<vmem>>, vector<1x1x8x32xf32>
    %107 = vector.shape_cast %106 : vector<1x1x8x32xf32> to vector<8x32xf32>
    %cst_87 = arith.constant dense<0.000000e+00> : vector<8x8xf32>
    %108 = tpu.matmul %44, %107, %cst_87 {dimension_numbers = #tpu.dot_dimension_numbers<[1], [1], [0], [0], [0, 0, 1, 0], [], []>} : vector<8x32xf32>, vector<8x32xf32>, vector<8x8xf32> -> vector<8x8xf32>
    %cst_88 = arith.constant 0.353553385 : f32
    %109 = vector.broadcast %cst_88 : f32 to vector<8x8xf32>
    %110 = arith.mulf %108, %109 : vector<8x8xf32>
    %c0_89 = arith.constant 0 : index
    %c2_90 = arith.constant 2 : index
    %c0_91 = arith.constant 0 : index
    %c0_92 = arith.constant 0 : index
    %111 = vector.load %arg10[%c0_89, %c2_90, %c0_91, %c0_92] : memref<2x4x8x32xf32, #tpu.memory_space<vmem>>, vector<1x1x8x32xf32>
    %112 = vector.shape_cast %111 : vector<1x1x8x32xf32> to vector<8x32xf32>
    %cst_93 = arith.constant dense<0.000000e+00> : vector<8x8xf32>
    %113 = tpu.matmul %44, %112, %cst_93 {dimension_numbers = #tpu.dot_dimension_numbers<[1], [1], [0], [0], [0, 0, 1, 0], [], []>} : vector<8x32xf32>, vector<8x32xf32>, vector<8x8xf32> -> vector<8x8xf32>
    %c0_94 = arith.constant 0 : index
    %c2_95 = arith.constant 2 : index
    %c0_96 = arith.constant 0 : index
    %c0_97 = arith.constant 0 : index
    %114 = vector.load %arg11[%c0_94, %c2_95, %c0_96, %c0_97] : memref<2x4x8x32xf32, #tpu.memory_space<vmem>>, vector<1x1x8x32xf32>
    %115 = vector.shape_cast %114 : vector<1x1x8x32xf32> to vector<8x32xf32>
    %cst_98 = arith.constant dense<0.000000e+00> : vector<8x8xf32>
    %116 = tpu.matmul %44, %115, %cst_98 {dimension_numbers = #tpu.dot_dimension_numbers<[1], [1], [0], [0], [0, 0, 1, 0], [], []>} : vector<8x32xf32>, vector<8x32xf32>, vector<8x8xf32> -> vector<8x8xf32>
    %cst_99 = arith.constant dense<0.000000e+00> : vector<8x8xf32>
    %117 = tpu.matmul %110, %113, %cst_99 {dimension_numbers = #tpu.dot_dimension_numbers<[1], [1], [0], [0], [0, 0, 1, 0], [], []>} : vector<8x8xf32>, vector<8x8xf32>, vector<8x8xf32> -> vector<8x8xf32>
    %cst_100 = arith.constant -9.99999984E+17 : f32
    %118 = vector.broadcast %cst_100 : f32 to vector<8x8xf32>
    %119 = arith.select %12, %118, %117 : vector<8x8xi1>, vector<8x8xf32>
    %cst_101 = arith.constant dense<0xFF800000> : vector<8xf32>
    %120 = vector.multi_reduction <maximumf>, %119, %cst_101 [1] : vector<8x8xf32> to vector<8xf32>
    %cst_102 = arith.constant 0xFF800000 : f32
    %121 = vector.broadcast %cst_102 : f32 to vector<8xf32>
    %122 = arith.maximumf %121, %120 : vector<8xf32>
    %123 = vector.shape_cast %122 : vector<8xf32> to vector<8x1xf32>
    %124 = vector.broadcast %123 : vector<8x1xf32> to vector<8x8xf32>
    %125 = arith.subf %119, %124 : vector<8x8xf32>
    %126 = math.exp %125 : vector<8x8xf32>
    %cst_103 = arith.constant dense<0.000000e+00> : vector<8xf32>
    %127 = vector.multi_reduction <add>, %126, %cst_103 [1] : vector<8x8xf32> to vector<8xf32>
    %128 = vector.shape_cast %127 : vector<8xf32> to vector<8x1xf32>
    %129 = vector.broadcast %128 : vector<8x1xf32> to vector<8x8xf32>
    %130 = arith.divf %126, %129 : vector<8x8xf32>
    %cst_104 = arith.constant dense<0.000000e+00> : vector<8x8xf32>
    %131 = tpu.matmul %130, %116, %cst_104 {dimension_numbers = #tpu.dot_dimension_numbers<[1], [0], [0], [1], [0, 0, 1, 1], [], []>} : vector<8x8xf32>, vector<8x8xf32>, vector<8x8xf32> -> vector<8x8xf32>
    %c0_105 = arith.constant 0 : index
    %c2_106 = arith.constant 2 : index
    %c0_107 = arith.constant 0 : index
    %c0_108 = arith.constant 0 : index
    %132 = vector.load %arg12[%c0_105, %c2_106, %c0_107, %c0_108] : memref<2x4x32x8xf32, #tpu.memory_space<vmem>>, vector<1x1x32x8xf32>
    %133 = vector.shape_cast %132 : vector<1x1x32x8xf32> to vector<32x8xf32>
    %cst_109 = arith.constant dense<0.000000e+00> : vector<8x32xf32>
    %134 = tpu.matmul %131, %133, %cst_109 {dimension_numbers = #tpu.dot_dimension_numbers<[1], [1], [0], [0], [0, 0, 1, 0], [], []>} : vector<8x8xf32>, vector<32x8xf32>, vector<8x32xf32> -> vector<8x32xf32>
    %135 = arith.addf %105, %134 : vector<8x32xf32>
    %c0_110 = arith.constant 0 : index
    %c3 = arith.constant 3 : index
    %c0_111 = arith.constant 0 : index
    %c0_112 = arith.constant 0 : index
    %136 = vector.load %arg9[%c0_110, %c3, %c0_111, %c0_112] : memref<2x4x8x32xf32, #tpu.memory_space<vmem>>, vector<1x1x8x32xf32>
    %137 = vector.shape_cast %136 : vector<1x1x8x32xf32> to vector<8x32xf32>
    %cst_113 = arith.constant dense<0.000000e+00> : vector<8x8xf32>
    %138 = tpu.matmul %44, %137, %cst_113 {dimension_numbers = #tpu.dot_dimension_numbers<[1], [1], [0], [0], [0, 0, 1, 0], [], []>} : vector<8x32xf32>, vector<8x32xf32>, vector<8x8xf32> -> vector<8x8xf32>
    %cst_114 = arith.constant 0.353553385 : f32
    %139 = vector.broadcast %cst_114 : f32 to vector<8x8xf32>
    %140 = arith.mulf %138, %139 : vector<8x8xf32>
    %c0_115 = arith.constant 0 : index
    %c3_116 = arith.constant 3 : index
    %c0_117 = arith.constant 0 : index
    %c0_118 = arith.constant 0 : index
    %141 = vector.load %arg10[%c0_115, %c3_116, %c0_117, %c0_118] : memref<2x4x8x32xf32, #tpu.memory_space<vmem>>, vector<1x1x8x32xf32>
    %142 = vector.shape_cast %141 : vector<1x1x8x32xf32> to vector<8x32xf32>
    %cst_119 = arith.constant dense<0.000000e+00> : vector<8x8xf32>
    %143 = tpu.matmul %44, %142, %cst_119 {dimension_numbers = #tpu.dot_dimension_numbers<[1], [1], [0], [0], [0, 0, 1, 0], [], []>} : vector<8x32xf32>, vector<8x32xf32>, vector<8x8xf32> -> vector<8x8xf32>
    %c0_120 = arith.constant 0 : index
    %c3_121 = arith.constant 3 : index
    %c0_122 = arith.constant 0 : index
    %c0_123 = arith.constant 0 : index
    %144 = vector.load %arg11[%c0_120, %c3_121, %c0_122, %c0_123] : memref<2x4x8x32xf32, #tpu.memory_space<vmem>>, vector<1x1x8x32xf32>
    %145 = vector.shape_cast %144 : vector<1x1x8x32xf32> to vector<8x32xf32>
    %cst_124 = arith.constant dense<0.000000e+00> : vector<8x8xf32>
    %146 = tpu.matmul %44, %145, %cst_124 {dimension_numbers = #tpu.dot_dimension_numbers<[1], [1], [0], [0], [0, 0, 1, 0], [], []>} : vector<8x32xf32>, vector<8x32xf32>, vector<8x8xf32> -> vector<8x8xf32>
    %cst_125 = arith.constant dense<0.000000e+00> : vector<8x8xf32>
    %147 = tpu.matmul %140, %143, %cst_125 {dimension_numbers = #tpu.dot_dimension_numbers<[1], [1], [0], [0], [0, 0, 1, 0], [], []>} : vector<8x8xf32>, vector<8x8xf32>, vector<8x8xf32> -> vector<8x8xf32>
    %cst_126 = arith.constant -9.99999984E+17 : f32
    %148 = vector.broadcast %cst_126 : f32 to vector<8x8xf32>
    %149 = arith.select %12, %148, %147 : vector<8x8xi1>, vector<8x8xf32>
    %cst_127 = arith.constant dense<0xFF800000> : vector<8xf32>
    %150 = vector.multi_reduction <maximumf>, %149, %cst_127 [1] : vector<8x8xf32> to vector<8xf32>
    %cst_128 = arith.constant 0xFF800000 : f32
    %151 = vector.broadcast %cst_128 : f32 to vector<8xf32>
    %152 = arith.maximumf %151, %150 : vector<8xf32>
    %153 = vector.shape_cast %152 : vector<8xf32> to vector<8x1xf32>
    %154 = vector.broadcast %153 : vector<8x1xf32> to vector<8x8xf32>
    %155 = arith.subf %149, %154 : vector<8x8xf32>
    %156 = math.exp %155 : vector<8x8xf32>
    %cst_129 = arith.constant dense<0.000000e+00> : vector<8xf32>
    %157 = vector.multi_reduction <add>, %156, %cst_129 [1] : vector<8x8xf32> to vector<8xf32>
    %158 = vector.shape_cast %157 : vector<8xf32> to vector<8x1xf32>
    %159 = vector.broadcast %158 : vector<8x1xf32> to vector<8x8xf32>
    %160 = arith.divf %156, %159 : vector<8x8xf32>
    %cst_130 = arith.constant dense<0.000000e+00> : vector<8x8xf32>
    %161 = tpu.matmul %160, %146, %cst_130 {dimension_numbers = #tpu.dot_dimension_numbers<[1], [0], [0], [1], [0, 0, 1, 1], [], []>} : vector<8x8xf32>, vector<8x8xf32>, vector<8x8xf32> -> vector<8x8xf32>
    %c0_131 = arith.constant 0 : index
    %c3_132 = arith.constant 3 : index
    %c0_133 = arith.constant 0 : index
    %c0_134 = arith.constant 0 : index
    %162 = vector.load %arg12[%c0_131, %c3_132, %c0_133, %c0_134] : memref<2x4x32x8xf32, #tpu.memory_space<vmem>>, vector<1x1x32x8xf32>
    %163 = vector.shape_cast %162 : vector<1x1x32x8xf32> to vector<32x8xf32>
    %cst_135 = arith.constant dense<0.000000e+00> : vector<8x32xf32>
    %164 = tpu.matmul %161, %163, %cst_135 {dimension_numbers = #tpu.dot_dimension_numbers<[1], [1], [0], [0], [0, 0, 1, 0], [], []>} : vector<8x8xf32>, vector<32x8xf32>, vector<8x32xf32> -> vector<8x32xf32>
    %165 = arith.addf %135, %164 : vector<8x32xf32>
    %166 = arith.addf %6, %165 : vector<8x32xf32>
    %c0_136 = arith.constant 0 : index
    %c0_137 = arith.constant 0 : index
    %c0_138 = arith.constant 0 : index
    %167 = vector.load %arg13[%c0_136, %c0_137, %c0_138] : memref<2x1x32xf32, #tpu.memory_space<vmem>>, vector<1x1x32xf32>
    %168 = vector.shape_cast %167 : vector<1x1x32xf32> to vector<1x32xf32>
    %c0_139 = arith.constant 0 : index
    %c0_140 = arith.constant 0 : index
    %c0_141 = arith.constant 0 : index
    %169 = vector.load %arg14[%c0_139, %c0_140, %c0_141] : memref<2x1x32xf32, #tpu.memory_space<vmem>>, vector<1x1x32xf32>
    %170 = vector.shape_cast %169 : vector<1x1x32xf32> to vector<1x32xf32>
    %cst_142 = arith.constant dense<0.000000e+00> : vector<8xf32>
    %171 = vector.multi_reduction <add>, %166, %cst_142 [1] : vector<8x32xf32> to vector<8xf32>
    %172 = vector.shape_cast %171 : vector<8xf32> to vector<8x1xf32>
    %173 = arith.mulf %166, %166 : vector<8x32xf32>
    %cst_143 = arith.constant dense<0.000000e+00> : vector<8xf32>
    %174 = vector.multi_reduction <add>, %173, %cst_143 [1] : vector<8x32xf32> to vector<8xf32>
    %175 = vector.shape_cast %174 : vector<8xf32> to vector<8x1xf32>
    %cst_144 = arith.constant 3.125000e-02 : f32
    %176 = vector.broadcast %cst_144 : f32 to vector<8x1xf32>
    %177 = arith.mulf %172, %176 : vector<8x1xf32>
    %178 = arith.mulf %172, %177 : vector<8x1xf32>
    %179 = arith.subf %175, %178 : vector<8x1xf32>
    %cst_145 = arith.constant 0.000000e+00 : f32
    %180 = vector.broadcast %cst_145 : f32 to vector<8x1xf32>
    %181 = arith.maximumf %179, %180 : vector<8x1xf32>
    %cst_146 = arith.constant 0.0322580636 : f32
    %182 = vector.broadcast %cst_146 : f32 to vector<8x1xf32>
    %183 = arith.mulf %181, %182 : vector<8x1xf32>
    %184 = math.sqrt %183 : vector<8x1xf32>
    %185 = vector.broadcast %177 : vector<8x1xf32> to vector<8x32xf32>
    %186 = arith.subf %166, %185 : vector<8x32xf32>
    %187 = vector.broadcast %168 : vector<1x32xf32> to vector<8x32xf32>
    %188 = arith.mulf %187, %186 : vector<8x32xf32>
    %cst_147 = arith.constant 9.99999997E-7 : f32
    %189 = vector.broadcast %cst_147 : f32 to vector<8x1xf32>
    %190 = arith.addf %184, %189 : vector<8x1xf32>
    %191 = vector.broadcast %190 : vector<8x1xf32> to vector<8x32xf32>
    %192 = arith.divf %188, %191 : vector<8x32xf32>
    %193 = vector.broadcast %170 : vector<1x32xf32> to vector<8x32xf32>
    %194 = arith.addf %192, %193 : vector<8x32xf32>
    %cst_148 = arith.constant 0.000000e+00 : f32
    %195 = vector.broadcast %cst_148 : f32 to vector<8x32xf32>
    %c0_149 = arith.constant 0 : index
    %c0_150 = arith.constant 0 : index
    %c0_151 = arith.constant 0 : index
    %c0_152 = arith.constant 0 : index
    %196 = vector.load %arg15[%c0_149, %c0_150, %c0_151, %c0_152] : memref<2x4x8x32xf32, #tpu.memory_space<vmem>>, vector<1x1x8x32xf32>
    %197 = vector.shape_cast %196 : vector<1x1x8x32xf32> to vector<8x32xf32>
    %cst_153 = arith.constant dense<0.000000e+00> : vector<8x8xf32>
    %198 = tpu.matmul %194, %197, %cst_153 {dimension_numbers = #tpu.dot_dimension_numbers<[1], [1], [0], [0], [0, 0, 1, 0], [], []>} : vector<8x32xf32>, vector<8x32xf32>, vector<8x8xf32> -> vector<8x8xf32>
    %cst_154 = arith.constant 0.353553385 : f32
    %199 = vector.broadcast %cst_154 : f32 to vector<8x8xf32>
    %200 = arith.mulf %198, %199 : vector<8x8xf32>
    %c0_155 = arith.constant 0 : index
    %c0_156 = arith.constant 0 : index
    %c0_157 = arith.constant 0 : index
    %c0_158 = arith.constant 0 : index
    %201 = vector.load %arg16[%c0_155, %c0_156, %c0_157, %c0_158] : memref<2x4x8x32xf32, #tpu.memory_space<vmem>>, vector<1x1x8x32xf32>
    %202 = vector.shape_cast %201 : vector<1x1x8x32xf32> to vector<8x32xf32>
    %cst_159 = arith.constant dense<0.000000e+00> : vector<16x8xf32>
    %203 = tpu.matmul %8, %202, %cst_159 {dimension_numbers = #tpu.dot_dimension_numbers<[1], [1], [0], [0], [0, 0, 1, 0], [], []>} : vector<16x32xf32>, vector<8x32xf32>, vector<16x8xf32> -> vector<16x8xf32>
    %c0_160 = arith.constant 0 : index
    %c0_161 = arith.constant 0 : index
    %c0_162 = arith.constant 0 : index
    %c0_163 = arith.constant 0 : index
    %204 = vector.load %arg17[%c0_160, %c0_161, %c0_162, %c0_163] : memref<2x4x8x32xf32, #tpu.memory_space<vmem>>, vector<1x1x8x32xf32>
    %205 = vector.shape_cast %204 : vector<1x1x8x32xf32> to vector<8x32xf32>
    %cst_164 = arith.constant dense<0.000000e+00> : vector<16x8xf32>
    %206 = tpu.matmul %8, %205, %cst_164 {dimension_numbers = #tpu.dot_dimension_numbers<[1], [1], [0], [0], [0, 0, 1, 0], [], []>} : vector<16x32xf32>, vector<8x32xf32>, vector<16x8xf32> -> vector<16x8xf32>
    %cst_165 = arith.constant dense<0.000000e+00> : vector<8x16xf32>
    %207 = tpu.matmul %200, %203, %cst_165 {dimension_numbers = #tpu.dot_dimension_numbers<[1], [1], [0], [0], [0, 0, 1, 0], [], []>} : vector<8x8xf32>, vector<16x8xf32>, vector<8x16xf32> -> vector<8x16xf32>
    %cst_166 = arith.constant -9.99999984E+17 : f32
    %208 = vector.shape_cast %16 : vector<1x16xi1> to vector<1x16xi1>
    %209 = vector.broadcast %208 : vector<1x16xi1> to vector<8x16xi1>
    %210 = vector.broadcast %cst_166 : f32 to vector<8x16xf32>
    %211 = arith.select %209, %210, %207 : vector<8x16xi1>, vector<8x16xf32>
    %cst_167 = arith.constant dense<0xFF800000> : vector<8xf32>
    %212 = vector.multi_reduction <maximumf>, %211, %cst_167 [1] : vector<8x16xf32> to vector<8xf32>
    %cst_168 = arith.constant 0xFF800000 : f32
    %213 = vector.broadcast %cst_168 : f32 to vector<8xf32>
    %214 = arith.maximumf %213, %212 : vector<8xf32>
    %215 = vector.shape_cast %214 : vector<8xf32> to vector<8x1xf32>
    %216 = vector.broadcast %215 : vector<8x1xf32> to vector<8x16xf32>
    %217 = arith.subf %211, %216 : vector<8x16xf32>
    %218 = math.exp %217 : vector<8x16xf32>
    %cst_169 = arith.constant dense<0.000000e+00> : vector<8xf32>
    %219 = vector.multi_reduction <add>, %218, %cst_169 [1] : vector<8x16xf32> to vector<8xf32>
    %220 = vector.shape_cast %219 : vector<8xf32> to vector<8x1xf32>
    %221 = vector.broadcast %220 : vector<8x1xf32> to vector<8x16xf32>
    %222 = arith.divf %218, %221 : vector<8x16xf32>
    %cst_170 = arith.constant dense<0.000000e+00> : vector<8x8xf32>
    %223 = tpu.matmul %222, %206, %cst_170 {dimension_numbers = #tpu.dot_dimension_numbers<[1], [0], [0], [1], [0, 0, 1, 1], [], []>} : vector<8x16xf32>, vector<16x8xf32>, vector<8x8xf32> -> vector<8x8xf32>
    %c0_171 = arith.constant 0 : index
    %c0_172 = arith.constant 0 : index
    %c0_173 = arith.constant 0 : index
    %c0_174 = arith.constant 0 : index
    %224 = vector.load %arg18[%c0_171, %c0_172, %c0_173, %c0_174] : memref<2x4x32x8xf32, #tpu.memory_space<vmem>>, vector<1x1x32x8xf32>
    %225 = vector.shape_cast %224 : vector<1x1x32x8xf32> to vector<32x8xf32>
    %cst_175 = arith.constant dense<0.000000e+00> : vector<8x32xf32>
    %226 = tpu.matmul %223, %225, %cst_175 {dimension_numbers = #tpu.dot_dimension_numbers<[1], [1], [0], [0], [0, 0, 1, 0], [], []>} : vector<8x8xf32>, vector<32x8xf32>, vector<8x32xf32> -> vector<8x32xf32>
    %227 = arith.addf %195, %226 : vector<8x32xf32>
    %c0_176 = arith.constant 0 : index
    %c1_177 = arith.constant 1 : index
    %c0_178 = arith.constant 0 : index
    %c0_179 = arith.constant 0 : index
    %228 = vector.load %arg15[%c0_176, %c1_177, %c0_178, %c0_179] : memref<2x4x8x32xf32, #tpu.memory_space<vmem>>, vector<1x1x8x32xf32>
    %229 = vector.shape_cast %228 : vector<1x1x8x32xf32> to vector<8x32xf32>
    %cst_180 = arith.constant dense<0.000000e+00> : vector<8x8xf32>
    %230 = tpu.matmul %194, %229, %cst_180 {dimension_numbers = #tpu.dot_dimension_numbers<[1], [1], [0], [0], [0, 0, 1, 0], [], []>} : vector<8x32xf32>, vector<8x32xf32>, vector<8x8xf32> -> vector<8x8xf32>
    %cst_181 = arith.constant 0.353553385 : f32
    %231 = vector.broadcast %cst_181 : f32 to vector<8x8xf32>
    %232 = arith.mulf %230, %231 : vector<8x8xf32>
    %c0_182 = arith.constant 0 : index
    %c1_183 = arith.constant 1 : index
    %c0_184 = arith.constant 0 : index
    %c0_185 = arith.constant 0 : index
    %233 = vector.load %arg16[%c0_182, %c1_183, %c0_184, %c0_185] : memref<2x4x8x32xf32, #tpu.memory_space<vmem>>, vector<1x1x8x32xf32>
    %234 = vector.shape_cast %233 : vector<1x1x8x32xf32> to vector<8x32xf32>
    %cst_186 = arith.constant dense<0.000000e+00> : vector<16x8xf32>
    %235 = tpu.matmul %8, %234, %cst_186 {dimension_numbers = #tpu.dot_dimension_numbers<[1], [1], [0], [0], [0, 0, 1, 0], [], []>} : vector<16x32xf32>, vector<8x32xf32>, vector<16x8xf32> -> vector<16x8xf32>
    %c0_187 = arith.constant 0 : index
    %c1_188 = arith.constant 1 : index
    %c0_189 = arith.constant 0 : index
    %c0_190 = arith.constant 0 : index
    %236 = vector.load %arg17[%c0_187, %c1_188, %c0_189, %c0_190] : memref<2x4x8x32xf32, #tpu.memory_space<vmem>>, vector<1x1x8x32xf32>
    %237 = vector.shape_cast %236 : vector<1x1x8x32xf32> to vector<8x32xf32>
    %cst_191 = arith.constant dense<0.000000e+00> : vector<16x8xf32>
    %238 = tpu.matmul %8, %237, %cst_191 {dimension_numbers = #tpu.dot_dimension_numbers<[1], [1], [0], [0], [0, 0, 1, 0], [], []>} : vector<16x32xf32>, vector<8x32xf32>, vector<16x8xf32> -> vector<16x8xf32>
    %cst_192 = arith.constant dense<0.000000e+00> : vector<8x16xf32>
    %239 = tpu.matmul %232, %235, %cst_192 {dimension_numbers = #tpu.dot_dimension_numbers<[1], [1], [0], [0], [0, 0, 1, 0], [], []>} : vector<8x8xf32>, vector<16x8xf32>, vector<8x16xf32> -> vector<8x16xf32>
    %cst_193 = arith.constant -9.99999984E+17 : f32
    %240 = vector.shape_cast %16 : vector<1x16xi1> to vector<1x16xi1>
    %241 = vector.broadcast %240 : vector<1x16xi1> to vector<8x16xi1>
    %242 = vector.broadcast %cst_193 : f32 to vector<8x16xf32>
    %243 = arith.select %241, %242, %239 : vector<8x16xi1>, vector<8x16xf32>
    %cst_194 = arith.constant dense<0xFF800000> : vector<8xf32>
    %244 = vector.multi_reduction <maximumf>, %243, %cst_194 [1] : vector<8x16xf32> to vector<8xf32>
    %cst_195 = arith.constant 0xFF800000 : f32
    %245 = vector.broadcast %cst_195 : f32 to vector<8xf32>
    %246 = arith.maximumf %245, %244 : vector<8xf32>
    %247 = vector.shape_cast %246 : vector<8xf32> to vector<8x1xf32>
    %248 = vector.broadcast %247 : vector<8x1xf32> to vector<8x16xf32>
    %249 = arith.subf %243, %248 : vector<8x16xf32>
    %250 = math.exp %249 : vector<8x16xf32>
    %cst_196 = arith.constant dense<0.000000e+00> : vector<8xf32>
    %251 = vector.multi_reduction <add>, %250, %cst_196 [1] : vector<8x16xf32> to vector<8xf32>
    %252 = vector.shape_cast %251 : vector<8xf32> to vector<8x1xf32>
    %253 = vector.broadcast %252 : vector<8x1xf32> to vector<8x16xf32>
    %254 = arith.divf %250, %253 : vector<8x16xf32>
    %cst_197 = arith.constant dense<0.000000e+00> : vector<8x8xf32>
    %255 = tpu.matmul %254, %238, %cst_197 {dimension_numbers = #tpu.dot_dimension_numbers<[1], [0], [0], [1], [0, 0, 1, 1], [], []>} : vector<8x16xf32>, vector<16x8xf32>, vector<8x8xf32> -> vector<8x8xf32>
    %c0_198 = arith.constant 0 : index
    %c1_199 = arith.constant 1 : index
    %c0_200 = arith.constant 0 : index
    %c0_201 = arith.constant 0 : index
    %256 = vector.load %arg18[%c0_198, %c1_199, %c0_200, %c0_201] : memref<2x4x32x8xf32, #tpu.memory_space<vmem>>, vector<1x1x32x8xf32>
    %257 = vector.shape_cast %256 : vector<1x1x32x8xf32> to vector<32x8xf32>
    %cst_202 = arith.constant dense<0.000000e+00> : vector<8x32xf32>
    %258 = tpu.matmul %255, %257, %cst_202 {dimension_numbers = #tpu.dot_dimension_numbers<[1], [1], [0], [0], [0, 0, 1, 0], [], []>} : vector<8x8xf32>, vector<32x8xf32>, vector<8x32xf32> -> vector<8x32xf32>
    %259 = arith.addf %227, %258 : vector<8x32xf32>
    %c0_203 = arith.constant 0 : index
    %c2_204 = arith.constant 2 : index
    %c0_205 = arith.constant 0 : index
    %c0_206 = arith.constant 0 : index
    %260 = vector.load %arg15[%c0_203, %c2_204, %c0_205, %c0_206] : memref<2x4x8x32xf32, #tpu.memory_space<vmem>>, vector<1x1x8x32xf32>
    %261 = vector.shape_cast %260 : vector<1x1x8x32xf32> to vector<8x32xf32>
    %cst_207 = arith.constant dense<0.000000e+00> : vector<8x8xf32>
    %262 = tpu.matmul %194, %261, %cst_207 {dimension_numbers = #tpu.dot_dimension_numbers<[1], [1], [0], [0], [0, 0, 1, 0], [], []>} : vector<8x32xf32>, vector<8x32xf32>, vector<8x8xf32> -> vector<8x8xf32>
    %cst_208 = arith.constant 0.353553385 : f32
    %263 = vector.broadcast %cst_208 : f32 to vector<8x8xf32>
    %264 = arith.mulf %262, %263 : vector<8x8xf32>
    %c0_209 = arith.constant 0 : index
    %c2_210 = arith.constant 2 : index
    %c0_211 = arith.constant 0 : index
    %c0_212 = arith.constant 0 : index
    %265 = vector.load %arg16[%c0_209, %c2_210, %c0_211, %c0_212] : memref<2x4x8x32xf32, #tpu.memory_space<vmem>>, vector<1x1x8x32xf32>
    %266 = vector.shape_cast %265 : vector<1x1x8x32xf32> to vector<8x32xf32>
    %cst_213 = arith.constant dense<0.000000e+00> : vector<16x8xf32>
    %267 = tpu.matmul %8, %266, %cst_213 {dimension_numbers = #tpu.dot_dimension_numbers<[1], [1], [0], [0], [0, 0, 1, 0], [], []>} : vector<16x32xf32>, vector<8x32xf32>, vector<16x8xf32> -> vector<16x8xf32>
    %c0_214 = arith.constant 0 : index
    %c2_215 = arith.constant 2 : index
    %c0_216 = arith.constant 0 : index
    %c0_217 = arith.constant 0 : index
    %268 = vector.load %arg17[%c0_214, %c2_215, %c0_216, %c0_217] : memref<2x4x8x32xf32, #tpu.memory_space<vmem>>, vector<1x1x8x32xf32>
    %269 = vector.shape_cast %268 : vector<1x1x8x32xf32> to vector<8x32xf32>
    %cst_218 = arith.constant dense<0.000000e+00> : vector<16x8xf32>
    %270 = tpu.matmul %8, %269, %cst_218 {dimension_numbers = #tpu.dot_dimension_numbers<[1], [1], [0], [0], [0, 0, 1, 0], [], []>} : vector<16x32xf32>, vector<8x32xf32>, vector<16x8xf32> -> vector<16x8xf32>
    %cst_219 = arith.constant dense<0.000000e+00> : vector<8x16xf32>
    %271 = tpu.matmul %264, %267, %cst_219 {dimension_numbers = #tpu.dot_dimension_numbers<[1], [1], [0], [0], [0, 0, 1, 0], [], []>} : vector<8x8xf32>, vector<16x8xf32>, vector<8x16xf32> -> vector<8x16xf32>
    %cst_220 = arith.constant -9.99999984E+17 : f32
    %272 = vector.shape_cast %16 : vector<1x16xi1> to vector<1x16xi1>
    %273 = vector.broadcast %272 : vector<1x16xi1> to vector<8x16xi1>
    %274 = vector.broadcast %cst_220 : f32 to vector<8x16xf32>
    %275 = arith.select %273, %274, %271 : vector<8x16xi1>, vector<8x16xf32>
    %cst_221 = arith.constant dense<0xFF800000> : vector<8xf32>
    %276 = vector.multi_reduction <maximumf>, %275, %cst_221 [1] : vector<8x16xf32> to vector<8xf32>
    %cst_222 = arith.constant 0xFF800000 : f32
    %277 = vector.broadcast %cst_222 : f32 to vector<8xf32>
    %278 = arith.maximumf %277, %276 : vector<8xf32>
    %279 = vector.shape_cast %278 : vector<8xf32> to vector<8x1xf32>
    %280 = vector.broadcast %279 : vector<8x1xf32> to vector<8x16xf32>
    %281 = arith.subf %275, %280 : vector<8x16xf32>
    %282 = math.exp %281 : vector<8x16xf32>
    %cst_223 = arith.constant dense<0.000000e+00> : vector<8xf32>
    %283 = vector.multi_reduction <add>, %282, %cst_223 [1] : vector<8x16xf32> to vector<8xf32>
    %284 = vector.shape_cast %283 : vector<8xf32> to vector<8x1xf32>
    %285 = vector.broadcast %284 : vector<8x1xf32> to vector<8x16xf32>
    %286 = arith.divf %282, %285 : vector<8x16xf32>
    %cst_224 = arith.constant dense<0.000000e+00> : vector<8x8xf32>
    %287 = tpu.matmul %286, %270, %cst_224 {dimension_numbers = #tpu.dot_dimension_numbers<[1], [0], [0], [1], [0, 0, 1, 1], [], []>} : vector<8x16xf32>, vector<16x8xf32>, vector<8x8xf32> -> vector<8x8xf32>
    %c0_225 = arith.constant 0 : index
    %c2_226 = arith.constant 2 : index
    %c0_227 = arith.constant 0 : index
    %c0_228 = arith.constant 0 : index
    %288 = vector.load %arg18[%c0_225, %c2_226, %c0_227, %c0_228] : memref<2x4x32x8xf32, #tpu.memory_space<vmem>>, vector<1x1x32x8xf32>
    %289 = vector.shape_cast %288 : vector<1x1x32x8xf32> to vector<32x8xf32>
    %cst_229 = arith.constant dense<0.000000e+00> : vector<8x32xf32>
    %290 = tpu.matmul %287, %289, %cst_229 {dimension_numbers = #tpu.dot_dimension_numbers<[1], [1], [0], [0], [0, 0, 1, 0], [], []>} : vector<8x8xf32>, vector<32x8xf32>, vector<8x32xf32> -> vector<8x32xf32>
    %291 = arith.addf %259, %290 : vector<8x32xf32>
    %c0_230 = arith.constant 0 : index
    %c3_231 = arith.constant 3 : index
    %c0_232 = arith.constant 0 : index
    %c0_233 = arith.constant 0 : index
    %292 = vector.load %arg15[%c0_230, %c3_231, %c0_232, %c0_233] : memref<2x4x8x32xf32, #tpu.memory_space<vmem>>, vector<1x1x8x32xf32>
    %293 = vector.shape_cast %292 : vector<1x1x8x32xf32> to vector<8x32xf32>
    %cst_234 = arith.constant dense<0.000000e+00> : vector<8x8xf32>
    %294 = tpu.matmul %194, %293, %cst_234 {dimension_numbers = #tpu.dot_dimension_numbers<[1], [1], [0], [0], [0, 0, 1, 0], [], []>} : vector<8x32xf32>, vector<8x32xf32>, vector<8x8xf32> -> vector<8x8xf32>
    %cst_235 = arith.constant 0.353553385 : f32
    %295 = vector.broadcast %cst_235 : f32 to vector<8x8xf32>
    %296 = arith.mulf %294, %295 : vector<8x8xf32>
    %c0_236 = arith.constant 0 : index
    %c3_237 = arith.constant 3 : index
    %c0_238 = arith.constant 0 : index
    %c0_239 = arith.constant 0 : index
    %297 = vector.load %arg16[%c0_236, %c3_237, %c0_238, %c0_239] : memref<2x4x8x32xf32, #tpu.memory_space<vmem>>, vector<1x1x8x32xf32>
    %298 = vector.shape_cast %297 : vector<1x1x8x32xf32> to vector<8x32xf32>
    %cst_240 = arith.constant dense<0.000000e+00> : vector<16x8xf32>
    %299 = tpu.matmul %8, %298, %cst_240 {dimension_numbers = #tpu.dot_dimension_numbers<[1], [1], [0], [0], [0, 0, 1, 0], [], []>} : vector<16x32xf32>, vector<8x32xf32>, vector<16x8xf32> -> vector<16x8xf32>
    %c0_241 = arith.constant 0 : index
    %c3_242 = arith.constant 3 : index
    %c0_243 = arith.constant 0 : index
    %c0_244 = arith.constant 0 : index
    %300 = vector.load %arg17[%c0_241, %c3_242, %c0_243, %c0_244] : memref<2x4x8x32xf32, #tpu.memory_space<vmem>>, vector<1x1x8x32xf32>
    %301 = vector.shape_cast %300 : vector<1x1x8x32xf32> to vector<8x32xf32>
    %cst_245 = arith.constant dense<0.000000e+00> : vector<16x8xf32>
    %302 = tpu.matmul %8, %301, %cst_245 {dimension_numbers = #tpu.dot_dimension_numbers<[1], [1], [0], [0], [0, 0, 1, 0], [], []>} : vector<16x32xf32>, vector<8x32xf32>, vector<16x8xf32> -> vector<16x8xf32>
    %cst_246 = arith.constant dense<0.000000e+00> : vector<8x16xf32>
    %303 = tpu.matmul %296, %299, %cst_246 {dimension_numbers = #tpu.dot_dimension_numbers<[1], [1], [0], [0], [0, 0, 1, 0], [], []>} : vector<8x8xf32>, vector<16x8xf32>, vector<8x16xf32> -> vector<8x16xf32>
    %cst_247 = arith.constant -9.99999984E+17 : f32
    %304 = vector.shape_cast %16 : vector<1x16xi1> to vector<1x16xi1>
    %305 = vector.broadcast %304 : vector<1x16xi1> to vector<8x16xi1>
    %306 = vector.broadcast %cst_247 : f32 to vector<8x16xf32>
    %307 = arith.select %305, %306, %303 : vector<8x16xi1>, vector<8x16xf32>
    %cst_248 = arith.constant dense<0xFF800000> : vector<8xf32>
    %308 = vector.multi_reduction <maximumf>, %307, %cst_248 [1] : vector<8x16xf32> to vector<8xf32>
    %cst_249 = arith.constant 0xFF800000 : f32
    %309 = vector.broadcast %cst_249 : f32 to vector<8xf32>
    %310 = arith.maximumf %309, %308 : vector<8xf32>
    %311 = vector.shape_cast %310 : vector<8xf32> to vector<8x1xf32>
    %312 = vector.broadcast %311 : vector<8x1xf32> to vector<8x16xf32>
    %313 = arith.subf %307, %312 : vector<8x16xf32>
    %314 = math.exp %313 : vector<8x16xf32>
    %cst_250 = arith.constant dense<0.000000e+00> : vector<8xf32>
    %315 = vector.multi_reduction <add>, %314, %cst_250 [1] : vector<8x16xf32> to vector<8xf32>
    %316 = vector.shape_cast %315 : vector<8xf32> to vector<8x1xf32>
    %317 = vector.broadcast %316 : vector<8x1xf32> to vector<8x16xf32>
    %318 = arith.divf %314, %317 : vector<8x16xf32>
    %cst_251 = arith.constant dense<0.000000e+00> : vector<8x8xf32>
    %319 = tpu.matmul %318, %302, %cst_251 {dimension_numbers = #tpu.dot_dimension_numbers<[1], [0], [0], [1], [0, 0, 1, 1], [], []>} : vector<8x16xf32>, vector<16x8xf32>, vector<8x8xf32> -> vector<8x8xf32>
    %c0_252 = arith.constant 0 : index
    %c3_253 = arith.constant 3 : index
    %c0_254 = arith.constant 0 : index
    %c0_255 = arith.constant 0 : index
    %320 = vector.load %arg18[%c0_252, %c3_253, %c0_254, %c0_255] : memref<2x4x32x8xf32, #tpu.memory_space<vmem>>, vector<1x1x32x8xf32>
    %321 = vector.shape_cast %320 : vector<1x1x32x8xf32> to vector<32x8xf32>
    %cst_256 = arith.constant dense<0.000000e+00> : vector<8x32xf32>
    %322 = tpu.matmul %319, %321, %cst_256 {dimension_numbers = #tpu.dot_dimension_numbers<[1], [1], [0], [0], [0, 0, 1, 0], [], []>} : vector<8x8xf32>, vector<32x8xf32>, vector<8x32xf32> -> vector<8x32xf32>
    %323 = arith.addf %291, %322 : vector<8x32xf32>
    %324 = arith.addf %166, %323 : vector<8x32xf32>
    %c0_257 = arith.constant 0 : index
    %c0_258 = arith.constant 0 : index
    %c0_259 = arith.constant 0 : index
    %325 = vector.load %arg19[%c0_257, %c0_258, %c0_259] : memref<2x1x32xf32, #tpu.memory_space<vmem>>, vector<1x1x32xf32>
    %326 = vector.shape_cast %325 : vector<1x1x32xf32> to vector<1x32xf32>
    %c0_260 = arith.constant 0 : index
    %c0_261 = arith.constant 0 : index
    %c0_262 = arith.constant 0 : index
    %327 = vector.load %arg20[%c0_260, %c0_261, %c0_262] : memref<2x1x32xf32, #tpu.memory_space<vmem>>, vector<1x1x32xf32>
    %328 = vector.shape_cast %327 : vector<1x1x32xf32> to vector<1x32xf32>
    %cst_263 = arith.constant dense<0.000000e+00> : vector<8xf32>
    %329 = vector.multi_reduction <add>, %324, %cst_263 [1] : vector<8x32xf32> to vector<8xf32>
    %330 = vector.shape_cast %329 : vector<8xf32> to vector<8x1xf32>
    %331 = arith.mulf %324, %324 : vector<8x32xf32>
    %cst_264 = arith.constant dense<0.000000e+00> : vector<8xf32>
    %332 = vector.multi_reduction <add>, %331, %cst_264 [1] : vector<8x32xf32> to vector<8xf32>
    %333 = vector.shape_cast %332 : vector<8xf32> to vector<8x1xf32>
    %cst_265 = arith.constant 3.125000e-02 : f32
    %334 = vector.broadcast %cst_265 : f32 to vector<8x1xf32>
    %335 = arith.mulf %330, %334 : vector<8x1xf32>
    %336 = arith.mulf %330, %335 : vector<8x1xf32>
    %337 = arith.subf %333, %336 : vector<8x1xf32>
    %cst_266 = arith.constant 0.000000e+00 : f32
    %338 = vector.broadcast %cst_266 : f32 to vector<8x1xf32>
    %339 = arith.maximumf %337, %338 : vector<8x1xf32>
    %cst_267 = arith.constant 0.0322580636 : f32
    %340 = vector.broadcast %cst_267 : f32 to vector<8x1xf32>
    %341 = arith.mulf %339, %340 : vector<8x1xf32>
    %342 = math.sqrt %341 : vector<8x1xf32>
    %343 = vector.broadcast %335 : vector<8x1xf32> to vector<8x32xf32>
    %344 = arith.subf %324, %343 : vector<8x32xf32>
    %345 = vector.broadcast %326 : vector<1x32xf32> to vector<8x32xf32>
    %346 = arith.mulf %345, %344 : vector<8x32xf32>
    %cst_268 = arith.constant 9.99999997E-7 : f32
    %347 = vector.broadcast %cst_268 : f32 to vector<8x1xf32>
    %348 = arith.addf %342, %347 : vector<8x1xf32>
    %349 = vector.broadcast %348 : vector<8x1xf32> to vector<8x32xf32>
    %350 = arith.divf %346, %349 : vector<8x32xf32>
    %351 = vector.broadcast %328 : vector<1x32xf32> to vector<8x32xf32>
    %352 = arith.addf %350, %351 : vector<8x32xf32>
    %c0_269 = arith.constant 0 : index
    %c0_270 = arith.constant 0 : index
    %c0_271 = arith.constant 0 : index
    %353 = vector.load %arg21[%c0_269, %c0_270, %c0_271] : memref<2x64x96xf32, #tpu.memory_space<vmem>>, vector<1x64x96xf32>
    %354 = vector.shape_cast %353 : vector<1x64x96xf32> to vector<64x96xf32>
    %c0_272 = arith.constant 0 : index
    %c0_273 = arith.constant 0 : index
    %c0_274 = arith.constant 0 : index
    %355 = vector.load %arg22[%c0_272, %c0_273, %c0_274] : memref<2x1x64xf32, #tpu.memory_space<vmem>>, vector<1x1x64xf32>
    %356 = vector.shape_cast %355 : vector<1x1x64xf32> to vector<1x64xf32>
    %c2_i32 = arith.constant 2 : i32
    %357 = tpu.dynamic_rotate %352 by %c2_i32 dim 0 : vector<8x32xf32>, i32 -> vector<8x32xf32>
    %358 = tpu.iota {dimensions = array<i32: 0>} : vector<8x32xi32>
    %c2_i32_275 = arith.constant 2 : i32
    %359 = vector.broadcast %c2_i32_275 : i32 to vector<8x32xi32>
    %360 = arith.cmpi slt, %358, %359 : vector<8x32xi32>
    %cst_276 = arith.constant 0.000000e+00 : f32
    %361 = vector.broadcast %cst_276 : f32 to vector<8x32xf32>
    %362 = arith.select %360, %361, %357 : vector<8x32xi1>, vector<8x32xf32>
    %c1_i32 = arith.constant 1 : i32
    %363 = tpu.dynamic_rotate %352 by %c1_i32 dim 0 : vector<8x32xf32>, i32 -> vector<8x32xf32>
    %364 = tpu.iota {dimensions = array<i32: 0>} : vector<8x32xi32>
    %c1_i32_277 = arith.constant 1 : i32
    %365 = vector.broadcast %c1_i32_277 : i32 to vector<8x32xi32>
    %366 = arith.cmpi slt, %364, %365 : vector<8x32xi32>
    %cst_278 = arith.constant 0.000000e+00 : f32
    %367 = vector.broadcast %cst_278 : f32 to vector<8x32xf32>
    %368 = arith.select %366, %367, %363 : vector<8x32xi1>, vector<8x32xf32>
    %369 = tpu.concatenate %362, %368, %352 in 1 : vector<8x32xf32>, vector<8x32xf32>, vector<8x32xf32> -> vector<8x96xf32>
    %cst_279 = arith.constant dense<0.000000e+00> : vector<8x64xf32>
    %370 = tpu.matmul %369, %354, %cst_279 {dimension_numbers = #tpu.dot_dimension_numbers<[1], [1], [0], [0], [0, 0, 1, 0], [], []>} : vector<8x96xf32>, vector<64x96xf32>, vector<8x64xf32> -> vector<8x64xf32>
    %371 = vector.broadcast %356 : vector<1x64xf32> to vector<8x64xf32>
    %372 = arith.addf %370, %371 : vector<8x64xf32>
    %cst_280 = arith.constant 0.000000e+00 : f32
    %373 = vector.broadcast %cst_280 : f32 to vector<8x64xf32>
    %374 = arith.maximumf %372, %373 : vector<8x64xf32>
    %c0_281 = arith.constant 0 : index
    %c0_282 = arith.constant 0 : index
    %c0_283 = arith.constant 0 : index
    %375 = vector.load %arg23[%c0_281, %c0_282, %c0_283] : memref<2x32x192xf32, #tpu.memory_space<vmem>>, vector<1x32x192xf32>
    %376 = vector.shape_cast %375 : vector<1x32x192xf32> to vector<32x192xf32>
    %c0_284 = arith.constant 0 : index
    %c0_285 = arith.constant 0 : index
    %c0_286 = arith.constant 0 : index
    %377 = vector.load %arg24[%c0_284, %c0_285, %c0_286] : memref<2x1x32xf32, #tpu.memory_space<vmem>>, vector<1x1x32xf32>
    %378 = vector.shape_cast %377 : vector<1x1x32xf32> to vector<1x32xf32>
    %c2_i32_287 = arith.constant 2 : i32
    %379 = tpu.dynamic_rotate %374 by %c2_i32_287 dim 0 : vector<8x64xf32>, i32 -> vector<8x64xf32>
    %380 = tpu.iota {dimensions = array<i32: 0>} : vector<8x64xi32>
    %c2_i32_288 = arith.constant 2 : i32
    %381 = vector.broadcast %c2_i32_288 : i32 to vector<8x64xi32>
    %382 = arith.cmpi slt, %380, %381 : vector<8x64xi32>
    %cst_289 = arith.constant 0.000000e+00 : f32
    %383 = vector.broadcast %cst_289 : f32 to vector<8x64xf32>
    %384 = arith.select %382, %383, %379 : vector<8x64xi1>, vector<8x64xf32>
    %c1_i32_290 = arith.constant 1 : i32
    %385 = tpu.dynamic_rotate %374 by %c1_i32_290 dim 0 : vector<8x64xf32>, i32 -> vector<8x64xf32>
    %386 = tpu.iota {dimensions = array<i32: 0>} : vector<8x64xi32>
    %c1_i32_291 = arith.constant 1 : i32
    %387 = vector.broadcast %c1_i32_291 : i32 to vector<8x64xi32>
    %388 = arith.cmpi slt, %386, %387 : vector<8x64xi32>
    %cst_292 = arith.constant 0.000000e+00 : f32
    %389 = vector.broadcast %cst_292 : f32 to vector<8x64xf32>
    %390 = arith.select %388, %389, %385 : vector<8x64xi1>, vector<8x64xf32>
    %391 = tpu.concatenate %384, %390, %374 in 1 : vector<8x64xf32>, vector<8x64xf32>, vector<8x64xf32> -> vector<8x192xf32>
    %cst_293 = arith.constant dense<0.000000e+00> : vector<8x32xf32>
    %392 = tpu.matmul %391, %376, %cst_293 {dimension_numbers = #tpu.dot_dimension_numbers<[1], [1], [0], [0], [0, 0, 1, 0], [], []>} : vector<8x192xf32>, vector<32x192xf32>, vector<8x32xf32> -> vector<8x32xf32>
    %393 = vector.broadcast %378 : vector<1x32xf32> to vector<8x32xf32>
    %394 = arith.addf %392, %393 : vector<8x32xf32>
    %395 = arith.addf %324, %394 : vector<8x32xf32>
    %c1_294 = arith.constant 1 : index
    %c0_295 = arith.constant 0 : index
    %c0_296 = arith.constant 0 : index
    %396 = vector.load %arg7[%c1_294, %c0_295, %c0_296] : memref<2x1x32xf32, #tpu.memory_space<vmem>>, vector<1x1x32xf32>
    %397 = vector.shape_cast %396 : vector<1x1x32xf32> to vector<1x32xf32>
    %c1_297 = arith.constant 1 : index
    %c0_298 = arith.constant 0 : index
    %c0_299 = arith.constant 0 : index
    %398 = vector.load %arg8[%c1_297, %c0_298, %c0_299] : memref<2x1x32xf32, #tpu.memory_space<vmem>>, vector<1x1x32xf32>
    %399 = vector.shape_cast %398 : vector<1x1x32xf32> to vector<1x32xf32>
    %cst_300 = arith.constant dense<0.000000e+00> : vector<8xf32>
    %400 = vector.multi_reduction <add>, %395, %cst_300 [1] : vector<8x32xf32> to vector<8xf32>
    %401 = vector.shape_cast %400 : vector<8xf32> to vector<8x1xf32>
    %402 = arith.mulf %395, %395 : vector<8x32xf32>
    %cst_301 = arith.constant dense<0.000000e+00> : vector<8xf32>
    %403 = vector.multi_reduction <add>, %402, %cst_301 [1] : vector<8x32xf32> to vector<8xf32>
    %404 = vector.shape_cast %403 : vector<8xf32> to vector<8x1xf32>
    %cst_302 = arith.constant 3.125000e-02 : f32
    %405 = vector.broadcast %cst_302 : f32 to vector<8x1xf32>
    %406 = arith.mulf %401, %405 : vector<8x1xf32>
    %407 = arith.mulf %401, %406 : vector<8x1xf32>
    %408 = arith.subf %404, %407 : vector<8x1xf32>
    %cst_303 = arith.constant 0.000000e+00 : f32
    %409 = vector.broadcast %cst_303 : f32 to vector<8x1xf32>
    %410 = arith.maximumf %408, %409 : vector<8x1xf32>
    %cst_304 = arith.constant 0.0322580636 : f32
    %411 = vector.broadcast %cst_304 : f32 to vector<8x1xf32>
    %412 = arith.mulf %410, %411 : vector<8x1xf32>
    %413 = math.sqrt %412 : vector<8x1xf32>
    %414 = vector.broadcast %406 : vector<8x1xf32> to vector<8x32xf32>
    %415 = arith.subf %395, %414 : vector<8x32xf32>
    %416 = vector.broadcast %397 : vector<1x32xf32> to vector<8x32xf32>
    %417 = arith.mulf %416, %415 : vector<8x32xf32>
    %cst_305 = arith.constant 9.99999997E-7 : f32
    %418 = vector.broadcast %cst_305 : f32 to vector<8x1xf32>
    %419 = arith.addf %413, %418 : vector<8x1xf32>
    %420 = vector.broadcast %419 : vector<8x1xf32> to vector<8x32xf32>
    %421 = arith.divf %417, %420 : vector<8x32xf32>
    %422 = vector.broadcast %399 : vector<1x32xf32> to vector<8x32xf32>
    %423 = arith.addf %421, %422 : vector<8x32xf32>
    %cst_306 = arith.constant 0.000000e+00 : f32
    %424 = vector.broadcast %cst_306 : f32 to vector<8x32xf32>
    %c1_307 = arith.constant 1 : index
    %c0_308 = arith.constant 0 : index
    %c0_309 = arith.constant 0 : index
    %c0_310 = arith.constant 0 : index
    %425 = vector.load %arg9[%c1_307, %c0_308, %c0_309, %c0_310] : memref<2x4x8x32xf32, #tpu.memory_space<vmem>>, vector<1x1x8x32xf32>
    %426 = vector.shape_cast %425 : vector<1x1x8x32xf32> to vector<8x32xf32>
    %cst_311 = arith.constant dense<0.000000e+00> : vector<8x8xf32>
    %427 = tpu.matmul %423, %426, %cst_311 {dimension_numbers = #tpu.dot_dimension_numbers<[1], [1], [0], [0], [0, 0, 1, 0], [], []>} : vector<8x32xf32>, vector<8x32xf32>, vector<8x8xf32> -> vector<8x8xf32>
    %cst_312 = arith.constant 0.353553385 : f32
    %428 = vector.broadcast %cst_312 : f32 to vector<8x8xf32>
    %429 = arith.mulf %427, %428 : vector<8x8xf32>
    %c1_313 = arith.constant 1 : index
    %c0_314 = arith.constant 0 : index
    %c0_315 = arith.constant 0 : index
    %c0_316 = arith.constant 0 : index
    %430 = vector.load %arg10[%c1_313, %c0_314, %c0_315, %c0_316] : memref<2x4x8x32xf32, #tpu.memory_space<vmem>>, vector<1x1x8x32xf32>
    %431 = vector.shape_cast %430 : vector<1x1x8x32xf32> to vector<8x32xf32>
    %cst_317 = arith.constant dense<0.000000e+00> : vector<8x8xf32>
    %432 = tpu.matmul %423, %431, %cst_317 {dimension_numbers = #tpu.dot_dimension_numbers<[1], [1], [0], [0], [0, 0, 1, 0], [], []>} : vector<8x32xf32>, vector<8x32xf32>, vector<8x8xf32> -> vector<8x8xf32>
    %c1_318 = arith.constant 1 : index
    %c0_319 = arith.constant 0 : index
    %c0_320 = arith.constant 0 : index
    %c0_321 = arith.constant 0 : index
    %433 = vector.load %arg11[%c1_318, %c0_319, %c0_320, %c0_321] : memref<2x4x8x32xf32, #tpu.memory_space<vmem>>, vector<1x1x8x32xf32>
    %434 = vector.shape_cast %433 : vector<1x1x8x32xf32> to vector<8x32xf32>
    %cst_322 = arith.constant dense<0.000000e+00> : vector<8x8xf32>
    %435 = tpu.matmul %423, %434, %cst_322 {dimension_numbers = #tpu.dot_dimension_numbers<[1], [1], [0], [0], [0, 0, 1, 0], [], []>} : vector<8x32xf32>, vector<8x32xf32>, vector<8x8xf32> -> vector<8x8xf32>
    %cst_323 = arith.constant dense<0.000000e+00> : vector<8x8xf32>
    %436 = tpu.matmul %429, %432, %cst_323 {dimension_numbers = #tpu.dot_dimension_numbers<[1], [1], [0], [0], [0, 0, 1, 0], [], []>} : vector<8x8xf32>, vector<8x8xf32>, vector<8x8xf32> -> vector<8x8xf32>
    %cst_324 = arith.constant -9.99999984E+17 : f32
    %437 = vector.broadcast %cst_324 : f32 to vector<8x8xf32>
    %438 = arith.select %12, %437, %436 : vector<8x8xi1>, vector<8x8xf32>
    %cst_325 = arith.constant dense<0xFF800000> : vector<8xf32>
    %439 = vector.multi_reduction <maximumf>, %438, %cst_325 [1] : vector<8x8xf32> to vector<8xf32>
    %cst_326 = arith.constant 0xFF800000 : f32
    %440 = vector.broadcast %cst_326 : f32 to vector<8xf32>
    %441 = arith.maximumf %440, %439 : vector<8xf32>
    %442 = vector.shape_cast %441 : vector<8xf32> to vector<8x1xf32>
    %443 = vector.broadcast %442 : vector<8x1xf32> to vector<8x8xf32>
    %444 = arith.subf %438, %443 : vector<8x8xf32>
    %445 = math.exp %444 : vector<8x8xf32>
    %cst_327 = arith.constant dense<0.000000e+00> : vector<8xf32>
    %446 = vector.multi_reduction <add>, %445, %cst_327 [1] : vector<8x8xf32> to vector<8xf32>
    %447 = vector.shape_cast %446 : vector<8xf32> to vector<8x1xf32>
    %448 = vector.broadcast %447 : vector<8x1xf32> to vector<8x8xf32>
    %449 = arith.divf %445, %448 : vector<8x8xf32>
    %cst_328 = arith.constant dense<0.000000e+00> : vector<8x8xf32>
    %450 = tpu.matmul %449, %435, %cst_328 {dimension_numbers = #tpu.dot_dimension_numbers<[1], [0], [0], [1], [0, 0, 1, 1], [], []>} : vector<8x8xf32>, vector<8x8xf32>, vector<8x8xf32> -> vector<8x8xf32>
    %c1_329 = arith.constant 1 : index
    %c0_330 = arith.constant 0 : index
    %c0_331 = arith.constant 0 : index
    %c0_332 = arith.constant 0 : index
    %451 = vector.load %arg12[%c1_329, %c0_330, %c0_331, %c0_332] : memref<2x4x32x8xf32, #tpu.memory_space<vmem>>, vector<1x1x32x8xf32>
    %452 = vector.shape_cast %451 : vector<1x1x32x8xf32> to vector<32x8xf32>
    %cst_333 = arith.constant dense<0.000000e+00> : vector<8x32xf32>
    %453 = tpu.matmul %450, %452, %cst_333 {dimension_numbers = #tpu.dot_dimension_numbers<[1], [1], [0], [0], [0, 0, 1, 0], [], []>} : vector<8x8xf32>, vector<32x8xf32>, vector<8x32xf32> -> vector<8x32xf32>
    %454 = arith.addf %424, %453 : vector<8x32xf32>
    %c1_334 = arith.constant 1 : index
    %c1_335 = arith.constant 1 : index
    %c0_336 = arith.constant 0 : index
    %c0_337 = arith.constant 0 : index
    %455 = vector.load %arg9[%c1_334, %c1_335, %c0_336, %c0_337] : memref<2x4x8x32xf32, #tpu.memory_space<vmem>>, vector<1x1x8x32xf32>
    %456 = vector.shape_cast %455 : vector<1x1x8x32xf32> to vector<8x32xf32>
    %cst_338 = arith.constant dense<0.000000e+00> : vector<8x8xf32>
    %457 = tpu.matmul %423, %456, %cst_338 {dimension_numbers = #tpu.dot_dimension_numbers<[1], [1], [0], [0], [0, 0, 1, 0], [], []>} : vector<8x32xf32>, vector<8x32xf32>, vector<8x8xf32> -> vector<8x8xf32>
    %cst_339 = arith.constant 0.353553385 : f32
    %458 = vector.broadcast %cst_339 : f32 to vector<8x8xf32>
    %459 = arith.mulf %457, %458 : vector<8x8xf32>
    %c1_340 = arith.constant 1 : index
    %c1_341 = arith.constant 1 : index
    %c0_342 = arith.constant 0 : index
    %c0_343 = arith.constant 0 : index
    %460 = vector.load %arg10[%c1_340, %c1_341, %c0_342, %c0_343] : memref<2x4x8x32xf32, #tpu.memory_space<vmem>>, vector<1x1x8x32xf32>
    %461 = vector.shape_cast %460 : vector<1x1x8x32xf32> to vector<8x32xf32>
    %cst_344 = arith.constant dense<0.000000e+00> : vector<8x8xf32>
    %462 = tpu.matmul %423, %461, %cst_344 {dimension_numbers = #tpu.dot_dimension_numbers<[1], [1], [0], [0], [0, 0, 1, 0], [], []>} : vector<8x32xf32>, vector<8x32xf32>, vector<8x8xf32> -> vector<8x8xf32>
    %c1_345 = arith.constant 1 : index
    %c1_346 = arith.constant 1 : index
    %c0_347 = arith.constant 0 : index
    %c0_348 = arith.constant 0 : index
    %463 = vector.load %arg11[%c1_345, %c1_346, %c0_347, %c0_348] : memref<2x4x8x32xf32, #tpu.memory_space<vmem>>, vector<1x1x8x32xf32>
    %464 = vector.shape_cast %463 : vector<1x1x8x32xf32> to vector<8x32xf32>
    %cst_349 = arith.constant dense<0.000000e+00> : vector<8x8xf32>
    %465 = tpu.matmul %423, %464, %cst_349 {dimension_numbers = #tpu.dot_dimension_numbers<[1], [1], [0], [0], [0, 0, 1, 0], [], []>} : vector<8x32xf32>, vector<8x32xf32>, vector<8x8xf32> -> vector<8x8xf32>
    %cst_350 = arith.constant dense<0.000000e+00> : vector<8x8xf32>
    %466 = tpu.matmul %459, %462, %cst_350 {dimension_numbers = #tpu.dot_dimension_numbers<[1], [1], [0], [0], [0, 0, 1, 0], [], []>} : vector<8x8xf32>, vector<8x8xf32>, vector<8x8xf32> -> vector<8x8xf32>
    %cst_351 = arith.constant -9.99999984E+17 : f32
    %467 = vector.broadcast %cst_351 : f32 to vector<8x8xf32>
    %468 = arith.select %12, %467, %466 : vector<8x8xi1>, vector<8x8xf32>
    %cst_352 = arith.constant dense<0xFF800000> : vector<8xf32>
    %469 = vector.multi_reduction <maximumf>, %468, %cst_352 [1] : vector<8x8xf32> to vector<8xf32>
    %cst_353 = arith.constant 0xFF800000 : f32
    %470 = vector.broadcast %cst_353 : f32 to vector<8xf32>
    %471 = arith.maximumf %470, %469 : vector<8xf32>
    %472 = vector.shape_cast %471 : vector<8xf32> to vector<8x1xf32>
    %473 = vector.broadcast %472 : vector<8x1xf32> to vector<8x8xf32>
    %474 = arith.subf %468, %473 : vector<8x8xf32>
    %475 = math.exp %474 : vector<8x8xf32>
    %cst_354 = arith.constant dense<0.000000e+00> : vector<8xf32>
    %476 = vector.multi_reduction <add>, %475, %cst_354 [1] : vector<8x8xf32> to vector<8xf32>
    %477 = vector.shape_cast %476 : vector<8xf32> to vector<8x1xf32>
    %478 = vector.broadcast %477 : vector<8x1xf32> to vector<8x8xf32>
    %479 = arith.divf %475, %478 : vector<8x8xf32>
    %cst_355 = arith.constant dense<0.000000e+00> : vector<8x8xf32>
    %480 = tpu.matmul %479, %465, %cst_355 {dimension_numbers = #tpu.dot_dimension_numbers<[1], [0], [0], [1], [0, 0, 1, 1], [], []>} : vector<8x8xf32>, vector<8x8xf32>, vector<8x8xf32> -> vector<8x8xf32>
    %c1_356 = arith.constant 1 : index
    %c1_357 = arith.constant 1 : index
    %c0_358 = arith.constant 0 : index
    %c0_359 = arith.constant 0 : index
    %481 = vector.load %arg12[%c1_356, %c1_357, %c0_358, %c0_359] : memref<2x4x32x8xf32, #tpu.memory_space<vmem>>, vector<1x1x32x8xf32>
    %482 = vector.shape_cast %481 : vector<1x1x32x8xf32> to vector<32x8xf32>
    %cst_360 = arith.constant dense<0.000000e+00> : vector<8x32xf32>
    %483 = tpu.matmul %480, %482, %cst_360 {dimension_numbers = #tpu.dot_dimension_numbers<[1], [1], [0], [0], [0, 0, 1, 0], [], []>} : vector<8x8xf32>, vector<32x8xf32>, vector<8x32xf32> -> vector<8x32xf32>
    %484 = arith.addf %454, %483 : vector<8x32xf32>
    %c1_361 = arith.constant 1 : index
    %c2_362 = arith.constant 2 : index
    %c0_363 = arith.constant 0 : index
    %c0_364 = arith.constant 0 : index
    %485 = vector.load %arg9[%c1_361, %c2_362, %c0_363, %c0_364] : memref<2x4x8x32xf32, #tpu.memory_space<vmem>>, vector<1x1x8x32xf32>
    %486 = vector.shape_cast %485 : vector<1x1x8x32xf32> to vector<8x32xf32>
    %cst_365 = arith.constant dense<0.000000e+00> : vector<8x8xf32>
    %487 = tpu.matmul %423, %486, %cst_365 {dimension_numbers = #tpu.dot_dimension_numbers<[1], [1], [0], [0], [0, 0, 1, 0], [], []>} : vector<8x32xf32>, vector<8x32xf32>, vector<8x8xf32> -> vector<8x8xf32>
    %cst_366 = arith.constant 0.353553385 : f32
    %488 = vector.broadcast %cst_366 : f32 to vector<8x8xf32>
    %489 = arith.mulf %487, %488 : vector<8x8xf32>
    %c1_367 = arith.constant 1 : index
    %c2_368 = arith.constant 2 : index
    %c0_369 = arith.constant 0 : index
    %c0_370 = arith.constant 0 : index
    %490 = vector.load %arg10[%c1_367, %c2_368, %c0_369, %c0_370] : memref<2x4x8x32xf32, #tpu.memory_space<vmem>>, vector<1x1x8x32xf32>
    %491 = vector.shape_cast %490 : vector<1x1x8x32xf32> to vector<8x32xf32>
    %cst_371 = arith.constant dense<0.000000e+00> : vector<8x8xf32>
    %492 = tpu.matmul %423, %491, %cst_371 {dimension_numbers = #tpu.dot_dimension_numbers<[1], [1], [0], [0], [0, 0, 1, 0], [], []>} : vector<8x32xf32>, vector<8x32xf32>, vector<8x8xf32> -> vector<8x8xf32>
    %c1_372 = arith.constant 1 : index
    %c2_373 = arith.constant 2 : index
    %c0_374 = arith.constant 0 : index
    %c0_375 = arith.constant 0 : index
    %493 = vector.load %arg11[%c1_372, %c2_373, %c0_374, %c0_375] : memref<2x4x8x32xf32, #tpu.memory_space<vmem>>, vector<1x1x8x32xf32>
    %494 = vector.shape_cast %493 : vector<1x1x8x32xf32> to vector<8x32xf32>
    %cst_376 = arith.constant dense<0.000000e+00> : vector<8x8xf32>
    %495 = tpu.matmul %423, %494, %cst_376 {dimension_numbers = #tpu.dot_dimension_numbers<[1], [1], [0], [0], [0, 0, 1, 0], [], []>} : vector<8x32xf32>, vector<8x32xf32>, vector<8x8xf32> -> vector<8x8xf32>
    %cst_377 = arith.constant dense<0.000000e+00> : vector<8x8xf32>
    %496 = tpu.matmul %489, %492, %cst_377 {dimension_numbers = #tpu.dot_dimension_numbers<[1], [1], [0], [0], [0, 0, 1, 0], [], []>} : vector<8x8xf32>, vector<8x8xf32>, vector<8x8xf32> -> vector<8x8xf32>
    %cst_378 = arith.constant -9.99999984E+17 : f32
    %497 = vector.broadcast %cst_378 : f32 to vector<8x8xf32>
    %498 = arith.select %12, %497, %496 : vector<8x8xi1>, vector<8x8xf32>
    %cst_379 = arith.constant dense<0xFF800000> : vector<8xf32>
    %499 = vector.multi_reduction <maximumf>, %498, %cst_379 [1] : vector<8x8xf32> to vector<8xf32>
    %cst_380 = arith.constant 0xFF800000 : f32
    %500 = vector.broadcast %cst_380 : f32 to vector<8xf32>
    %501 = arith.maximumf %500, %499 : vector<8xf32>
    %502 = vector.shape_cast %501 : vector<8xf32> to vector<8x1xf32>
    %503 = vector.broadcast %502 : vector<8x1xf32> to vector<8x8xf32>
    %504 = arith.subf %498, %503 : vector<8x8xf32>
    %505 = math.exp %504 : vector<8x8xf32>
    %cst_381 = arith.constant dense<0.000000e+00> : vector<8xf32>
    %506 = vector.multi_reduction <add>, %505, %cst_381 [1] : vector<8x8xf32> to vector<8xf32>
    %507 = vector.shape_cast %506 : vector<8xf32> to vector<8x1xf32>
    %508 = vector.broadcast %507 : vector<8x1xf32> to vector<8x8xf32>
    %509 = arith.divf %505, %508 : vector<8x8xf32>
    %cst_382 = arith.constant dense<0.000000e+00> : vector<8x8xf32>
    %510 = tpu.matmul %509, %495, %cst_382 {dimension_numbers = #tpu.dot_dimension_numbers<[1], [0], [0], [1], [0, 0, 1, 1], [], []>} : vector<8x8xf32>, vector<8x8xf32>, vector<8x8xf32> -> vector<8x8xf32>
    %c1_383 = arith.constant 1 : index
    %c2_384 = arith.constant 2 : index
    %c0_385 = arith.constant 0 : index
    %c0_386 = arith.constant 0 : index
    %511 = vector.load %arg12[%c1_383, %c2_384, %c0_385, %c0_386] : memref<2x4x32x8xf32, #tpu.memory_space<vmem>>, vector<1x1x32x8xf32>
    %512 = vector.shape_cast %511 : vector<1x1x32x8xf32> to vector<32x8xf32>
    %cst_387 = arith.constant dense<0.000000e+00> : vector<8x32xf32>
    %513 = tpu.matmul %510, %512, %cst_387 {dimension_numbers = #tpu.dot_dimension_numbers<[1], [1], [0], [0], [0, 0, 1, 0], [], []>} : vector<8x8xf32>, vector<32x8xf32>, vector<8x32xf32> -> vector<8x32xf32>
    %514 = arith.addf %484, %513 : vector<8x32xf32>
    %c1_388 = arith.constant 1 : index
    %c3_389 = arith.constant 3 : index
    %c0_390 = arith.constant 0 : index
    %c0_391 = arith.constant 0 : index
    %515 = vector.load %arg9[%c1_388, %c3_389, %c0_390, %c0_391] : memref<2x4x8x32xf32, #tpu.memory_space<vmem>>, vector<1x1x8x32xf32>
    %516 = vector.shape_cast %515 : vector<1x1x8x32xf32> to vector<8x32xf32>
    %cst_392 = arith.constant dense<0.000000e+00> : vector<8x8xf32>
    %517 = tpu.matmul %423, %516, %cst_392 {dimension_numbers = #tpu.dot_dimension_numbers<[1], [1], [0], [0], [0, 0, 1, 0], [], []>} : vector<8x32xf32>, vector<8x32xf32>, vector<8x8xf32> -> vector<8x8xf32>
    %cst_393 = arith.constant 0.353553385 : f32
    %518 = vector.broadcast %cst_393 : f32 to vector<8x8xf32>
    %519 = arith.mulf %517, %518 : vector<8x8xf32>
    %c1_394 = arith.constant 1 : index
    %c3_395 = arith.constant 3 : index
    %c0_396 = arith.constant 0 : index
    %c0_397 = arith.constant 0 : index
    %520 = vector.load %arg10[%c1_394, %c3_395, %c0_396, %c0_397] : memref<2x4x8x32xf32, #tpu.memory_space<vmem>>, vector<1x1x8x32xf32>
    %521 = vector.shape_cast %520 : vector<1x1x8x32xf32> to vector<8x32xf32>
    %cst_398 = arith.constant dense<0.000000e+00> : vector<8x8xf32>
    %522 = tpu.matmul %423, %521, %cst_398 {dimension_numbers = #tpu.dot_dimension_numbers<[1], [1], [0], [0], [0, 0, 1, 0], [], []>} : vector<8x32xf32>, vector<8x32xf32>, vector<8x8xf32> -> vector<8x8xf32>
    %c1_399 = arith.constant 1 : index
    %c3_400 = arith.constant 3 : index
    %c0_401 = arith.constant 0 : index
    %c0_402 = arith.constant 0 : index
    %523 = vector.load %arg11[%c1_399, %c3_400, %c0_401, %c0_402] : memref<2x4x8x32xf32, #tpu.memory_space<vmem>>, vector<1x1x8x32xf32>
    %524 = vector.shape_cast %523 : vector<1x1x8x32xf32> to vector<8x32xf32>
    %cst_403 = arith.constant dense<0.000000e+00> : vector<8x8xf32>
    %525 = tpu.matmul %423, %524, %cst_403 {dimension_numbers = #tpu.dot_dimension_numbers<[1], [1], [0], [0], [0, 0, 1, 0], [], []>} : vector<8x32xf32>, vector<8x32xf32>, vector<8x8xf32> -> vector<8x8xf32>
    %cst_404 = arith.constant dense<0.000000e+00> : vector<8x8xf32>
    %526 = tpu.matmul %519, %522, %cst_404 {dimension_numbers = #tpu.dot_dimension_numbers<[1], [1], [0], [0], [0, 0, 1, 0], [], []>} : vector<8x8xf32>, vector<8x8xf32>, vector<8x8xf32> -> vector<8x8xf32>
    %cst_405 = arith.constant -9.99999984E+17 : f32
    %527 = vector.broadcast %cst_405 : f32 to vector<8x8xf32>
    %528 = arith.select %12, %527, %526 : vector<8x8xi1>, vector<8x8xf32>
    %cst_406 = arith.constant dense<0xFF800000> : vector<8xf32>
    %529 = vector.multi_reduction <maximumf>, %528, %cst_406 [1] : vector<8x8xf32> to vector<8xf32>
    %cst_407 = arith.constant 0xFF800000 : f32
    %530 = vector.broadcast %cst_407 : f32 to vector<8xf32>
    %531 = arith.maximumf %530, %529 : vector<8xf32>
    %532 = vector.shape_cast %531 : vector<8xf32> to vector<8x1xf32>
    %533 = vector.broadcast %532 : vector<8x1xf32> to vector<8x8xf32>
    %534 = arith.subf %528, %533 : vector<8x8xf32>
    %535 = math.exp %534 : vector<8x8xf32>
    %cst_408 = arith.constant dense<0.000000e+00> : vector<8xf32>
    %536 = vector.multi_reduction <add>, %535, %cst_408 [1] : vector<8x8xf32> to vector<8xf32>
    %537 = vector.shape_cast %536 : vector<8xf32> to vector<8x1xf32>
    %538 = vector.broadcast %537 : vector<8x1xf32> to vector<8x8xf32>
    %539 = arith.divf %535, %538 : vector<8x8xf32>
    %cst_409 = arith.constant dense<0.000000e+00> : vector<8x8xf32>
    %540 = tpu.matmul %539, %525, %cst_409 {dimension_numbers = #tpu.dot_dimension_numbers<[1], [0], [0], [1], [0, 0, 1, 1], [], []>} : vector<8x8xf32>, vector<8x8xf32>, vector<8x8xf32> -> vector<8x8xf32>
    %c1_410 = arith.constant 1 : index
    %c3_411 = arith.constant 3 : index
    %c0_412 = arith.constant 0 : index
    %c0_413 = arith.constant 0 : index
    %541 = vector.load %arg12[%c1_410, %c3_411, %c0_412, %c0_413] : memref<2x4x32x8xf32, #tpu.memory_space<vmem>>, vector<1x1x32x8xf32>
    %542 = vector.shape_cast %541 : vector<1x1x32x8xf32> to vector<32x8xf32>
    %cst_414 = arith.constant dense<0.000000e+00> : vector<8x32xf32>
    %543 = tpu.matmul %540, %542, %cst_414 {dimension_numbers = #tpu.dot_dimension_numbers<[1], [1], [0], [0], [0, 0, 1, 0], [], []>} : vector<8x8xf32>, vector<32x8xf32>, vector<8x32xf32> -> vector<8x32xf32>
    %544 = arith.addf %514, %543 : vector<8x32xf32>
    %545 = arith.addf %395, %544 : vector<8x32xf32>
    %c1_415 = arith.constant 1 : index
    %c0_416 = arith.constant 0 : index
    %c0_417 = arith.constant 0 : index
    %546 = vector.load %arg13[%c1_415, %c0_416, %c0_417] : memref<2x1x32xf32, #tpu.memory_space<vmem>>, vector<1x1x32xf32>
    %547 = vector.shape_cast %546 : vector<1x1x32xf32> to vector<1x32xf32>
    %c1_418 = arith.constant 1 : index
    %c0_419 = arith.constant 0 : index
    %c0_420 = arith.constant 0 : index
    %548 = vector.load %arg14[%c1_418, %c0_419, %c0_420] : memref<2x1x32xf32, #tpu.memory_space<vmem>>, vector<1x1x32xf32>
    %549 = vector.shape_cast %548 : vector<1x1x32xf32> to vector<1x32xf32>
    %cst_421 = arith.constant dense<0.000000e+00> : vector<8xf32>
    %550 = vector.multi_reduction <add>, %545, %cst_421 [1] : vector<8x32xf32> to vector<8xf32>
    %551 = vector.shape_cast %550 : vector<8xf32> to vector<8x1xf32>
    %552 = arith.mulf %545, %545 : vector<8x32xf32>
    %cst_422 = arith.constant dense<0.000000e+00> : vector<8xf32>
    %553 = vector.multi_reduction <add>, %552, %cst_422 [1] : vector<8x32xf32> to vector<8xf32>
    %554 = vector.shape_cast %553 : vector<8xf32> to vector<8x1xf32>
    %cst_423 = arith.constant 3.125000e-02 : f32
    %555 = vector.broadcast %cst_423 : f32 to vector<8x1xf32>
    %556 = arith.mulf %551, %555 : vector<8x1xf32>
    %557 = arith.mulf %551, %556 : vector<8x1xf32>
    %558 = arith.subf %554, %557 : vector<8x1xf32>
    %cst_424 = arith.constant 0.000000e+00 : f32
    %559 = vector.broadcast %cst_424 : f32 to vector<8x1xf32>
    %560 = arith.maximumf %558, %559 : vector<8x1xf32>
    %cst_425 = arith.constant 0.0322580636 : f32
    %561 = vector.broadcast %cst_425 : f32 to vector<8x1xf32>
    %562 = arith.mulf %560, %561 : vector<8x1xf32>
    %563 = math.sqrt %562 : vector<8x1xf32>
    %564 = vector.broadcast %556 : vector<8x1xf32> to vector<8x32xf32>
    %565 = arith.subf %545, %564 : vector<8x32xf32>
    %566 = vector.broadcast %547 : vector<1x32xf32> to vector<8x32xf32>
    %567 = arith.mulf %566, %565 : vector<8x32xf32>
    %cst_426 = arith.constant 9.99999997E-7 : f32
    %568 = vector.broadcast %cst_426 : f32 to vector<8x1xf32>
    %569 = arith.addf %563, %568 : vector<8x1xf32>
    %570 = vector.broadcast %569 : vector<8x1xf32> to vector<8x32xf32>
    %571 = arith.divf %567, %570 : vector<8x32xf32>
    %572 = vector.broadcast %549 : vector<1x32xf32> to vector<8x32xf32>
    %573 = arith.addf %571, %572 : vector<8x32xf32>
    %cst_427 = arith.constant 0.000000e+00 : f32
    %574 = vector.broadcast %cst_427 : f32 to vector<8x32xf32>
    %cst_428 = arith.constant 0.000000e+00 : f32
    %575 = vector.broadcast %cst_428 : f32 to vector<8x16xf32>
    %c1_429 = arith.constant 1 : index
    %c0_430 = arith.constant 0 : index
    %c0_431 = arith.constant 0 : index
    %c0_432 = arith.constant 0 : index
    %576 = vector.load %arg15[%c1_429, %c0_430, %c0_431, %c0_432] : memref<2x4x8x32xf32, #tpu.memory_space<vmem>>, vector<1x1x8x32xf32>
    %577 = vector.shape_cast %576 : vector<1x1x8x32xf32> to vector<8x32xf32>
    %cst_433 = arith.constant dense<0.000000e+00> : vector<8x8xf32>
    %578 = tpu.matmul %573, %577, %cst_433 {dimension_numbers = #tpu.dot_dimension_numbers<[1], [1], [0], [0], [0, 0, 1, 0], [], []>} : vector<8x32xf32>, vector<8x32xf32>, vector<8x8xf32> -> vector<8x8xf32>
    %cst_434 = arith.constant 0.353553385 : f32
    %579 = vector.broadcast %cst_434 : f32 to vector<8x8xf32>
    %580 = arith.mulf %578, %579 : vector<8x8xf32>
    %c1_435 = arith.constant 1 : index
    %c0_436 = arith.constant 0 : index
    %c0_437 = arith.constant 0 : index
    %c0_438 = arith.constant 0 : index
    %581 = vector.load %arg16[%c1_435, %c0_436, %c0_437, %c0_438] : memref<2x4x8x32xf32, #tpu.memory_space<vmem>>, vector<1x1x8x32xf32>
    %582 = vector.shape_cast %581 : vector<1x1x8x32xf32> to vector<8x32xf32>
    %cst_439 = arith.constant dense<0.000000e+00> : vector<16x8xf32>
    %583 = tpu.matmul %8, %582, %cst_439 {dimension_numbers = #tpu.dot_dimension_numbers<[1], [1], [0], [0], [0, 0, 1, 0], [], []>} : vector<16x32xf32>, vector<8x32xf32>, vector<16x8xf32> -> vector<16x8xf32>
    %c1_440 = arith.constant 1 : index
    %c0_441 = arith.constant 0 : index
    %c0_442 = arith.constant 0 : index
    %c0_443 = arith.constant 0 : index
    %584 = vector.load %arg17[%c1_440, %c0_441, %c0_442, %c0_443] : memref<2x4x8x32xf32, #tpu.memory_space<vmem>>, vector<1x1x8x32xf32>
    %585 = vector.shape_cast %584 : vector<1x1x8x32xf32> to vector<8x32xf32>
    %cst_444 = arith.constant dense<0.000000e+00> : vector<16x8xf32>
    %586 = tpu.matmul %8, %585, %cst_444 {dimension_numbers = #tpu.dot_dimension_numbers<[1], [1], [0], [0], [0, 0, 1, 0], [], []>} : vector<16x32xf32>, vector<8x32xf32>, vector<16x8xf32> -> vector<16x8xf32>
    %cst_445 = arith.constant dense<0.000000e+00> : vector<8x16xf32>
    %587 = tpu.matmul %580, %583, %cst_445 {dimension_numbers = #tpu.dot_dimension_numbers<[1], [1], [0], [0], [0, 0, 1, 0], [], []>} : vector<8x8xf32>, vector<16x8xf32>, vector<8x16xf32> -> vector<8x16xf32>
    %cst_446 = arith.constant -9.99999984E+17 : f32
    %588 = vector.shape_cast %16 : vector<1x16xi1> to vector<1x16xi1>
    %589 = vector.broadcast %588 : vector<1x16xi1> to vector<8x16xi1>
    %590 = vector.broadcast %cst_446 : f32 to vector<8x16xf32>
    %591 = arith.select %589, %590, %587 : vector<8x16xi1>, vector<8x16xf32>
    %592 = arith.addf %575, %591 : vector<8x16xf32>
    %cst_447 = arith.constant dense<0xFF800000> : vector<8xf32>
    %593 = vector.multi_reduction <maximumf>, %591, %cst_447 [1] : vector<8x16xf32> to vector<8xf32>
    %cst_448 = arith.constant 0xFF800000 : f32
    %594 = vector.broadcast %cst_448 : f32 to vector<8xf32>
    %595 = arith.maximumf %594, %593 : vector<8xf32>
    %596 = vector.shape_cast %595 : vector<8xf32> to vector<8x1xf32>
    %597 = vector.broadcast %596 : vector<8x1xf32> to vector<8x16xf32>
    %598 = arith.subf %591, %597 : vector<8x16xf32>
    %599 = math.exp %598 : vector<8x16xf32>
    %cst_449 = arith.constant dense<0.000000e+00> : vector<8xf32>
    %600 = vector.multi_reduction <add>, %599, %cst_449 [1] : vector<8x16xf32> to vector<8xf32>
    %601 = vector.shape_cast %600 : vector<8xf32> to vector<8x1xf32>
    %602 = vector.broadcast %601 : vector<8x1xf32> to vector<8x16xf32>
    %603 = arith.divf %599, %602 : vector<8x16xf32>
    %cst_450 = arith.constant dense<0.000000e+00> : vector<8x8xf32>
    %604 = tpu.matmul %603, %586, %cst_450 {dimension_numbers = #tpu.dot_dimension_numbers<[1], [0], [0], [1], [0, 0, 1, 1], [], []>} : vector<8x16xf32>, vector<16x8xf32>, vector<8x8xf32> -> vector<8x8xf32>
    %c1_451 = arith.constant 1 : index
    %c0_452 = arith.constant 0 : index
    %c0_453 = arith.constant 0 : index
    %c0_454 = arith.constant 0 : index
    %605 = vector.load %arg18[%c1_451, %c0_452, %c0_453, %c0_454] : memref<2x4x32x8xf32, #tpu.memory_space<vmem>>, vector<1x1x32x8xf32>
    %606 = vector.shape_cast %605 : vector<1x1x32x8xf32> to vector<32x8xf32>
    %cst_455 = arith.constant dense<0.000000e+00> : vector<8x32xf32>
    %607 = tpu.matmul %604, %606, %cst_455 {dimension_numbers = #tpu.dot_dimension_numbers<[1], [1], [0], [0], [0, 0, 1, 0], [], []>} : vector<8x8xf32>, vector<32x8xf32>, vector<8x32xf32> -> vector<8x32xf32>
    %608 = arith.addf %574, %607 : vector<8x32xf32>
    %c1_456 = arith.constant 1 : index
    %c1_457 = arith.constant 1 : index
    %c0_458 = arith.constant 0 : index
    %c0_459 = arith.constant 0 : index
    %609 = vector.load %arg15[%c1_456, %c1_457, %c0_458, %c0_459] : memref<2x4x8x32xf32, #tpu.memory_space<vmem>>, vector<1x1x8x32xf32>
    %610 = vector.shape_cast %609 : vector<1x1x8x32xf32> to vector<8x32xf32>
    %cst_460 = arith.constant dense<0.000000e+00> : vector<8x8xf32>
    %611 = tpu.matmul %573, %610, %cst_460 {dimension_numbers = #tpu.dot_dimension_numbers<[1], [1], [0], [0], [0, 0, 1, 0], [], []>} : vector<8x32xf32>, vector<8x32xf32>, vector<8x8xf32> -> vector<8x8xf32>
    %cst_461 = arith.constant 0.353553385 : f32
    %612 = vector.broadcast %cst_461 : f32 to vector<8x8xf32>
    %613 = arith.mulf %611, %612 : vector<8x8xf32>
    %c1_462 = arith.constant 1 : index
    %c1_463 = arith.constant 1 : index
    %c0_464 = arith.constant 0 : index
    %c0_465 = arith.constant 0 : index
    %614 = vector.load %arg16[%c1_462, %c1_463, %c0_464, %c0_465] : memref<2x4x8x32xf32, #tpu.memory_space<vmem>>, vector<1x1x8x32xf32>
    %615 = vector.shape_cast %614 : vector<1x1x8x32xf32> to vector<8x32xf32>
    %cst_466 = arith.constant dense<0.000000e+00> : vector<16x8xf32>
    %616 = tpu.matmul %8, %615, %cst_466 {dimension_numbers = #tpu.dot_dimension_numbers<[1], [1], [0], [0], [0, 0, 1, 0], [], []>} : vector<16x32xf32>, vector<8x32xf32>, vector<16x8xf32> -> vector<16x8xf32>
    %c1_467 = arith.constant 1 : index
    %c1_468 = arith.constant 1 : index
    %c0_469 = arith.constant 0 : index
    %c0_470 = arith.constant 0 : index
    %617 = vector.load %arg17[%c1_467, %c1_468, %c0_469, %c0_470] : memref<2x4x8x32xf32, #tpu.memory_space<vmem>>, vector<1x1x8x32xf32>
    %618 = vector.shape_cast %617 : vector<1x1x8x32xf32> to vector<8x32xf32>
    %cst_471 = arith.constant dense<0.000000e+00> : vector<16x8xf32>
    %619 = tpu.matmul %8, %618, %cst_471 {dimension_numbers = #tpu.dot_dimension_numbers<[1], [1], [0], [0], [0, 0, 1, 0], [], []>} : vector<16x32xf32>, vector<8x32xf32>, vector<16x8xf32> -> vector<16x8xf32>
    %cst_472 = arith.constant dense<0.000000e+00> : vector<8x16xf32>
    %620 = tpu.matmul %613, %616, %cst_472 {dimension_numbers = #tpu.dot_dimension_numbers<[1], [1], [0], [0], [0, 0, 1, 0], [], []>} : vector<8x8xf32>, vector<16x8xf32>, vector<8x16xf32> -> vector<8x16xf32>
    %cst_473 = arith.constant -9.99999984E+17 : f32
    %621 = vector.shape_cast %16 : vector<1x16xi1> to vector<1x16xi1>
    %622 = vector.broadcast %621 : vector<1x16xi1> to vector<8x16xi1>
    %623 = vector.broadcast %cst_473 : f32 to vector<8x16xf32>
    %624 = arith.select %622, %623, %620 : vector<8x16xi1>, vector<8x16xf32>
    %625 = arith.addf %592, %624 : vector<8x16xf32>
    %cst_474 = arith.constant dense<0xFF800000> : vector<8xf32>
    %626 = vector.multi_reduction <maximumf>, %624, %cst_474 [1] : vector<8x16xf32> to vector<8xf32>
    %cst_475 = arith.constant 0xFF800000 : f32
    %627 = vector.broadcast %cst_475 : f32 to vector<8xf32>
    %628 = arith.maximumf %627, %626 : vector<8xf32>
    %629 = vector.shape_cast %628 : vector<8xf32> to vector<8x1xf32>
    %630 = vector.broadcast %629 : vector<8x1xf32> to vector<8x16xf32>
    %631 = arith.subf %624, %630 : vector<8x16xf32>
    %632 = math.exp %631 : vector<8x16xf32>
    %cst_476 = arith.constant dense<0.000000e+00> : vector<8xf32>
    %633 = vector.multi_reduction <add>, %632, %cst_476 [1] : vector<8x16xf32> to vector<8xf32>
    %634 = vector.shape_cast %633 : vector<8xf32> to vector<8x1xf32>
    %635 = vector.broadcast %634 : vector<8x1xf32> to vector<8x16xf32>
    %636 = arith.divf %632, %635 : vector<8x16xf32>
    %cst_477 = arith.constant dense<0.000000e+00> : vector<8x8xf32>
    %637 = tpu.matmul %636, %619, %cst_477 {dimension_numbers = #tpu.dot_dimension_numbers<[1], [0], [0], [1], [0, 0, 1, 1], [], []>} : vector<8x16xf32>, vector<16x8xf32>, vector<8x8xf32> -> vector<8x8xf32>
    %c1_478 = arith.constant 1 : index
    %c1_479 = arith.constant 1 : index
    %c0_480 = arith.constant 0 : index
    %c0_481 = arith.constant 0 : index
    %638 = vector.load %arg18[%c1_478, %c1_479, %c0_480, %c0_481] : memref<2x4x32x8xf32, #tpu.memory_space<vmem>>, vector<1x1x32x8xf32>
    %639 = vector.shape_cast %638 : vector<1x1x32x8xf32> to vector<32x8xf32>
    %cst_482 = arith.constant dense<0.000000e+00> : vector<8x32xf32>
    %640 = tpu.matmul %637, %639, %cst_482 {dimension_numbers = #tpu.dot_dimension_numbers<[1], [1], [0], [0], [0, 0, 1, 0], [], []>} : vector<8x8xf32>, vector<32x8xf32>, vector<8x32xf32> -> vector<8x32xf32>
    %641 = arith.addf %608, %640 : vector<8x32xf32>
    %c1_483 = arith.constant 1 : index
    %c2_484 = arith.constant 2 : index
    %c0_485 = arith.constant 0 : index
    %c0_486 = arith.constant 0 : index
    %642 = vector.load %arg15[%c1_483, %c2_484, %c0_485, %c0_486] : memref<2x4x8x32xf32, #tpu.memory_space<vmem>>, vector<1x1x8x32xf32>
    %643 = vector.shape_cast %642 : vector<1x1x8x32xf32> to vector<8x32xf32>
    %cst_487 = arith.constant dense<0.000000e+00> : vector<8x8xf32>
    %644 = tpu.matmul %573, %643, %cst_487 {dimension_numbers = #tpu.dot_dimension_numbers<[1], [1], [0], [0], [0, 0, 1, 0], [], []>} : vector<8x32xf32>, vector<8x32xf32>, vector<8x8xf32> -> vector<8x8xf32>
    %cst_488 = arith.constant 0.353553385 : f32
    %645 = vector.broadcast %cst_488 : f32 to vector<8x8xf32>
    %646 = arith.mulf %644, %645 : vector<8x8xf32>
    %c1_489 = arith.constant 1 : index
    %c2_490 = arith.constant 2 : index
    %c0_491 = arith.constant 0 : index
    %c0_492 = arith.constant 0 : index
    %647 = vector.load %arg16[%c1_489, %c2_490, %c0_491, %c0_492] : memref<2x4x8x32xf32, #tpu.memory_space<vmem>>, vector<1x1x8x32xf32>
    %648 = vector.shape_cast %647 : vector<1x1x8x32xf32> to vector<8x32xf32>
    %cst_493 = arith.constant dense<0.000000e+00> : vector<16x8xf32>
    %649 = tpu.matmul %8, %648, %cst_493 {dimension_numbers = #tpu.dot_dimension_numbers<[1], [1], [0], [0], [0, 0, 1, 0], [], []>} : vector<16x32xf32>, vector<8x32xf32>, vector<16x8xf32> -> vector<16x8xf32>
    %c1_494 = arith.constant 1 : index
    %c2_495 = arith.constant 2 : index
    %c0_496 = arith.constant 0 : index
    %c0_497 = arith.constant 0 : index
    %650 = vector.load %arg17[%c1_494, %c2_495, %c0_496, %c0_497] : memref<2x4x8x32xf32, #tpu.memory_space<vmem>>, vector<1x1x8x32xf32>
    %651 = vector.shape_cast %650 : vector<1x1x8x32xf32> to vector<8x32xf32>
    %cst_498 = arith.constant dense<0.000000e+00> : vector<16x8xf32>
    %652 = tpu.matmul %8, %651, %cst_498 {dimension_numbers = #tpu.dot_dimension_numbers<[1], [1], [0], [0], [0, 0, 1, 0], [], []>} : vector<16x32xf32>, vector<8x32xf32>, vector<16x8xf32> -> vector<16x8xf32>
    %cst_499 = arith.constant dense<0.000000e+00> : vector<8x16xf32>
    %653 = tpu.matmul %646, %649, %cst_499 {dimension_numbers = #tpu.dot_dimension_numbers<[1], [1], [0], [0], [0, 0, 1, 0], [], []>} : vector<8x8xf32>, vector<16x8xf32>, vector<8x16xf32> -> vector<8x16xf32>
    %cst_500 = arith.constant -9.99999984E+17 : f32
    %654 = vector.shape_cast %16 : vector<1x16xi1> to vector<1x16xi1>
    %655 = vector.broadcast %654 : vector<1x16xi1> to vector<8x16xi1>
    %656 = vector.broadcast %cst_500 : f32 to vector<8x16xf32>
    %657 = arith.select %655, %656, %653 : vector<8x16xi1>, vector<8x16xf32>
    %658 = arith.addf %625, %657 : vector<8x16xf32>
    %cst_501 = arith.constant dense<0xFF800000> : vector<8xf32>
    %659 = vector.multi_reduction <maximumf>, %657, %cst_501 [1] : vector<8x16xf32> to vector<8xf32>
    %cst_502 = arith.constant 0xFF800000 : f32
    %660 = vector.broadcast %cst_502 : f32 to vector<8xf32>
    %661 = arith.maximumf %660, %659 : vector<8xf32>
    %662 = vector.shape_cast %661 : vector<8xf32> to vector<8x1xf32>
    %663 = vector.broadcast %662 : vector<8x1xf32> to vector<8x16xf32>
    %664 = arith.subf %657, %663 : vector<8x16xf32>
    %665 = math.exp %664 : vector<8x16xf32>
    %cst_503 = arith.constant dense<0.000000e+00> : vector<8xf32>
    %666 = vector.multi_reduction <add>, %665, %cst_503 [1] : vector<8x16xf32> to vector<8xf32>
    %667 = vector.shape_cast %666 : vector<8xf32> to vector<8x1xf32>
    %668 = vector.broadcast %667 : vector<8x1xf32> to vector<8x16xf32>
    %669 = arith.divf %665, %668 : vector<8x16xf32>
    %cst_504 = arith.constant dense<0.000000e+00> : vector<8x8xf32>
    %670 = tpu.matmul %669, %652, %cst_504 {dimension_numbers = #tpu.dot_dimension_numbers<[1], [0], [0], [1], [0, 0, 1, 1], [], []>} : vector<8x16xf32>, vector<16x8xf32>, vector<8x8xf32> -> vector<8x8xf32>
    %c1_505 = arith.constant 1 : index
    %c2_506 = arith.constant 2 : index
    %c0_507 = arith.constant 0 : index
    %c0_508 = arith.constant 0 : index
    %671 = vector.load %arg18[%c1_505, %c2_506, %c0_507, %c0_508] : memref<2x4x32x8xf32, #tpu.memory_space<vmem>>, vector<1x1x32x8xf32>
    %672 = vector.shape_cast %671 : vector<1x1x32x8xf32> to vector<32x8xf32>
    %cst_509 = arith.constant dense<0.000000e+00> : vector<8x32xf32>
    %673 = tpu.matmul %670, %672, %cst_509 {dimension_numbers = #tpu.dot_dimension_numbers<[1], [1], [0], [0], [0, 0, 1, 0], [], []>} : vector<8x8xf32>, vector<32x8xf32>, vector<8x32xf32> -> vector<8x32xf32>
    %674 = arith.addf %641, %673 : vector<8x32xf32>
    %c1_510 = arith.constant 1 : index
    %c3_511 = arith.constant 3 : index
    %c0_512 = arith.constant 0 : index
    %c0_513 = arith.constant 0 : index
    %675 = vector.load %arg15[%c1_510, %c3_511, %c0_512, %c0_513] : memref<2x4x8x32xf32, #tpu.memory_space<vmem>>, vector<1x1x8x32xf32>
    %676 = vector.shape_cast %675 : vector<1x1x8x32xf32> to vector<8x32xf32>
    %cst_514 = arith.constant dense<0.000000e+00> : vector<8x8xf32>
    %677 = tpu.matmul %573, %676, %cst_514 {dimension_numbers = #tpu.dot_dimension_numbers<[1], [1], [0], [0], [0, 0, 1, 0], [], []>} : vector<8x32xf32>, vector<8x32xf32>, vector<8x8xf32> -> vector<8x8xf32>
    %cst_515 = arith.constant 0.353553385 : f32
    %678 = vector.broadcast %cst_515 : f32 to vector<8x8xf32>
    %679 = arith.mulf %677, %678 : vector<8x8xf32>
    %c1_516 = arith.constant 1 : index
    %c3_517 = arith.constant 3 : index
    %c0_518 = arith.constant 0 : index
    %c0_519 = arith.constant 0 : index
    %680 = vector.load %arg16[%c1_516, %c3_517, %c0_518, %c0_519] : memref<2x4x8x32xf32, #tpu.memory_space<vmem>>, vector<1x1x8x32xf32>
    %681 = vector.shape_cast %680 : vector<1x1x8x32xf32> to vector<8x32xf32>
    %cst_520 = arith.constant dense<0.000000e+00> : vector<16x8xf32>
    %682 = tpu.matmul %8, %681, %cst_520 {dimension_numbers = #tpu.dot_dimension_numbers<[1], [1], [0], [0], [0, 0, 1, 0], [], []>} : vector<16x32xf32>, vector<8x32xf32>, vector<16x8xf32> -> vector<16x8xf32>
    %c1_521 = arith.constant 1 : index
    %c3_522 = arith.constant 3 : index
    %c0_523 = arith.constant 0 : index
    %c0_524 = arith.constant 0 : index
    %683 = vector.load %arg17[%c1_521, %c3_522, %c0_523, %c0_524] : memref<2x4x8x32xf32, #tpu.memory_space<vmem>>, vector<1x1x8x32xf32>
    %684 = vector.shape_cast %683 : vector<1x1x8x32xf32> to vector<8x32xf32>
    %cst_525 = arith.constant dense<0.000000e+00> : vector<16x8xf32>
    %685 = tpu.matmul %8, %684, %cst_525 {dimension_numbers = #tpu.dot_dimension_numbers<[1], [1], [0], [0], [0, 0, 1, 0], [], []>} : vector<16x32xf32>, vector<8x32xf32>, vector<16x8xf32> -> vector<16x8xf32>
    %cst_526 = arith.constant dense<0.000000e+00> : vector<8x16xf32>
    %686 = tpu.matmul %679, %682, %cst_526 {dimension_numbers = #tpu.dot_dimension_numbers<[1], [1], [0], [0], [0, 0, 1, 0], [], []>} : vector<8x8xf32>, vector<16x8xf32>, vector<8x16xf32> -> vector<8x16xf32>
    %cst_527 = arith.constant -9.99999984E+17 : f32
    %687 = vector.shape_cast %16 : vector<1x16xi1> to vector<1x16xi1>
    %688 = vector.broadcast %687 : vector<1x16xi1> to vector<8x16xi1>
    %689 = vector.broadcast %cst_527 : f32 to vector<8x16xf32>
    %690 = arith.select %688, %689, %686 : vector<8x16xi1>, vector<8x16xf32>
    %691 = arith.addf %658, %690 : vector<8x16xf32>
    %cst_528 = arith.constant dense<0xFF800000> : vector<8xf32>
    %692 = vector.multi_reduction <maximumf>, %690, %cst_528 [1] : vector<8x16xf32> to vector<8xf32>
    %cst_529 = arith.constant 0xFF800000 : f32
    %693 = vector.broadcast %cst_529 : f32 to vector<8xf32>
    %694 = arith.maximumf %693, %692 : vector<8xf32>
    %695 = vector.shape_cast %694 : vector<8xf32> to vector<8x1xf32>
    %696 = vector.broadcast %695 : vector<8x1xf32> to vector<8x16xf32>
    %697 = arith.subf %690, %696 : vector<8x16xf32>
    %698 = math.exp %697 : vector<8x16xf32>
    %cst_530 = arith.constant dense<0.000000e+00> : vector<8xf32>
    %699 = vector.multi_reduction <add>, %698, %cst_530 [1] : vector<8x16xf32> to vector<8xf32>
    %700 = vector.shape_cast %699 : vector<8xf32> to vector<8x1xf32>
    %701 = vector.broadcast %700 : vector<8x1xf32> to vector<8x16xf32>
    %702 = arith.divf %698, %701 : vector<8x16xf32>
    %cst_531 = arith.constant dense<0.000000e+00> : vector<8x8xf32>
    %703 = tpu.matmul %702, %685, %cst_531 {dimension_numbers = #tpu.dot_dimension_numbers<[1], [0], [0], [1], [0, 0, 1, 1], [], []>} : vector<8x16xf32>, vector<16x8xf32>, vector<8x8xf32> -> vector<8x8xf32>
    %c1_532 = arith.constant 1 : index
    %c3_533 = arith.constant 3 : index
    %c0_534 = arith.constant 0 : index
    %c0_535 = arith.constant 0 : index
    %704 = vector.load %arg18[%c1_532, %c3_533, %c0_534, %c0_535] : memref<2x4x32x8xf32, #tpu.memory_space<vmem>>, vector<1x1x32x8xf32>
    %705 = vector.shape_cast %704 : vector<1x1x32x8xf32> to vector<32x8xf32>
    %cst_536 = arith.constant dense<0.000000e+00> : vector<8x32xf32>
    %706 = tpu.matmul %703, %705, %cst_536 {dimension_numbers = #tpu.dot_dimension_numbers<[1], [1], [0], [0], [0, 0, 1, 0], [], []>} : vector<8x8xf32>, vector<32x8xf32>, vector<8x32xf32> -> vector<8x32xf32>
    %707 = arith.addf %674, %706 : vector<8x32xf32>
    %cst_537 = arith.constant 2.500000e-01 : f32
    %708 = vector.broadcast %cst_537 : f32 to vector<8x16xf32>
    %709 = arith.mulf %691, %708 : vector<8x16xf32>
    %710 = arith.addf %545, %707 : vector<8x32xf32>
    %c1_538 = arith.constant 1 : index
    %c0_539 = arith.constant 0 : index
    %c0_540 = arith.constant 0 : index
    %711 = vector.load %arg19[%c1_538, %c0_539, %c0_540] : memref<2x1x32xf32, #tpu.memory_space<vmem>>, vector<1x1x32xf32>
    %712 = vector.shape_cast %711 : vector<1x1x32xf32> to vector<1x32xf32>
    %c1_541 = arith.constant 1 : index
    %c0_542 = arith.constant 0 : index
    %c0_543 = arith.constant 0 : index
    %713 = vector.load %arg20[%c1_541, %c0_542, %c0_543] : memref<2x1x32xf32, #tpu.memory_space<vmem>>, vector<1x1x32xf32>
    %714 = vector.shape_cast %713 : vector<1x1x32xf32> to vector<1x32xf32>
    %cst_544 = arith.constant dense<0.000000e+00> : vector<8xf32>
    %715 = vector.multi_reduction <add>, %710, %cst_544 [1] : vector<8x32xf32> to vector<8xf32>
    %716 = vector.shape_cast %715 : vector<8xf32> to vector<8x1xf32>
    %717 = arith.mulf %710, %710 : vector<8x32xf32>
    %cst_545 = arith.constant dense<0.000000e+00> : vector<8xf32>
    %718 = vector.multi_reduction <add>, %717, %cst_545 [1] : vector<8x32xf32> to vector<8xf32>
    %719 = vector.shape_cast %718 : vector<8xf32> to vector<8x1xf32>
    %cst_546 = arith.constant 3.125000e-02 : f32
    %720 = vector.broadcast %cst_546 : f32 to vector<8x1xf32>
    %721 = arith.mulf %716, %720 : vector<8x1xf32>
    %722 = arith.mulf %716, %721 : vector<8x1xf32>
    %723 = arith.subf %719, %722 : vector<8x1xf32>
    %cst_547 = arith.constant 0.000000e+00 : f32
    %724 = vector.broadcast %cst_547 : f32 to vector<8x1xf32>
    %725 = arith.maximumf %723, %724 : vector<8x1xf32>
    %cst_548 = arith.constant 0.0322580636 : f32
    %726 = vector.broadcast %cst_548 : f32 to vector<8x1xf32>
    %727 = arith.mulf %725, %726 : vector<8x1xf32>
    %728 = math.sqrt %727 : vector<8x1xf32>
    %729 = vector.broadcast %721 : vector<8x1xf32> to vector<8x32xf32>
    %730 = arith.subf %710, %729 : vector<8x32xf32>
    %731 = vector.broadcast %712 : vector<1x32xf32> to vector<8x32xf32>
    %732 = arith.mulf %731, %730 : vector<8x32xf32>
    %cst_549 = arith.constant 9.99999997E-7 : f32
    %733 = vector.broadcast %cst_549 : f32 to vector<8x1xf32>
    %734 = arith.addf %728, %733 : vector<8x1xf32>
    %735 = vector.broadcast %734 : vector<8x1xf32> to vector<8x32xf32>
    %736 = arith.divf %732, %735 : vector<8x32xf32>
    %737 = vector.broadcast %714 : vector<1x32xf32> to vector<8x32xf32>
    %738 = arith.addf %736, %737 : vector<8x32xf32>
    %c1_550 = arith.constant 1 : index
    %c0_551 = arith.constant 0 : index
    %c0_552 = arith.constant 0 : index
    %739 = vector.load %arg21[%c1_550, %c0_551, %c0_552] : memref<2x64x96xf32, #tpu.memory_space<vmem>>, vector<1x64x96xf32>
    %740 = vector.shape_cast %739 : vector<1x64x96xf32> to vector<64x96xf32>
    %c1_553 = arith.constant 1 : index
    %c0_554 = arith.constant 0 : index
    %c0_555 = arith.constant 0 : index
    %741 = vector.load %arg22[%c1_553, %c0_554, %c0_555] : memref<2x1x64xf32, #tpu.memory_space<vmem>>, vector<1x1x64xf32>
    %742 = vector.shape_cast %741 : vector<1x1x64xf32> to vector<1x64xf32>
    %c2_i32_556 = arith.constant 2 : i32
    %743 = tpu.dynamic_rotate %738 by %c2_i32_556 dim 0 : vector<8x32xf32>, i32 -> vector<8x32xf32>
    %744 = tpu.iota {dimensions = array<i32: 0>} : vector<8x32xi32>
    %c2_i32_557 = arith.constant 2 : i32
    %745 = vector.broadcast %c2_i32_557 : i32 to vector<8x32xi32>
    %746 = arith.cmpi slt, %744, %745 : vector<8x32xi32>
    %cst_558 = arith.constant 0.000000e+00 : f32
    %747 = vector.broadcast %cst_558 : f32 to vector<8x32xf32>
    %748 = arith.select %746, %747, %743 : vector<8x32xi1>, vector<8x32xf32>
    %c1_i32_559 = arith.constant 1 : i32
    %749 = tpu.dynamic_rotate %738 by %c1_i32_559 dim 0 : vector<8x32xf32>, i32 -> vector<8x32xf32>
    %750 = tpu.iota {dimensions = array<i32: 0>} : vector<8x32xi32>
    %c1_i32_560 = arith.constant 1 : i32
    %751 = vector.broadcast %c1_i32_560 : i32 to vector<8x32xi32>
    %752 = arith.cmpi slt, %750, %751 : vector<8x32xi32>
    %cst_561 = arith.constant 0.000000e+00 : f32
    %753 = vector.broadcast %cst_561 : f32 to vector<8x32xf32>
    %754 = arith.select %752, %753, %749 : vector<8x32xi1>, vector<8x32xf32>
    %755 = tpu.concatenate %748, %754, %738 in 1 : vector<8x32xf32>, vector<8x32xf32>, vector<8x32xf32> -> vector<8x96xf32>
    %cst_562 = arith.constant dense<0.000000e+00> : vector<8x64xf32>
    %756 = tpu.matmul %755, %740, %cst_562 {dimension_numbers = #tpu.dot_dimension_numbers<[1], [1], [0], [0], [0, 0, 1, 0], [], []>} : vector<8x96xf32>, vector<64x96xf32>, vector<8x64xf32> -> vector<8x64xf32>
    %757 = vector.broadcast %742 : vector<1x64xf32> to vector<8x64xf32>
    %758 = arith.addf %756, %757 : vector<8x64xf32>
    %cst_563 = arith.constant 0.000000e+00 : f32
    %759 = vector.broadcast %cst_563 : f32 to vector<8x64xf32>
    %760 = arith.maximumf %758, %759 : vector<8x64xf32>
    %c1_564 = arith.constant 1 : index
    %c0_565 = arith.constant 0 : index
    %c0_566 = arith.constant 0 : index
    %761 = vector.load %arg23[%c1_564, %c0_565, %c0_566] : memref<2x32x192xf32, #tpu.memory_space<vmem>>, vector<1x32x192xf32>
    %762 = vector.shape_cast %761 : vector<1x32x192xf32> to vector<32x192xf32>
    %c1_567 = arith.constant 1 : index
    %c0_568 = arith.constant 0 : index
    %c0_569 = arith.constant 0 : index
    %763 = vector.load %arg24[%c1_567, %c0_568, %c0_569] : memref<2x1x32xf32, #tpu.memory_space<vmem>>, vector<1x1x32xf32>
    %764 = vector.shape_cast %763 : vector<1x1x32xf32> to vector<1x32xf32>
    %c2_i32_570 = arith.constant 2 : i32
    %765 = tpu.dynamic_rotate %760 by %c2_i32_570 dim 0 : vector<8x64xf32>, i32 -> vector<8x64xf32>
    %766 = tpu.iota {dimensions = array<i32: 0>} : vector<8x64xi32>
    %c2_i32_571 = arith.constant 2 : i32
    %767 = vector.broadcast %c2_i32_571 : i32 to vector<8x64xi32>
    %768 = arith.cmpi slt, %766, %767 : vector<8x64xi32>
    %cst_572 = arith.constant 0.000000e+00 : f32
    %769 = vector.broadcast %cst_572 : f32 to vector<8x64xf32>
    %770 = arith.select %768, %769, %765 : vector<8x64xi1>, vector<8x64xf32>
    %c1_i32_573 = arith.constant 1 : i32
    %771 = tpu.dynamic_rotate %760 by %c1_i32_573 dim 0 : vector<8x64xf32>, i32 -> vector<8x64xf32>
    %772 = tpu.iota {dimensions = array<i32: 0>} : vector<8x64xi32>
    %c1_i32_574 = arith.constant 1 : i32
    %773 = vector.broadcast %c1_i32_574 : i32 to vector<8x64xi32>
    %774 = arith.cmpi slt, %772, %773 : vector<8x64xi32>
    %cst_575 = arith.constant 0.000000e+00 : f32
    %775 = vector.broadcast %cst_575 : f32 to vector<8x64xf32>
    %776 = arith.select %774, %775, %771 : vector<8x64xi1>, vector<8x64xf32>
    %777 = tpu.concatenate %770, %776, %760 in 1 : vector<8x64xf32>, vector<8x64xf32>, vector<8x64xf32> -> vector<8x192xf32>
    %cst_576 = arith.constant dense<0.000000e+00> : vector<8x32xf32>
    %778 = tpu.matmul %777, %762, %cst_576 {dimension_numbers = #tpu.dot_dimension_numbers<[1], [1], [0], [0], [0, 0, 1, 0], [], []>} : vector<8x192xf32>, vector<32x192xf32>, vector<8x32xf32> -> vector<8x32xf32>
    %779 = vector.broadcast %764 : vector<1x32xf32> to vector<8x32xf32>
    %780 = arith.addf %778, %779 : vector<8x32xf32>
    %781 = arith.addf %710, %780 : vector<8x32xf32>
    %c0_577 = arith.constant 0 : index
    %c0_578 = arith.constant 0 : index
    %782 = vector.load %arg25[%c0_577, %c0_578] : memref<1x32xf32, #tpu.memory_space<vmem>>, vector<1x32xf32>
    %c0_579 = arith.constant 0 : index
    %c0_580 = arith.constant 0 : index
    %783 = vector.load %arg26[%c0_579, %c0_580] : memref<1x32xf32, #tpu.memory_space<vmem>>, vector<1x32xf32>
    %cst_581 = arith.constant dense<0.000000e+00> : vector<8xf32>
    %784 = vector.multi_reduction <add>, %781, %cst_581 [1] : vector<8x32xf32> to vector<8xf32>
    %785 = vector.shape_cast %784 : vector<8xf32> to vector<8x1xf32>
    %786 = arith.mulf %781, %781 : vector<8x32xf32>
    %cst_582 = arith.constant dense<0.000000e+00> : vector<8xf32>
    %787 = vector.multi_reduction <add>, %786, %cst_582 [1] : vector<8x32xf32> to vector<8xf32>
    %788 = vector.shape_cast %787 : vector<8xf32> to vector<8x1xf32>
    %cst_583 = arith.constant 3.125000e-02 : f32
    %789 = vector.broadcast %cst_583 : f32 to vector<8x1xf32>
    %790 = arith.mulf %785, %789 : vector<8x1xf32>
    %791 = arith.mulf %785, %790 : vector<8x1xf32>
    %792 = arith.subf %788, %791 : vector<8x1xf32>
    %cst_584 = arith.constant 0.000000e+00 : f32
    %793 = vector.broadcast %cst_584 : f32 to vector<8x1xf32>
    %794 = arith.maximumf %792, %793 : vector<8x1xf32>
    %cst_585 = arith.constant 0.0322580636 : f32
    %795 = vector.broadcast %cst_585 : f32 to vector<8x1xf32>
    %796 = arith.mulf %794, %795 : vector<8x1xf32>
    %797 = math.sqrt %796 : vector<8x1xf32>
    %798 = vector.broadcast %790 : vector<8x1xf32> to vector<8x32xf32>
    %799 = arith.subf %781, %798 : vector<8x32xf32>
    %800 = vector.broadcast %782 : vector<1x32xf32> to vector<8x32xf32>
    %801 = arith.mulf %800, %799 : vector<8x32xf32>
    %cst_586 = arith.constant 9.99999997E-7 : f32
    %802 = vector.broadcast %cst_586 : f32 to vector<8x1xf32>
    %803 = arith.addf %797, %802 : vector<8x1xf32>
    %804 = vector.broadcast %803 : vector<8x1xf32> to vector<8x32xf32>
    %805 = arith.divf %801, %804 : vector<8x32xf32>
    %806 = vector.broadcast %783 : vector<1x32xf32> to vector<8x32xf32>
    %807 = arith.addf %805, %806 : vector<8x32xf32>
    %c0_587 = arith.constant 0 : index
    %c0_588 = arith.constant 0 : index
    %c0_589 = arith.constant 0 : index
    %808 = vector.load %arg27[%c0_587, %c0_588, %c0_589] : memref<1x8x32xf32, #tpu.memory_space<vmem>>, vector<1x8x32xf32>
    %809 = vector.shape_cast %808 : vector<1x8x32xf32> to vector<8x32xf32>
    %810 = vector.shape_cast %807 : vector<8x32xf32> to vector<1x8x32xf32>
    tpu.vector_store %arg27[%c0_587, %c0_588, %c0_589], %810 {strides = array<i32>} : memref<1x8x32xf32, #tpu.memory_space<vmem>>, vector<1x8x32xf32>,
    %c0_590 = arith.constant 0 : index
    %c0_591 = arith.constant 0 : index
    %c0_592 = arith.constant 0 : index
    %811 = vector.load %arg28[%c0_590, %c0_591, %c0_592] : memref<1x8x16xf32, #tpu.memory_space<vmem>>, vector<1x8x16xf32>
    %812 = vector.shape_cast %811 : vector<1x8x16xf32> to vector<8x16xf32>
    %813 = vector.shape_cast %709 : vector<8x16xf32> to vector<1x8x16xf32>
    tpu.vector_store %arg28[%c0_590, %c0_591, %c0_592], %813 {strides = array<i32>} : memref<1x8x16xf32, #tpu.memory_space<vmem>>, vector<1x8x16xf32>,
    return
  }
  func.func @transform_0(%arg0: i32) -> (i32, i32, i32) {
    %c0_i32 = arith.constant 0 : i32
    %c0_i32_0 = arith.constant 0 : i32
    %c0_i32_1 = arith.constant 0 : i32
    return %arg0, %c0_i32, %c0_i32_0 : i32, i32, i32
  }
  func.func @transform_1(%arg0: i32) -> (i32, i32, i32) {
    %c0_i32 = arith.constant 0 : i32
    %c0_i32_0 = arith.constant 0 : i32
    %c0_i32_1 = arith.constant 0 : i32
    return %arg0, %c0_i32, %c0_i32_0 : i32, i32, i32
  }
  func.func @transform_2(%arg0: i32) -> (i32, i32, i32) {
    %c0_i32 = arith.constant 0 : i32
    %c0_i32_0 = arith.constant 0 : i32
    %c0_i32_1 = arith.constant 0 : i32
    return %arg0, %c0_i32, %c0_i32_0 : i32, i32, i32
  }
  func.func @transform_3(%arg0: i32) -> (i32, i32, i32) {
    %c0_i32 = arith.constant 0 : i32
    %c0_i32_0 = arith.constant 0 : i32
    %c0_i32_1 = arith.constant 0 : i32
    return %arg0, %c0_i32, %c0_i32_0 : i32, i32, i32
  }
  func.func @transform_4(%arg0: i32) -> (i32, i32, i32) {
    %c0_i32 = arith.constant 0 : i32
    %c0_i32_0 = arith.constant 0 : i32
    %c0_i32_1 = arith.constant 0 : i32
    %c0_i32_2 = arith.constant 0 : i32
    return %c0_i32, %c0_i32_0, %c0_i32_1 : i32, i32, i32
  }
  func.func @transform_5(%arg0: i32) -> (i32, i32) {
    %c0_i32 = arith.constant 0 : i32
    %c0_i32_0 = arith.constant 0 : i32
    %c0_i32_1 = arith.constant 0 : i32
    return %c0_i32, %c0_i32_0 : i32, i32
  }
  func.func @transform_6(%arg0: i32) -> (i32, i32, i32) {
    %c0_i32 = arith.constant 0 : i32
    %c0_i32_0 = arith.constant 0 : i32
    %c0_i32_1 = arith.constant 0 : i32
    %c0_i32_2 = arith.constant 0 : i32
    return %c0_i32, %c0_i32_0, %c0_i32_1 : i32, i32, i32
  }
  func.func @transform_7(%arg0: i32) -> (i32, i32, i32) {
    %c0_i32 = arith.constant 0 : i32
    %c0_i32_0 = arith.constant 0 : i32
    %c0_i32_1 = arith.constant 0 : i32
    %c0_i32_2 = arith.constant 0 : i32
    return %c0_i32, %c0_i32_0, %c0_i32_1 : i32, i32, i32
  }
  func.func @transform_8(%arg0: i32) -> (i32, i32, i32, i32) {
    %c0_i32 = arith.constant 0 : i32
    %c0_i32_0 = arith.constant 0 : i32
    %c0_i32_1 = arith.constant 0 : i32
    %c0_i32_2 = arith.constant 0 : i32
    %c0_i32_3 = arith.constant 0 : i32
    return %c0_i32, %c0_i32_0, %c0_i32_1, %c0_i32_2 : i32, i32, i32, i32
  }
  func.func @transform_9(%arg0: i32) -> (i32, i32, i32, i32) {
    %c0_i32 = arith.constant 0 : i32
    %c0_i32_0 = arith.constant 0 : i32
    %c0_i32_1 = arith.constant 0 : i32
    %c0_i32_2 = arith.constant 0 : i32
    %c0_i32_3 = arith.constant 0 : i32
    return %c0_i32, %c0_i32_0, %c0_i32_1, %c0_i32_2 : i32, i32, i32, i32
  }
  func.func @transform_10(%arg0: i32) -> (i32, i32, i32, i32) {
    %c0_i32 = arith.constant 0 : i32
    %c0_i32_0 = arith.constant 0 : i32
    %c0_i32_1 = arith.constant 0 : i32
    %c0_i32_2 = arith.constant 0 : i32
    %c0_i32_3 = arith.constant 0 : i32
    return %c0_i32, %c0_i32_0, %c0_i32_1, %c0_i32_2 : i32, i32, i32, i32
  }
  func.func @transform_11(%arg0: i32) -> (i32, i32, i32, i32) {
    %c0_i32 = arith.constant 0 : i32
    %c0_i32_0 = arith.constant 0 : i32
    %c0_i32_1 = arith.constant 0 : i32
    %c0_i32_2 = arith.constant 0 : i32
    %c0_i32_3 = arith.constant 0 : i32
    return %c0_i32, %c0_i32_0, %c0_i32_1, %c0_i32_2 : i32, i32, i32, i32
  }
  func.func @transform_12(%arg0: i32) -> (i32, i32, i32) {
    %c0_i32 = arith.constant 0 : i32
    %c0_i32_0 = arith.constant 0 : i32
    %c0_i32_1 = arith.constant 0 : i32
    %c0_i32_2 = arith.constant 0 : i32
    return %c0_i32, %c0_i32_0, %c0_i32_1 : i32, i32, i32
  }
  func.func @transform_13(%arg0: i32) -> (i32, i32, i32) {
    %c0_i32 = arith.constant 0 : i32
    %c0_i32_0 = arith.constant 0 : i32
    %c0_i32_1 = arith.constant 0 : i32
    %c0_i32_2 = arith.constant 0 : i32
    return %c0_i32, %c0_i32_0, %c0_i32_1 : i32, i32, i32
  }
  func.func @transform_14(%arg0: i32) -> (i32, i32, i32, i32) {
    %c0_i32 = arith.constant 0 : i32
    %c0_i32_0 = arith.constant 0 : i32
    %c0_i32_1 = arith.constant 0 : i32
    %c0_i32_2 = arith.constant 0 : i32
    %c0_i32_3 = arith.constant 0 : i32
    return %c0_i32, %c0_i32_0, %c0_i32_1, %c0_i32_2 : i32, i32, i32, i32
  }
  func.func @transform_15(%arg0: i32) -> (i32, i32, i32, i32) {
    %c0_i32 = arith.constant 0 : i32
    %c0_i32_0 = arith.constant 0 : i32
    %c0_i32_1 = arith.constant 0 : i32
    %c0_i32_2 = arith.constant 0 : i32
    %c0_i32_3 = arith.constant 0 : i32
    return %c0_i32, %c0_i32_0, %c0_i32_1, %c0_i32_2 : i32, i32, i32, i32
  }
  func.func @transform_16(%arg0: i32) -> (i32, i32, i32, i32) {
    %c0_i32 = arith.constant 0 : i32
    %c0_i32_0 = arith.constant 0 : i32
    %c0_i32_1 = arith.constant 0 : i32
    %c0_i32_2 = arith.constant 0 : i32
    %c0_i32_3 = arith.constant 0 : i32
    return %c0_i32, %c0_i32_0, %c0_i32_1, %c0_i32_2 : i32, i32, i32, i32
  }
  func.func @transform_17(%arg0: i32) -> (i32, i32, i32, i32) {
    %c0_i32 = arith.constant 0 : i32
    %c0_i32_0 = arith.constant 0 : i32
    %c0_i32_1 = arith.constant 0 : i32
    %c0_i32_2 = arith.constant 0 : i32
    %c0_i32_3 = arith.constant 0 : i32
    return %c0_i32, %c0_i32_0, %c0_i32_1, %c0_i32_2 : i32, i32, i32, i32
  }
  func.func @transform_18(%arg0: i32) -> (i32, i32, i32) {
    %c0_i32 = arith.constant 0 : i32
    %c0_i32_0 = arith.constant 0 : i32
    %c0_i32_1 = arith.constant 0 : i32
    %c0_i32_2 = arith.constant 0 : i32
    return %c0_i32, %c0_i32_0, %c0_i32_1 : i32, i32, i32
  }
  func.func @transform_19(%arg0: i32) -> (i32, i32, i32) {
    %c0_i32 = arith.constant 0 : i32
    %c0_i32_0 = arith.constant 0 : i32
    %c0_i32_1 = arith.constant 0 : i32
    %c0_i32_2 = arith.constant 0 : i32
    return %c0_i32, %c0_i32_0, %c0_i32_1 : i32, i32, i32
  }
  func.func @transform_20(%arg0: i32) -> (i32, i32, i32) {
    %c0_i32 = arith.constant 0 : i32
    %c0_i32_0 = arith.constant 0 : i32
    %c0_i32_1 = arith.constant 0 : i32
    %c0_i32_2 = arith.constant 0 : i32
    return %c0_i32, %c0_i32_0, %c0_i32_1 : i32, i32, i32
  }
  func.func @transform_21(%arg0: i32) -> (i32, i32, i32) {
    %c0_i32 = arith.constant 0 : i32
    %c0_i32_0 = arith.constant 0 : i32
    %c0_i32_1 = arith.constant 0 : i32
    %c0_i32_2 = arith.constant 0 : i32
    return %c0_i32, %c0_i32_0, %c0_i32_1 : i32, i32, i32
  }
  func.func @transform_22(%arg0: i32) -> (i32, i32, i32) {
    %c0_i32 = arith.constant 0 : i32
    %c0_i32_0 = arith.constant 0 : i32
    %c0_i32_1 = arith.constant 0 : i32
    %c0_i32_2 = arith.constant 0 : i32
    return %c0_i32, %c0_i32_0, %c0_i32_1 : i32, i32, i32
  }
  func.func @transform_23(%arg0: i32) -> (i32, i32, i32) {
    %c0_i32 = arith.constant 0 : i32
    %c0_i32_0 = arith.constant 0 : i32
    %c0_i32_1 = arith.constant 0 : i32
    %c0_i32_2 = arith.constant 0 : i32
    return %c0_i32, %c0_i32_0, %c0_i32_1 : i32, i32, i32
  }
  func.func @transform_24(%arg0: i32) -> (i32, i32) {
    %c0_i32 = arith.constant 0 : i32
    %c0_i32_0 = arith.constant 0 : i32
    %c0_i32_1 = arith.constant 0 : i32
    return %c0_i32, %c0_i32_0 : i32, i32
  }
  func.func @transform_25(%arg0: i32) -> (i32, i32) {
    %c0_i32 = arith.constant 0 : i32
    %c0_i32_0 = arith.constant 0 : i32
    %c0_i32_1 = arith.constant 0 : i32
    return %c0_i32, %c0_i32_0 : i32, i32
  }
  func.func @transform_26(%arg0: i32) -> (i32, i32, i32) {
    %c0_i32 = arith.constant 0 : i32
    %c0_i32_0 = arith.constant 0 : i32
    %c0_i32_1 = arith.constant 0 : i32
    return %arg0, %c0_i32, %c0_i32_0 : i32, i32, i32
  }
  func.func @transform_27(%arg0: i32) -> (i32, i32, i32) {
    %c0_i32 = arith.constant 0 : i32
    %c0_i32_0 = arith.constant 0 : i32
    %c0_i32_1 = arith.constant 0 : i32
    return %arg0, %c0_i32, %c0_i32_0 : i32, i32, i32
  }
}

</mosaic_0001>

<llo_original>
// kernel: tpu_custom_call.1
$region0: #{tpu_custom_call.1}
  #allocation0 [shape = 'u32[]', space=smem, size = 0x4, offset = 0x4, fixed_abs, tag = 'smem constant byte address 0x4 - core index']
  #allocation1 [shape = 'u32[72,128]{1,0:T(1,128)}', space=vmem, size = 0x9000, scoped, tag = 'internal scratch']
  %s0 = inlined_call_operand.hbm [shape: f32[2,8,32], index: 0, kind: input, shape index: {}]
  %s1 = inlined_call_operand.hbm [shape: f32[2,16,32], index: 1, kind: input, shape index: {}]
  %s2 = inlined_call_operand.hbm [shape: f32[2,8,8], index: 2, kind: input, shape index: {}]
  %s3 = inlined_call_operand.hbm [shape: f32[2,1,16], index: 3, kind: input, shape index: {}]
  %s4 = inlined_call_operand.hbm [shape: f32[1,8,32], index: 4, kind: input, shape index: {}]
  %s5 = inlined_call_operand.hbm [shape: f32[32,32], index: 5, kind: input, shape index: {}]
  %s6 = inlined_call_operand.hbm [shape: f32[2,1,32], index: 6, kind: input, shape index: {}]
  %s7 = inlined_call_operand.vmem [shape: f32[2,1,32], index: 7, kind: input, shape index: {}]
  %s8 = inlined_call_operand.vmem [shape: f32[2,4,8,32], index: 8, kind: input, shape index: {}]
  %s9 = inlined_call_operand.vmem [shape: f32[2,4,8,32], index: 9, kind: input, shape index: {}]
  %s10 = inlined_call_operand.vmem [shape: f32[2,4,8,32], index: 10, kind: input, shape index: {}]
  %s11 = inlined_call_operand.vmem [shape: f32[2,4,32,8], index: 11, kind: input, shape index: {}]
  %s12 = inlined_call_operand.vmem [shape: f32[2,1,32], index: 12, kind: input, shape index: {}]
  %s13 = inlined_call_operand.vmem [shape: f32[2,1,32], index: 13, kind: input, shape index: {}]
  %s14 = inlined_call_operand.vmem [shape: f32[2,4,8,32], index: 14, kind: input, shape index: {}]
  %s15 = inlined_call_operand.vmem [shape: f32[2,4,8,32], index: 15, kind: input, shape index: {}]
  %s16 = inlined_call_operand.hbm [shape: f32[2,4,8,32], index: 16, kind: input, shape index: {}]
  %s17 = inlined_call_operand.vmem [shape: f32[2,4,32,8], index: 17, kind: input, shape index: {}]
  %s18 = inlined_call_operand.vmem [shape: f32[2,1,32], index: 18, kind: input, shape index: {}]
  %s19 = inlined_call_operand.vmem [shape: f32[2,1,32], index: 19, kind: input, shape index: {}]
  %s20 = inlined_call_operand.vmem [shape: f32[2,64,96], index: 20, kind: input, shape index: {}]
  %s21 = inlined_call_operand.vmem [shape: f32[2,1,64], index: 21, kind: input, shape index: {}]
  %s22 = inlined_call_operand.vmem [shape: f32[2,32,192], index: 22, kind: input, shape index: {}]
  %s23 = inlined_call_operand.vmem [shape: f32[2,1,32], index: 23, kind: input, shape index: {}]
  %s24 = inlined_call_operand.vmem [shape: f32[1,32], index: 24, kind: input, shape index: {}]
  %s25 = inlined_call_operand.vmem [shape: f32[1,32], index: 25, kind: input, shape index: {}]
  %s26 = inlined_call_operand.hbm [shape: f32[2,8,32], index: 26, kind: output, shape index: {0}]
  %s27 = inlined_call_operand.hbm [shape: f32[2,8,16], index: 27, kind: output, shape index: {1}]
  %28 = xla_tuple %s26, %s27
  %s29 = sld [smem:[#allocation0]]
  $region177: #{tpu_custom_call.1} parent=0
    _
  %s31 = ssub.s32 1, %s29
  %s32 = scalar_select 0, %s31, %s29
  $region1: #{tpu_custom_call.1} parent=0
    #allocation2 [shape = 'u8[8192]{0}', space=vmem, size = 0x2000, scoped, tag = 'input window, operand 0']
    #allocation3 [shape = 's32[2]{0}', space=sflag, size = 0x8, scoped, tag = 'scoped memory for tpu_custom_call.1']
    #allocation4 [shape = 's32[2]{0}', space=sflag, size = 0x8, scoped, tag = 'scoped memory for tpu_custom_call.1']
    #allocation5 [shape = 'u8[16384]{0}', space=vmem, size = 0x4000, scoped, tag = 'input window, operand 1']
    #allocation6 [shape = 's32[2]{0}', space=sflag, size = 0x8, scoped, tag = 'scoped memory for tpu_custom_call.1']
    #allocation7 [shape = 'u8[8192]{0}', space=vmem, size = 0x2000, scoped, tag = 'input window, operand 2']
    #allocation8 [shape = 'u8[1024]{0}', space=vmem, size = 0x400, scoped, tag = 'input window, operand 3']
    #allocation9 [shape = 's32[2]{0}', space=sflag, size = 0x8, scoped, tag = 'scoped memory for tpu_custom_call.1']
    #allocation10 [shape = 'u8[4096]{0}', space=vmem, size = 0x1000, scoped, tag = 'input window, operand 4, single buffered']
    #allocation11 [shape = 'u8[16384]{0}', space=vmem, size = 0x4000, scoped, tag = 'input window, operand 5, single buffered']
    #allocation12 [shape = 's32[1]{0}', space=sflag, size = 0x4, scoped, tag = 'scoped memory for tpu_custom_call.1']
    #allocation13 [shape = 'u8[1024]{0}', space=vmem, size = 0x400, scoped, tag = 'input window, operand 6, single buffered']
    #allocation14 [shape = 'u8[32768]{0}', space=vmem, size = 0x8000, scoped, tag = 'input window, operand 16, single buffered']
    #allocation15 [shape = 's32[1]{0}', space=sflag, size = 0x4, scoped, tag = 'scoped memory for tpu_custom_call.1']
    #allocation16 [shape = 'u8[8192]{0}', space=vmem, size = 0x2000, scoped, tag = 'output window, operand 0']
    #allocation17 [shape = 'u8[8192]{0}', space=vmem, size = 0x2000, scoped, tag = 'output window, operand 1']
    #allocation18 [shape = 's32[2]{0}', space=sflag, size = 0x8, scoped, tag = 'scoped memory for tpu_custom_call.1']
    %33 = vsyncpa [#allocation3], 0
    %s34 = scalar_lea.sflag [#allocation3], 1
    %35 = vsyncpa %s34, 0
    %36 = vsyncpa [#allocation6], 0
    %s37 = scalar_lea.sflag [#allocation6], 1
    %38 = vsyncpa %s37, 0
    %39 = vsyncpa [#allocation9], 0
    %s40 = scalar_lea.sflag [#allocation9], 1
    %41 = vsyncpa %s40, 0
    %42 = vsyncpa [#allocation12], 0
    %43 = vsyncpa [#allocation15], 0
    %44 = vsyncpa [#allocation4], 0
    %s45 = scalar_lea.sflag [#allocation4], 1
    %46 = vsyncpa %s45, 0
    %47 = vsyncpa [#allocation18], 0
    %s48 = scalar_lea.sflag [#allocation18], 1
    %49 = vsyncpa %s48, 0
    loop: start=0, step=1, limit=4
    $region2: #{tpu_custom_call.1} parent=1 // loop_pre_header
      _
    $region3: #{tpu_custom_call.1} parent=1 // loop_header
      %s51 = sphi 0, %s55
      %p52 = scmp.ge.s32.totalorder %s51, 4
      %s61 = sphi 0, %s63
      %s64 = sphi 0, %s61
      %s65 = sphi 0, %s64
      %s81 = sphi 0, %s65
      %s87 = sphi 0, %s89
      %s90 = sphi 0, %s87
      %s91 = sphi 0, %s90
      %s107 = sphi 0, %s91
      %s113 = sphi 0, %s115
      %s116 = sphi 0, %s113
      %s117 = sphi 0, %s116
      %s133 = sphi 0, %s117
      %s139 = sphi 0, %s141
      %s142 = sphi 0, %s139
      %s143 = sphi 0, %s142
      %s159 = sphi 0, %s143
      %s163 = sphi 0, %s163
      %s165 = sphi 0, %s163
      %s166 = sphi 0, %s165
      %s180 = sphi 0, %s166
      %s184 = sphi 0, %s184
      %s186 = sphi 0, %s184
      %s187 = sphi 0, %s186
      %s201 = sphi 0, %s187
      %s205 = sphi 0, %s205
      %s207 = sphi 0, %s205
      %s208 = sphi 0, %s207
      %s222 = sphi 0, %s208
      %s226 = sphi 0, %s226
      %s228 = sphi 0, %s226
      %s229 = sphi 0, %s228
      %s243 = sphi 0, %s229
      %s247 = sphi 0, %s247
      %s249 = sphi 0, %s247
      %s250 = sphi 0, %s249
      %s264 = sphi 0, %s250
      %s268 = sphi 0, %s268
      %s270 = sphi 0, %s268
      %s271 = sphi 0, %s270
      %s285 = sphi 0, %s271
      %s289 = sphi 0, %s289
      %s291 = sphi 0, %s289
      %s292 = sphi 0, %s291
      %s306 = sphi 0, %s292
      %s310 = sphi 0, %s310
      %s312 = sphi 0, %s310
      %s313 = sphi 0, %s312
      %s327 = sphi 0, %s313
      %s331 = sphi 0, %s331
      %s333 = sphi 0, %s331
      %s334 = sphi 0, %s333
      %s348 = sphi 0, %s334
      %s352 = sphi 0, %s352
      %s354 = sphi 0, %s352
      %s355 = sphi 0, %s354
      %s369 = sphi 0, %s355
      %s373 = sphi 0, %s373
      %s375 = sphi 0, %s373
      %s376 = sphi 0, %s375
      %s390 = sphi 0, %s376
      %s394 = sphi 0, %s394
      %s396 = sphi 0, %s394
      %s397 = sphi 0, %s396
      %s411 = sphi 0, %s397
      %s415 = sphi 0, %s415
      %s417 = sphi 0, %s415
      %s418 = sphi 0, %s417
      %s432 = sphi 0, %s418
      %s436 = sphi 0, %s436
      %s438 = sphi 0, %s436
      %s439 = sphi 0, %s438
      %s453 = sphi 0, %s439
      %s457 = sphi 0, %s457
      %s459 = sphi 0, %s457
      %s460 = sphi 0, %s459
      %s474 = sphi 0, %s460
      %s478 = sphi 0, %s478
      %s480 = sphi 0, %s478
      %s481 = sphi 0, %s480
      %s495 = sphi 0, %s481
      %s499 = sphi 0, %s499
      %s501 = sphi 0, %s499
      %s502 = sphi 0, %s501
      %s516 = sphi 0, %s502
      %s520 = sphi 0, %s520
      %s522 = sphi 0, %s520
      %s523 = sphi 0, %s522
      %s537 = sphi 0, %s523
      %s541 = sphi 0, %s541
      %s543 = sphi 0, %s541
      %s544 = sphi 0, %s543
      %s558 = sphi 0, %s544
      %s562 = sphi 0, %s562
      %s564 = sphi 0, %s562
      %s565 = sphi 0, %s564
      %s579 = sphi 0, %s565
      %s583 = sphi 0, %s583
      %s585 = sphi 0, %s583
      %s586 = sphi 0, %s585
      %s600 = sphi 0, %s586
      %s604 = sphi 0, %s604
      %s606 = sphi 0, %s604
      %s607 = sphi 0, %s606
      %s621 = sphi 0, %s607
      %s627 = sphi 0, %s629
      %s630 = sphi 0, %s627
      %s631 = sphi 0, %s630
      %s647 = sphi 0, %s631
      %s653 = sphi 0, %s655
      %s656 = sphi 0, %s653
      %s657 = sphi 0, %s656
      %s673 = sphi 0, %s657
    $region4: #{tpu_custom_call.1} parent=1 // loop_header_branch
      %54 = sbr.rel (%p52) target = $region8
    $region5: #{tpu_custom_call.1} parent=1 // loop_body
      %s56 = ssub.s32 %s51, 1
      %s57 = ssub.s32 %s51, 2
      %s58 = sadd.s32 %s51, 1
      %s59 = ssub.s32 %s51, %s58
      %p60 = scmp.eq.s32.totalorder %s59, 0
      %s62 = sadd.s32 %s61, 1
      %s63 = scalar_select %p60, %s61, %s62
      %p66 = pneg %p60
      %p67 = scmp.eq.s32.totalorder %s51, 1
      %p68 = por %p66, %p67
      %p69 = scmp.ne.s32.totalorder %s61, %s64
      %p70 = scmp.eq.s32.totalorder %s51, 0
      %p71 = por %p69, %p70
      %p72 = scmp.ne.s32.totalorder %s61, %s64
      %p73 = scmp.eq.s32.totalorder %s56, 1
      %p74 = por %p72, %p73
      %p75 = scmp.ne.s32.totalorder %s64, %s65
      %p76 = scmp.eq.s32.totalorder %s56, 0
      %p77 = por %p75, %p76
      %p78 = scmp.ne.s32.totalorder %s64, %s65
      %p79 = scmp.eq.s32.totalorder %s57, 1
      %p80 = por %p78, %p79
      %p82 = scmp.ne.s32.totalorder %s65, %s81
      %p83 = scmp.eq.s32.totalorder %s57, 0
      %p84 = por %p82, %p83
      %s85 = ssub.s32 %s51, %s58
      %p86 = scmp.eq.s32.totalorder %s85, 0
      %s88 = sadd.s32 %s87, 1
      %s89 = scalar_select %p86, %s87, %s88
      %p92 = pneg %p86
      %p93 = scmp.eq.s32.totalorder %s51, 1
      %p94 = por %p92, %p93
      %p95 = scmp.ne.s32.totalorder %s87, %s90
      %p96 = scmp.eq.s32.totalorder %s51, 0
      %p97 = por %p95, %p96
      %p98 = scmp.ne.s32.totalorder %s87, %s90
      %p99 = scmp.eq.s32.totalorder %s56, 1
      %p100 = por %p98, %p99
      %p101 = scmp.ne.s32.totalorder %s90, %s91
      %p102 = scmp.eq.s32.totalorder %s56, 0
      %p103 = por %p101, %p102
      %p104 = scmp.ne.s32.totalorder %s90, %s91
      %p105 = scmp.eq.s32.totalorder %s57, 1
      %p106 = por %p104, %p105
      %p108 = scmp.ne.s32.totalorder %s91, %s107
      %p109 = scmp.eq.s32.totalorder %s57, 0
      %p110 = por %p108, %p109
      %s111 = ssub.s32 %s51, %s58
      %p112 = scmp.eq.s32.totalorder %s111, 0
      %s114 = sadd.s32 %s113, 1
      %s115 = scalar_select %p112, %s113, %s114
      %p118 = pneg %p112
      %p119 = scmp.eq.s32.totalorder %s51, 1
      %p120 = por %p118, %p119
      %p121 = scmp.ne.s32.totalorder %s113, %s116
      %p122 = scmp.eq.s32.totalorder %s51, 0
      %p123 = por %p121, %p122
      %p124 = scmp.ne.s32.totalorder %s113, %s116
      %p125 = scmp.eq.s32.totalorder %s56, 1
      %p126 = por %p124, %p125
      %p127 = scmp.ne.s32.totalorder %s116, %s117
      %p128 = scmp.eq.s32.totalorder %s56, 0
      %p129 = por %p127, %p128
      %p130 = scmp.ne.s32.totalorder %s116, %s117
      %p131 = scmp.eq.s32.totalorder %s57, 1
      %p132 = por %p130, %p131
      %p134 = scmp.ne.s32.totalorder %s117, %s133
      %p135 = scmp.eq.s32.totalorder %s57, 0
      %p136 = por %p134, %p135
      %s137 = ssub.s32 %s51, %s58
      %p138 = scmp.eq.s32.totalorder %s137, 0
      %s140 = sadd.s32 %s139, 1
      %s141 = scalar_select %p138, %s139, %s140
      %p144 = pneg %p138
      %p145 = scmp.eq.s32.totalorder %s51, 1
      %p146 = por %p144, %p145
      %p147 = scmp.ne.s32.totalorder %s139, %s142
      %p148 = scmp.eq.s32.totalorder %s51, 0
      %p149 = por %p147, %p148
      %p150 = scmp.ne.s32.totalorder %s139, %s142
      %p151 = scmp.eq.s32.totalorder %s56, 1
      %p152 = por %p150, %p151
      %p153 = scmp.ne.s32.totalorder %s142, %s143
      %p154 = scmp.eq.s32.totalorder %s56, 0
      %p155 = por %p153, %p154
      %p156 = scmp.ne.s32.totalorder %s142, %s143
      %p157 = scmp.eq.s32.totalorder %s57, 1
      %p158 = por %p156, %p157
      %p160 = scmp.ne.s32.totalorder %s143, %s159
      %p161 = scmp.eq.s32.totalorder %s57, 0
      %p162 = por %p160, %p161
      %s164 = sadd.s32 %s163, 1
      %p167 = scmp.eq.s32.totalorder %s51, 1
      %p168 = scmp.ne.s32.totalorder %s163, %s165
      %p169 = scmp.eq.s32.totalorder %s51, 0
      %p170 = por %p168, %p169
      %p171 = scmp.ne.s32.totalorder %s163, %s165
      %p172 = scmp.eq.s32.totalorder %s56, 1
      %p173 = por %p171, %p172
      %p174 = scmp.ne.s32.totalorder %s165, %s166
      %p175 = scmp.eq.s32.totalorder %s56, 0
      %p176 = por %p174, %p175
      %p177 = scmp.ne.s32.totalorder %s165, %s166
      %p178 = scmp.eq.s32.totalorder %s57, 1
      %p179 = por %p177, %p178
      %p181 = scmp.ne.s32.totalorder %s166, %s180
      %p182 = scmp.eq.s32.totalorder %s57, 0
      %p183 = por %p181, %p182
      %s185 = sadd.s32 %s184, 1
      %p188 = scmp.eq.s32.totalorder %s51, 1
      %p189 = scmp.ne.s32.totalorder %s184, %s186
      %p190 = scmp.eq.s32.totalorder %s51, 0
      %p191 = por %p189, %p190
      %p192 = scmp.ne.s32.totalorder %s184, %s186
      %p193 = scmp.eq.s32.totalorder %s56, 1
      %p194 = por %p192, %p193
      %p195 = scmp.ne.s32.totalorder %s186, %s187
      %p196 = scmp.eq.s32.totalorder %s56, 0
      %p197 = por %p195, %p196
      %p198 = scmp.ne.s32.totalorder %s186, %s187
      %p199 = scmp.eq.s32.totalorder %s57, 1
      %p200 = por %p198, %p199
      %p202 = scmp.ne.s32.totalorder %s187, %s201
      %p203 = scmp.eq.s32.totalorder %s57, 0
      %p204 = por %p202, %p203
      %s206 = sadd.s32 %s205, 1
      %p209 = scmp.eq.s32.totalorder %s51, 1
      %p210 = scmp.ne.s32.totalorder %s205, %s207
      %p211 = scmp.eq.s32.totalorder %s51, 0
      %p212 = por %p210, %p211
      %p213 = scmp.ne.s32.totalorder %s205, %s207
      %p214 = scmp.eq.s32.totalorder %s56, 1
      %p215 = por %p213, %p214
      %p216 = scmp.ne.s32.totalorder %s207, %s208
      %p217 = scmp.eq.s32.totalorder %s56, 0
      %p218 = por %p216, %p217
      %p219 = scmp.ne.s32.totalorder %s207, %s208
      %p220 = scmp.eq.s32.totalorder %s57, 1
      %p221 = por %p219, %p220
      %p223 = scmp.ne.s32.totalorder %s208, %s222
      %p224 = scmp.eq.s32.totalorder %s57, 0
      %p225 = por %p223, %p224
      %s227 = sadd.s32 %s226, 1
      %p230 = scmp.eq.s32.totalorder %s51, 1
      %p231 = scmp.ne.s32.totalorder %s226, %s228
      %p232 = scmp.eq.s32.totalorder %s51, 0
      %p233 = por %p231, %p232
      %p234 = scmp.ne.s32.totalorder %s226, %s228
      %p235 = scmp.eq.s32.totalorder %s56, 1
      %p236 = por %p234, %p235
      %p237 = scmp.ne.s32.totalorder %s228, %s229
      %p238 = scmp.eq.s32.totalorder %s56, 0
      %p239 = por %p237, %p238
      %p240 = scmp.ne.s32.totalorder %s228, %s229
      %p241 = scmp.eq.s32.totalorder %s57, 1
      %p242 = por %p240, %p241
      %p244 = scmp.ne.s32.totalorder %s229, %s243
      %p245 = scmp.eq.s32.totalorder %s57, 0
      %p246 = por %p244, %p245
      %s248 = sadd.s32 %s247, 1
      %p251 = scmp.eq.s32.totalorder %s51, 1
      %p252 = scmp.ne.s32.totalorder %s247, %s249
      %p253 = scmp.eq.s32.totalorder %s51, 0
      %p254 = por %p252, %p253
      %p255 = scmp.ne.s32.totalorder %s247, %s249
      %p256 = scmp.eq.s32.totalorder %s56, 1
      %p257 = por %p255, %p256
      %p258 = scmp.ne.s32.totalorder %s249, %s250
      %p259 = scmp.eq.s32.totalorder %s56, 0
      %p260 = por %p258, %p259
      %p261 = scmp.ne.s32.totalorder %s249, %s250
      %p262 = scmp.eq.s32.totalorder %s57, 1
      %p263 = por %p261, %p262
      %p265 = scmp.ne.s32.totalorder %s250, %s264
      %p266 = scmp.eq.s32.totalorder %s57, 0
      %p267 = por %p265, %p266
      %s269 = sadd.s32 %s268, 1
      %p272 = scmp.eq.s32.totalorder %s51, 1
      %p273 = scmp.ne.s32.totalorder %s268, %s270
      %p274 = scmp.eq.s32.totalorder %s51, 0
      %p275 = por %p273, %p274
      %p276 = scmp.ne.s32.totalorder %s268, %s270
      %p277 = scmp.eq.s32.totalorder %s56, 1
      %p278 = por %p276, %p277
      %p279 = scmp.ne.s32.totalorder %s270, %s271
      %p280 = scmp.eq.s32.totalorder %s56, 0
      %p281 = por %p279, %p280
      %p282 = scmp.ne.s32.totalorder %s270, %s271
      %p283 = scmp.eq.s32.totalorder %s57, 1
      %p284 = por %p282, %p283
      %p286 = scmp.ne.s32.totalorder %s271, %s285
      %p287 = scmp.eq.s32.totalorder %s57, 0
      %p288 = por %p286, %p287
      %s290 = sadd.s32 %s289, 1
      %p293 = scmp.eq.s32.totalorder %s51, 1
      %p294 = scmp.ne.s32.totalorder %s289, %s291
      %p295 = scmp.eq.s32.totalorder %s51, 0
      %p296 = por %p294, %p295
      %p297 = scmp.ne.s32.totalorder %s289, %s291
      %p298 = scmp.eq.s32.totalorder %s56, 1
      %p299 = por %p297, %p298
      %p300 = scmp.ne.s32.totalorder %s291, %s292
      %p301 = scmp.eq.s32.totalorder %s56, 0
      %p302 = por %p300, %p301
      %p303 = scmp.ne.s32.totalorder %s291, %s292
      %p304 = scmp.eq.s32.totalorder %s57, 1
      %p305 = por %p303, %p304
      %p307 = scmp.ne.s32.totalorder %s292, %s306
      %p308 = scmp.eq.s32.totalorder %s57, 0
      %p309 = por %p307, %p308
      %s311 = sadd.s32 %s310, 1
      %p314 = scmp.eq.s32.totalorder %s51, 1
      %p315 = scmp.ne.s32.totalorder %s310, %s312
      %p316 = scmp.eq.s32.totalorder %s51, 0
      %p317 = por %p315, %p316
      %p318 = scmp.ne.s32.totalorder %s310, %s312
      %p319 = scmp.eq.s32.totalorder %s56, 1
      %p320 = por %p318, %p319
      %p321 = scmp.ne.s32.totalorder %s312, %s313
      %p322 = scmp.eq.s32.totalorder %s56, 0
      %p323 = por %p321, %p322
      %p324 = scmp.ne.s32.totalorder %s312, %s313
      %p325 = scmp.eq.s32.totalorder %s57, 1
      %p326 = por %p324, %p325
      %p328 = scmp.ne.s32.totalorder %s313, %s327
      %p329 = scmp.eq.s32.totalorder %s57, 0
      %p330 = por %p328, %p329
      %s332 = sadd.s32 %s331, 1
      %p335 = scmp.eq.s32.totalorder %s51, 1
      %p336 = scmp.ne.s32.totalorder %s331, %s333
      %p337 = scmp.eq.s32.totalorder %s51, 0
      %p338 = por %p336, %p337
      %p339 = scmp.ne.s32.totalorder %s331, %s333
      %p340 = scmp.eq.s32.totalorder %s56, 1
      %p341 = por %p339, %p340
      %p342 = scmp.ne.s32.totalorder %s333, %s334
      %p343 = scmp.eq.s32.totalorder %s56, 0
      %p344 = por %p342, %p343
      %p345 = scmp.ne.s32.totalorder %s333, %s334
      %p346 = scmp.eq.s32.totalorder %s57, 1
      %p347 = por %p345, %p346
      %p349 = scmp.ne.s32.totalorder %s334, %s348
      %p350 = scmp.eq.s32.totalorder %s57, 0
      %p351 = por %p349, %p350
      %s353 = sadd.s32 %s352, 1
      %p356 = scmp.eq.s32.totalorder %s51, 1
      %p357 = scmp.ne.s32.totalorder %s352, %s354
      %p358 = scmp.eq.s32.totalorder %s51, 0
      %p359 = por %p357, %p358
      %p360 = scmp.ne.s32.totalorder %s352, %s354
      %p361 = scmp.eq.s32.totalorder %s56, 1
      %p362 = por %p360, %p361
      %p363 = scmp.ne.s32.totalorder %s354, %s355
      %p364 = scmp.eq.s32.totalorder %s56, 0
      %p365 = por %p363, %p364
      %p366 = scmp.ne.s32.totalorder %s354, %s355
      %p367 = scmp.eq.s32.totalorder %s57, 1
      %p368 = por %p366, %p367
      %p370 = scmp.ne.s32.totalorder %s355, %s369
      %p371 = scmp.eq.s32.totalorder %s57, 0
      %p372 = por %p370, %p371
      %s374 = sadd.s32 %s373, 1
      %p377 = scmp.eq.s32.totalorder %s51, 1
      %p378 = scmp.ne.s32.totalorder %s373, %s375
      %p379 = scmp.eq.s32.totalorder %s51, 0
      %p380 = por %p378, %p379
      %p381 = scmp.ne.s32.totalorder %s373, %s375
      %p382 = scmp.eq.s32.totalorder %s56, 1
      %p383 = por %p381, %p382
      %p384 = scmp.ne.s32.totalorder %s375, %s376
      %p385 = scmp.eq.s32.totalorder %s56, 0
      %p386 = por %p384, %p385
      %p387 = scmp.ne.s32.totalorder %s375, %s376
      %p388 = scmp.eq.s32.totalorder %s57, 1
      %p389 = por %p387, %p388
      %p391 = scmp.ne.s32.totalorder %s376, %s390
      %p392 = scmp.eq.s32.totalorder %s57, 0
      %p393 = por %p391, %p392
      %s395 = sadd.s32 %s394, 1
      %p398 = scmp.eq.s32.totalorder %s51, 1
      %p399 = scmp.ne.s32.totalorder %s394, %s396
      %p400 = scmp.eq.s32.totalorder %s51, 0
      %p401 = por %p399, %p400
      %p402 = scmp.ne.s32.totalorder %s394, %s396
      %p403 = scmp.eq.s32.totalorder %s56, 1
      %p404 = por %p402, %p403
      %p405 = scmp.ne.s32.totalorder %s396, %s397
      %p406 = scmp.eq.s32.totalorder %s56, 0
      %p407 = por %p405, %p406
      %p408 = scmp.ne.s32.totalorder %s396, %s397
      %p409 = scmp.eq.s32.totalorder %s57, 1
      %p410 = por %p408, %p409
      %p412 = scmp.ne.s32.totalorder %s397, %s411
      %p413 = scmp.eq.s32.totalorder %s57, 0
      %p414 = por %p412, %p413
      %s416 = sadd.s32 %s415, 1
      %p419 = scmp.eq.s32.totalorder %s51, 1
      %p420 = scmp.ne.s32.totalorder %s415, %s417
      %p421 = scmp.eq.s32.totalorder %s51, 0
      %p422 = por %p420, %p421
      %p423 = scmp.ne.s32.totalorder %s415, %s417
      %p424 = scmp.eq.s32.totalorder %s56, 1
      %p425 = por %p423, %p424
      %p426 = scmp.ne.s32.totalorder %s417, %s418
      %p427 = scmp.eq.s32.totalorder %s56, 0
      %p428 = por %p426, %p427
      %p429 = scmp.ne.s32.totalorder %s417, %s418
      %p430 = scmp.eq.s32.totalorder %s57, 1
      %p431 = por %p429, %p430
      %p433 = scmp.ne.s32.totalorder %s418, %s432
      %p434 = scmp.eq.s32.totalorder %s57, 0
      %p435 = por %p433, %p434
      %s437 = sadd.s32 %s436, 1
      %p440 = scmp.eq.s32.totalorder %s51, 1
      %p441 = scmp.ne.s32.totalorder %s436, %s438
      %p442 = scmp.eq.s32.totalorder %s51, 0
      %p443 = por %p441, %p442
      %p444 = scmp.ne.s32.totalorder %s436, %s438
      %p445 = scmp.eq.s32.totalorder %s56, 1
      %p446 = por %p444, %p445
      %p447 = scmp.ne.s32.totalorder %s438, %s439
      %p448 = scmp.eq.s32.totalorder %s56, 0
      %p449 = por %p447, %p448
      %p450 = scmp.ne.s32.totalorder %s438, %s439
      %p451 = scmp.eq.s32.totalorder %s57, 1
      %p452 = por %p450, %p451
      %p454 = scmp.ne.s32.totalorder %s439, %s453
      %p455 = scmp.eq.s32.totalorder %s57, 0
      %p456 = por %p454, %p455
      %s458 = sadd.s32 %s457, 1
      %p461 = scmp.eq.s32.totalorder %s51, 1
      %p462 = scmp.ne.s32.totalorder %s457, %s459
      %p463 = scmp.eq.s32.totalorder %s51, 0
      %p464 = por %p462, %p463
      %p465 = scmp.ne.s32.totalorder %s457, %s459
      %p466 = scmp.eq.s32.totalorder %s56, 1
      %p467 = por %p465, %p466
      %p468 = scmp.ne.s32.totalorder %s459, %s460
      %p469 = scmp.eq.s32.totalorder %s56, 0
      %p470 = por %p468, %p469
      %p471 = scmp.ne.s32.totalorder %s459, %s460
      %p472 = scmp.eq.s32.totalorder %s57, 1
      %p473 = por %p471, %p472
      %p475 = scmp.ne.s32.totalorder %s460, %s474
      %p476 = scmp.eq.s32.totalorder %s57, 0
      %p477 = por %p475, %p476
      %s479 = sadd.s32 %s478, 1
      %p482 = scmp.eq.s32.totalorder %s51, 1
      %p483 = scmp.ne.s32.totalorder %s478, %s480
      %p484 = scmp.eq.s32.totalorder %s51, 0
      %p485 = por %p483, %p484
      %p486 = scmp.ne.s32.totalorder %s478, %s480
      %p487 = scmp.eq.s32.totalorder %s56, 1
      %p488 = por %p486, %p487
      %p489 = scmp.ne.s32.totalorder %s480, %s481
      %p490 = scmp.eq.s32.totalorder %s56, 0
      %p491 = por %p489, %p490
      %p492 = scmp.ne.s32.totalorder %s480, %s481
      %p493 = scmp.eq.s32.totalorder %s57, 1
      %p494 = por %p492, %p493
      %p496 = scmp.ne.s32.totalorder %s481, %s495
      %p497 = scmp.eq.s32.totalorder %s57, 0
      %p498 = por %p496, %p497
      %s500 = sadd.s32 %s499, 1
      %p503 = scmp.eq.s32.totalorder %s51, 1
      %p504 = scmp.ne.s32.totalorder %s499, %s501
      %p505 = scmp.eq.s32.totalorder %s51, 0
      %p506 = por %p504, %p505
      %p507 = scmp.ne.s32.totalorder %s499, %s501
      %p508 = scmp.eq.s32.totalorder %s56, 1
      %p509 = por %p507, %p508
      %p510 = scmp.ne.s32.totalorder %s501, %s502
      %p511 = scmp.eq.s32.totalorder %s56, 0
      %p512 = por %p510, %p511
      %p513 = scmp.ne.s32.totalorder %s501, %s502
      %p514 = scmp.eq.s32.totalorder %s57, 1
      %p515 = por %p513, %p514
      %p517 = scmp.ne.s32.totalorder %s502, %s516
      %p518 = scmp.eq.s32.totalorder %s57, 0
      %p519 = por %p517, %p518
      %s521 = sadd.s32 %s520, 1
      %p524 = scmp.eq.s32.totalorder %s51, 1
      %p525 = scmp.ne.s32.totalorder %s520, %s522
      %p526 = scmp.eq.s32.totalorder %s51, 0
      %p527 = por %p525, %p526
      %p528 = scmp.ne.s32.totalorder %s520, %s522
      %p529 = scmp.eq.s32.totalorder %s56, 1
      %p530 = por %p528, %p529
      %p531 = scmp.ne.s32.totalorder %s522, %s523
      %p532 = scmp.eq.s32.totalorder %s56, 0
      %p533 = por %p531, %p532
      %p534 = scmp.ne.s32.totalorder %s522, %s523
      %p535 = scmp.eq.s32.totalorder %s57, 1
      %p536 = por %p534, %p535
      %p538 = scmp.ne.s32.totalorder %s523, %s537
      %p539 = scmp.eq.s32.totalorder %s57, 0
      %p540 = por %p538, %p539
      %s542 = sadd.s32 %s541, 1
      %p545 = scmp.eq.s32.totalorder %s51, 1
      %p546 = scmp.ne.s32.totalorder %s541, %s543
      %p547 = scmp.eq.s32.totalorder %s51, 0
      %p548 = por %p546, %p547
      %p549 = scmp.ne.s32.totalorder %s541, %s543
      %p550 = scmp.eq.s32.totalorder %s56, 1
      %p551 = por %p549, %p550
      %p552 = scmp.ne.s32.totalorder %s543, %s544
      %p553 = scmp.eq.s32.totalorder %s56, 0
      %p554 = por %p552, %p553
      %p555 = scmp.ne.s32.totalorder %s543, %s544
      %p556 = scmp.eq.s32.totalorder %s57, 1
      %p557 = por %p555, %p556
      %p559 = scmp.ne.s32.totalorder %s544, %s558
      %p560 = scmp.eq.s32.totalorder %s57, 0
      %p561 = por %p559, %p560
      %s563 = sadd.s32 %s562, 1
      %p566 = scmp.eq.s32.totalorder %s51, 1
      %p567 = scmp.ne.s32.totalorder %s562, %s564
      %p568 = scmp.eq.s32.totalorder %s51, 0
      %p569 = por %p567, %p568
      %p570 = scmp.ne.s32.totalorder %s562, %s564
      %p571 = scmp.eq.s32.totalorder %s56, 1
      %p572 = por %p570, %p571
      %p573 = scmp.ne.s32.totalorder %s564, %s565
      %p574 = scmp.eq.s32.totalorder %s56, 0
      %p575 = por %p573, %p574
      %p576 = scmp.ne.s32.totalorder %s564, %s565
      %p577 = scmp.eq.s32.totalorder %s57, 1
      %p578 = por %p576, %p577
      %p580 = scmp.ne.s32.totalorder %s565, %s579
      %p581 = scmp.eq.s32.totalorder %s57, 0
      %p582 = por %p580, %p581
      %s584 = sadd.s32 %s583, 1
      %p587 = scmp.eq.s32.totalorder %s51, 1
      %p588 = scmp.ne.s32.totalorder %s583, %s585
      %p589 = scmp.eq.s32.totalorder %s51, 0
      %p590 = por %p588, %p589
      %p591 = scmp.ne.s32.totalorder %s583, %s585
      %p592 = scmp.eq.s32.totalorder %s56, 1
      %p593 = por %p591, %p592
      %p594 = scmp.ne.s32.totalorder %s585, %s586
      %p595 = scmp.eq.s32.totalorder %s56, 0
      %p596 = por %p594, %p595
      %p597 = scmp.ne.s32.totalorder %s585, %s586
      %p598 = scmp.eq.s32.totalorder %s57, 1
      %p599 = por %p597, %p598
      %p601 = scmp.ne.s32.totalorder %s586, %s600
      %p602 = scmp.eq.s32.totalorder %s57, 0
      %p603 = por %p601, %p602
      %s605 = sadd.s32 %s604, 1
      %p608 = scmp.eq.s32.totalorder %s51, 1
      %p609 = scmp.ne.s32.totalorder %s604, %s606
      %p610 = scmp.eq.s32.totalorder %s51, 0
      %p611 = por %p609, %p610
      %p612 = scmp.ne.s32.totalorder %s604, %s606
      %p613 = scmp.eq.s32.totalorder %s56, 1
      %p614 = por %p612, %p613
      %p615 = scmp.ne.s32.totalorder %s606, %s607
      %p616 = scmp.eq.s32.totalorder %s56, 0
      %p617 = por %p615, %p616
      %p618 = scmp.ne.s32.totalorder %s606, %s607
      %p619 = scmp.eq.s32.totalorder %s57, 1
      %p620 = por %p618, %p619
      %p622 = scmp.ne.s32.totalorder %s607, %s621
      %p623 = scmp.eq.s32.totalorder %s57, 0
      %p624 = por %p622, %p623
      %s625 = ssub.s32 %s51, %s58
      %p626 = scmp.eq.s32.totalorder %s625, 0
      %s628 = sadd.s32 %s627, 1
      %s629 = scalar_select %p626, %s627, %s628
      %p632 = pneg %p626
      %p633 = scmp.eq.s32.totalorder %s51, 1
      %p634 = por %p632, %p633
      %p635 = scmp.ne.s32.totalorder %s627, %s630
      %p636 = scmp.eq.s32.totalorder %s51, 0
      %p637 = por %p635, %p636
      %p638 = scmp.ne.s32.totalorder %s627, %s630
      %p639 = scmp.eq.s32.totalorder %s56, 1
      %p640 = por %p638, %p639
      %p641 = scmp.ne.s32.totalorder %s630, %s631
      %p642 = scmp.eq.s32.totalorder %s56, 0
      %p643 = por %p641, %p642
      %p644 = scmp.ne.s32.totalorder %s630, %s631
      %p645 = scmp.eq.s32.totalorder %s57, 1
      %p646 = por %p644, %p645
      %p648 = scmp.ne.s32.totalorder %s631, %s647
      %p649 = scmp.eq.s32.totalorder %s57, 0
      %p650 = por %p648, %p649
      %s651 = ssub.s32 %s51, %s58
      %p652 = scmp.eq.s32.totalorder %s651, 0
      %s654 = sadd.s32 %s653, 1
      %s655 = scalar_select %p652, %s653, %s654
      %p658 = pneg %p652
      %p659 = scmp.eq.s32.totalorder %s51, 1
      %p660 = por %p658, %p659
      %p661 = scmp.ne.s32.totalorder %s653, %s656
      %p662 = scmp.eq.s32.totalorder %s51, 0
      %p663 = por %p661, %p662
      %p664 = scmp.ne.s32.totalorder %s653, %s656
      %p665 = scmp.eq.s32.totalorder %s56, 1
      %p666 = por %p664, %p665
      %p667 = scmp.ne.s32.totalorder %s656, %s657
      %p668 = scmp.eq.s32.totalorder %s56, 0
      %p669 = por %p667, %p668
      %p670 = scmp.ne.s32.totalorder %s656, %s657
      %p671 = scmp.eq.s32.totalorder %s57, 1
      %p672 = por %p670, %p671
      %p674 = scmp.ne.s32.totalorder %s657, %s673
      %p675 = scmp.eq.s32.totalorder %s57, 0
      %p676 = por %p674, %p675
      %p677 = scmp.le.s32.totalorder 1, %s51
      %p678 = scmp.lt.s32.totalorder %s51, 3
      %p679 = pnand %p677, %p678
      %p680 = pneg %p679
      // Predicated region
      $region9: #{tpu_custom_call.1} parent=5 // pred_check
        _
      $region10: #{tpu_custom_call.1} parent=5 // pred_check_branch
        %682 = sbr.rel (%p679) target = $region12
      $region11: #{tpu_custom_call.1} parent=5 // pred_region
        %s683 = ssub.s32 %s51, 1
        // Predicated region
        $region13: #{tpu_custom_call.1} parent=11 // pred_check
          %p684 = pneg %p176
        $region14: #{tpu_custom_call.1} parent=11 // pred_check_branch
          %686 = sbr.rel (%p684) target = $region16
        $region15: #{tpu_custom_call.1} parent=11 // pred_region
          %688 = vsyncadd [#allocation9], 0
          %s690 = sshll.u32 %s4, 4
          %s691 = int_to_ptr.hbm [resolvable:$true] %s690
          %s692 = sshll.u32 [#allocation10], 4
          %s693 = int_to_ptr.vmem [resolvable:$true] %s692
          %695 = dma.hbm_to_vmem [thread:$0]  %s691, 128, %s693, [#allocation9]
        $region16: #{tpu_custom_call.1} parent=11 // pred_fallthru
          _
        // Predicated region
        $region17: #{tpu_custom_call.1} parent=11 // pred_check
          %p696 = pneg %p197
        $region18: #{tpu_custom_call.1} parent=11 // pred_check_branch
          %698 = sbr.rel (%p696) target = $region20
        $region19: #{tpu_custom_call.1} parent=11 // pred_region
          %700 = vsyncadd [#allocation12], 0
          %s701 = sshll.u32 %s5, 4
          %s702 = int_to_ptr.hbm [resolvable:$true] %s701
          %s703 = sshll.u32 [#allocation11], 4
          %s704 = int_to_ptr.vmem [resolvable:$true] %s703
          %709 = dma.hbm_to_vmem [thread:$0]  %s702, 512, %s704, [#allocation12], 128, 128, 8
        $region20: #{tpu_custom_call.1} parent=11 // pred_fallthru
          _
        // Predicated region
        $region21: #{tpu_custom_call.1} parent=11 // pred_check
          %p710 = pneg %p218
        $region22: #{tpu_custom_call.1} parent=11 // pred_check_branch
          %712 = sbr.rel (%p710) target = $region24
        $region23: #{tpu_custom_call.1} parent=11 // pred_region
          %714 = vsyncadd [#allocation12], 0
          %s715 = sshll.u32 %s6, 4
          %s716 = int_to_ptr.hbm [resolvable:$true] %s715
          %s717 = sshll.u32 [#allocation13], 4
          %s718 = int_to_ptr.vmem [resolvable:$true] %s717
          %723 = dma.hbm_to_vmem [thread:$0]  %s716, 32, %s718, [#allocation12], 16, 16, 1
        $region24: #{tpu_custom_call.1} parent=11 // pred_fallthru
          _
        // Predicated region
        $region25: #{tpu_custom_call.1} parent=11 // pred_check
          %p724 = pneg %p239
        $region26: #{tpu_custom_call.1} parent=11 // pred_check_branch
          %726 = sbr.rel (%p724) target = $region28
        $region27: #{tpu_custom_call.1} parent=11 // pred_region
          _
        $region28: #{tpu_custom_call.1} parent=11 // pred_fallthru
          _
        // Predicated region
        $region29: #{tpu_custom_call.1} parent=11 // pred_check
          %p727 = pneg %p260
        $region30: #{tpu_custom_call.1} parent=11 // pred_check_branch
          %729 = sbr.rel (%p727) target = $region32
        $region31: #{tpu_custom_call.1} parent=11 // pred_region
          _
        $region32: #{tpu_custom_call.1} parent=11 // pred_fallthru
          _
        // Predicated region
        $region33: #{tpu_custom_call.1} parent=11 // pred_check
          %p730 = pneg %p281
        $region34: #{tpu_custom_call.1} parent=11 // pred_check_branch
          %732 = sbr.rel (%p730) target = $region36
        $region35: #{tpu_custom_call.1} parent=11 // pred_region
          _
        $region36: #{tpu_custom_call.1} parent=11 // pred_fallthru
          _
        // Predicated region
        $region37: #{tpu_custom_call.1} parent=11 // pred_check
          %p733 = pneg %p302
        $region38: #{tpu_custom_call.1} parent=11 // pred_check_branch
          %735 = sbr.rel (%p733) target = $region40
        $region39: #{tpu_custom_call.1} parent=11 // pred_region
          _
        $region40: #{tpu_custom_call.1} parent=11 // pred_fallthru
          _
        // Predicated region
        $region41: #{tpu_custom_call.1} parent=11 // pred_check
          %p736 = pneg %p323
        $region42: #{tpu_custom_call.1} parent=11 // pred_check_branch
          %738 = sbr.rel (%p736) target = $region44
        $region43: #{tpu_custom_call.1} parent=11 // pred_region
          _
        $region44: #{tpu_custom_call.1} parent=11 // pred_fallthru
          _
        // Predicated region
        $region45: #{tpu_custom_call.1} parent=11 // pred_check
          %p739 = pneg %p344
        $region46: #{tpu_custom_call.1} parent=11 // pred_check_branch
          %741 = sbr.rel (%p739) target = $region48
        $region47: #{tpu_custom_call.1} parent=11 // pred_region
          _
        $region48: #{tpu_custom_call.1} parent=11 // pred_fallthru
          _
        // Predicated region
        $region49: #{tpu_custom_call.1} parent=11 // pred_check
          %p742 = pneg %p365
        $region50: #{tpu_custom_call.1} parent=11 // pred_check_branch
          %744 = sbr.rel (%p742) target = $region52
        $region51: #{tpu_custom_call.1} parent=11 // pred_region
          _
        $region52: #{tpu_custom_call.1} parent=11 // pred_fallthru
          _
        // Predicated region
        $region53: #{tpu_custom_call.1} parent=11 // pred_check
          %p745 = pneg %p386
        $region54: #{tpu_custom_call.1} parent=11 // pred_check_branch
          %747 = sbr.rel (%p745) target = $region56
        $region55: #{tpu_custom_call.1} parent=11 // pred_region
          _
        $region56: #{tpu_custom_call.1} parent=11 // pred_fallthru
          _
        // Predicated region
        $region57: #{tpu_custom_call.1} parent=11 // pred_check
          %p748 = pneg %p407
        $region58: #{tpu_custom_call.1} parent=11 // pred_check_branch
          %750 = sbr.rel (%p748) target = $region60
        $region59: #{tpu_custom_call.1} parent=11 // pred_region
          _
        $region60: #{tpu_custom_call.1} parent=11 // pred_fallthru
          _
        // Predicated region
        $region61: #{tpu_custom_call.1} parent=11 // pred_check
          %p751 = pneg %p428
        $region62: #{tpu_custom_call.1} parent=11 // pred_check_branch
          %753 = sbr.rel (%p751) target = $region64
        $region63: #{tpu_custom_call.1} parent=11 // pred_region
          %755 = vsyncadd [#allocation15], 0
          %s756 = sshll.u32 %s16, 4
          %s757 = int_to_ptr.hbm [resolvable:$true] %s756
          %s758 = sshll.u32 [#allocation14], 4
          %s759 = int_to_ptr.vmem [resolvable:$true] %s758
          %764 = dma.hbm_to_vmem [thread:$0]  %s757, 1024, %s759, [#allocation15], 128, 128, 8
        $region64: #{tpu_custom_call.1} parent=11 // pred_fallthru
          _
        // Predicated region
        $region65: #{tpu_custom_call.1} parent=11 // pred_check
          %p765 = pneg %p449
        $region66: #{tpu_custom_call.1} parent=11 // pred_check_branch
          %767 = sbr.rel (%p765) target = $region68
        $region67: #{tpu_custom_call.1} parent=11 // pred_region
          _
        $region68: #{tpu_custom_call.1} parent=11 // pred_fallthru
          _
        // Predicated region
        $region69: #{tpu_custom_call.1} parent=11 // pred_check
          %p768 = pneg %p470
        $region70: #{tpu_custom_call.1} parent=11 // pred_check_branch
          %770 = sbr.rel (%p768) target = $region72
        $region71: #{tpu_custom_call.1} parent=11 // pred_region
          _
        $region72: #{tpu_custom_call.1} parent=11 // pred_fallthru
          _
        // Predicated region
        $region73: #{tpu_custom_call.1} parent=11 // pred_check
          %p771 = pneg %p491
        $region74: #{tpu_custom_call.1} parent=11 // pred_check_branch
          %773 = sbr.rel (%p771) target = $region76
        $region75: #{tpu_custom_call.1} parent=11 // pred_region
          _
        $region76: #{tpu_custom_call.1} parent=11 // pred_fallthru
          _
        // Predicated region
        $region77: #{tpu_custom_call.1} parent=11 // pred_check
          %p774 = pneg %p512
        $region78: #{tpu_custom_call.1} parent=11 // pred_check_branch
          %776 = sbr.rel (%p774) target = $region80
        $region79: #{tpu_custom_call.1} parent=11 // pred_region
          _
        $region80: #{tpu_custom_call.1} parent=11 // pred_fallthru
          _
        // Predicated region
        $region81: #{tpu_custom_call.1} parent=11 // pred_check
          %p777 = pneg %p533
        $region82: #{tpu_custom_call.1} parent=11 // pred_check_branch
          %779 = sbr.rel (%p777) target = $region84
        $region83: #{tpu_custom_call.1} parent=11 // pred_region
          _
        $region84: #{tpu_custom_call.1} parent=11 // pred_fallthru
          _
        // Predicated region
        $region85: #{tpu_custom_call.1} parent=11 // pred_check
          %p780 = pneg %p554
        $region86: #{tpu_custom_call.1} parent=11 // pred_check_branch
          %782 = sbr.rel (%p780) target = $region88
        $region87: #{tpu_custom_call.1} parent=11 // pred_region
          _
        $region88: #{tpu_custom_call.1} parent=11 // pred_fallthru
          _
        // Predicated region
        $region89: #{tpu_custom_call.1} parent=11 // pred_check
          %p783 = pneg %p575
        $region90: #{tpu_custom_call.1} parent=11 // pred_check_branch
          %785 = sbr.rel (%p783) target = $region92
        $region91: #{tpu_custom_call.1} parent=11 // pred_region
          _
        $region92: #{tpu_custom_call.1} parent=11 // pred_fallthru
          _
        // Predicated region
        $region93: #{tpu_custom_call.1} parent=11 // pred_check
          %p786 = pneg %p596
        $region94: #{tpu_custom_call.1} parent=11 // pred_check_branch
          %788 = sbr.rel (%p786) target = $region96
        $region95: #{tpu_custom_call.1} parent=11 // pred_region
          _
        $region96: #{tpu_custom_call.1} parent=11 // pred_fallthru
          _
        // Predicated region
        $region97: #{tpu_custom_call.1} parent=11 // pred_check
          %p789 = pneg %p617
        $region98: #{tpu_custom_call.1} parent=11 // pred_check_branch
          %791 = sbr.rel (%p789) target = $region100
        $region99: #{tpu_custom_call.1} parent=11 // pred_region
          _
        $region100: #{tpu_custom_call.1} parent=11 // pred_fallthru
          _
      $region12: #{tpu_custom_call.1} parent=5 // pred_fallthru
        _
      %p792 = scmp.lt.s32.totalorder %s51, 2
      // Predicated region
      $region101: #{tpu_custom_call.1} parent=5 // pred_check
        %p793 = pneg %p792
      $region102: #{tpu_custom_call.1} parent=5 // pred_check_branch
        %795 = sbr.rel (%p793) target = $region104
      $region103: #{tpu_custom_call.1} parent=5 // pred_region
        // Predicated region
        $region105: #{tpu_custom_call.1} parent=103 // pred_check
          %p796 = pneg %p71
        $region106: #{tpu_custom_call.1} parent=103 // pred_check_branch
          %798 = sbr.rel (%p796) target = $region108
        $region107: #{tpu_custom_call.1} parent=103 // pred_region
          %s799 = sand.u32 %s61, 1
          %s800 = scalar_lea.sflag [#allocation3], %s799
          %s801 = sand.u32 %s61, 1
          %s802 = smul.addr %s801, 8
          %s803 = scalar_lea.vmem [#allocation2], %s802
          %805 = vsyncadd %s800, 0
          %s806 = smul.addr %s51, 8
          %s807 = scalar_lea.hbm %s0, %s806
          %s809 = sshll.u32 %s807, 4
          %s810 = int_to_ptr.hbm [resolvable:$true] %s809
          %s811 = sshll.u32 %s803, 4
          %s812 = int_to_ptr.vmem [resolvable:$true] %s811
          %814 = dma.hbm_to_vmem [thread:$0]  %s810, 128, %s812, %s800
        $region108: #{tpu_custom_call.1} parent=103 // pred_fallthru
          _
        // Predicated region
        $region109: #{tpu_custom_call.1} parent=103 // pred_check
          %p815 = pneg %p97
        $region110: #{tpu_custom_call.1} parent=103 // pred_check_branch
          %817 = sbr.rel (%p815) target = $region112
        $region111: #{tpu_custom_call.1} parent=103 // pred_region
          %s818 = sand.u32 %s51, 1
          %s819 = scalar_lea.sflag [#allocation6], %s818
          %s820 = sand.u32 %s87, 1
          %s821 = smul.addr %s820, 16
          %s822 = scalar_lea.vmem [#allocation5], %s821
          %824 = vsyncadd %s819, 0
          %s825 = smul.addr %s51, 2
          %s826 = smul.addr %s825, 8
          %s827 = scalar_lea.hbm %s1, %s826
          %s828 = sshll.u32 %s827, 4
          %s829 = int_to_ptr.hbm [resolvable:$true] %s828
          %s830 = sshll.u32 %s822, 4
          %s831 = int_to_ptr.vmem [resolvable:$true] %s830
          %836 = dma.hbm_to_vmem [thread:$0]  %s829, 256, %s831, %s819, 128, 128, 8
        $region112: #{tpu_custom_call.1} parent=103 // pred_fallthru
          _
        // Predicated region
        $region113: #{tpu_custom_call.1} parent=103 // pred_check
          %p837 = pneg %p123
        $region114: #{tpu_custom_call.1} parent=103 // pred_check_branch
          %839 = sbr.rel (%p837) target = $region116
        $region115: #{tpu_custom_call.1} parent=103 // pred_region
          %s840 = sand.u32 %s51, 1
          %s841 = scalar_lea.sflag [#allocation6], %s840
          %s842 = sand.u32 %s113, 1
          %s843 = smul.addr %s842, 8
          %s844 = scalar_lea.vmem [#allocation7], %s843
          %846 = vsyncadd %s841, 0
          %s847 = smul.addr %s51, 8
          %s848 = scalar_lea.hbm %s2, %s847
          %s850 = sshll.u32 %s848, 4
          %s851 = int_to_ptr.hbm [resolvable:$true] %s850
          %s852 = sshll.u32 %s844, 4
          %s853 = int_to_ptr.vmem [resolvable:$true] %s852
          %855 = dma.hbm_to_vmem [thread:$0]  %s851, 128, %s853, %s841
        $region116: #{tpu_custom_call.1} parent=103 // pred_fallthru
          _
        // Predicated region
        $region117: #{tpu_custom_call.1} parent=103 // pred_check
          %p856 = pneg %p149
        $region118: #{tpu_custom_call.1} parent=103 // pred_check_branch
          %858 = sbr.rel (%p856) target = $region120
        $region119: #{tpu_custom_call.1} parent=103 // pred_region
          %s859 = sand.u32 %s51, 1
          %s860 = scalar_lea.sflag [#allocation9], %s859
          %s861 = sand.u32 %s139, 1
          %s862 = scalar_lea.vmem [#allocation8], %s861
          %864 = vsyncadd %s860, 0
          %s865 = scalar_lea.hbm %s3, %s51
          %s867 = sshll.u32 %s865, 4
          %s868 = int_to_ptr.hbm [resolvable:$true] %s867
          %s869 = sshll.u32 %s862, 4
          %s870 = int_to_ptr.vmem [resolvable:$true] %s869
          %872 = dma.hbm_to_vmem [thread:$0]  %s868, 16, %s870, %s860
        $region120: #{tpu_custom_call.1} parent=103 // pred_fallthru
          _
      $region104: #{tpu_custom_call.1} parent=5 // pred_fallthru
        _
      %p873 = scmp.le.s32.totalorder 1, %s51
      %p874 = scmp.lt.s32.totalorder %s51, 3
      %p875 = pnand %p873, %p874
      %p876 = pneg %p875
      // Predicated region
      $region121: #{tpu_custom_call.1} parent=5 // pred_check
        _
      $region122: #{tpu_custom_call.1} parent=5 // pred_check_branch
        %878 = sbr.rel (%p875) target = $region124
      $region123: #{tpu_custom_call.1} parent=5 // pred_region
        %s879 = ssub.s32 %s51, 1
        %s880 = sand.u32 %s64, 1
        %s881 = scalar_lea.sflag [#allocation3], %s880
        %s882 = sand.u32 %s64, 1
        %s883 = smul.addr %s882, 8
        %s884 = scalar_lea.vmem [#allocation2], %s883
        // Predicated region
        $region125: #{tpu_custom_call.1} parent=123 // pred_check
          %p885 = pneg %p77
        $region126: #{tpu_custom_call.1} parent=123 // pred_check_branch
          %887 = sbr.rel (%p885) target = $region128
        $region127: #{tpu_custom_call.1} parent=123 // pred_region
          %889 = dma.done %s881, 128
        $region128: #{tpu_custom_call.1} parent=123 // pred_fallthru
          _
        %s890 = sand.u32 %s56, 1
        %s891 = scalar_lea.sflag [#allocation6], %s890
        %s892 = sand.u32 %s90, 1
        %s893 = smul.addr %s892, 16
        %s894 = scalar_lea.vmem [#allocation5], %s893
        // Predicated region
        $region129: #{tpu_custom_call.1} parent=123 // pred_check
          %p895 = pneg %p103
        $region130: #{tpu_custom_call.1} parent=123 // pred_check_branch
          %897 = sbr.rel (%p895) target = $region132
        $region131: #{tpu_custom_call.1} parent=123 // pred_region
          %899 = dma.done %s891, 256
        $region132: #{tpu_custom_call.1} parent=123 // pred_fallthru
          _
        %s900 = sand.u32 %s56, 1
        %s901 = scalar_lea.sflag [#allocation6], %s900
        %s902 = sand.u32 %s116, 1
        %s903 = smul.addr %s902, 8
        %s904 = scalar_lea.vmem [#allocation7], %s903
        // Predicated region
        $region133: #{tpu_custom_call.1} parent=123 // pred_check
          %p905 = pneg %p129
        $region134: #{tpu_custom_call.1} parent=123 // pred_check_branch
          %907 = sbr.rel (%p905) target = $region136
        $region135: #{tpu_custom_call.1} parent=123 // pred_region
          %909 = dma.done %s901, 128
        $region136: #{tpu_custom_call.1} parent=123 // pred_fallthru
          _
        %s910 = sand.u32 %s56, 1
        %s911 = scalar_lea.sflag [#allocation9], %s910
        %s912 = sand.u32 %s142, 1
        %s913 = scalar_lea.vmem [#allocation8], %s912
        // Predicated region
        $region137: #{tpu_custom_call.1} parent=123 // pred_check
          %p914 = pneg %p155
        $region138: #{tpu_custom_call.1} parent=123 // pred_check_branch
          %916 = sbr.rel (%p914) target = $region140
        $region139: #{tpu_custom_call.1} parent=123 // pred_region
          %918 = dma.done %s911, 16
        $region140: #{tpu_custom_call.1} parent=123 // pred_fallthru
          _
        // Predicated region
        $region141: #{tpu_custom_call.1} parent=123 // pred_check
          %p919 = pneg %p176
        $region142: #{tpu_custom_call.1} parent=123 // pred_check_branch
          %921 = sbr.rel (%p919) target = $region144
        $region143: #{tpu_custom_call.1} parent=123 // pred_region
          %923 = dma.done [#allocation9], 128
        $region144: #{tpu_custom_call.1} parent=123 // pred_fallthru
          _
        // Predicated region
        $region145: #{tpu_custom_call.1} parent=123 // pred_check
          %p924 = pneg %p197
        $region146: #{tpu_custom_call.1} parent=123 // pred_check_branch
          %926 = sbr.rel (%p924) target = $region148
        $region147: #{tpu_custom_call.1} parent=123 // pred_region
          %928 = dma.done [#allocation12], 512
        $region148: #{tpu_custom_call.1} parent=123 // pred_fallthru
          _
        // Predicated region
        $region149: #{tpu_custom_call.1} parent=123 // pred_check
          %p929 = pneg %p218
        $region150: #{tpu_custom_call.1} parent=123 // pred_check_branch
          %931 = sbr.rel (%p929) target = $region152
        $region151: #{tpu_custom_call.1} parent=123 // pred_region
          %933 = dma.done [#allocation12], 32
        $region152: #{tpu_custom_call.1} parent=123 // pred_fallthru
          _
        // Predicated region
        $region153: #{tpu_custom_call.1} parent=123 // pred_check
          %p934 = pneg %p428
        $region154: #{tpu_custom_call.1} parent=123 // pred_check_branch
          %936 = sbr.rel (%p934) target = $region156
        $region155: #{tpu_custom_call.1} parent=123 // pred_region
          %938 = dma.done [#allocation15], 1024
        $region156: #{tpu_custom_call.1} parent=123 // pred_fallthru
          _
        %s939 = sand.u32 %s64, 1
        %s940 = scalar_lea.sflag [#allocation3], %s939
        %s941 = sand.u32 %s64, 1
        %s942 = smul.addr %s941, 8
        %s943 = scalar_lea.vmem [#allocation2], %s942
        %p944 = pneg %p77
        %p945 = pneg %p74
        %s946 = sand.u32 %s56, 1
        %s947 = scalar_lea.sflag [#allocation6], %s946
        %s948 = sand.u32 %s90, 1
        %s949 = smul.addr %s948, 16
        %s950 = scalar_lea.vmem [#allocation5], %s949
        %p951 = pneg %p103
        %p952 = pneg %p100
        %s953 = sand.u32 %s56, 1
        %s954 = scalar_lea.sflag [#allocation6], %s953
        %s955 = sand.u32 %s116, 1
        %s956 = smul.addr %s955, 8
        %s957 = scalar_lea.vmem [#allocation7], %s956
        %p958 = pneg %p129
        %p959 = pneg %p126
        %s960 = sand.u32 %s56, 1
        %s961 = scalar_lea.sflag [#allocation9], %s960
        %s962 = sand.u32 %s142, 1
        %s963 = scalar_lea.vmem [#allocation8], %s962
        %p964 = pneg %p155
        %p965 = pneg %p152
        %p966 = pneg %p176
        %p967 = pneg %p173
        %p968 = pneg %p197
        %p969 = pneg %p194
        %p970 = pneg %p218
        %p971 = pneg %p215
        %p972 = pneg %p239
        %p973 = pneg %p236
        %p974 = pneg %p260
        %p975 = pneg %p257
        %p976 = pneg %p281
        %p977 = pneg %p278
        %p978 = pneg %p302
        %p979 = pneg %p299
        %p980 = pneg %p323
        %p981 = pneg %p320
        %p982 = pneg %p344
        %p983 = pneg %p341
        %p984 = pneg %p365
        %p985 = pneg %p362
        %p986 = pneg %p386
        %p987 = pneg %p383
        %p988 = pneg %p407
        %p989 = pneg %p404
        %p990 = pneg %p428
        %p991 = pneg %p425
        %p992 = pneg %p449
        %p993 = pneg %p446
        %p994 = pneg %p470
        %p995 = pneg %p467
        %p996 = pneg %p491
        %p997 = pneg %p488
        %p998 = pneg %p512
        %p999 = pneg %p509
        %p1000 = pneg %p533
        %p1001 = pneg %p530
        %p1002 = pneg %p554
        %p1003 = pneg %p551
        %p1004 = pneg %p575
        %p1005 = pneg %p572
        %p1006 = pneg %p596
        %p1007 = pneg %p593
        %p1008 = pneg %p617
        %p1009 = pneg %p614
        %p1010 = pneg %p643
        %p1011 = pneg %p640
        %s1012 = sand.u32 %s630, 1
        %s1013 = scalar_lea.sflag [#allocation4], %s1012
        %s1014 = sand.u32 %s630, 1
        %s1015 = smul.addr %s1014, 8
        %s1016 = scalar_lea.vmem [#allocation16], %s1015
        %p1017 = pneg %p669
        %p1018 = pneg %p666
        %s1019 = sand.u32 %s656, 1
        %s1020 = scalar_lea.sflag [#allocation18], %s1019
        %s1021 = sand.u32 %s656, 1
        %s1022 = smul.addr %s1021, 8
        %s1023 = scalar_lea.vmem [#allocation17], %s1022
        %v1024 = vld [vmem:[%s884] sm:$0xff]
        %v1025 = vld [vmem:[#allocation11] sm:$0xff]
        %v1026 = vld [vmem:[#allocation11 + $0x8] sm:$0xff]
        %v1027 = vld [vmem:[#allocation11 + $0x10] sm:$0xff]
        %v1028 = vld [vmem:[#allocation11 + $0x18] sm:$0xff]
        %v1029 = vld [vmem:[#allocation10] sm:$0xff]
        %vm1030 = vcmask 261120
        %v1032 = vsel %vm1030, %v1024, 0
        %v1035 = vsel %vm1030, %v1025, 0
        %v1038 = vsel %vm1030, %v1026, 0
        %v1041 = vsel %vm1030, %v1027, 0
        %v1044 = vsel %vm1030, %v1028, 0
        %1046 = vmatpush.xpose.msra.mxu0 0.0
        %1047 = vmatpush.xpose.msra.mxu0 0.0
        %1048 = vmatpush.xpose.msra.mxu0 0.0
        %1049 = vmatpush.xpose.msra.mxu0 0.0
        %1050 = vmatpush.xpose.msra.mxu0 0.0
        %1051 = vmatpush.xpose.msra.mxu0 0.0
        %1052 = vmatpush.xpose.msra.mxu0 0.0
        %1053 = vmatpush.xpose.msra.mxu0 0.0
        %1054 = vmatpush.xpose.msra.mxu0 0.0
        %1055 = vmatpush.xpose.msra.mxu0 0.0
        %1056 = vmatpush.xpose.msra.mxu0 0.0
        %1057 = vmatpush.xpose.msra.mxu0 0.0
        %1058 = vmatpush.xpose.msra.mxu0 %v1044
        %1059 = vmatpush.xpose.msra.mxu0 %v1041
        %1060 = vmatpush.xpose.msra.mxu0 %v1038
        %1061 = vmatpush.xpose.msra.mxu0 %v1035
        %1062 = vmatmul.f32.gmra.mxu0 %v1032
        %v1063 = vpop.f32.mrf.mxu0
        %v1064 = vadd.f32 %v1029, %v1063
        %1065 = vdwg.mxu0
        %v1066 = vld [vmem:[%s894] sm:$0xff]
        %v1067 = vld [vmem:[%s894 + $0x8] sm:$0xff]
        %v1068 = vld [vmem:[%s904] sm:$0xff]
        %vm1069 = vcmp.gt.f32.partialorder %v1068, 0.5
        %v1070 = vld [vmem:[%s913] sm:$0x1]
        %vm1071 = vcmp.gt.f32.partialorder %v1070, 0.5
        %v1072 = vld [vmem:[#allocation13] sm:$0x1]
        %v1073 = vld [vmem:[%s7] sm:$0x1]
        %v1074 = vsel %vm1030, %v1064, 0.0
        %1075 = vadd.xlane.f32.xlu0 %v1074
        %v1076 = vpop.xlane.xlu0 %1075
        %v1077 = vmul.f32 %v1064, %v1064
        %v1078 = vsel %vm1030, %v1077, 0.0
        %1079 = vadd.xlane.f32.xlu0 %v1078
        %v1080 = vpop.xlane.xlu0 %1079
        %v1081 = vmul.f32 %v1076, 0.03125
        %v1082 = vmul.f32 %v1076, %v1081
        %v1083 = vsub.f32 %v1080, %v1082
        %v1084 = vmax.f32 %v1083, 0.0
        %v1085 = vmul.f32 %v1084, 0.032258064
        %v1086 = vrsqrt.pop %v1085
        %v1087 = vmul.f32 %v1086, %v1085
        %v1088 = vmul.f32 %v1087, %v1086
        %v1089 = vmul.f32 0.5, %v1088
        %v1090 = vsub.f32 1.5, %v1089
        %v1091 = vmul.f32 %v1086, %v1090
        %v1092 = vmul.f32 %v1085, %v1091
        %vm1093 = vcmp.eq.f32.partialorder %v1085, inf
        %v1094 = vsel %vm1093, %v1085, %v1092
        %vm1095 = vcmp.eq.f32.partialorder %v1085, 0.0
        %v1096 = vand.u32 %v1085, 2147483648
        %v1097 = vsel %vm1095, %v1096, %v1094
        %v1098 = vsub.f32 %v1064, %v1081
        %v1100 = vperm.slane %v1072, 0
        %v1102 = vmul.f32 %v1100, %v1098
        %v1103 = vadd.f32 %v1097, 1e-06
        %v1104 = vrcp.pop %v1103
        %v1105 = vmul.f32 %v1103, %v1104
        %v1106 = vsub.f32 1.0, %v1105
        %v1107 = vmul.f32 %v1104, %v1106
        %v1108 = vadd.f32 %v1104, %v1107
        %vm1109 = vweird.f32 %v1103
        %vm1110 = vweird.f32 %v1104
        %vm1111 = vmor %vm1109, %vm1110
        %v1112 = vsel %vm1111, %v1104, %v1108
        %v1113 = vand.u32 2147483647, %v1103
        %vm1114 = vcmp.eq.f32.partialorder %v1113, 8.507059e+37
        %v1115 = vand.u32 %v1103, 2147483648
        %v1116 = vor.u32 1.1754944e-38, %v1115
        %v1117 = vsel %vm1114, %v1116, %v1112
        %v1118 = vmul.f32 %v1102, %v1117
        %v1120 = vperm.slane %v1073, 0
        %v1122 = vadd.f32 %v1118, %v1120
        %v1123 = vld [vmem:[%s8] sm:$0xff]
        %v1125 = vsel %vm1030, %v1122, 0
        %v1128 = vsel %vm1030, %v1123, 0
        %1130 = vmatpush.xpose.msra.mxu0 0.0
        %1131 = vmatpush.xpose.msra.mxu0 0.0
        %1132 = vmatpush.xpose.msra.mxu0 0.0
        %1133 = vmatpush.xpose.msra.mxu0 0.0
        %1134 = vmatpush.xpose.msra.mxu0 0.0
        %1135 = vmatpush.xpose.msra.mxu0 0.0
        %1136 = vmatpush.xpose.msra.mxu0 0.0
        %1137 = vmatpush.xpose.msra.mxu0 0.0
        %1138 = vmatpush.xpose.msra.mxu0 0.0
        %1139 = vmatpush.xpose.msra.mxu0 0.0
        %1140 = vmatpush.xpose.msra.mxu0 0.0
        %1141 = vmatpush.xpose.msra.mxu0 0.0
        %1142 = vmatpush.xpose.msra.mxu0 0.0
        %1143 = vmatpush.xpose.msra.mxu0 0.0
        %1144 = vmatpush.xpose.msra.mxu0 0.0
        %1145 = vmatpush.xpose.msra.mxu0 %v1128
        %1146 = vmatmul.f32.gmra.mxu0 %v1125
        %v1147 = vpop.f32.mrf.mxu0
        %v1148 = vadd.f32 0.0, %v1147
        %1149 = vdwg.mxu0
        %v1150 = vmul.f32 %v1148, 0.35355338
        %v1151 = vld [vmem:[%s9] sm:$0xff]
        %v1153 = vsel %vm1030, %v1151, 0
        %1155 = vmatpush.xpose.msra.mxu0 0.0
        %1156 = vmatpush.xpose.msra.mxu0 0.0
        %1157 = vmatpush.xpose.msra.mxu0 0.0
        %1158 = vmatpush.xpose.msra.mxu0 0.0
        %1159 = vmatpush.xpose.msra.mxu0 0.0
        %1160 = vmatpush.xpose.msra.mxu0 0.0
        %1161 = vmatpush.xpose.msra.mxu0 0.0
        %1162 = vmatpush.xpose.msra.mxu0 0.0
        %1163 = vmatpush.xpose.msra.mxu0 0.0
        %1164 = vmatpush.xpose.msra.mxu0 0.0
        %1165 = vmatpush.xpose.msra.mxu0 0.0
        %1166 = vmatpush.xpose.msra.mxu0 0.0
        %1167 = vmatpush.xpose.msra.mxu0 0.0
        %1168 = vmatpush.xpose.msra.mxu0 0.0
        %1169 = vmatpush.xpose.msra.mxu0 0.0
        %1170 = vmatpush.xpose.msra.mxu0 %v1153
        %1171 = vmatmul.f32.gmra.mxu0 %v1125
        %v1172 = vpop.f32.mrf.mxu0
        %v1173 = vadd.f32 0.0, %v1172
        %1174 = vdwg.mxu0
        %v1175 = vld [vmem:[%s10] sm:$0xff]
        %v1177 = vsel %vm1030, %v1175, 0
        %1179 = vmatpush.xpose.msra.mxu0 0.0
        %1180 = vmatpush.xpose.msra.mxu0 0.0
        %1181 = vmatpush.xpose.msra.mxu0 0.0
        %1182 = vmatpush.xpose.msra.mxu0 0.0
        %1183 = vmatpush.xpose.msra.mxu0 0.0
        %1184 = vmatpush.xpose.msra.mxu0 0.0
        %1185 = vmatpush.xpose.msra.mxu0 0.0
        %1186 = vmatpush.xpose.msra.mxu0 0.0
        %1187 = vmatpush.xpose.msra.mxu0 0.0
        %1188 = vmatpush.xpose.msra.mxu0 0.0
        %1189 = vmatpush.xpose.msra.mxu0 0.0
        %1190 = vmatpush.xpose.msra.mxu0 0.0
        %1191 = vmatpush.xpose.msra.mxu0 0.0
        %1192 = vmatpush.xpose.msra.mxu0 0.0
        %1193 = vmatpush.xpose.msra.mxu0 0.0
        %1194 = vmatpush.xpose.msra.mxu0 %v1177
        %1195 = vmatmul.f32.gmra.mxu0 %v1125
        %v1196 = vpop.f32.mrf.mxu0
        %v1197 = vadd.f32 0.0, %v1196
        %1198 = vdwg.mxu0
        %vm1199 = vcmask 64512
        %v1201 = vsel %vm1199, %v1150, 0
        %v1204 = vsel %vm1199, %v1173, 0
        %1206 = vmatpush.xpose.msra.mxu0 0.0
        %1207 = vmatpush.xpose.msra.mxu0 0.0
        %1208 = vmatpush.xpose.msra.mxu0 0.0
        %1209 = vmatpush.xpose.msra.mxu0 0.0
        %1210 = vmatpush.xpose.msra.mxu0 0.0
        %1211 = vmatpush.xpose.msra.mxu0 0.0
        %1212 = vmatpush.xpose.msra.mxu0 0.0
        %1213 = vmatpush.xpose.msra.mxu0 0.0
        %1214 = vmatpush.xpose.msra.mxu0 0.0
        %1215 = vmatpush.xpose.msra.mxu0 0.0
        %1216 = vmatpush.xpose.msra.mxu0 0.0
        %1217 = vmatpush.xpose.msra.mxu0 0.0
        %1218 = vmatpush.xpose.msra.mxu0 0.0
        %1219 = vmatpush.xpose.msra.mxu0 0.0
        %1220 = vmatpush.xpose.msra.mxu0 0.0
        %1221 = vmatpush.xpose.msra.mxu0 %v1204
        %1222 = vmatmul.f32.gmra.mxu0 %v1201
        %v1223 = vpop.f32.mrf.mxu0
        %v1224 = vadd.f32 0.0, %v1223
        %1225 = vdwg.mxu0
        %v1226 = vsel %vm1069, -1e+18, %v1224
        %v1227 = vsel %vm1199, %v1226, -inf
        %1228 = vmax.xlane.f32.xlu0 %v1227
        %v1229 = vpop.xlane.xlu0 %1228
        %v1230 = vsub.f32 %v1226, %v1229
        %v1231 = vmul.f32 %v1230, 1.442695
        %v1232 = vpow.pop %v1231
        %v1233 = vsel %vm1199, %v1232, 0.0
        %1234 = vadd.xlane.f32.xlu0 %v1233
        %v1235 = vpop.xlane.xlu0 %1234
        %v1236 = vrcp.pop %v1235
        %v1237 = vmul.f32 %v1235, %v1236
        %v1238 = vsub.f32 1.0, %v1237
        %v1239 = vmul.f32 %v1236, %v1238
        %v1240 = vadd.f32 %v1236, %v1239
        %vm1241 = vweird.f32 %v1235
        %vm1242 = vweird.f32 %v1236
        %vm1243 = vmor %vm1241, %vm1242
        %v1244 = vsel %vm1243, %v1236, %v1240
        %v1245 = vand.u32 2147483647, %v1235
        %vm1246 = vcmp.eq.f32.partialorder %v1245, 8.507059e+37
        %v1247 = vand.u32 %v1235, 2147483648
        %v1248 = vor.u32 1.1754944e-38, %v1247
        %v1249 = vsel %vm1246, %v1248, %v1244
        %v1250 = vmul.f32 %v1232, %v1249
        %v1252 = vsel %vm1199, %v1250, 0
        %1254 = vmatpush.msra.mxu0 0.0
        %1255 = vmatpush.msra.mxu0 0.0
        %1256 = vmatpush.msra.mxu0 0.0
        %1257 = vmatpush.msra.mxu0 0.0
        %1258 = vmatpush.msra.mxu0 0.0
        %1259 = vmatpush.msra.mxu0 0.0
        %1260 = vmatpush.msra.mxu0 0.0
        %1261 = vmatpush.msra.mxu0 0.0
        %1262 = vmatpush.msra.mxu0 0.0
        %1263 = vmatpush.msra.mxu0 0.0
        %1264 = vmatpush.msra.mxu0 0.0
        %1265 = vmatpush.msra.mxu0 0.0
        %1266 = vmatpush.msra.mxu0 0.0
        %1267 = vmatpush.msra.mxu0 0.0
        %1268 = vmatpush.msra.mxu0 0.0
        %1269 = vmatpush.msra.mxu0 %v1197
        %1270 = vmatmul.f32.gmra.mxu0 %v1252
        %v1271 = vpop.f32.mrf.mxu0
        %v1272 = vadd.f32 0.0, %v1271
        %1273 = vdwg.mxu0
        %v1274 = vld [vmem:[%s11] sm:$0xff]
        %v1275 = vld [vmem:[%s11 + $0x8] sm:$0xff]
        %v1276 = vld [vmem:[%s11 + $0x10] sm:$0xff]
        %v1277 = vld [vmem:[%s11 + $0x18] sm:$0xff]
        %s1278 = scalar_lea.vmem %s8, 8
        %v1279 = vld [vmem:[%s1278] sm:$0xff]
        %v1281 = vsel %vm1030, %v1279, 0
        %1283 = vmatpush.xpose.msra.mxu0 0.0
        %1284 = vmatpush.xpose.msra.mxu0 0.0
        %1285 = vmatpush.xpose.msra.mxu0 0.0
        %1286 = vmatpush.xpose.msra.mxu0 0.0
        %1287 = vmatpush.xpose.msra.mxu0 0.0
        %1288 = vmatpush.xpose.msra.mxu0 0.0
        %1289 = vmatpush.xpose.msra.mxu0 0.0
        %1290 = vmatpush.xpose.msra.mxu0 0.0
        %1291 = vmatpush.xpose.msra.mxu0 0.0
        %1292 = vmatpush.xpose.msra.mxu0 0.0
        %1293 = vmatpush.xpose.msra.mxu0 0.0
        %1294 = vmatpush.xpose.msra.mxu0 0.0
        %1295 = vmatpush.xpose.msra.mxu0 0.0
        %1296 = vmatpush.xpose.msra.mxu0 0.0
        %1297 = vmatpush.xpose.msra.mxu0 0.0
        %1298 = vmatpush.xpose.msra.mxu0 %v1281
        %1299 = vmatmul.f32.gmra.mxu0 %v1125
        %v1300 = vpop.f32.mrf.mxu0
        %v1301 = vadd.f32 0.0, %v1300
        %1302 = vdwg.mxu0
        %v1303 = vmul.f32 %v1301, 0.35355338
        %s1304 = scalar_lea.vmem %s9, 8
        %v1305 = vld [vmem:[%s1304] sm:$0xff]
        %v1307 = vsel %vm1030, %v1305, 0
        %1309 = vmatpush.xpose.msra.mxu0 0.0
        %1310 = vmatpush.xpose.msra.mxu0 0.0
        %1311 = vmatpush.xpose.msra.mxu0 0.0
        %1312 = vmatpush.xpose.msra.mxu0 0.0
        %1313 = vmatpush.xpose.msra.mxu0 0.0
        %1314 = vmatpush.xpose.msra.mxu0 0.0
        %1315 = vmatpush.xpose.msra.mxu0 0.0
        %1316 = vmatpush.xpose.msra.mxu0 0.0
        %1317 = vmatpush.xpose.msra.mxu0 0.0
        %1318 = vmatpush.xpose.msra.mxu0 0.0
        %1319 = vmatpush.xpose.msra.mxu0 0.0
        %1320 = vmatpush.xpose.msra.mxu0 0.0
        %1321 = vmatpush.xpose.msra.mxu0 0.0
        %1322 = vmatpush.xpose.msra.mxu0 0.0
        %1323 = vmatpush.xpose.msra.mxu0 0.0
        %1324 = vmatpush.xpose.msra.mxu0 %v1307
        %1325 = vmatmul.f32.gmra.mxu0 %v1125
        %v1326 = vpop.f32.mrf.mxu0
        %v1327 = vadd.f32 0.0, %v1326
        %1328 = vdwg.mxu0
        %s1329 = scalar_lea.vmem %s10, 8
        %v1330 = vld [vmem:[%s1329] sm:$0xff]
        %v1332 = vsel %vm1030, %v1330, 0
        %1334 = vmatpush.xpose.msra.mxu0 0.0
        %1335 = vmatpush.xpose.msra.mxu0 0.0
        %1336 = vmatpush.xpose.msra.mxu0 0.0
        %1337 = vmatpush.xpose.msra.mxu0 0.0
        %1338 = vmatpush.xpose.msra.mxu0 0.0
        %1339 = vmatpush.xpose.msra.mxu0 0.0
        %1340 = vmatpush.xpose.msra.mxu0 0.0
        %1341 = vmatpush.xpose.msra.mxu0 0.0
        %1342 = vmatpush.xpose.msra.mxu0 0.0
        %1343 = vmatpush.xpose.msra.mxu0 0.0
        %1344 = vmatpush.xpose.msra.mxu0 0.0
        %1345 = vmatpush.xpose.msra.mxu0 0.0
        %1346 = vmatpush.xpose.msra.mxu0 0.0
        %1347 = vmatpush.xpose.msra.mxu0 0.0
        %1348 = vmatpush.xpose.msra.mxu0 0.0
        %1349 = vmatpush.xpose.msra.mxu0 %v1332
        %1350 = vmatmul.f32.gmra.mxu0 %v1125
        %v1351 = vpop.f32.mrf.mxu0
        %v1352 = vadd.f32 0.0, %v1351
        %1353 = vdwg.mxu0
        %v1355 = vsel %vm1199, %v1303, 0
        %v1358 = vsel %vm1199, %v1327, 0
        %1360 = vmatpush.xpose.msra.mxu0 0.0
        %1361 = vmatpush.xpose.msra.mxu0 0.0
        %1362 = vmatpush.xpose.msra.mxu0 0.0
        %1363 = vmatpush.xpose.msra.mxu0 0.0
        %1364 = vmatpush.xpose.msra.mxu0 0.0
        %1365 = vmatpush.xpose.msra.mxu0 0.0
        %1366 = vmatpush.xpose.msra.mxu0 0.0
        %1367 = vmatpush.xpose.msra.mxu0 0.0
        %1368 = vmatpush.xpose.msra.mxu0 0.0
        %1369 = vmatpush.xpose.msra.mxu0 0.0
        %1370 = vmatpush.xpose.msra.mxu0 0.0
        %1371 = vmatpush.xpose.msra.mxu0 0.0
        %1372 = vmatpush.xpose.msra.mxu0 0.0
        %1373 = vmatpush.xpose.msra.mxu0 0.0
        %1374 = vmatpush.xpose.msra.mxu0 0.0
        %1375 = vmatpush.xpose.msra.mxu0 %v1358
        %1376 = vmatmul.f32.gmra.mxu0 %v1355
        %v1377 = vpop.f32.mrf.mxu0
        %v1378 = vadd.f32 0.0, %v1377
        %1379 = vdwg.mxu0
        %v1380 = vsel %vm1069, -1e+18, %v1378
        %v1381 = vsel %vm1199, %v1380, -inf
        %1382 = vmax.xlane.f32.xlu0 %v1381
        %v1383 = vpop.xlane.xlu0 %1382
        %v1384 = vsub.f32 %v1380, %v1383
        %v1385 = vmul.f32 %v1384, 1.442695
        %v1386 = vpow.pop %v1385
        %v1387 = vsel %vm1199, %v1386, 0.0
        %1388 = vadd.xlane.f32.xlu0 %v1387
        %v1389 = vpop.xlane.xlu0 %1388
        %v1390 = vrcp.pop %v1389
        %v1391 = vmul.f32 %v1389, %v1390
        %v1392 = vsub.f32 1.0, %v1391
        %v1393 = vmul.f32 %v1390, %v1392
        %v1394 = vadd.f32 %v1390, %v1393
        %vm1395 = vweird.f32 %v1389
        %vm1396 = vweird.f32 %v1390
        %vm1397 = vmor %vm1395, %vm1396
        %v1398 = vsel %vm1397, %v1390, %v1394
        %v1399 = vand.u32 2147483647, %v1389
        %vm1400 = vcmp.eq.f32.partialorder %v1399, 8.507059e+37
        %v1401 = vand.u32 %v1389, 2147483648
        %v1402 = vor.u32 1.1754944e-38, %v1401
        %v1403 = vsel %vm1400, %v1402, %v1398
        %v1404 = vmul.f32 %v1386, %v1403
        %v1406 = vsel %vm1199, %v1404, 0
        %1408 = vmatpush.msra.mxu0 0.0
        %1409 = vmatpush.msra.mxu0 0.0
        %1410 = vmatpush.msra.mxu0 0.0
        %1411 = vmatpush.msra.mxu0 0.0
        %1412 = vmatpush.msra.mxu0 0.0
        %1413 = vmatpush.msra.mxu0 0.0
        %1414 = vmatpush.msra.mxu0 0.0
        %1415 = vmatpush.msra.mxu0 0.0
        %1416 = vmatpush.msra.mxu0 0.0
        %1417 = vmatpush.msra.mxu0 0.0
        %1418 = vmatpush.msra.mxu0 0.0
        %1419 = vmatpush.msra.mxu0 0.0
        %1420 = vmatpush.msra.mxu0 0.0
        %1421 = vmatpush.msra.mxu0 0.0
        %1422 = vmatpush.msra.mxu0 0.0
        %1423 = vmatpush.msra.mxu0 %v1352
        %1424 = vmatmul.f32.gmra.mxu0 %v1406
        %v1425 = vpop.f32.mrf.mxu0
        %v1426 = vadd.f32 0.0, %v1425
        %1427 = vdwg.mxu0
        %s1428 = scalar_lea.vmem %s11, 32
        %v1429 = vld [vmem:[%s1428] sm:$0xff]
        %v1430 = vld [vmem:[%s1428 + $0x8] sm:$0xff]
        %v1431 = vld [vmem:[%s1428 + $0x10] sm:$0xff]
        %v1432 = vld [vmem:[%s1428 + $0x18] sm:$0xff]
        %v1434 = vsel %vm1199, %v1426, 0
        %v1437 = vsel %vm1199, %v1429, 0
        %v1440 = vsel %vm1199, %v1430, 0
        %v1443 = vsel %vm1199, %v1431, 0
        %v1446 = vsel %vm1199, %v1432, 0
        %1448 = vmatpush.xpose.msra.mxu0 0.0
        %1449 = vmatpush.xpose.msra.mxu0 0.0
        %1450 = vmatpush.xpose.msra.mxu0 0.0
        %1451 = vmatpush.xpose.msra.mxu0 0.0
        %1452 = vmatpush.xpose.msra.mxu0 0.0
        %1453 = vmatpush.xpose.msra.mxu0 0.0
        %1454 = vmatpush.xpose.msra.mxu0 0.0
        %1455 = vmatpush.xpose.msra.mxu0 0.0
        %1456 = vmatpush.xpose.msra.mxu0 0.0
        %1457 = vmatpush.xpose.msra.mxu0 0.0
        %1458 = vmatpush.xpose.msra.mxu0 0.0
        %1459 = vmatpush.xpose.msra.mxu0 0.0
        %1460 = vmatpush.xpose.msra.mxu0 %v1446
        %1461 = vmatpush.xpose.msra.mxu0 %v1443
        %1462 = vmatpush.xpose.msra.mxu0 %v1440
        %1463 = vmatpush.xpose.msra.mxu0 %v1437
        %1464 = vmatmul.f32.gmra.mxu0 %v1434
        %v1465 = vpop.f32.mrf.mxu0
        %v1466 = vadd.f32 0.0, %v1465
        %1467 = vdwg.mxu0
        %v1469 = vsel %vm1199, %v1272, 0
        %v1472 = vsel %vm1199, %v1274, 0
        %v1475 = vsel %vm1199, %v1275, 0
        %v1478 = vsel %vm1199, %v1276, 0
        %v1481 = vsel %vm1199, %v1277, 0
        %1483 = vmatpush.xpose.msra.mxu0 0.0
        %1484 = vmatpush.xpose.msra.mxu0 0.0
        %1485 = vmatpush.xpose.msra.mxu0 0.0
        %1486 = vmatpush.xpose.msra.mxu0 0.0
        %1487 = vmatpush.xpose.msra.mxu0 0.0
        %1488 = vmatpush.xpose.msra.mxu0 0.0
        %1489 = vmatpush.xpose.msra.mxu0 0.0
        %1490 = vmatpush.xpose.msra.mxu0 0.0
        %1491 = vmatpush.xpose.msra.mxu0 0.0
        %1492 = vmatpush.xpose.msra.mxu0 0.0
        %1493 = vmatpush.xpose.msra.mxu0 0.0
        %1494 = vmatpush.xpose.msra.mxu0 0.0
        %1495 = vmatpush.xpose.msra.mxu0 %v1481
        %1496 = vmatpush.xpose.msra.mxu0 %v1478
        %1497 = vmatpush.xpose.msra.mxu0 %v1475
        %1498 = vmatpush.xpose.msra.mxu0 %v1472
        %1499 = vmatmul.f32.gmra.mxu0 %v1469
        %v1500 = vpop.f32.mrf.mxu0
        %v1501 = vadd.f32 %v1466, %v1500
        %1502 = vdwg.mxu0
        %s1503 = scalar_lea.vmem %s8, 16
        %v1504 = vld [vmem:[%s1503] sm:$0xff]
        %v1506 = vsel %vm1030, %v1504, 0
        %1508 = vmatpush.xpose.msra.mxu0 0.0
        %1509 = vmatpush.xpose.msra.mxu0 0.0
        %1510 = vmatpush.xpose.msra.mxu0 0.0
        %1511 = vmatpush.xpose.msra.mxu0 0.0
        %1512 = vmatpush.xpose.msra.mxu0 0.0
        %1513 = vmatpush.xpose.msra.mxu0 0.0
        %1514 = vmatpush.xpose.msra.mxu0 0.0
        %1515 = vmatpush.xpose.msra.mxu0 0.0
        %1516 = vmatpush.xpose.msra.mxu0 0.0
        %1517 = vmatpush.xpose.msra.mxu0 0.0
        %1518 = vmatpush.xpose.msra.mxu0 0.0
        %1519 = vmatpush.xpose.msra.mxu0 0.0
        %1520 = vmatpush.xpose.msra.mxu0 0.0
        %1521 = vmatpush.xpose.msra.mxu0 0.0
        %1522 = vmatpush.xpose.msra.mxu0 0.0
        %1523 = vmatpush.xpose.msra.mxu0 %v1506
        %1524 = vmatmul.f32.gmra.mxu0 %v1125
        %v1525 = vpop.f32.mrf.mxu0
        %v1526 = vadd.f32 0.0, %v1525
        %1527 = vdwg.mxu0
        %v1528 = vmul.f32 %v1526, 0.35355338
        %s1529 = scalar_lea.vmem %s9, 16
        %v1530 = vld [vmem:[%s1529] sm:$0xff]
        %v1532 = vsel %vm1030, %v1530, 0
        %1534 = vmatpush.xpose.msra.mxu0 0.0
        %1535 = vmatpush.xpose.msra.mxu0 0.0
        %1536 = vmatpush.xpose.msra.mxu0 0.0
        %1537 = vmatpush.xpose.msra.mxu0 0.0
        %1538 = vmatpush.xpose.msra.mxu0 0.0
        %1539 = vmatpush.xpose.msra.mxu0 0.0
        %1540 = vmatpush.xpose.msra.mxu0 0.0
        %1541 = vmatpush.xpose.msra.mxu0 0.0
        %1542 = vmatpush.xpose.msra.mxu0 0.0
        %1543 = vmatpush.xpose.msra.mxu0 0.0
        %1544 = vmatpush.xpose.msra.mxu0 0.0
        %1545 = vmatpush.xpose.msra.mxu0 0.0
        %1546 = vmatpush.xpose.msra.mxu0 0.0
        %1547 = vmatpush.xpose.msra.mxu0 0.0
        %1548 = vmatpush.xpose.msra.mxu0 0.0
        %1549 = vmatpush.xpose.msra.mxu0 %v1532
        %1550 = vmatmul.f32.gmra.mxu0 %v1125
        %v1551 = vpop.f32.mrf.mxu0
        %v1552 = vadd.f32 0.0, %v1551
        %1553 = vdwg.mxu0
        %s1554 = scalar_lea.vmem %s10, 16
        %v1555 = vld [vmem:[%s1554] sm:$0xff]
        %v1557 = vsel %vm1030, %v1555, 0
        %1559 = vmatpush.xpose.msra.mxu0 0.0
        %1560 = vmatpush.xpose.msra.mxu0 0.0
        %1561 = vmatpush.xpose.msra.mxu0 0.0
        %1562 = vmatpush.xpose.msra.mxu0 0.0
        %1563 = vmatpush.xpose.msra.mxu0 0.0
        %1564 = vmatpush.xpose.msra.mxu0 0.0
        %1565 = vmatpush.xpose.msra.mxu0 0.0
        %1566 = vmatpush.xpose.msra.mxu0 0.0
        %1567 = vmatpush.xpose.msra.mxu0 0.0
        %1568 = vmatpush.xpose.msra.mxu0 0.0
        %1569 = vmatpush.xpose.msra.mxu0 0.0
        %1570 = vmatpush.xpose.msra.mxu0 0.0
        %1571 = vmatpush.xpose.msra.mxu0 0.0
        %1572 = vmatpush.xpose.msra.mxu0 0.0
        %1573 = vmatpush.xpose.msra.mxu0 0.0
        %1574 = vmatpush.xpose.msra.mxu0 %v1557
        %1575 = vmatmul.f32.gmra.mxu0 %v1125
        %v1576 = vpop.f32.mrf.mxu0
        %v1577 = vadd.f32 0.0, %v1576
        %1578 = vdwg.mxu0
        %v1580 = vsel %vm1199, %v1528, 0
        %v1583 = vsel %vm1199, %v1552, 0
        %1585 = vmatpush.xpose.msra.mxu0 0.0
        %1586 = vmatpush.xpose.msra.mxu0 0.0
        %1587 = vmatpush.xpose.msra.mxu0 0.0
        %1588 = vmatpush.xpose.msra.mxu0 0.0
        %1589 = vmatpush.xpose.msra.mxu0 0.0
        %1590 = vmatpush.xpose.msra.mxu0 0.0
        %1591 = vmatpush.xpose.msra.mxu0 0.0
        %1592 = vmatpush.xpose.msra.mxu0 0.0
        %1593 = vmatpush.xpose.msra.mxu0 0.0
        %1594 = vmatpush.xpose.msra.mxu0 0.0
        %1595 = vmatpush.xpose.msra.mxu0 0.0
        %1596 = vmatpush.xpose.msra.mxu0 0.0
        %1597 = vmatpush.xpose.msra.mxu0 0.0
        %1598 = vmatpush.xpose.msra.mxu0 0.0
        %1599 = vmatpush.xpose.msra.mxu0 0.0
        %1600 = vmatpush.xpose.msra.mxu0 %v1583
        %1601 = vmatmul.f32.gmra.mxu0 %v1580
        %v1602 = vpop.f32.mrf.mxu0
        %v1603 = vadd.f32 0.0, %v1602
        %1604 = vdwg.mxu0
        %v1605 = vsel %vm1069, -1e+18, %v1603
        %v1606 = vsel %vm1199, %v1605, -inf
        %1607 = vmax.xlane.f32.xlu0 %v1606
        %v1608 = vpop.xlane.xlu0 %1607
        %v1609 = vsub.f32 %v1605, %v1608
        %v1610 = vmul.f32 %v1609, 1.442695
        %v1611 = vpow.pop %v1610
        %v1612 = vsel %vm1199, %v1611, 0.0
        %1613 = vadd.xlane.f32.xlu0 %v1612
        %v1614 = vpop.xlane.xlu0 %1613
        %v1615 = vrcp.pop %v1614
        %v1616 = vmul.f32 %v1614, %v1615
        %v1617 = vsub.f32 1.0, %v1616
        %v1618 = vmul.f32 %v1615, %v1617
        %v1619 = vadd.f32 %v1615, %v1618
        %vm1620 = vweird.f32 %v1614
        %vm1621 = vweird.f32 %v1615
        %vm1622 = vmor %vm1620, %vm1621
        %v1623 = vsel %vm1622, %v1615, %v1619
        %v1624 = vand.u32 2147483647, %v1614
        %vm1625 = vcmp.eq.f32.partialorder %v1624, 8.507059e+37
        %v1626 = vand.u32 %v1614, 2147483648
        %v1627 = vor.u32 1.1754944e-38, %v1626
        %v1628 = vsel %vm1625, %v1627, %v1623
        %v1629 = vmul.f32 %v1611, %v1628
        %v1631 = vsel %vm1199, %v1629, 0
        %1633 = vmatpush.msra.mxu0 0.0
        %1634 = vmatpush.msra.mxu0 0.0
        %1635 = vmatpush.msra.mxu0 0.0
        %1636 = vmatpush.msra.mxu0 0.0
        %1637 = vmatpush.msra.mxu0 0.0
        %1638 = vmatpush.msra.mxu0 0.0
        %1639 = vmatpush.msra.mxu0 0.0
        %1640 = vmatpush.msra.mxu0 0.0
        %1641 = vmatpush.msra.mxu0 0.0
        %1642 = vmatpush.msra.mxu0 0.0
        %1643 = vmatpush.msra.mxu0 0.0
        %1644 = vmatpush.msra.mxu0 0.0
        %1645 = vmatpush.msra.mxu0 0.0
        %1646 = vmatpush.msra.mxu0 0.0
        %1647 = vmatpush.msra.mxu0 0.0
        %1648 = vmatpush.msra.mxu0 %v1577
        %1649 = vmatmul.f32.gmra.mxu0 %v1631
        %v1650 = vpop.f32.mrf.mxu0
        %v1651 = vadd.f32 0.0, %v1650
        %1652 = vdwg.mxu0
        %s1653 = scalar_lea.vmem %s11, 64
        %v1654 = vld [vmem:[%s1653] sm:$0xff]
        %v1655 = vld [vmem:[%s1653 + $0x8] sm:$0xff]
        %v1656 = vld [vmem:[%s1653 + $0x10] sm:$0xff]
        %v1657 = vld [vmem:[%s1653 + $0x18] sm:$0xff]
        %v1659 = vsel %vm1199, %v1651, 0
        %v1662 = vsel %vm1199, %v1654, 0
        %v1665 = vsel %vm1199, %v1655, 0
        %v1668 = vsel %vm1199, %v1656, 0
        %v1671 = vsel %vm1199, %v1657, 0
        %1673 = vmatpush.xpose.msra.mxu0 0.0
        %1674 = vmatpush.xpose.msra.mxu0 0.0
        %1675 = vmatpush.xpose.msra.mxu0 0.0
        %1676 = vmatpush.xpose.msra.mxu0 0.0
        %1677 = vmatpush.xpose.msra.mxu0 0.0
        %1678 = vmatpush.xpose.msra.mxu0 0.0
        %1679 = vmatpush.xpose.msra.mxu0 0.0
        %1680 = vmatpush.xpose.msra.mxu0 0.0
        %1681 = vmatpush.xpose.msra.mxu0 0.0
        %1682 = vmatpush.xpose.msra.mxu0 0.0
        %1683 = vmatpush.xpose.msra.mxu0 0.0
        %1684 = vmatpush.xpose.msra.mxu0 0.0
        %1685 = vmatpush.xpose.msra.mxu0 %v1671
        %1686 = vmatpush.xpose.msra.mxu0 %v1668
        %1687 = vmatpush.xpose.msra.mxu0 %v1665
        %1688 = vmatpush.xpose.msra.mxu0 %v1662
        %1689 = vmatmul.f32.gmra.mxu0 %v1659
        %v1690 = vpop.f32.mrf.mxu0
        %v1691 = vadd.f32 0.0, %v1690
        %1692 = vdwg.mxu0
        %v1693 = vadd.f32 %v1501, %v1691
        %s1694 = scalar_lea.vmem %s8, 24
        %v1695 = vld [vmem:[%s1694] sm:$0xff]
        %v1697 = vsel %vm1030, %v1695, 0
        %1699 = vmatpush.xpose.msra.mxu0 0.0
        %1700 = vmatpush.xpose.msra.mxu0 0.0
        %1701 = vmatpush.xpose.msra.mxu0 0.0
        %1702 = vmatpush.xpose.msra.mxu0 0.0
        %1703 = vmatpush.xpose.msra.mxu0 0.0
        %1704 = vmatpush.xpose.msra.mxu0 0.0
        %1705 = vmatpush.xpose.msra.mxu0 0.0
        %1706 = vmatpush.xpose.msra.mxu0 0.0
        %1707 = vmatpush.xpose.msra.mxu0 0.0
        %1708 = vmatpush.xpose.msra.mxu0 0.0
        %1709 = vmatpush.xpose.msra.mxu0 0.0
        %1710 = vmatpush.xpose.msra.mxu0 0.0
        %1711 = vmatpush.xpose.msra.mxu0 0.0
        %1712 = vmatpush.xpose.msra.mxu0 0.0
        %1713 = vmatpush.xpose.msra.mxu0 0.0
        %1714 = vmatpush.xpose.msra.mxu0 %v1697
        %1715 = vmatmul.f32.gmra.mxu0 %v1125
        %v1716 = vpop.f32.mrf.mxu0
        %v1717 = vadd.f32 0.0, %v1716
        %1718 = vdwg.mxu0
        %v1719 = vmul.f32 %v1717, 0.35355338
        %s1720 = scalar_lea.vmem %s9, 24
        %v1721 = vld [vmem:[%s1720] sm:$0xff]
        %v1723 = vsel %vm1030, %v1721, 0
        %1725 = vmatpush.xpose.msra.mxu0 0.0
        %1726 = vmatpush.xpose.msra.mxu0 0.0
        %1727 = vmatpush.xpose.msra.mxu0 0.0
        %1728 = vmatpush.xpose.msra.mxu0 0.0
        %1729 = vmatpush.xpose.msra.mxu0 0.0
        %1730 = vmatpush.xpose.msra.mxu0 0.0
        %1731 = vmatpush.xpose.msra.mxu0 0.0
        %1732 = vmatpush.xpose.msra.mxu0 0.0
        %1733 = vmatpush.xpose.msra.mxu0 0.0
        %1734 = vmatpush.xpose.msra.mxu0 0.0
        %1735 = vmatpush.xpose.msra.mxu0 0.0
        %1736 = vmatpush.xpose.msra.mxu0 0.0
        %1737 = vmatpush.xpose.msra.mxu0 0.0
        %1738 = vmatpush.xpose.msra.mxu0 0.0
        %1739 = vmatpush.xpose.msra.mxu0 0.0
        %1740 = vmatpush.xpose.msra.mxu0 %v1723
        %1741 = vmatmul.f32.gmra.mxu0 %v1125
        %v1742 = vpop.f32.mrf.mxu0
        %v1743 = vadd.f32 0.0, %v1742
        %1744 = vdwg.mxu0
        %s1745 = scalar_lea.vmem %s10, 24
        %v1746 = vld [vmem:[%s1745] sm:$0xff]
        %v1748 = vsel %vm1030, %v1746, 0
        %1750 = vmatpush.xpose.msra.mxu0 0.0
        %1751 = vmatpush.xpose.msra.mxu0 0.0
        %1752 = vmatpush.xpose.msra.mxu0 0.0
        %1753 = vmatpush.xpose.msra.mxu0 0.0
        %1754 = vmatpush.xpose.msra.mxu0 0.0
        %1755 = vmatpush.xpose.msra.mxu0 0.0
        %1756 = vmatpush.xpose.msra.mxu0 0.0
        %1757 = vmatpush.xpose.msra.mxu0 0.0
        %1758 = vmatpush.xpose.msra.mxu0 0.0
        %1759 = vmatpush.xpose.msra.mxu0 0.0
        %1760 = vmatpush.xpose.msra.mxu0 0.0
        %1761 = vmatpush.xpose.msra.mxu0 0.0
        %1762 = vmatpush.xpose.msra.mxu0 0.0
        %1763 = vmatpush.xpose.msra.mxu0 0.0
        %1764 = vmatpush.xpose.msra.mxu0 0.0
        %1765 = vmatpush.xpose.msra.mxu0 %v1748
        %1766 = vmatmul.f32.gmra.mxu0 %v1125
        %v1767 = vpop.f32.mrf.mxu0
        %v1768 = vadd.f32 0.0, %v1767
        %1769 = vdwg.mxu0
        %v1771 = vsel %vm1199, %v1719, 0
        %v1774 = vsel %vm1199, %v1743, 0
        %1776 = vmatpush.xpose.msra.mxu0 0.0
        %1777 = vmatpush.xpose.msra.mxu0 0.0
        %1778 = vmatpush.xpose.msra.mxu0 0.0
        %1779 = vmatpush.xpose.msra.mxu0 0.0
        %1780 = vmatpush.xpose.msra.mxu0 0.0
        %1781 = vmatpush.xpose.msra.mxu0 0.0
        %1782 = vmatpush.xpose.msra.mxu0 0.0
        %1783 = vmatpush.xpose.msra.mxu0 0.0
        %1784 = vmatpush.xpose.msra.mxu0 0.0
        %1785 = vmatpush.xpose.msra.mxu0 0.0
        %1786 = vmatpush.xpose.msra.mxu0 0.0
        %1787 = vmatpush.xpose.msra.mxu0 0.0
        %1788 = vmatpush.xpose.msra.mxu0 0.0
        %1789 = vmatpush.xpose.msra.mxu0 0.0
        %1790 = vmatpush.xpose.msra.mxu0 0.0
        %1791 = vmatpush.xpose.msra.mxu0 %v1774
        %1792 = vmatmul.f32.gmra.mxu0 %v1771
        %v1793 = vpop.f32.mrf.mxu0
        %v1794 = vadd.f32 0.0, %v1793
        %1795 = vdwg.mxu0
        %v1796 = vsel %vm1069, -1e+18, %v1794
        %v1797 = vsel %vm1199, %v1796, -inf
        %1798 = vmax.xlane.f32.xlu0 %v1797
        %v1799 = vpop.xlane.xlu0 %1798
        %v1800 = vsub.f32 %v1796, %v1799
        %v1801 = vmul.f32 %v1800, 1.442695
        %v1802 = vpow.pop %v1801
        %v1803 = vsel %vm1199, %v1802, 0.0
        %1804 = vadd.xlane.f32.xlu0 %v1803
        %v1805 = vpop.xlane.xlu0 %1804
        %v1806 = vrcp.pop %v1805
        %v1807 = vmul.f32 %v1805, %v1806
        %v1808 = vsub.f32 1.0, %v1807
        %v1809 = vmul.f32 %v1806, %v1808
        %v1810 = vadd.f32 %v1806, %v1809
        %vm1811 = vweird.f32 %v1805
        %vm1812 = vweird.f32 %v1806
        %vm1813 = vmor %vm1811, %vm1812
        %v1814 = vsel %vm1813, %v1806, %v1810
        %v1815 = vand.u32 2147483647, %v1805
        %vm1816 = vcmp.eq.f32.partialorder %v1815, 8.507059e+37
        %v1817 = vand.u32 %v1805, 2147483648
        %v1818 = vor.u32 1.1754944e-38, %v1817
        %v1819 = vsel %vm1816, %v1818, %v1814
        %v1820 = vmul.f32 %v1802, %v1819
        %v1822 = vsel %vm1199, %v1820, 0
        %1824 = vmatpush.msra.mxu0 0.0
        %1825 = vmatpush.msra.mxu0 0.0
        %1826 = vmatpush.msra.mxu0 0.0
        %1827 = vmatpush.msra.mxu0 0.0
        %1828 = vmatpush.msra.mxu0 0.0
        %1829 = vmatpush.msra.mxu0 0.0
        %1830 = vmatpush.msra.mxu0 0.0
        %1831 = vmatpush.msra.mxu0 0.0
        %1832 = vmatpush.msra.mxu0 0.0
        %1833 = vmatpush.msra.mxu0 0.0
        %1834 = vmatpush.msra.mxu0 0.0
        %1835 = vmatpush.msra.mxu0 0.0
        %1836 = vmatpush.msra.mxu0 0.0
        %1837 = vmatpush.msra.mxu0 0.0
        %1838 = vmatpush.msra.mxu0 0.0
        %1839 = vmatpush.msra.mxu0 %v1768
        %1840 = vmatmul.f32.gmra.mxu0 %v1822
        %v1841 = vpop.f32.mrf.mxu0
        %v1842 = vadd.f32 0.0, %v1841
        %1843 = vdwg.mxu0
        %s1844 = scalar_lea.vmem %s11, 96
        %v1845 = vld [vmem:[%s1844] sm:$0xff]
        %v1846 = vld [vmem:[%s1844 + $0x8] sm:$0xff]
        %v1847 = vld [vmem:[%s1844 + $0x10] sm:$0xff]
        %v1848 = vld [vmem:[%s1844 + $0x18] sm:$0xff]
        %v1850 = vsel %vm1199, %v1842, 0
        %v1853 = vsel %vm1199, %v1845, 0
        %v1856 = vsel %vm1199, %v1846, 0
        %v1859 = vsel %vm1199, %v1847, 0
        %v1862 = vsel %vm1199, %v1848, 0
        %1864 = vmatpush.xpose.msra.mxu0 0.0
        %1865 = vmatpush.xpose.msra.mxu0 0.0
        %1866 = vmatpush.xpose.msra.mxu0 0.0
        %1867 = vmatpush.xpose.msra.mxu0 0.0
        %1868 = vmatpush.xpose.msra.mxu0 0.0
        %1869 = vmatpush.xpose.msra.mxu0 0.0
        %1870 = vmatpush.xpose.msra.mxu0 0.0
        %1871 = vmatpush.xpose.msra.mxu0 0.0
        %1872 = vmatpush.xpose.msra.mxu0 0.0
        %1873 = vmatpush.xpose.msra.mxu0 0.0
        %1874 = vmatpush.xpose.msra.mxu0 0.0
        %1875 = vmatpush.xpose.msra.mxu0 0.0
        %1876 = vmatpush.xpose.msra.mxu0 %v1862
        %1877 = vmatpush.xpose.msra.mxu0 %v1859
        %1878 = vmatpush.xpose.msra.mxu0 %v1856
        %1879 = vmatpush.xpose.msra.mxu0 %v1853
        %1880 = vmatmul.f32.gmra.mxu0 %v1850
        %v1881 = vpop.f32.mrf.mxu0
        %v1882 = vadd.f32 0.0, %v1881
        %1883 = vdwg.mxu0
        %v1884 = vadd.f32 %v1693, %v1882
        %v1885 = vadd.f32 %v1064, %v1884
        %v1886 = vld [vmem:[%s12] sm:$0x1]
        %v1887 = vld [vmem:[%s13] sm:$0x1]
        %v1888 = vsel %vm1030, %v1885, 0.0
        %1889 = vadd.xlane.f32.xlu0 %v1888
        %v1890 = vpop.xlane.xlu0 %1889
        %v1891 = vmul.f32 %v1885, %v1885
        %v1892 = vsel %vm1030, %v1891, 0.0
        %1893 = vadd.xlane.f32.xlu0 %v1892
        %v1894 = vpop.xlane.xlu0 %1893
        %v1895 = vmul.f32 %v1890, 0.03125
        %v1896 = vmul.f32 %v1890, %v1895
        %v1897 = vsub.f32 %v1894, %v1896
        %v1898 = vmax.f32 %v1897, 0.0
        %v1899 = vmul.f32 %v1898, 0.032258064
        %v1900 = vrsqrt.pop %v1899
        %v1901 = vmul.f32 %v1900, %v1899
        %v1902 = vmul.f32 %v1901, %v1900
        %v1903 = vmul.f32 0.5, %v1902
        %v1904 = vsub.f32 1.5, %v1903
        %v1905 = vmul.f32 %v1900, %v1904
        %v1906 = vmul.f32 %v1899, %v1905
        %vm1907 = vcmp.eq.f32.partialorder %v1899, inf
        %v1908 = vsel %vm1907, %v1899, %v1906
        %vm1909 = vcmp.eq.f32.partialorder %v1899, 0.0
        %v1910 = vand.u32 %v1899, 2147483648
        %v1911 = vsel %vm1909, %v1910, %v1908
        %v1912 = vsub.f32 %v1885, %v1895
        %v1914 = vperm.slane %v1886, 0
        %v1916 = vmul.f32 %v1914, %v1912
        %v1917 = vadd.f32 %v1911, 1e-06
        %v1918 = vrcp.pop %v1917
        %v1919 = vmul.f32 %v1917, %v1918
        %v1920 = vsub.f32 1.0, %v1919
        %v1921 = vmul.f32 %v1918, %v1920
        %v1922 = vadd.f32 %v1918, %v1921
        %vm1923 = vweird.f32 %v1917
        %vm1924 = vweird.f32 %v1918
        %vm1925 = vmor %vm1923, %vm1924
        %v1926 = vsel %vm1925, %v1918, %v1922
        %v1927 = vand.u32 2147483647, %v1917
        %vm1928 = vcmp.eq.f32.partialorder %v1927, 8.507059e+37
        %v1929 = vand.u32 %v1917, 2147483648
        %v1930 = vor.u32 1.1754944e-38, %v1929
        %v1931 = vsel %vm1928, %v1930, %v1926
        %v1932 = vmul.f32 %v1916, %v1931
        %v1934 = vperm.slane %v1887, 0
        %v1936 = vadd.f32 %v1932, %v1934
        %v1937 = vld [vmem:[%s14] sm:$0xff]
        %v1939 = vsel %vm1030, %v1936, 0
        %v1942 = vsel %vm1030, %v1937, 0
        %1944 = vmatpush.xpose.msra.mxu0 0.0
        %1945 = vmatpush.xpose.msra.mxu0 0.0
        %1946 = vmatpush.xpose.msra.mxu0 0.0
        %1947 = vmatpush.xpose.msra.mxu0 0.0
        %1948 = vmatpush.xpose.msra.mxu0 0.0
        %1949 = vmatpush.xpose.msra.mxu0 0.0
        %1950 = vmatpush.xpose.msra.mxu0 0.0
        %1951 = vmatpush.xpose.msra.mxu0 0.0
        %1952 = vmatpush.xpose.msra.mxu0 0.0
        %1953 = vmatpush.xpose.msra.mxu0 0.0
        %1954 = vmatpush.xpose.msra.mxu0 0.0
        %1955 = vmatpush.xpose.msra.mxu0 0.0
        %1956 = vmatpush.xpose.msra.mxu0 0.0
        %1957 = vmatpush.xpose.msra.mxu0 0.0
        %1958 = vmatpush.xpose.msra.mxu0 0.0
        %1959 = vmatpush.xpose.msra.mxu0 %v1942
        %1960 = vmatmul.f32.gmra.mxu0 %v1939
        %v1961 = vpop.f32.mrf.mxu0
        %v1962 = vadd.f32 0.0, %v1961
        %1963 = vdwg.mxu0
        %v1964 = vmul.f32 %v1962, 0.35355338
        %v1965 = vld [vmem:[%s15] sm:$0xff]
        %v1967 = vsel %vm1030, %v1066, 0
        %v1970 = vsel %vm1030, %v1067, 0
        %v1973 = vsel %vm1030, %v1965, 0
        %1975 = vmatpush.xpose.msra.mxu0 0.0
        %1976 = vmatpush.xpose.msra.mxu0 0.0
        %1977 = vmatpush.xpose.msra.mxu0 0.0
        %1978 = vmatpush.xpose.msra.mxu0 0.0
        %1979 = vmatpush.xpose.msra.mxu0 0.0
        %1980 = vmatpush.xpose.msra.mxu0 0.0
        %1981 = vmatpush.xpose.msra.mxu0 0.0
        %1982 = vmatpush.xpose.msra.mxu0 0.0
        %1983 = vmatpush.xpose.msra.mxu0 0.0
        %1984 = vmatpush.xpose.msra.mxu0 0.0
        %1985 = vmatpush.xpose.msra.mxu0 0.0
        %1986 = vmatpush.xpose.msra.mxu0 0.0
        %1987 = vmatpush.xpose.msra.mxu0 0.0
        %1988 = vmatpush.xpose.msra.mxu0 0.0
        %1989 = vmatpush.xpose.msra.mxu0 0.0
        %1990 = vmatpush.xpose.msra.mxu0 %v1973
        %1991 = vmatmul.f32.gmra.mxu0 %v1967
        %v1992 = vpop.f32.mrf.mxu0
        %v1993 = vadd.f32 0.0, %v1992
        %1994 = vmatmul.f32.gmra.mxu0 %v1970
        %v1995 = vpop.f32.mrf.mxu0
        %v1996 = vadd.f32 0.0, %v1995
        %1997 = vdwg.mxu0
        %v1998 = vld [vmem:[#allocation14] sm:$0xff]
        %v2000 = vsel %vm1030, %v1998, 0
        %2002 = vmatpush.xpose.msra.mxu0 0.0
        %2003 = vmatpush.xpose.msra.mxu0 0.0
        %2004 = vmatpush.xpose.msra.mxu0 0.0
        %2005 = vmatpush.xpose.msra.mxu0 0.0
        %2006 = vmatpush.xpose.msra.mxu0 0.0
        %2007 = vmatpush.xpose.msra.mxu0 0.0
        %2008 = vmatpush.xpose.msra.mxu0 0.0
        %2009 = vmatpush.xpose.msra.mxu0 0.0
        %2010 = vmatpush.xpose.msra.mxu0 0.0
        %2011 = vmatpush.xpose.msra.mxu0 0.0
        %2012 = vmatpush.xpose.msra.mxu0 0.0
        %2013 = vmatpush.xpose.msra.mxu0 0.0
        %2014 = vmatpush.xpose.msra.mxu0 0.0
        %2015 = vmatpush.xpose.msra.mxu0 0.0
        %2016 = vmatpush.xpose.msra.mxu0 0.0
        %2017 = vmatpush.xpose.msra.mxu0 %v2000
        %2018 = vmatmul.f32.gmra.mxu0 %v1967
        %v2019 = vpop.f32.mrf.mxu0
        %v2020 = vadd.f32 0.0, %v2019
        %2021 = vmatmul.f32.gmra.mxu0 %v1970
        %v2022 = vpop.f32.mrf.mxu0
        %v2023 = vadd.f32 0.0, %v2022
        %2024 = vdwg.mxu0
        %v2026 = vsel %vm1199, %v1964, 0
        %v2029 = vsel %vm1199, %v1993, 0
        %v2032 = vsel %vm1199, %v1996, 0
        %2034 = vmatpush.xpose.msra.mxu0 0.0
        %2035 = vmatpush.xpose.msra.mxu0 0.0
        %2036 = vmatpush.xpose.msra.mxu0 0.0
        %2037 = vmatpush.xpose.msra.mxu0 0.0
        %2038 = vmatpush.xpose.msra.mxu0 0.0
        %2039 = vmatpush.xpose.msra.mxu0 0.0
        %2040 = vmatpush.xpose.msra.mxu0 0.0
        %2041 = vmatpush.xpose.msra.mxu0 0.0
        %2042 = vmatpush.xpose.msra.mxu0 0.0
        %2043 = vmatpush.xpose.msra.mxu0 0.0
        %2044 = vmatpush.xpose.msra.mxu0 0.0
        %2045 = vmatpush.xpose.msra.mxu0 0.0
        %2046 = vmatpush.xpose.msra.mxu0 0.0
        %2047 = vmatpush.xpose.msra.mxu0 0.0
        %2048 = vmatpush.xpose.msra.mxu0 %v2032
        %2049 = vmatpush.xpose.msra.mxu0 %v2029
        %2050 = vmatmul.f32.gmra.mxu0 %v2026
        %v2051 = vpop.f32.mrf.mxu0
        %v2052 = vadd.f32 0.0, %v2051
        %2053 = vdwg.mxu0
        %v2054 = vsel %vm1071, 1, 0
        %v2055 = vperm.slane %v2054, 0
        %vm2056 = vcmp.eq.s32.totalorder %v2055, 1
        %v2057 = vsel %vm2056, -1e+18, %v2052
        %vm2058 = vcmask 130048
        %v2059 = vsel %vm2058, %v2057, -inf
        %2060 = vmax.xlane.f32.xlu0 %v2059
        %v2061 = vpop.xlane.xlu0 %2060
        %v2062 = vsub.f32 %v2057, %v2061
        %v2063 = vmul.f32 %v2062, 1.442695
        %v2064 = vpow.pop %v2063
        %v2065 = vsel %vm2058, %v2064, 0.0
        %2066 = vadd.xlane.f32.xlu0 %v2065
        %v2067 = vpop.xlane.xlu0 %2066
        %v2068 = vrcp.pop %v2067
        %v2069 = vmul.f32 %v2067, %v2068
        %v2070 = vsub.f32 1.0, %v2069
        %v2071 = vmul.f32 %v2068, %v2070
        %v2072 = vadd.f32 %v2068, %v2071
        %vm2073 = vweird.f32 %v2067
        %vm2074 = vweird.f32 %v2068
        %vm2075 = vmor %vm2073, %vm2074
        %v2076 = vsel %vm2075, %v2068, %v2072
        %v2077 = vand.u32 2147483647, %v2067
        %vm2078 = vcmp.eq.f32.partialorder %v2077, 8.507059e+37
        %v2079 = vand.u32 %v2067, 2147483648
        %v2080 = vor.u32 1.1754944e-38, %v2079
        %v2081 = vsel %vm2078, %v2080, %v2076
        %v2082 = vmul.f32 %v2064, %v2081
        %v2084 = vsel %vm2058, %v2082, 0
        %2086 = vmatpush.msra.mxu0 0.0
        %2087 = vmatpush.msra.mxu0 0.0
        %2088 = vmatpush.msra.mxu0 0.0
        %2089 = vmatpush.msra.mxu0 0.0
        %2090 = vmatpush.msra.mxu0 0.0
        %2091 = vmatpush.msra.mxu0 0.0
        %2092 = vmatpush.msra.mxu0 0.0
        %2093 = vmatpush.msra.mxu0 0.0
        %2094 = vmatpush.msra.mxu0 0.0
        %2095 = vmatpush.msra.mxu0 0.0
        %2096 = vmatpush.msra.mxu0 0.0
        %2097 = vmatpush.msra.mxu0 0.0
        %2098 = vmatpush.msra.mxu0 0.0
        %2099 = vmatpush.msra.mxu0 0.0
        %2100 = vmatpush.msra.mxu0 %v2023
        %2101 = vmatpush.msra.mxu0 %v2020
        %2102 = vmatmul.f32.gmra.mxu0 %v2084
        %v2103 = vpop.f32.mrf.mxu0
        %v2104 = vadd.f32 0.0, %v2103
        %2105 = vdwg.mxu0
        %v2106 = vld [vmem:[%s17] sm:$0xff]
        %v2107 = vld [vmem:[%s17 + $0x8] sm:$0xff]
        %v2108 = vld [vmem:[%s17 + $0x10] sm:$0xff]
        %v2109 = vld [vmem:[%s17 + $0x18] sm:$0xff]
        %s2110 = scalar_lea.vmem %s14, 8
        %v2111 = vld [vmem:[%s2110] sm:$0xff]
        %v2113 = vsel %vm1030, %v2111, 0
        %2115 = vmatpush.xpose.msra.mxu0 0.0
        %2116 = vmatpush.xpose.msra.mxu0 0.0
        %2117 = vmatpush.xpose.msra.mxu0 0.0
        %2118 = vmatpush.xpose.msra.mxu0 0.0
        %2119 = vmatpush.xpose.msra.mxu0 0.0
        %2120 = vmatpush.xpose.msra.mxu0 0.0
        %2121 = vmatpush.xpose.msra.mxu0 0.0
        %2122 = vmatpush.xpose.msra.mxu0 0.0
        %2123 = vmatpush.xpose.msra.mxu0 0.0
        %2124 = vmatpush.xpose.msra.mxu0 0.0
        %2125 = vmatpush.xpose.msra.mxu0 0.0
        %2126 = vmatpush.xpose.msra.mxu0 0.0
        %2127 = vmatpush.xpose.msra.mxu0 0.0
        %2128 = vmatpush.xpose.msra.mxu0 0.0
        %2129 = vmatpush.xpose.msra.mxu0 0.0
        %2130 = vmatpush.xpose.msra.mxu0 %v2113
        %2131 = vmatmul.f32.gmra.mxu0 %v1939
        %v2132 = vpop.f32.mrf.mxu0
        %v2133 = vadd.f32 0.0, %v2132
        %2134 = vdwg.mxu0
        %v2135 = vmul.f32 %v2133, 0.35355338
        %s2136 = scalar_lea.vmem %s15, 8
        %v2137 = vld [vmem:[%s2136] sm:$0xff]
        %v2139 = vsel %vm1030, %v2137, 0
        %2141 = vmatpush.xpose.msra.mxu0 0.0
        %2142 = vmatpush.xpose.msra.mxu0 0.0
        %2143 = vmatpush.xpose.msra.mxu0 0.0
        %2144 = vmatpush.xpose.msra.mxu0 0.0
        %2145 = vmatpush.xpose.msra.mxu0 0.0
        %2146 = vmatpush.xpose.msra.mxu0 0.0
        %2147 = vmatpush.xpose.msra.mxu0 0.0
        %2148 = vmatpush.xpose.msra.mxu0 0.0
        %2149 = vmatpush.xpose.msra.mxu0 0.0
        %2150 = vmatpush.xpose.msra.mxu0 0.0
        %2151 = vmatpush.xpose.msra.mxu0 0.0
        %2152 = vmatpush.xpose.msra.mxu0 0.0
        %2153 = vmatpush.xpose.msra.mxu0 0.0
        %2154 = vmatpush.xpose.msra.mxu0 0.0
        %2155 = vmatpush.xpose.msra.mxu0 0.0
        %2156 = vmatpush.xpose.msra.mxu0 %v2139
        %2157 = vmatmul.f32.gmra.mxu0 %v1967
        %v2158 = vpop.f32.mrf.mxu0
        %v2159 = vadd.f32 0.0, %v2158
        %2160 = vmatmul.f32.gmra.mxu0 %v1970
        %v2161 = vpop.f32.mrf.mxu0
        %v2162 = vadd.f32 0.0, %v2161
        %2163 = vdwg.mxu0
        %s2164 = scalar_lea.vmem [#allocation14], 8
        %v2165 = vld [vmem:[%s2164] sm:$0xff]
        %v2167 = vsel %vm1030, %v2165, 0
        %2169 = vmatpush.xpose.msra.mxu0 0.0
        %2170 = vmatpush.xpose.msra.mxu0 0.0
        %2171 = vmatpush.xpose.msra.mxu0 0.0
        %2172 = vmatpush.xpose.msra.mxu0 0.0
        %2173 = vmatpush.xpose.msra.mxu0 0.0
        %2174 = vmatpush.xpose.msra.mxu0 0.0
        %2175 = vmatpush.xpose.msra.mxu0 0.0
        %2176 = vmatpush.xpose.msra.mxu0 0.0
        %2177 = vmatpush.xpose.msra.mxu0 0.0
        %2178 = vmatpush.xpose.msra.mxu0 0.0
        %2179 = vmatpush.xpose.msra.mxu0 0.0
        %2180 = vmatpush.xpose.msra.mxu0 0.0
        %2181 = vmatpush.xpose.msra.mxu0 0.0
        %2182 = vmatpush.xpose.msra.mxu0 0.0
        %2183 = vmatpush.xpose.msra.mxu0 0.0
        %2184 = vmatpush.xpose.msra.mxu0 %v2167
        %2185 = vmatmul.f32.gmra.mxu0 %v1967
        %v2186 = vpop.f32.mrf.mxu0
        %v2187 = vadd.f32 0.0, %v2186
        %2188 = vmatmul.f32.gmra.mxu0 %v1970
        %v2189 = vpop.f32.mrf.mxu0
        %v2190 = vadd.f32 0.0, %v2189
        %2191 = vdwg.mxu0
        %v2193 = vsel %vm1199, %v2135, 0
        %v2196 = vsel %vm1199, %v2159, 0
        %v2199 = vsel %vm1199, %v2162, 0
        %2201 = vmatpush.xpose.msra.mxu0 0.0
        %2202 = vmatpush.xpose.msra.mxu0 0.0
        %2203 = vmatpush.xpose.msra.mxu0 0.0
        %2204 = vmatpush.xpose.msra.mxu0 0.0
        %2205 = vmatpush.xpose.msra.mxu0 0.0
        %2206 = vmatpush.xpose.msra.mxu0 0.0
        %2207 = vmatpush.xpose.msra.mxu0 0.0
        %2208 = vmatpush.xpose.msra.mxu0 0.0
        %2209 = vmatpush.xpose.msra.mxu0 0.0
        %2210 = vmatpush.xpose.msra.mxu0 0.0
        %2211 = vmatpush.xpose.msra.mxu0 0.0
        %2212 = vmatpush.xpose.msra.mxu0 0.0
        %2213 = vmatpush.xpose.msra.mxu0 0.0
        %2214 = vmatpush.xpose.msra.mxu0 0.0
        %2215 = vmatpush.xpose.msra.mxu0 %v2199
        %2216 = vmatpush.xpose.msra.mxu0 %v2196
        %2217 = vmatmul.f32.gmra.mxu0 %v2193
        %v2218 = vpop.f32.mrf.mxu0
        %v2219 = vadd.f32 0.0, %v2218
        %2220 = vdwg.mxu0
        %v2221 = vsel %vm2056, -1e+18, %v2219
        %v2222 = vsel %vm2058, %v2221, -inf
        %2223 = vmax.xlane.f32.xlu0 %v2222
        %v2224 = vpop.xlane.xlu0 %2223
        %v2225 = vsub.f32 %v2221, %v2224
        %v2226 = vmul.f32 %v2225, 1.442695
        %v2227 = vpow.pop %v2226
        %v2228 = vsel %vm2058, %v2227, 0.0
        %2229 = vadd.xlane.f32.xlu0 %v2228
        %v2230 = vpop.xlane.xlu0 %2229
        %v2231 = vrcp.pop %v2230
        %v2232 = vmul.f32 %v2230, %v2231
        %v2233 = vsub.f32 1.0, %v2232
        %v2234 = vmul.f32 %v2231, %v2233
        %v2235 = vadd.f32 %v2231, %v2234
        %vm2236 = vweird.f32 %v2230
        %vm2237 = vweird.f32 %v2231
        %vm2238 = vmor %vm2236, %vm2237
        %v2239 = vsel %vm2238, %v2231, %v2235
        %v2240 = vand.u32 2147483647, %v2230
        %vm2241 = vcmp.eq.f32.partialorder %v2240, 8.507059e+37
        %v2242 = vand.u32 %v2230, 2147483648
        %v2243 = vor.u32 1.1754944e-38, %v2242
        %v2244 = vsel %vm2241, %v2243, %v2239
        %v2245 = vmul.f32 %v2227, %v2244
        %v2247 = vsel %vm2058, %v2245, 0
        %2249 = vmatpush.msra.mxu0 0.0
        %2250 = vmatpush.msra.mxu0 0.0
        %2251 = vmatpush.msra.mxu0 0.0
        %2252 = vmatpush.msra.mxu0 0.0
        %2253 = vmatpush.msra.mxu0 0.0
        %2254 = vmatpush.msra.mxu0 0.0
        %2255 = vmatpush.msra.mxu0 0.0
        %2256 = vmatpush.msra.mxu0 0.0
        %2257 = vmatpush.msra.mxu0 0.0
        %2258 = vmatpush.msra.mxu0 0.0
        %2259 = vmatpush.msra.mxu0 0.0
        %2260 = vmatpush.msra.mxu0 0.0
        %2261 = vmatpush.msra.mxu0 0.0
        %2262 = vmatpush.msra.mxu0 0.0
        %2263 = vmatpush.msra.mxu0 %v2190
        %2264 = vmatpush.msra.mxu0 %v2187
        %2265 = vmatmul.f32.gmra.mxu0 %v2247
        %v2266 = vpop.f32.mrf.mxu0
        %v2267 = vadd.f32 0.0, %v2266
        %2268 = vdwg.mxu0
        %s2269 = scalar_lea.vmem %s17, 32
        %v2270 = vld [vmem:[%s2269] sm:$0xff]
        %v2271 = vld [vmem:[%s2269 + $0x8] sm:$0xff]
        %v2272 = vld [vmem:[%s2269 + $0x10] sm:$0xff]
        %v2273 = vld [vmem:[%s2269 + $0x18] sm:$0xff]
        %v2275 = vsel %vm1199, %v2267, 0
        %v2278 = vsel %vm1199, %v2270, 0
        %v2281 = vsel %vm1199, %v2271, 0
        %v2284 = vsel %vm1199, %v2272, 0
        %v2287 = vsel %vm1199, %v2273, 0
        %2289 = vmatpush.xpose.msra.mxu0 0.0
        %2290 = vmatpush.xpose.msra.mxu0 0.0
        %2291 = vmatpush.xpose.msra.mxu0 0.0
        %2292 = vmatpush.xpose.msra.mxu0 0.0
        %2293 = vmatpush.xpose.msra.mxu0 0.0
        %2294 = vmatpush.xpose.msra.mxu0 0.0
        %2295 = vmatpush.xpose.msra.mxu0 0.0
        %2296 = vmatpush.xpose.msra.mxu0 0.0
        %2297 = vmatpush.xpose.msra.mxu0 0.0
        %2298 = vmatpush.xpose.msra.mxu0 0.0
        %2299 = vmatpush.xpose.msra.mxu0 0.0
        %2300 = vmatpush.xpose.msra.mxu0 0.0
        %2301 = vmatpush.xpose.msra.mxu0 %v2287
        %2302 = vmatpush.xpose.msra.mxu0 %v2284
        %2303 = vmatpush.xpose.msra.mxu0 %v2281
        %2304 = vmatpush.xpose.msra.mxu0 %v2278
        %2305 = vmatmul.f32.gmra.mxu0 %v2275
        %v2306 = vpop.f32.mrf.mxu0
        %v2307 = vadd.f32 0.0, %v2306
        %2308 = vdwg.mxu0
        %v2310 = vsel %vm1199, %v2104, 0
        %v2313 = vsel %vm1199, %v2106, 0
        %v2316 = vsel %vm1199, %v2107, 0
        %v2319 = vsel %vm1199, %v2108, 0
        %v2322 = vsel %vm1199, %v2109, 0
        %2324 = vmatpush.xpose.msra.mxu0 0.0
        %2325 = vmatpush.xpose.msra.mxu0 0.0
        %2326 = vmatpush.xpose.msra.mxu0 0.0
        %2327 = vmatpush.xpose.msra.mxu0 0.0
        %2328 = vmatpush.xpose.msra.mxu0 0.0
        %2329 = vmatpush.xpose.msra.mxu0 0.0
        %2330 = vmatpush.xpose.msra.mxu0 0.0
        %2331 = vmatpush.xpose.msra.mxu0 0.0
        %2332 = vmatpush.xpose.msra.mxu0 0.0
        %2333 = vmatpush.xpose.msra.mxu0 0.0
        %2334 = vmatpush.xpose.msra.mxu0 0.0
        %2335 = vmatpush.xpose.msra.mxu0 0.0
        %2336 = vmatpush.xpose.msra.mxu0 %v2322
        %2337 = vmatpush.xpose.msra.mxu0 %v2319
        %2338 = vmatpush.xpose.msra.mxu0 %v2316
        %2339 = vmatpush.xpose.msra.mxu0 %v2313
        %2340 = vmatmul.f32.gmra.mxu0 %v2310
        %v2341 = vpop.f32.mrf.mxu0
        %v2342 = vadd.f32 %v2307, %v2341
        %2343 = vdwg.mxu0
        %s2344 = scalar_lea.vmem %s14, 16
        %v2345 = vld [vmem:[%s2344] sm:$0xff]
        %v2347 = vsel %vm1030, %v2345, 0
        %2349 = vmatpush.xpose.msra.mxu0 0.0
        %2350 = vmatpush.xpose.msra.mxu0 0.0
        %2351 = vmatpush.xpose.msra.mxu0 0.0
        %2352 = vmatpush.xpose.msra.mxu0 0.0
        %2353 = vmatpush.xpose.msra.mxu0 0.0
        %2354 = vmatpush.xpose.msra.mxu0 0.0
        %2355 = vmatpush.xpose.msra.mxu0 0.0
        %2356 = vmatpush.xpose.msra.mxu0 0.0
        %2357 = vmatpush.xpose.msra.mxu0 0.0
        %2358 = vmatpush.xpose.msra.mxu0 0.0
        %2359 = vmatpush.xpose.msra.mxu0 0.0
        %2360 = vmatpush.xpose.msra.mxu0 0.0
        %2361 = vmatpush.xpose.msra.mxu0 0.0
        %2362 = vmatpush.xpose.msra.mxu0 0.0
        %2363 = vmatpush.xpose.msra.mxu0 0.0
        %2364 = vmatpush.xpose.msra.mxu0 %v2347
        %2365 = vmatmul.f32.gmra.mxu0 %v1939
        %v2366 = vpop.f32.mrf.mxu0
        %v2367 = vadd.f32 0.0, %v2366
        %2368 = vdwg.mxu0
        %v2369 = vmul.f32 %v2367, 0.35355338
        %s2370 = scalar_lea.vmem %s15, 16
        %v2371 = vld [vmem:[%s2370] sm:$0xff]
        %v2373 = vsel %vm1030, %v2371, 0
        %2375 = vmatpush.xpose.msra.mxu0 0.0
        %2376 = vmatpush.xpose.msra.mxu0 0.0
        %2377 = vmatpush.xpose.msra.mxu0 0.0
        %2378 = vmatpush.xpose.msra.mxu0 0.0
        %2379 = vmatpush.xpose.msra.mxu0 0.0
        %2380 = vmatpush.xpose.msra.mxu0 0.0
        %2381 = vmatpush.xpose.msra.mxu0 0.0
        %2382 = vmatpush.xpose.msra.mxu0 0.0
        %2383 = vmatpush.xpose.msra.mxu0 0.0
        %2384 = vmatpush.xpose.msra.mxu0 0.0
        %2385 = vmatpush.xpose.msra.mxu0 0.0
        %2386 = vmatpush.xpose.msra.mxu0 0.0
        %2387 = vmatpush.xpose.msra.mxu0 0.0
        %2388 = vmatpush.xpose.msra.mxu0 0.0
        %2389 = vmatpush.xpose.msra.mxu0 0.0
        %2390 = vmatpush.xpose.msra.mxu0 %v2373
        %2391 = vmatmul.f32.gmra.mxu0 %v1967
        %v2392 = vpop.f32.mrf.mxu0
        %v2393 = vadd.f32 0.0, %v2392
        %2394 = vmatmul.f32.gmra.mxu0 %v1970
        %v2395 = vpop.f32.mrf.mxu0
        %v2396 = vadd.f32 0.0, %v2395
        %2397 = vdwg.mxu0
        %s2398 = scalar_lea.vmem [#allocation14], 16
        %v2399 = vld [vmem:[%s2398] sm:$0xff]
        %v2401 = vsel %vm1030, %v2399, 0
        %2403 = vmatpush.xpose.msra.mxu0 0.0
        %2404 = vmatpush.xpose.msra.mxu0 0.0
        %2405 = vmatpush.xpose.msra.mxu0 0.0
        %2406 = vmatpush.xpose.msra.mxu0 0.0
        %2407 = vmatpush.xpose.msra.mxu0 0.0
        %2408 = vmatpush.xpose.msra.mxu0 0.0
        %2409 = vmatpush.xpose.msra.mxu0 0.0
        %2410 = vmatpush.xpose.msra.mxu0 0.0
        %2411 = vmatpush.xpose.msra.mxu0 0.0
        %2412 = vmatpush.xpose.msra.mxu0 0.0
        %2413 = vmatpush.xpose.msra.mxu0 0.0
        %2414 = vmatpush.xpose.msra.mxu0 0.0
        %2415 = vmatpush.xpose.msra.mxu0 0.0
        %2416 = vmatpush.xpose.msra.mxu0 0.0
        %2417 = vmatpush.xpose.msra.mxu0 0.0
        %2418 = vmatpush.xpose.msra.mxu0 %v2401
        %2419 = vmatmul.f32.gmra.mxu0 %v1967
        %v2420 = vpop.f32.mrf.mxu0
        %v2421 = vadd.f32 0.0, %v2420
        %2422 = vmatmul.f32.gmra.mxu0 %v1970
        %v2423 = vpop.f32.mrf.mxu0
        %v2424 = vadd.f32 0.0, %v2423
        %2425 = vdwg.mxu0
        %v2427 = vsel %vm1199, %v2369, 0
        %v2430 = vsel %vm1199, %v2393, 0
        %v2433 = vsel %vm1199, %v2396, 0
        %2435 = vmatpush.xpose.msra.mxu0 0.0
        %2436 = vmatpush.xpose.msra.mxu0 0.0
        %2437 = vmatpush.xpose.msra.mxu0 0.0
        %2438 = vmatpush.xpose.msra.mxu0 0.0
        %2439 = vmatpush.xpose.msra.mxu0 0.0
        %2440 = vmatpush.xpose.msra.mxu0 0.0
        %2441 = vmatpush.xpose.msra.mxu0 0.0
        %2442 = vmatpush.xpose.msra.mxu0 0.0
        %2443 = vmatpush.xpose.msra.mxu0 0.0
        %2444 = vmatpush.xpose.msra.mxu0 0.0
        %2445 = vmatpush.xpose.msra.mxu0 0.0
        %2446 = vmatpush.xpose.msra.mxu0 0.0
        %2447 = vmatpush.xpose.msra.mxu0 0.0
        %2448 = vmatpush.xpose.msra.mxu0 0.0
        %2449 = vmatpush.xpose.msra.mxu0 %v2433
        %2450 = vmatpush.xpose.msra.mxu0 %v2430
        %2451 = vmatmul.f32.gmra.mxu0 %v2427
        %v2452 = vpop.f32.mrf.mxu0
        %v2453 = vadd.f32 0.0, %v2452
        %2454 = vdwg.mxu0
        %v2455 = vsel %vm2056, -1e+18, %v2453
        %v2456 = vsel %vm2058, %v2455, -inf
        %2457 = vmax.xlane.f32.xlu0 %v2456
        %v2458 = vpop.xlane.xlu0 %2457
        %v2459 = vsub.f32 %v2455, %v2458
        %v2460 = vmul.f32 %v2459, 1.442695
        %v2461 = vpow.pop %v2460
        %v2462 = vsel %vm2058, %v2461, 0.0
        %2463 = vadd.xlane.f32.xlu0 %v2462
        %v2464 = vpop.xlane.xlu0 %2463
        %v2465 = vrcp.pop %v2464
        %v2466 = vmul.f32 %v2464, %v2465
        %v2467 = vsub.f32 1.0, %v2466
        %v2468 = vmul.f32 %v2465, %v2467
        %v2469 = vadd.f32 %v2465, %v2468
        %vm2470 = vweird.f32 %v2464
        %vm2471 = vweird.f32 %v2465
        %vm2472 = vmor %vm2470, %vm2471
        %v2473 = vsel %vm2472, %v2465, %v2469
        %v2474 = vand.u32 2147483647, %v2464
        %vm2475 = vcmp.eq.f32.partialorder %v2474, 8.507059e+37
        %v2476 = vand.u32 %v2464, 2147483648
        %v2477 = vor.u32 1.1754944e-38, %v2476
        %v2478 = vsel %vm2475, %v2477, %v2473
        %v2479 = vmul.f32 %v2461, %v2478
        %v2481 = vsel %vm2058, %v2479, 0
        %2483 = vmatpush.msra.mxu0 0.0
        %2484 = vmatpush.msra.mxu0 0.0
        %2485 = vmatpush.msra.mxu0 0.0
        %2486 = vmatpush.msra.mxu0 0.0
        %2487 = vmatpush.msra.mxu0 0.0
        %2488 = vmatpush.msra.mxu0 0.0
        %2489 = vmatpush.msra.mxu0 0.0
        %2490 = vmatpush.msra.mxu0 0.0
        %2491 = vmatpush.msra.mxu0 0.0
        %2492 = vmatpush.msra.mxu0 0.0
        %2493 = vmatpush.msra.mxu0 0.0
        %2494 = vmatpush.msra.mxu0 0.0
        %2495 = vmatpush.msra.mxu0 0.0
        %2496 = vmatpush.msra.mxu0 0.0
        %2497 = vmatpush.msra.mxu0 %v2424
        %2498 = vmatpush.msra.mxu0 %v2421
        %2499 = vmatmul.f32.gmra.mxu0 %v2481
        %v2500 = vpop.f32.mrf.mxu0
        %v2501 = vadd.f32 0.0, %v2500
        %2502 = vdwg.mxu0
        %s2503 = scalar_lea.vmem %s17, 64
        %v2504 = vld [vmem:[%s2503] sm:$0xff]
        %v2505 = vld [vmem:[%s2503 + $0x8] sm:$0xff]
        %v2506 = vld [vmem:[%s2503 + $0x10] sm:$0xff]
        %v2507 = vld [vmem:[%s2503 + $0x18] sm:$0xff]
        %v2509 = vsel %vm1199, %v2501, 0
        %v2512 = vsel %vm1199, %v2504, 0
        %v2515 = vsel %vm1199, %v2505, 0
        %v2518 = vsel %vm1199, %v2506, 0
        %v2521 = vsel %vm1199, %v2507, 0
        %2523 = vmatpush.xpose.msra.mxu0 0.0
        %2524 = vmatpush.xpose.msra.mxu0 0.0
        %2525 = vmatpush.xpose.msra.mxu0 0.0
        %2526 = vmatpush.xpose.msra.mxu0 0.0
        %2527 = vmatpush.xpose.msra.mxu0 0.0
        %2528 = vmatpush.xpose.msra.mxu0 0.0
        %2529 = vmatpush.xpose.msra.mxu0 0.0
        %2530 = vmatpush.xpose.msra.mxu0 0.0
        %2531 = vmatpush.xpose.msra.mxu0 0.0
        %2532 = vmatpush.xpose.msra.mxu0 0.0
        %2533 = vmatpush.xpose.msra.mxu0 0.0
        %2534 = vmatpush.xpose.msra.mxu0 0.0
        %2535 = vmatpush.xpose.msra.mxu0 %v2521
        %2536 = vmatpush.xpose.msra.mxu0 %v2518
        %2537 = vmatpush.xpose.msra.mxu0 %v2515
        %2538 = vmatpush.xpose.msra.mxu0 %v2512
        %2539 = vmatmul.f32.gmra.mxu0 %v2509
        %v2540 = vpop.f32.mrf.mxu0
        %v2541 = vadd.f32 0.0, %v2540
        %2542 = vdwg.mxu0
        %v2543 = vadd.f32 %v2342, %v2541
        %s2544 = scalar_lea.vmem %s14, 24
        %v2545 = vld [vmem:[%s2544] sm:$0xff]
        %v2547 = vsel %vm1030, %v2545, 0
        %2549 = vmatpush.xpose.msra.mxu0 0.0
        %2550 = vmatpush.xpose.msra.mxu0 0.0
        %2551 = vmatpush.xpose.msra.mxu0 0.0
        %2552 = vmatpush.xpose.msra.mxu0 0.0
        %2553 = vmatpush.xpose.msra.mxu0 0.0
        %2554 = vmatpush.xpose.msra.mxu0 0.0
        %2555 = vmatpush.xpose.msra.mxu0 0.0
        %2556 = vmatpush.xpose.msra.mxu0 0.0
        %2557 = vmatpush.xpose.msra.mxu0 0.0
        %2558 = vmatpush.xpose.msra.mxu0 0.0
        %2559 = vmatpush.xpose.msra.mxu0 0.0
        %2560 = vmatpush.xpose.msra.mxu0 0.0
        %2561 = vmatpush.xpose.msra.mxu0 0.0
        %2562 = vmatpush.xpose.msra.mxu0 0.0
        %2563 = vmatpush.xpose.msra.mxu0 0.0
        %2564 = vmatpush.xpose.msra.mxu0 %v2547
        %2565 = vmatmul.f32.gmra.mxu0 %v1939
        %v2566 = vpop.f32.mrf.mxu0
        %v2567 = vadd.f32 0.0, %v2566
        %2568 = vdwg.mxu0
        %v2569 = vmul.f32 %v2567, 0.35355338
        %s2570 = scalar_lea.vmem %s15, 24
        %v2571 = vld [vmem:[%s2570] sm:$0xff]
        %v2573 = vsel %vm1030, %v2571, 0
        %2575 = vmatpush.xpose.msra.mxu0 0.0
        %2576 = vmatpush.xpose.msra.mxu0 0.0
        %2577 = vmatpush.xpose.msra.mxu0 0.0
        %2578 = vmatpush.xpose.msra.mxu0 0.0
        %2579 = vmatpush.xpose.msra.mxu0 0.0
        %2580 = vmatpush.xpose.msra.mxu0 0.0
        %2581 = vmatpush.xpose.msra.mxu0 0.0
        %2582 = vmatpush.xpose.msra.mxu0 0.0
        %2583 = vmatpush.xpose.msra.mxu0 0.0
        %2584 = vmatpush.xpose.msra.mxu0 0.0
        %2585 = vmatpush.xpose.msra.mxu0 0.0
        %2586 = vmatpush.xpose.msra.mxu0 0.0
        %2587 = vmatpush.xpose.msra.mxu0 0.0
        %2588 = vmatpush.xpose.msra.mxu0 0.0
        %2589 = vmatpush.xpose.msra.mxu0 0.0
        %2590 = vmatpush.xpose.msra.mxu0 %v2573
        %2591 = vmatmul.f32.gmra.mxu0 %v1967
        %v2592 = vpop.f32.mrf.mxu0
        %v2593 = vadd.f32 0.0, %v2592
        %2594 = vmatmul.f32.gmra.mxu0 %v1970
        %v2595 = vpop.f32.mrf.mxu0
        %v2596 = vadd.f32 0.0, %v2595
        %2597 = vdwg.mxu0
        %s2598 = scalar_lea.vmem [#allocation14], 24
        %v2599 = vld [vmem:[%s2598] sm:$0xff]
        %v2601 = vsel %vm1030, %v2599, 0
        %2603 = vmatpush.xpose.msra.mxu0 0.0
        %2604 = vmatpush.xpose.msra.mxu0 0.0
        %2605 = vmatpush.xpose.msra.mxu0 0.0
        %2606 = vmatpush.xpose.msra.mxu0 0.0
        %2607 = vmatpush.xpose.msra.mxu0 0.0
        %2608 = vmatpush.xpose.msra.mxu0 0.0
        %2609 = vmatpush.xpose.msra.mxu0 0.0
        %2610 = vmatpush.xpose.msra.mxu0 0.0
        %2611 = vmatpush.xpose.msra.mxu0 0.0
        %2612 = vmatpush.xpose.msra.mxu0 0.0
        %2613 = vmatpush.xpose.msra.mxu0 0.0
        %2614 = vmatpush.xpose.msra.mxu0 0.0
        %2615 = vmatpush.xpose.msra.mxu0 0.0
        %2616 = vmatpush.xpose.msra.mxu0 0.0
        %2617 = vmatpush.xpose.msra.mxu0 0.0
        %2618 = vmatpush.xpose.msra.mxu0 %v2601
        %2619 = vmatmul.f32.gmra.mxu0 %v1967
        %v2620 = vpop.f32.mrf.mxu0
        %v2621 = vadd.f32 0.0, %v2620
        %2622 = vmatmul.f32.gmra.mxu0 %v1970
        %v2623 = vpop.f32.mrf.mxu0
        %v2624 = vadd.f32 0.0, %v2623
        %2625 = vdwg.mxu0
        %v2627 = vsel %vm1199, %v2569, 0
        %v2630 = vsel %vm1199, %v2593, 0
        %v2633 = vsel %vm1199, %v2596, 0
        %2635 = vmatpush.xpose.msra.mxu0 0.0
        %2636 = vmatpush.xpose.msra.mxu0 0.0
        %2637 = vmatpush.xpose.msra.mxu0 0.0
        %2638 = vmatpush.xpose.msra.mxu0 0.0
        %2639 = vmatpush.xpose.msra.mxu0 0.0
        %2640 = vmatpush.xpose.msra.mxu0 0.0
        %2641 = vmatpush.xpose.msra.mxu0 0.0
        %2642 = vmatpush.xpose.msra.mxu0 0.0
        %2643 = vmatpush.xpose.msra.mxu0 0.0
        %2644 = vmatpush.xpose.msra.mxu0 0.0
        %2645 = vmatpush.xpose.msra.mxu0 0.0
        %2646 = vmatpush.xpose.msra.mxu0 0.0
        %2647 = vmatpush.xpose.msra.mxu0 0.0
        %2648 = vmatpush.xpose.msra.mxu0 0.0
        %2649 = vmatpush.xpose.msra.mxu0 %v2633
        %2650 = vmatpush.xpose.msra.mxu0 %v2630
        %2651 = vmatmul.f32.gmra.mxu0 %v2627
        %v2652 = vpop.f32.mrf.mxu0
        %v2653 = vadd.f32 0.0, %v2652
        %2654 = vdwg.mxu0
        %v2655 = vsel %vm2056, -1e+18, %v2653
        %v2656 = vsel %vm2058, %v2655, -inf
        %2657 = vmax.xlane.f32.xlu0 %v2656
        %v2658 = vpop.xlane.xlu0 %2657
        %v2659 = vsub.f32 %v2655, %v2658
        %v2660 = vmul.f32 %v2659, 1.442695
        %v2661 = vpow.pop %v2660
        %v2662 = vsel %vm2058, %v2661, 0.0
        %2663 = vadd.xlane.f32.xlu0 %v2662
        %v2664 = vpop.xlane.xlu0 %2663
        %v2665 = vrcp.pop %v2664
        %v2666 = vmul.f32 %v2664, %v2665
        %v2667 = vsub.f32 1.0, %v2666
        %v2668 = vmul.f32 %v2665, %v2667
        %v2669 = vadd.f32 %v2665, %v2668
        %vm2670 = vweird.f32 %v2664
        %vm2671 = vweird.f32 %v2665
        %vm2672 = vmor %vm2670, %vm2671
        %v2673 = vsel %vm2672, %v2665, %v2669
        %v2674 = vand.u32 2147483647, %v2664
        %vm2675 = vcmp.eq.f32.partialorder %v2674, 8.507059e+37
        %v2676 = vand.u32 %v2664, 2147483648
        %v2677 = vor.u32 1.1754944e-38, %v2676
        %v2678 = vsel %vm2675, %v2677, %v2673
        %v2679 = vmul.f32 %v2661, %v2678
        %v2681 = vsel %vm2058, %v2679, 0
        %2683 = vmatpush.msra.mxu0 0.0
        %2684 = vmatpush.msra.mxu0 0.0
        %2685 = vmatpush.msra.mxu0 0.0
        %2686 = vmatpush.msra.mxu0 0.0
        %2687 = vmatpush.msra.mxu0 0.0
        %2688 = vmatpush.msra.mxu0 0.0
        %2689 = vmatpush.msra.mxu0 0.0
        %2690 = vmatpush.msra.mxu0 0.0
        %2691 = vmatpush.msra.mxu0 0.0
        %2692 = vmatpush.msra.mxu0 0.0
        %2693 = vmatpush.msra.mxu0 0.0
        %2694 = vmatpush.msra.mxu0 0.0
        %2695 = vmatpush.msra.mxu0 0.0
        %2696 = vmatpush.msra.mxu0 0.0
        %2697 = vmatpush.msra.mxu0 %v2624
        %2698 = vmatpush.msra.mxu0 %v2621
        %2699 = vmatmul.f32.gmra.mxu0 %v2681
        %v2700 = vpop.f32.mrf.mxu0
        %v2701 = vadd.f32 0.0, %v2700
        %2702 = vdwg.mxu0
        %s2703 = scalar_lea.vmem %s17, 96
        %v2704 = vld [vmem:[%s2703] sm:$0xff]
        %v2705 = vld [vmem:[%s2703 + $0x8] sm:$0xff]
        %v2706 = vld [vmem:[%s2703 + $0x10] sm:$0xff]
        %v2707 = vld [vmem:[%s2703 + $0x18] sm:$0xff]
        %v2709 = vsel %vm1199, %v2701, 0
        %v2712 = vsel %vm1199, %v2704, 0
        %v2715 = vsel %vm1199, %v2705, 0
        %v2718 = vsel %vm1199, %v2706, 0
        %v2721 = vsel %vm1199, %v2707, 0
        %2723 = vmatpush.xpose.msra.mxu0 0.0
        %2724 = vmatpush.xpose.msra.mxu0 0.0
        %2725 = vmatpush.xpose.msra.mxu0 0.0
        %2726 = vmatpush.xpose.msra.mxu0 0.0
        %2727 = vmatpush.xpose.msra.mxu0 0.0
        %2728 = vmatpush.xpose.msra.mxu0 0.0
        %2729 = vmatpush.xpose.msra.mxu0 0.0
        %2730 = vmatpush.xpose.msra.mxu0 0.0
        %2731 = vmatpush.xpose.msra.mxu0 0.0
        %2732 = vmatpush.xpose.msra.mxu0 0.0
        %2733 = vmatpush.xpose.msra.mxu0 0.0
        %2734 = vmatpush.xpose.msra.mxu0 0.0
        %2735 = vmatpush.xpose.msra.mxu0 %v2721
        %2736 = vmatpush.xpose.msra.mxu0 %v2718
        %2737 = vmatpush.xpose.msra.mxu0 %v2715
        %2738 = vmatpush.xpose.msra.mxu0 %v2712
        %2739 = vmatmul.f32.gmra.mxu0 %v2709
        %v2740 = vpop.f32.mrf.mxu0
        %v2741 = vadd.f32 0.0, %v2740
        %2742 = vdwg.mxu0
        %v2743 = vadd.f32 %v2543, %v2741
        %v2744 = vadd.f32 %v1885, %v2743
        %v2745 = vld [vmem:[%s18] sm:$0x1]
        %v2746 = vld [vmem:[%s19] sm:$0x1]
        %v2747 = vsel %vm1030, %v2744, 0.0
        %2748 = vadd.xlane.f32.xlu0 %v2747
        %v2749 = vpop.xlane.xlu0 %2748
        %v2750 = vmul.f32 %v2744, %v2744
        %v2751 = vsel %vm1030, %v2750, 0.0
        %2752 = vadd.xlane.f32.xlu0 %v2751
        %v2753 = vpop.xlane.xlu0 %2752
        %v2754 = vmul.f32 %v2749, 0.03125
        %v2755 = vmul.f32 %v2749, %v2754
        %v2756 = vsub.f32 %v2753, %v2755
        %v2757 = vmax.f32 %v2756, 0.0
        %v2758 = vmul.f32 %v2757, 0.032258064
        %v2759 = vrsqrt.pop %v2758
        %v2760 = vmul.f32 %v2759, %v2758
        %v2761 = vmul.f32 %v2760, %v2759
        %v2762 = vmul.f32 0.5, %v2761
        %v2763 = vsub.f32 1.5, %v2762
        %v2764 = vmul.f32 %v2759, %v2763
        %v2765 = vmul.f32 %v2758, %v2764
        %vm2766 = vcmp.eq.f32.partialorder %v2758, inf
        %v2767 = vsel %vm2766, %v2758, %v2765
        %vm2768 = vcmp.eq.f32.partialorder %v2758, 0.0
        %v2769 = vand.u32 %v2758, 2147483648
        %v2770 = vsel %vm2768, %v2769, %v2767
        %v2771 = vsub.f32 %v2744, %v2754
        %v2773 = vperm.slane %v2745, 0
        %v2775 = vmul.f32 %v2773, %v2771
        %v2776 = vadd.f32 %v2770, 1e-06
        %v2777 = vrcp.pop %v2776
        %v2778 = vmul.f32 %v2776, %v2777
        %v2779 = vsub.f32 1.0, %v2778
        %v2780 = vmul.f32 %v2777, %v2779
        %v2781 = vadd.f32 %v2777, %v2780
        %vm2782 = vweird.f32 %v2776
        %vm2783 = vweird.f32 %v2777
        %vm2784 = vmor %vm2782, %vm2783
        %v2785 = vsel %vm2784, %v2777, %v2781
        %v2786 = vand.u32 2147483647, %v2776
        %vm2787 = vcmp.eq.f32.partialorder %v2786, 8.507059e+37
        %v2788 = vand.u32 %v2776, 2147483648
        %v2789 = vor.u32 1.1754944e-38, %v2788
        %v2790 = vsel %vm2787, %v2789, %v2785
        %v2791 = vmul.f32 %v2775, %v2790
        %v2793 = vperm.slane %v2746, 0
        %v2795 = vadd.f32 %v2791, %v2793
        %v2796 = vld [vmem:[%s20] sm:$0xff]
        %v2797 = vld [vmem:[%s20 + $0x8] sm:$0xff]
        %v2798 = vld [vmem:[%s20 + $0x10] sm:$0xff]
        %v2799 = vld [vmem:[%s20 + $0x18] sm:$0xff]
        %v2800 = vld [vmem:[%s20 + $0x20] sm:$0xff]
        %v2801 = vld [vmem:[%s20 + $0x28] sm:$0xff]
        %v2802 = vld [vmem:[%s20 + $0x30] sm:$0xff]
        %v2803 = vld [vmem:[%s20 + $0x38] sm:$0xff]
        %v2804 = vld [vmem:[%s21] sm:$0x1]
        %v2805 = vrot.slane %v2795, 6
        %v2806 = vlaneseq
        %v2807 = vshrl.u32 %v2806, 7
        %vm2808 = vcmp.lt.s32.totalorder %v2807, 2
        %v2809 = vsel %vm2808, 0.0, %v2805
        %v2810 = vrot.slane %v2795, 7
        %vm2811 = vcmp.lt.s32.totalorder %v2807, 1
        %v2812 = vsel %vm2811, 0.0, %v2810
        %2814 = vrot.lane.b32.xlu0 %v2812, 32
        %v2815 = vpop.permute.xlu0 %2814
        %2818 = vrot.lane.b32.xlu0 %v2795, 64
        %v2819 = vpop.permute.xlu0 %2818
        %v2821 = vsel %vm1030, %v2809, %v2815
        %vm2822 = vcmask 523264
        %v2823 = vsel %vm2822, %v2821, %v2819
        %v2825 = vperm.slane %v2804, 0
        %vm2827 = vcmask 785408
        %v2829 = vsel %vm2827, %v2823, 0
        %v2832 = vsel %vm2827, %v2796, 0
        %v2835 = vsel %vm2827, %v2797, 0
        %v2838 = vsel %vm2827, %v2798, 0
        %v2841 = vsel %vm2827, %v2799, 0
        %v2844 = vsel %vm2827, %v2800, 0
        %v2847 = vsel %vm2827, %v2801, 0
        %v2850 = vsel %vm2827, %v2802, 0
        %v2853 = vsel %vm2827, %v2803, 0
        %2855 = vmatpush.xpose.msra.mxu0 0.0
        %2856 = vmatpush.xpose.msra.mxu0 0.0
        %2857 = vmatpush.xpose.msra.mxu0 0.0
        %2858 = vmatpush.xpose.msra.mxu0 0.0
        %2859 = vmatpush.xpose.msra.mxu0 0.0
        %2860 = vmatpush.xpose.msra.mxu0 0.0
        %2861 = vmatpush.xpose.msra.mxu0 0.0
        %2862 = vmatpush.xpose.msra.mxu0 0.0
        %2863 = vmatpush.xpose.msra.mxu0 %v2853
        %2864 = vmatpush.xpose.msra.mxu0 %v2850
        %2865 = vmatpush.xpose.msra.mxu0 %v2847
        %2866 = vmatpush.xpose.msra.mxu0 %v2844
        %2867 = vmatpush.xpose.msra.mxu0 %v2841
        %2868 = vmatpush.xpose.msra.mxu0 %v2838
        %2869 = vmatpush.xpose.msra.mxu0 %v2835
        %2870 = vmatpush.xpose.msra.mxu0 %v2832
        %2871 = vmatmul.f32.gmra.mxu0 %v2829
        %v2872 = vpop.f32.mrf.mxu0
        %v2873 = vadd.f32 %v2825, %v2872
        %2874 = vdwg.mxu0
        %v2875 = vmax.f32 %v2873, 0.0
        %v2876 = vld [vmem:[%s22] sm:$0xff]
        %v2877 = vld [vmem:[%s22 + $0x8] sm:$0xff]
        %v2878 = vld [vmem:[%s22 + $0x10] sm:$0xff]
        %v2879 = vld [vmem:[%s22 + $0x18] sm:$0xff]
        %v2880 = vld [vmem:[%s22 + $0x20] sm:$0xff]
        %v2881 = vld [vmem:[%s22 + $0x28] sm:$0xff]
        %v2882 = vld [vmem:[%s22 + $0x30] sm:$0xff]
        %v2883 = vld [vmem:[%s22 + $0x38] sm:$0xff]
        %v2884 = vld [vmem:[%s23] sm:$0x1]
        %v2885 = vrot.slane %v2875, 6
        %v2886 = vsel %vm2808, 0.0, %v2885
        %v2887 = vrot.slane %v2875, 7
        %v2888 = vsel %vm2811, 0.0, %v2887
        %2890 = vrot.lane.b32.xlu0 %v2888, 64
        %v2891 = vpop.permute.xlu0 %2890
        %v2893 = vsel %vm2822, %v2886, %v2891
        %v2895 = vperm.slane %v2884, 0
        %v2898 = vsel %vm2822, %v2875, 0
        %v2901 = vsel %vm2822, %v2877, 0
        %v2904 = vsel %vm2822, %v2879, 0
        %v2907 = vsel %vm2822, %v2881, 0
        %v2910 = vsel %vm2822, %v2883, 0
        %2912 = vmatpush.xpose.msra.mxu0 0.0
        %2913 = vmatpush.xpose.msra.mxu0 0.0
        %2914 = vmatpush.xpose.msra.mxu0 0.0
        %2915 = vmatpush.xpose.msra.mxu0 0.0
        %2916 = vmatpush.xpose.msra.mxu0 0.0
        %2917 = vmatpush.xpose.msra.mxu0 0.0
        %2918 = vmatpush.xpose.msra.mxu0 0.0
        %2919 = vmatpush.xpose.msra.mxu0 0.0
        %2920 = vmatpush.xpose.msra.mxu0 0.0
        %2921 = vmatpush.xpose.msra.mxu0 0.0
        %2922 = vmatpush.xpose.msra.mxu0 0.0
        %2923 = vmatpush.xpose.msra.mxu0 0.0
        %2924 = vmatpush.xpose.msra.mxu0 %v2882
        %2925 = vmatpush.xpose.msra.mxu0 %v2880
        %2926 = vmatpush.xpose.msra.mxu0 %v2878
        %2927 = vmatpush.xpose.msra.mxu0 %v2876
        %2928 = vmatmul.f32.gmra.mxu0 %v2893
        %v2929 = vpop.f32.mrf.mxu0
        %v2930 = vadd.f32 %v2895, %v2929
        %2931 = vdwg.mxu0
        %2932 = vmatpush.xpose.msra.mxu0 0.0
        %2933 = vmatpush.xpose.msra.mxu0 0.0
        %2934 = vmatpush.xpose.msra.mxu0 0.0
        %2935 = vmatpush.xpose.msra.mxu0 0.0
        %2936 = vmatpush.xpose.msra.mxu0 0.0
        %2937 = vmatpush.xpose.msra.mxu0 0.0
        %2938 = vmatpush.xpose.msra.mxu0 0.0
        %2939 = vmatpush.xpose.msra.mxu0 0.0
        %2940 = vmatpush.xpose.msra.mxu0 0.0
        %2941 = vmatpush.xpose.msra.mxu0 0.0
        %2942 = vmatpush.xpose.msra.mxu0 0.0
        %2943 = vmatpush.xpose.msra.mxu0 0.0
        %2944 = vmatpush.xpose.msra.mxu0 %v2910
        %2945 = vmatpush.xpose.msra.mxu0 %v2907
        %2946 = vmatpush.xpose.msra.mxu0 %v2904
        %2947 = vmatpush.xpose.msra.mxu0 %v2901
        %2948 = vmatmul.f32.gmra.mxu0 %v2898
        %v2949 = vpop.f32.mrf.mxu0
        %v2950 = vadd.f32 %v2930, %v2949
        %2951 = vdwg.mxu0
        %v2952 = vadd.f32 %v2744, %v2950
        %s2953 = scalar_lea.vmem [#allocation13], 1
        %v2954 = vld [vmem:[%s2953] sm:$0x1]
        %s2955 = scalar_lea.vmem %s7, 1
        %v2956 = vld [vmem:[%s2955] sm:$0x1]
        %v2957 = vsel %vm1030, %v2952, 0.0
        %2958 = vadd.xlane.f32.xlu0 %v2957
        %v2959 = vpop.xlane.xlu0 %2958
        %v2960 = vmul.f32 %v2952, %v2952
        %v2961 = vsel %vm1030, %v2960, 0.0
        %2962 = vadd.xlane.f32.xlu0 %v2961
        %v2963 = vpop.xlane.xlu0 %2962
        %v2964 = vmul.f32 %v2959, 0.03125
        %v2965 = vmul.f32 %v2959, %v2964
        %v2966 = vsub.f32 %v2963, %v2965
        %v2967 = vmax.f32 %v2966, 0.0
        %v2968 = vmul.f32 %v2967, 0.032258064
        %v2969 = vrsqrt.pop %v2968
        %v2970 = vmul.f32 %v2969, %v2968
        %v2971 = vmul.f32 %v2970, %v2969
        %v2972 = vmul.f32 0.5, %v2971
        %v2973 = vsub.f32 1.5, %v2972
        %v2974 = vmul.f32 %v2969, %v2973
        %v2975 = vmul.f32 %v2968, %v2974
        %vm2976 = vcmp.eq.f32.partialorder %v2968, inf
        %v2977 = vsel %vm2976, %v2968, %v2975
        %vm2978 = vcmp.eq.f32.partialorder %v2968, 0.0
        %v2979 = vand.u32 %v2968, 2147483648
        %v2980 = vsel %vm2978, %v2979, %v2977
        %v2981 = vsub.f32 %v2952, %v2964
        %v2983 = vperm.slane %v2954, 0
        %v2985 = vmul.f32 %v2983, %v2981
        %v2986 = vadd.f32 %v2980, 1e-06
        %v2987 = vrcp.pop %v2986
        %v2988 = vmul.f32 %v2986, %v2987
        %v2989 = vsub.f32 1.0, %v2988
        %v2990 = vmul.f32 %v2987, %v2989
        %v2991 = vadd.f32 %v2987, %v2990
        %vm2992 = vweird.f32 %v2986
        %vm2993 = vweird.f32 %v2987
        %vm2994 = vmor %vm2992, %vm2993
        %v2995 = vsel %vm2994, %v2987, %v2991
        %v2996 = vand.u32 2147483647, %v2986
        %vm2997 = vcmp.eq.f32.partialorder %v2996, 8.507059e+37
        %v2998 = vand.u32 %v2986, 2147483648
        %v2999 = vor.u32 1.1754944e-38, %v2998
        %v3000 = vsel %vm2997, %v2999, %v2995
        %v3001 = vmul.f32 %v2985, %v3000
        %v3003 = vperm.slane %v2956, 0
        %v3005 = vadd.f32 %v3001, %v3003
        %s3006 = scalar_lea.vmem %s8, 32
        %v3007 = vld [vmem:[%s3006] sm:$0xff]
        %v3009 = vsel %vm1030, %v3005, 0
        %v3012 = vsel %vm1030, %v3007, 0
        %3014 = vmatpush.xpose.msra.mxu0 0.0
        %3015 = vmatpush.xpose.msra.mxu0 0.0
        %3016 = vmatpush.xpose.msra.mxu0 0.0
        %3017 = vmatpush.xpose.msra.mxu0 0.0
        %3018 = vmatpush.xpose.msra.mxu0 0.0
        %3019 = vmatpush.xpose.msra.mxu0 0.0
        %3020 = vmatpush.xpose.msra.mxu0 0.0
        %3021 = vmatpush.xpose.msra.mxu0 0.0
        %3022 = vmatpush.xpose.msra.mxu0 0.0
        %3023 = vmatpush.xpose.msra.mxu0 0.0
        %3024 = vmatpush.xpose.msra.mxu0 0.0
        %3025 = vmatpush.xpose.msra.mxu0 0.0
        %3026 = vmatpush.xpose.msra.mxu0 0.0
        %3027 = vmatpush.xpose.msra.mxu0 0.0
        %3028 = vmatpush.xpose.msra.mxu0 0.0
        %3029 = vmatpush.xpose.msra.mxu0 %v3012
        %3030 = vmatmul.f32.gmra.mxu0 %v3009
        %v3031 = vpop.f32.mrf.mxu0
        %v3032 = vadd.f32 0.0, %v3031
        %3033 = vdwg.mxu0
        %v3034 = vmul.f32 %v3032, 0.35355338
        %s3035 = scalar_lea.vmem %s9, 32
        %v3036 = vld [vmem:[%s3035] sm:$0xff]
        %v3038 = vsel %vm1030, %v3036, 0
        %3040 = vmatpush.xpose.msra.mxu0 0.0
        %3041 = vmatpush.xpose.msra.mxu0 0.0
        %3042 = vmatpush.xpose.msra.mxu0 0.0
        %3043 = vmatpush.xpose.msra.mxu0 0.0
        %3044 = vmatpush.xpose.msra.mxu0 0.0
        %3045 = vmatpush.xpose.msra.mxu0 0.0
        %3046 = vmatpush.xpose.msra.mxu0 0.0
        %3047 = vmatpush.xpose.msra.mxu0 0.0
        %3048 = vmatpush.xpose.msra.mxu0 0.0
        %3049 = vmatpush.xpose.msra.mxu0 0.0
        %3050 = vmatpush.xpose.msra.mxu0 0.0
        %3051 = vmatpush.xpose.msra.mxu0 0.0
        %3052 = vmatpush.xpose.msra.mxu0 0.0
        %3053 = vmatpush.xpose.msra.mxu0 0.0
        %3054 = vmatpush.xpose.msra.mxu0 0.0
        %3055 = vmatpush.xpose.msra.mxu0 %v3038
        %3056 = vmatmul.f32.gmra.mxu0 %v3009
        %v3057 = vpop.f32.mrf.mxu0
        %v3058 = vadd.f32 0.0, %v3057
        %3059 = vdwg.mxu0
        %s3060 = scalar_lea.vmem %s10, 32
        %v3061 = vld [vmem:[%s3060] sm:$0xff]
        %v3063 = vsel %vm1030, %v3061, 0
        %3065 = vmatpush.xpose.msra.mxu0 0.0
        %3066 = vmatpush.xpose.msra.mxu0 0.0
        %3067 = vmatpush.xpose.msra.mxu0 0.0
        %3068 = vmatpush.xpose.msra.mxu0 0.0
        %3069 = vmatpush.xpose.msra.mxu0 0.0
        %3070 = vmatpush.xpose.msra.mxu0 0.0
        %3071 = vmatpush.xpose.msra.mxu0 0.0
        %3072 = vmatpush.xpose.msra.mxu0 0.0
        %3073 = vmatpush.xpose.msra.mxu0 0.0
        %3074 = vmatpush.xpose.msra.mxu0 0.0
        %3075 = vmatpush.xpose.msra.mxu0 0.0
        %3076 = vmatpush.xpose.msra.mxu0 0.0
        %3077 = vmatpush.xpose.msra.mxu0 0.0
        %3078 = vmatpush.xpose.msra.mxu0 0.0
        %3079 = vmatpush.xpose.msra.mxu0 0.0
        %3080 = vmatpush.xpose.msra.mxu0 %v3063
        %3081 = vmatmul.f32.gmra.mxu0 %v3009
        %v3082 = vpop.f32.mrf.mxu0
        %v3083 = vadd.f32 0.0, %v3082
        %3084 = vdwg.mxu0
        %v3086 = vsel %vm1199, %v3034, 0
        %v3089 = vsel %vm1199, %v3058, 0
        %3091 = vmatpush.xpose.msra.mxu0 0.0
        %3092 = vmatpush.xpose.msra.mxu0 0.0
        %3093 = vmatpush.xpose.msra.mxu0 0.0
        %3094 = vmatpush.xpose.msra.mxu0 0.0
        %3095 = vmatpush.xpose.msra.mxu0 0.0
        %3096 = vmatpush.xpose.msra.mxu0 0.0
        %3097 = vmatpush.xpose.msra.mxu0 0.0
        %3098 = vmatpush.xpose.msra.mxu0 0.0
        %3099 = vmatpush.xpose.msra.mxu0 0.0
        %3100 = vmatpush.xpose.msra.mxu0 0.0
        %3101 = vmatpush.xpose.msra.mxu0 0.0
        %3102 = vmatpush.xpose.msra.mxu0 0.0
        %3103 = vmatpush.xpose.msra.mxu0 0.0
        %3104 = vmatpush.xpose.msra.mxu0 0.0
        %3105 = vmatpush.xpose.msra.mxu0 0.0
        %3106 = vmatpush.xpose.msra.mxu0 %v3089
        %3107 = vmatmul.f32.gmra.mxu0 %v3086
        %v3108 = vpop.f32.mrf.mxu0
        %v3109 = vadd.f32 0.0, %v3108
        %3110 = vdwg.mxu0
        %v3111 = vsel %vm1069, -1e+18, %v3109
        %v3112 = vsel %vm1199, %v3111, -inf
        %3113 = vmax.xlane.f32.xlu0 %v3112
        %v3114 = vpop.xlane.xlu0 %3113
        %v3115 = vsub.f32 %v3111, %v3114
        %v3116 = vmul.f32 %v3115, 1.442695
        %v3117 = vpow.pop %v3116
        %v3118 = vsel %vm1199, %v3117, 0.0
        %3119 = vadd.xlane.f32.xlu0 %v3118
        %v3120 = vpop.xlane.xlu0 %3119
        %v3121 = vrcp.pop %v3120
        %v3122 = vmul.f32 %v3120, %v3121
        %v3123 = vsub.f32 1.0, %v3122
        %v3124 = vmul.f32 %v3121, %v3123
        %v3125 = vadd.f32 %v3121, %v3124
        %vm3126 = vweird.f32 %v3120
        %vm3127 = vweird.f32 %v3121
        %vm3128 = vmor %vm3126, %vm3127
        %v3129 = vsel %vm3128, %v3121, %v3125
        %v3130 = vand.u32 2147483647, %v3120
        %vm3131 = vcmp.eq.f32.partialorder %v3130, 8.507059e+37
        %v3132 = vand.u32 %v3120, 2147483648
        %v3133 = vor.u32 1.1754944e-38, %v3132
        %v3134 = vsel %vm3131, %v3133, %v3129
        %v3135 = vmul.f32 %v3117, %v3134
        %v3137 = vsel %vm1199, %v3135, 0
        %3139 = vmatpush.msra.mxu0 0.0
        %3140 = vmatpush.msra.mxu0 0.0
        %3141 = vmatpush.msra.mxu0 0.0
        %3142 = vmatpush.msra.mxu0 0.0
        %3143 = vmatpush.msra.mxu0 0.0
        %3144 = vmatpush.msra.mxu0 0.0
        %3145 = vmatpush.msra.mxu0 0.0
        %3146 = vmatpush.msra.mxu0 0.0
        %3147 = vmatpush.msra.mxu0 0.0
        %3148 = vmatpush.msra.mxu0 0.0
        %3149 = vmatpush.msra.mxu0 0.0
        %3150 = vmatpush.msra.mxu0 0.0
        %3151 = vmatpush.msra.mxu0 0.0
        %3152 = vmatpush.msra.mxu0 0.0
        %3153 = vmatpush.msra.mxu0 0.0
        %3154 = vmatpush.msra.mxu0 %v3083
        %3155 = vmatmul.f32.gmra.mxu0 %v3137
        %v3156 = vpop.f32.mrf.mxu0
        %v3157 = vadd.f32 0.0, %v3156
        %3158 = vdwg.mxu0
        %s3159 = scalar_lea.vmem %s11, 128
        %v3160 = vld [vmem:[%s3159] sm:$0xff]
        %v3161 = vld [vmem:[%s3159 + $0x8] sm:$0xff]
        %v3162 = vld [vmem:[%s3159 + $0x10] sm:$0xff]
        %v3163 = vld [vmem:[%s3159 + $0x18] sm:$0xff]
        %s3164 = scalar_lea.vmem %s8, 40
        %v3165 = vld [vmem:[%s3164] sm:$0xff]
        %v3167 = vsel %vm1030, %v3165, 0
        %3169 = vmatpush.xpose.msra.mxu0 0.0
        %3170 = vmatpush.xpose.msra.mxu0 0.0
        %3171 = vmatpush.xpose.msra.mxu0 0.0
        %3172 = vmatpush.xpose.msra.mxu0 0.0
        %3173 = vmatpush.xpose.msra.mxu0 0.0
        %3174 = vmatpush.xpose.msra.mxu0 0.0
        %3175 = vmatpush.xpose.msra.mxu0 0.0
        %3176 = vmatpush.xpose.msra.mxu0 0.0
        %3177 = vmatpush.xpose.msra.mxu0 0.0
        %3178 = vmatpush.xpose.msra.mxu0 0.0
        %3179 = vmatpush.xpose.msra.mxu0 0.0
        %3180 = vmatpush.xpose.msra.mxu0 0.0
        %3181 = vmatpush.xpose.msra.mxu0 0.0
        %3182 = vmatpush.xpose.msra.mxu0 0.0
        %3183 = vmatpush.xpose.msra.mxu0 0.0
        %3184 = vmatpush.xpose.msra.mxu0 %v3167
        %3185 = vmatmul.f32.gmra.mxu0 %v3009
        %v3186 = vpop.f32.mrf.mxu0
        %v3187 = vadd.f32 0.0, %v3186
        %3188 = vdwg.mxu0
        %v3189 = vmul.f32 %v3187, 0.35355338
        %s3190 = scalar_lea.vmem %s9, 40
        %v3191 = vld [vmem:[%s3190] sm:$0xff]
        %v3193 = vsel %vm1030, %v3191, 0
        %3195 = vmatpush.xpose.msra.mxu0 0.0
        %3196 = vmatpush.xpose.msra.mxu0 0.0
        %3197 = vmatpush.xpose.msra.mxu0 0.0
        %3198 = vmatpush.xpose.msra.mxu0 0.0
        %3199 = vmatpush.xpose.msra.mxu0 0.0
        %3200 = vmatpush.xpose.msra.mxu0 0.0
        %3201 = vmatpush.xpose.msra.mxu0 0.0
        %3202 = vmatpush.xpose.msra.mxu0 0.0
        %3203 = vmatpush.xpose.msra.mxu0 0.0
        %3204 = vmatpush.xpose.msra.mxu0 0.0
        %3205 = vmatpush.xpose.msra.mxu0 0.0
        %3206 = vmatpush.xpose.msra.mxu0 0.0
        %3207 = vmatpush.xpose.msra.mxu0 0.0
        %3208 = vmatpush.xpose.msra.mxu0 0.0
        %3209 = vmatpush.xpose.msra.mxu0 0.0
        %3210 = vmatpush.xpose.msra.mxu0 %v3193
        %3211 = vmatmul.f32.gmra.mxu0 %v3009
        %v3212 = vpop.f32.mrf.mxu0
        %v3213 = vadd.f32 0.0, %v3212
        %3214 = vdwg.mxu0
        %s3215 = scalar_lea.vmem %s10, 40
        %v3216 = vld [vmem:[%s3215] sm:$0xff]
        %v3218 = vsel %vm1030, %v3216, 0
        %3220 = vmatpush.xpose.msra.mxu0 0.0
        %3221 = vmatpush.xpose.msra.mxu0 0.0
        %3222 = vmatpush.xpose.msra.mxu0 0.0
        %3223 = vmatpush.xpose.msra.mxu0 0.0
        %3224 = vmatpush.xpose.msra.mxu0 0.0
        %3225 = vmatpush.xpose.msra.mxu0 0.0
        %3226 = vmatpush.xpose.msra.mxu0 0.0
        %3227 = vmatpush.xpose.msra.mxu0 0.0
        %3228 = vmatpush.xpose.msra.mxu0 0.0
        %3229 = vmatpush.xpose.msra.mxu0 0.0
        %3230 = vmatpush.xpose.msra.mxu0 0.0
        %3231 = vmatpush.xpose.msra.mxu0 0.0
        %3232 = vmatpush.xpose.msra.mxu0 0.0
        %3233 = vmatpush.xpose.msra.mxu0 0.0
        %3234 = vmatpush.xpose.msra.mxu0 0.0
        %3235 = vmatpush.xpose.msra.mxu0 %v3218
        %3236 = vmatmul.f32.gmra.mxu0 %v3009
        %v3237 = vpop.f32.mrf.mxu0
        %v3238 = vadd.f32 0.0, %v3237
        %3239 = vdwg.mxu0
        %v3241 = vsel %vm1199, %v3189, 0
        %v3244 = vsel %vm1199, %v3213, 0
        %3246 = vmatpush.xpose.msra.mxu0 0.0
        %3247 = vmatpush.xpose.msra.mxu0 0.0
        %3248 = vmatpush.xpose.msra.mxu0 0.0
        %3249 = vmatpush.xpose.msra.mxu0 0.0
        %3250 = vmatpush.xpose.msra.mxu0 0.0
        %3251 = vmatpush.xpose.msra.mxu0 0.0
        %3252 = vmatpush.xpose.msra.mxu0 0.0
        %3253 = vmatpush.xpose.msra.mxu0 0.0
        %3254 = vmatpush.xpose.msra.mxu0 0.0
        %3255 = vmatpush.xpose.msra.mxu0 0.0
        %3256 = vmatpush.xpose.msra.mxu0 0.0
        %3257 = vmatpush.xpose.msra.mxu0 0.0
        %3258 = vmatpush.xpose.msra.mxu0 0.0
        %3259 = vmatpush.xpose.msra.mxu0 0.0
        %3260 = vmatpush.xpose.msra.mxu0 0.0
        %3261 = vmatpush.xpose.msra.mxu0 %v3244
        %3262 = vmatmul.f32.gmra.mxu0 %v3241
        %v3263 = vpop.f32.mrf.mxu0
        %v3264 = vadd.f32 0.0, %v3263
        %3265 = vdwg.mxu0
        %v3266 = vsel %vm1069, -1e+18, %v3264
        %v3267 = vsel %vm1199, %v3266, -inf
        %3268 = vmax.xlane.f32.xlu0 %v3267
        %v3269 = vpop.xlane.xlu0 %3268
        %v3270 = vsub.f32 %v3266, %v3269
        %v3271 = vmul.f32 %v3270, 1.442695
        %v3272 = vpow.pop %v3271
        %v3273 = vsel %vm1199, %v3272, 0.0
        %3274 = vadd.xlane.f32.xlu0 %v3273
        %v3275 = vpop.xlane.xlu0 %3274
        %v3276 = vrcp.pop %v3275
        %v3277 = vmul.f32 %v3275, %v3276
        %v3278 = vsub.f32 1.0, %v3277
        %v3279 = vmul.f32 %v3276, %v3278
        %v3280 = vadd.f32 %v3276, %v3279
        %vm3281 = vweird.f32 %v3275
        %vm3282 = vweird.f32 %v3276
        %vm3283 = vmor %vm3281, %vm3282
        %v3284 = vsel %vm3283, %v3276, %v3280
        %v3285 = vand.u32 2147483647, %v3275
        %vm3286 = vcmp.eq.f32.partialorder %v3285, 8.507059e+37
        %v3287 = vand.u32 %v3275, 2147483648
        %v3288 = vor.u32 1.1754944e-38, %v3287
        %v3289 = vsel %vm3286, %v3288, %v3284
        %v3290 = vmul.f32 %v3272, %v3289
        %v3292 = vsel %vm1199, %v3290, 0
        %3294 = vmatpush.msra.mxu0 0.0
        %3295 = vmatpush.msra.mxu0 0.0
        %3296 = vmatpush.msra.mxu0 0.0
        %3297 = vmatpush.msra.mxu0 0.0
        %3298 = vmatpush.msra.mxu0 0.0
        %3299 = vmatpush.msra.mxu0 0.0
        %3300 = vmatpush.msra.mxu0 0.0
        %3301 = vmatpush.msra.mxu0 0.0
        %3302 = vmatpush.msra.mxu0 0.0
        %3303 = vmatpush.msra.mxu0 0.0
        %3304 = vmatpush.msra.mxu0 0.0
        %3305 = vmatpush.msra.mxu0 0.0
        %3306 = vmatpush.msra.mxu0 0.0
        %3307 = vmatpush.msra.mxu0 0.0
        %3308 = vmatpush.msra.mxu0 0.0
        %3309 = vmatpush.msra.mxu0 %v3238
        %3310 = vmatmul.f32.gmra.mxu0 %v3292
        %v3311 = vpop.f32.mrf.mxu0
        %v3312 = vadd.f32 0.0, %v3311
        %3313 = vdwg.mxu0
        %s3314 = scalar_lea.vmem %s11, 160
        %v3315 = vld [vmem:[%s3314] sm:$0xff]
        %v3316 = vld [vmem:[%s3314 + $0x8] sm:$0xff]
        %v3317 = vld [vmem:[%s3314 + $0x10] sm:$0xff]
        %v3318 = vld [vmem:[%s3314 + $0x18] sm:$0xff]
        %v3320 = vsel %vm1199, %v3312, 0
        %v3323 = vsel %vm1199, %v3315, 0
        %v3326 = vsel %vm1199, %v3316, 0
        %v3329 = vsel %vm1199, %v3317, 0
        %v3332 = vsel %vm1199, %v3318, 0
        %3334 = vmatpush.xpose.msra.mxu0 0.0
        %3335 = vmatpush.xpose.msra.mxu0 0.0
        %3336 = vmatpush.xpose.msra.mxu0 0.0
        %3337 = vmatpush.xpose.msra.mxu0 0.0
        %3338 = vmatpush.xpose.msra.mxu0 0.0
        %3339 = vmatpush.xpose.msra.mxu0 0.0
        %3340 = vmatpush.xpose.msra.mxu0 0.0
        %3341 = vmatpush.xpose.msra.mxu0 0.0
        %3342 = vmatpush.xpose.msra.mxu0 0.0
        %3343 = vmatpush.xpose.msra.mxu0 0.0
        %3344 = vmatpush.xpose.msra.mxu0 0.0
        %3345 = vmatpush.xpose.msra.mxu0 0.0
        %3346 = vmatpush.xpose.msra.mxu0 %v3332
        %3347 = vmatpush.xpose.msra.mxu0 %v3329
        %3348 = vmatpush.xpose.msra.mxu0 %v3326
        %3349 = vmatpush.xpose.msra.mxu0 %v3323
        %3350 = vmatmul.f32.gmra.mxu0 %v3320
        %v3351 = vpop.f32.mrf.mxu0
        %v3352 = vadd.f32 0.0, %v3351
        %3353 = vdwg.mxu0
        %v3355 = vsel %vm1199, %v3157, 0
        %v3358 = vsel %vm1199, %v3160, 0
        %v3361 = vsel %vm1199, %v3161, 0
        %v3364 = vsel %vm1199, %v3162, 0
        %v3367 = vsel %vm1199, %v3163, 0
        %3369 = vmatpush.xpose.msra.mxu0 0.0
        %3370 = vmatpush.xpose.msra.mxu0 0.0
        %3371 = vmatpush.xpose.msra.mxu0 0.0
        %3372 = vmatpush.xpose.msra.mxu0 0.0
        %3373 = vmatpush.xpose.msra.mxu0 0.0
        %3374 = vmatpush.xpose.msra.mxu0 0.0
        %3375 = vmatpush.xpose.msra.mxu0 0.0
        %3376 = vmatpush.xpose.msra.mxu0 0.0
        %3377 = vmatpush.xpose.msra.mxu0 0.0
        %3378 = vmatpush.xpose.msra.mxu0 0.0
        %3379 = vmatpush.xpose.msra.mxu0 0.0
        %3380 = vmatpush.xpose.msra.mxu0 0.0
        %3381 = vmatpush.xpose.msra.mxu0 %v3367
        %3382 = vmatpush.xpose.msra.mxu0 %v3364
        %3383 = vmatpush.xpose.msra.mxu0 %v3361
        %3384 = vmatpush.xpose.msra.mxu0 %v3358
        %3385 = vmatmul.f32.gmra.mxu0 %v3355
        %v3386 = vpop.f32.mrf.mxu0
        %v3387 = vadd.f32 %v3352, %v3386
        %3388 = vdwg.mxu0
        %s3389 = scalar_lea.vmem %s8, 48
        %v3390 = vld [vmem:[%s3389] sm:$0xff]
        %v3392 = vsel %vm1030, %v3390, 0
        %3394 = vmatpush.xpose.msra.mxu0 0.0
        %3395 = vmatpush.xpose.msra.mxu0 0.0
        %3396 = vmatpush.xpose.msra.mxu0 0.0
        %3397 = vmatpush.xpose.msra.mxu0 0.0
        %3398 = vmatpush.xpose.msra.mxu0 0.0
        %3399 = vmatpush.xpose.msra.mxu0 0.0
        %3400 = vmatpush.xpose.msra.mxu0 0.0
        %3401 = vmatpush.xpose.msra.mxu0 0.0
        %3402 = vmatpush.xpose.msra.mxu0 0.0
        %3403 = vmatpush.xpose.msra.mxu0 0.0
        %3404 = vmatpush.xpose.msra.mxu0 0.0
        %3405 = vmatpush.xpose.msra.mxu0 0.0
        %3406 = vmatpush.xpose.msra.mxu0 0.0
        %3407 = vmatpush.xpose.msra.mxu0 0.0
        %3408 = vmatpush.xpose.msra.mxu0 0.0
        %3409 = vmatpush.xpose.msra.mxu0 %v3392
        %3410 = vmatmul.f32.gmra.mxu0 %v3009
        %v3411 = vpop.f32.mrf.mxu0
        %v3412 = vadd.f32 0.0, %v3411
        %3413 = vdwg.mxu0
        %v3414 = vmul.f32 %v3412, 0.35355338
        %s3415 = scalar_lea.vmem %s9, 48
        %v3416 = vld [vmem:[%s3415] sm:$0xff]
        %v3418 = vsel %vm1030, %v3416, 0
        %3420 = vmatpush.xpose.msra.mxu0 0.0
        %3421 = vmatpush.xpose.msra.mxu0 0.0
        %3422 = vmatpush.xpose.msra.mxu0 0.0
        %3423 = vmatpush.xpose.msra.mxu0 0.0
        %3424 = vmatpush.xpose.msra.mxu0 0.0
        %3425 = vmatpush.xpose.msra.mxu0 0.0
        %3426 = vmatpush.xpose.msra.mxu0 0.0
        %3427 = vmatpush.xpose.msra.mxu0 0.0
        %3428 = vmatpush.xpose.msra.mxu0 0.0
        %3429 = vmatpush.xpose.msra.mxu0 0.0
        %3430 = vmatpush.xpose.msra.mxu0 0.0
        %3431 = vmatpush.xpose.msra.mxu0 0.0
        %3432 = vmatpush.xpose.msra.mxu0 0.0
        %3433 = vmatpush.xpose.msra.mxu0 0.0
        %3434 = vmatpush.xpose.msra.mxu0 0.0
        %3435 = vmatpush.xpose.msra.mxu0 %v3418
        %3436 = vmatmul.f32.gmra.mxu0 %v3009
        %v3437 = vpop.f32.mrf.mxu0
        %v3438 = vadd.f32 0.0, %v3437
        %3439 = vdwg.mxu0
        %s3440 = scalar_lea.vmem %s10, 48
        %v3441 = vld [vmem:[%s3440] sm:$0xff]
        %v3443 = vsel %vm1030, %v3441, 0
        %3445 = vmatpush.xpose.msra.mxu0 0.0
        %3446 = vmatpush.xpose.msra.mxu0 0.0
        %3447 = vmatpush.xpose.msra.mxu0 0.0
        %3448 = vmatpush.xpose.msra.mxu0 0.0
        %3449 = vmatpush.xpose.msra.mxu0 0.0
        %3450 = vmatpush.xpose.msra.mxu0 0.0
        %3451 = vmatpush.xpose.msra.mxu0 0.0
        %3452 = vmatpush.xpose.msra.mxu0 0.0
        %3453 = vmatpush.xpose.msra.mxu0 0.0
        %3454 = vmatpush.xpose.msra.mxu0 0.0
        %3455 = vmatpush.xpose.msra.mxu0 0.0
        %3456 = vmatpush.xpose.msra.mxu0 0.0
        %3457 = vmatpush.xpose.msra.mxu0 0.0
        %3458 = vmatpush.xpose.msra.mxu0 0.0
        %3459 = vmatpush.xpose.msra.mxu0 0.0
        %3460 = vmatpush.xpose.msra.mxu0 %v3443
        %3461 = vmatmul.f32.gmra.mxu0 %v3009
        %v3462 = vpop.f32.mrf.mxu0
        %v3463 = vadd.f32 0.0, %v3462
        %3464 = vdwg.mxu0
        %v3466 = vsel %vm1199, %v3414, 0
        %v3469 = vsel %vm1199, %v3438, 0
        %3471 = vmatpush.xpose.msra.mxu0 0.0
        %3472 = vmatpush.xpose.msra.mxu0 0.0
        %3473 = vmatpush.xpose.msra.mxu0 0.0
        %3474 = vmatpush.xpose.msra.mxu0 0.0
        %3475 = vmatpush.xpose.msra.mxu0 0.0
        %3476 = vmatpush.xpose.msra.mxu0 0.0
        %3477 = vmatpush.xpose.msra.mxu0 0.0
        %3478 = vmatpush.xpose.msra.mxu0 0.0
        %3479 = vmatpush.xpose.msra.mxu0 0.0
        %3480 = vmatpush.xpose.msra.mxu0 0.0
        %3481 = vmatpush.xpose.msra.mxu0 0.0
        %3482 = vmatpush.xpose.msra.mxu0 0.0
        %3483 = vmatpush.xpose.msra.mxu0 0.0
        %3484 = vmatpush.xpose.msra.mxu0 0.0
        %3485 = vmatpush.xpose.msra.mxu0 0.0
        %3486 = vmatpush.xpose.msra.mxu0 %v3469
        %3487 = vmatmul.f32.gmra.mxu0 %v3466
        %v3488 = vpop.f32.mrf.mxu0
        %v3489 = vadd.f32 0.0, %v3488
        %3490 = vdwg.mxu0
        %v3491 = vsel %vm1069, -1e+18, %v3489
        %v3492 = vsel %vm1199, %v3491, -inf
        %3493 = vmax.xlane.f32.xlu0 %v3492
        %v3494 = vpop.xlane.xlu0 %3493
        %v3495 = vsub.f32 %v3491, %v3494
        %v3496 = vmul.f32 %v3495, 1.442695
        %v3497 = vpow.pop %v3496
        %v3498 = vsel %vm1199, %v3497, 0.0
        %3499 = vadd.xlane.f32.xlu0 %v3498
        %v3500 = vpop.xlane.xlu0 %3499
        %v3501 = vrcp.pop %v3500
        %v3502 = vmul.f32 %v3500, %v3501
        %v3503 = vsub.f32 1.0, %v3502
        %v3504 = vmul.f32 %v3501, %v3503
        %v3505 = vadd.f32 %v3501, %v3504
        %vm3506 = vweird.f32 %v3500
        %vm3507 = vweird.f32 %v3501
        %vm3508 = vmor %vm3506, %vm3507
        %v3509 = vsel %vm3508, %v3501, %v3505
        %v3510 = vand.u32 2147483647, %v3500
        %vm3511 = vcmp.eq.f32.partialorder %v3510, 8.507059e+37
        %v3512 = vand.u32 %v3500, 2147483648
        %v3513 = vor.u32 1.1754944e-38, %v3512
        %v3514 = vsel %vm3511, %v3513, %v3509
        %v3515 = vmul.f32 %v3497, %v3514
        %v3517 = vsel %vm1199, %v3515, 0
        %3519 = vmatpush.msra.mxu0 0.0
        %3520 = vmatpush.msra.mxu0 0.0
        %3521 = vmatpush.msra.mxu0 0.0
        %3522 = vmatpush.msra.mxu0 0.0
        %3523 = vmatpush.msra.mxu0 0.0
        %3524 = vmatpush.msra.mxu0 0.0
        %3525 = vmatpush.msra.mxu0 0.0
        %3526 = vmatpush.msra.mxu0 0.0
        %3527 = vmatpush.msra.mxu0 0.0
        %3528 = vmatpush.msra.mxu0 0.0
        %3529 = vmatpush.msra.mxu0 0.0
        %3530 = vmatpush.msra.mxu0 0.0
        %3531 = vmatpush.msra.mxu0 0.0
        %3532 = vmatpush.msra.mxu0 0.0
        %3533 = vmatpush.msra.mxu0 0.0
        %3534 = vmatpush.msra.mxu0 %v3463
        %3535 = vmatmul.f32.gmra.mxu0 %v3517
        %v3536 = vpop.f32.mrf.mxu0
        %v3537 = vadd.f32 0.0, %v3536
        %3538 = vdwg.mxu0
        %s3539 = scalar_lea.vmem %s11, 192
        %v3540 = vld [vmem:[%s3539] sm:$0xff]
        %v3541 = vld [vmem:[%s3539 + $0x8] sm:$0xff]
        %v3542 = vld [vmem:[%s3539 + $0x10] sm:$0xff]
        %v3543 = vld [vmem:[%s3539 + $0x18] sm:$0xff]
        %v3545 = vsel %vm1199, %v3537, 0
        %v3548 = vsel %vm1199, %v3540, 0
        %v3551 = vsel %vm1199, %v3541, 0
        %v3554 = vsel %vm1199, %v3542, 0
        %v3557 = vsel %vm1199, %v3543, 0
        %3559 = vmatpush.xpose.msra.mxu0 0.0
        %3560 = vmatpush.xpose.msra.mxu0 0.0
        %3561 = vmatpush.xpose.msra.mxu0 0.0
        %3562 = vmatpush.xpose.msra.mxu0 0.0
        %3563 = vmatpush.xpose.msra.mxu0 0.0
        %3564 = vmatpush.xpose.msra.mxu0 0.0
        %3565 = vmatpush.xpose.msra.mxu0 0.0
        %3566 = vmatpush.xpose.msra.mxu0 0.0
        %3567 = vmatpush.xpose.msra.mxu0 0.0
        %3568 = vmatpush.xpose.msra.mxu0 0.0
        %3569 = vmatpush.xpose.msra.mxu0 0.0
        %3570 = vmatpush.xpose.msra.mxu0 0.0
        %3571 = vmatpush.xpose.msra.mxu0 %v3557
        %3572 = vmatpush.xpose.msra.mxu0 %v3554
        %3573 = vmatpush.xpose.msra.mxu0 %v3551
        %3574 = vmatpush.xpose.msra.mxu0 %v3548
        %3575 = vmatmul.f32.gmra.mxu0 %v3545
        %v3576 = vpop.f32.mrf.mxu0
        %v3577 = vadd.f32 0.0, %v3576
        %3578 = vdwg.mxu0
        %v3579 = vadd.f32 %v3387, %v3577
        %s3580 = scalar_lea.vmem %s8, 56
        %v3581 = vld [vmem:[%s3580] sm:$0xff]
        %v3583 = vsel %vm1030, %v3581, 0
        %3585 = vmatpush.xpose.msra.mxu0 0.0
        %3586 = vmatpush.xpose.msra.mxu0 0.0
        %3587 = vmatpush.xpose.msra.mxu0 0.0
        %3588 = vmatpush.xpose.msra.mxu0 0.0
        %3589 = vmatpush.xpose.msra.mxu0 0.0
        %3590 = vmatpush.xpose.msra.mxu0 0.0
        %3591 = vmatpush.xpose.msra.mxu0 0.0
        %3592 = vmatpush.xpose.msra.mxu0 0.0
        %3593 = vmatpush.xpose.msra.mxu0 0.0
        %3594 = vmatpush.xpose.msra.mxu0 0.0
        %3595 = vmatpush.xpose.msra.mxu0 0.0
        %3596 = vmatpush.xpose.msra.mxu0 0.0
        %3597 = vmatpush.xpose.msra.mxu0 0.0
        %3598 = vmatpush.xpose.msra.mxu0 0.0
        %3599 = vmatpush.xpose.msra.mxu0 0.0
        %3600 = vmatpush.xpose.msra.mxu0 %v3583
        %3601 = vmatmul.f32.gmra.mxu0 %v3009
        %v3602 = vpop.f32.mrf.mxu0
        %v3603 = vadd.f32 0.0, %v3602
        %3604 = vdwg.mxu0
        %v3605 = vmul.f32 %v3603, 0.35355338
        %s3606 = scalar_lea.vmem %s9, 56
        %v3607 = vld [vmem:[%s3606] sm:$0xff]
        %v3609 = vsel %vm1030, %v3607, 0
        %3611 = vmatpush.xpose.msra.mxu0 0.0
        %3612 = vmatpush.xpose.msra.mxu0 0.0
        %3613 = vmatpush.xpose.msra.mxu0 0.0
        %3614 = vmatpush.xpose.msra.mxu0 0.0
        %3615 = vmatpush.xpose.msra.mxu0 0.0
        %3616 = vmatpush.xpose.msra.mxu0 0.0
        %3617 = vmatpush.xpose.msra.mxu0 0.0
        %3618 = vmatpush.xpose.msra.mxu0 0.0
        %3619 = vmatpush.xpose.msra.mxu0 0.0
        %3620 = vmatpush.xpose.msra.mxu0 0.0
        %3621 = vmatpush.xpose.msra.mxu0 0.0
        %3622 = vmatpush.xpose.msra.mxu0 0.0
        %3623 = vmatpush.xpose.msra.mxu0 0.0
        %3624 = vmatpush.xpose.msra.mxu0 0.0
        %3625 = vmatpush.xpose.msra.mxu0 0.0
        %3626 = vmatpush.xpose.msra.mxu0 %v3609
        %3627 = vmatmul.f32.gmra.mxu0 %v3009
        %v3628 = vpop.f32.mrf.mxu0
        %v3629 = vadd.f32 0.0, %v3628
        %3630 = vdwg.mxu0
        %s3631 = scalar_lea.vmem %s10, 56
        %v3632 = vld [vmem:[%s3631] sm:$0xff]
        %v3634 = vsel %vm1030, %v3632, 0
        %3636 = vmatpush.xpose.msra.mxu0 0.0
        %3637 = vmatpush.xpose.msra.mxu0 0.0
        %3638 = vmatpush.xpose.msra.mxu0 0.0
        %3639 = vmatpush.xpose.msra.mxu0 0.0
        %3640 = vmatpush.xpose.msra.mxu0 0.0
        %3641 = vmatpush.xpose.msra.mxu0 0.0
        %3642 = vmatpush.xpose.msra.mxu0 0.0
        %3643 = vmatpush.xpose.msra.mxu0 0.0
        %3644 = vmatpush.xpose.msra.mxu0 0.0
        %3645 = vmatpush.xpose.msra.mxu0 0.0
        %3646 = vmatpush.xpose.msra.mxu0 0.0
        %3647 = vmatpush.xpose.msra.mxu0 0.0
        %3648 = vmatpush.xpose.msra.mxu0 0.0
        %3649 = vmatpush.xpose.msra.mxu0 0.0
        %3650 = vmatpush.xpose.msra.mxu0 0.0
        %3651 = vmatpush.xpose.msra.mxu0 %v3634
        %3652 = vmatmul.f32.gmra.mxu0 %v3009
        %v3653 = vpop.f32.mrf.mxu0
        %v3654 = vadd.f32 0.0, %v3653
        %3655 = vdwg.mxu0
        %v3657 = vsel %vm1199, %v3605, 0
        %v3660 = vsel %vm1199, %v3629, 0
        %3662 = vmatpush.xpose.msra.mxu0 0.0
        %3663 = vmatpush.xpose.msra.mxu0 0.0
        %3664 = vmatpush.xpose.msra.mxu0 0.0
        %3665 = vmatpush.xpose.msra.mxu0 0.0
        %3666 = vmatpush.xpose.msra.mxu0 0.0
        %3667 = vmatpush.xpose.msra.mxu0 0.0
        %3668 = vmatpush.xpose.msra.mxu0 0.0
        %3669 = vmatpush.xpose.msra.mxu0 0.0
        %3670 = vmatpush.xpose.msra.mxu0 0.0
        %3671 = vmatpush.xpose.msra.mxu0 0.0
        %3672 = vmatpush.xpose.msra.mxu0 0.0
        %3673 = vmatpush.xpose.msra.mxu0 0.0
        %3674 = vmatpush.xpose.msra.mxu0 0.0
        %3675 = vmatpush.xpose.msra.mxu0 0.0
        %3676 = vmatpush.xpose.msra.mxu0 0.0
        %3677 = vmatpush.xpose.msra.mxu0 %v3660
        %3678 = vmatmul.f32.gmra.mxu0 %v3657
        %v3679 = vpop.f32.mrf.mxu0
        %v3680 = vadd.f32 0.0, %v3679
        %3681 = vdwg.mxu0
        %v3682 = vsel %vm1069, -1e+18, %v3680
        %v3683 = vsel %vm1199, %v3682, -inf
        %3684 = vmax.xlane.f32.xlu0 %v3683
        %v3685 = vpop.xlane.xlu0 %3684
        %v3686 = vsub.f32 %v3682, %v3685
        %v3687 = vmul.f32 %v3686, 1.442695
        %v3688 = vpow.pop %v3687
        %v3689 = vsel %vm1199, %v3688, 0.0
        %3690 = vadd.xlane.f32.xlu0 %v3689
        %v3691 = vpop.xlane.xlu0 %3690
        %v3692 = vrcp.pop %v3691
        %v3693 = vmul.f32 %v3691, %v3692
        %v3694 = vsub.f32 1.0, %v3693
        %v3695 = vmul.f32 %v3692, %v3694
        %v3696 = vadd.f32 %v3692, %v3695
        %vm3697 = vweird.f32 %v3691
        %vm3698 = vweird.f32 %v3692
        %vm3699 = vmor %vm3697, %vm3698
        %v3700 = vsel %vm3699, %v3692, %v3696
        %v3701 = vand.u32 2147483647, %v3691
        %vm3702 = vcmp.eq.f32.partialorder %v3701, 8.507059e+37
        %v3703 = vand.u32 %v3691, 2147483648
        %v3704 = vor.u32 1.1754944e-38, %v3703
        %v3705 = vsel %vm3702, %v3704, %v3700
        %v3706 = vmul.f32 %v3688, %v3705
        %v3708 = vsel %vm1199, %v3706, 0
        %3710 = vmatpush.msra.mxu0 0.0
        %3711 = vmatpush.msra.mxu0 0.0
        %3712 = vmatpush.msra.mxu0 0.0
        %3713 = vmatpush.msra.mxu0 0.0
        %3714 = vmatpush.msra.mxu0 0.0
        %3715 = vmatpush.msra.mxu0 0.0
        %3716 = vmatpush.msra.mxu0 0.0
        %3717 = vmatpush.msra.mxu0 0.0
        %3718 = vmatpush.msra.mxu0 0.0
        %3719 = vmatpush.msra.mxu0 0.0
        %3720 = vmatpush.msra.mxu0 0.0
        %3721 = vmatpush.msra.mxu0 0.0
        %3722 = vmatpush.msra.mxu0 0.0
        %3723 = vmatpush.msra.mxu0 0.0
        %3724 = vmatpush.msra.mxu0 0.0
        %3725 = vmatpush.msra.mxu0 %v3654
        %3726 = vmatmul.f32.gmra.mxu0 %v3708
        %v3727 = vpop.f32.mrf.mxu0
        %v3728 = vadd.f32 0.0, %v3727
        %3729 = vdwg.mxu0
        %s3730 = scalar_lea.vmem %s11, 224
        %v3731 = vld [vmem:[%s3730] sm:$0xff]
        %v3732 = vld [vmem:[%s3730 + $0x8] sm:$0xff]
        %v3733 = vld [vmem:[%s3730 + $0x10] sm:$0xff]
        %v3734 = vld [vmem:[%s3730 + $0x18] sm:$0xff]
        %v3736 = vsel %vm1199, %v3728, 0
        %v3739 = vsel %vm1199, %v3731, 0
        %v3742 = vsel %vm1199, %v3732, 0
        %v3745 = vsel %vm1199, %v3733, 0
        %v3748 = vsel %vm1199, %v3734, 0
        %3750 = vmatpush.xpose.msra.mxu0 0.0
        %3751 = vmatpush.xpose.msra.mxu0 0.0
        %3752 = vmatpush.xpose.msra.mxu0 0.0
        %3753 = vmatpush.xpose.msra.mxu0 0.0
        %3754 = vmatpush.xpose.msra.mxu0 0.0
        %3755 = vmatpush.xpose.msra.mxu0 0.0
        %3756 = vmatpush.xpose.msra.mxu0 0.0
        %3757 = vmatpush.xpose.msra.mxu0 0.0
        %3758 = vmatpush.xpose.msra.mxu0 0.0
        %3759 = vmatpush.xpose.msra.mxu0 0.0
        %3760 = vmatpush.xpose.msra.mxu0 0.0
        %3761 = vmatpush.xpose.msra.mxu0 0.0
        %3762 = vmatpush.xpose.msra.mxu0 %v3748
        %3763 = vmatpush.xpose.msra.mxu0 %v3745
        %3764 = vmatpush.xpose.msra.mxu0 %v3742
        %3765 = vmatpush.xpose.msra.mxu0 %v3739
        %3766 = vmatmul.f32.gmra.mxu0 %v3736
        %v3767 = vpop.f32.mrf.mxu0
        %v3768 = vadd.f32 0.0, %v3767
        %3769 = vdwg.mxu0
        %v3770 = vadd.f32 %v3579, %v3768
        %v3771 = vadd.f32 %v2952, %v3770
        %s3772 = scalar_lea.vmem %s12, 1
        %v3773 = vld [vmem:[%s3772] sm:$0x1]
        %s3774 = scalar_lea.vmem %s13, 1
        %v3775 = vld [vmem:[%s3774] sm:$0x1]
        %v3776 = vsel %vm1030, %v3771, 0.0
        %3777 = vadd.xlane.f32.xlu0 %v3776
        %v3778 = vpop.xlane.xlu0 %3777
        %v3779 = vmul.f32 %v3771, %v3771
        %v3780 = vsel %vm1030, %v3779, 0.0
        %3781 = vadd.xlane.f32.xlu0 %v3780
        %v3782 = vpop.xlane.xlu0 %3781
        %v3783 = vmul.f32 %v3778, 0.03125
        %v3784 = vmul.f32 %v3778, %v3783
        %v3785 = vsub.f32 %v3782, %v3784
        %v3786 = vmax.f32 %v3785, 0.0
        %v3787 = vmul.f32 %v3786, 0.032258064
        %v3788 = vrsqrt.pop %v3787
        %v3789 = vmul.f32 %v3788, %v3787
        %v3790 = vmul.f32 %v3789, %v3788
        %v3791 = vmul.f32 0.5, %v3790
        %v3792 = vsub.f32 1.5, %v3791
        %v3793 = vmul.f32 %v3788, %v3792
        %v3794 = vmul.f32 %v3787, %v3793
        %vm3795 = vcmp.eq.f32.partialorder %v3787, inf
        %v3796 = vsel %vm3795, %v3787, %v3794
        %vm3797 = vcmp.eq.f32.partialorder %v3787, 0.0
        %v3798 = vand.u32 %v3787, 2147483648
        %v3799 = vsel %vm3797, %v3798, %v3796
        %v3800 = vsub.f32 %v3771, %v3783
        %v3802 = vperm.slane %v3773, 0
        %v3804 = vmul.f32 %v3802, %v3800
        %v3805 = vadd.f32 %v3799, 1e-06
        %v3806 = vrcp.pop %v3805
        %v3807 = vmul.f32 %v3805, %v3806
        %v3808 = vsub.f32 1.0, %v3807
        %v3809 = vmul.f32 %v3806, %v3808
        %v3810 = vadd.f32 %v3806, %v3809
        %vm3811 = vweird.f32 %v3805
        %vm3812 = vweird.f32 %v3806
        %vm3813 = vmor %vm3811, %vm3812
        %v3814 = vsel %vm3813, %v3806, %v3810
        %v3815 = vand.u32 2147483647, %v3805
        %vm3816 = vcmp.eq.f32.partialorder %v3815, 8.507059e+37
        %v3817 = vand.u32 %v3805, 2147483648
        %v3818 = vor.u32 1.1754944e-38, %v3817
        %v3819 = vsel %vm3816, %v3818, %v3814
        %v3820 = vmul.f32 %v3804, %v3819
        %v3822 = vperm.slane %v3775, 0
        %v3824 = vadd.f32 %v3820, %v3822
        %s3825 = scalar_lea.vmem %s14, 32
        %v3826 = vld [vmem:[%s3825] sm:$0xff]
        %v3828 = vsel %vm1030, %v3824, 0
        %v3831 = vsel %vm1030, %v3826, 0
        %3833 = vmatpush.xpose.msra.mxu0 0.0
        %3834 = vmatpush.xpose.msra.mxu0 0.0
        %3835 = vmatpush.xpose.msra.mxu0 0.0
        %3836 = vmatpush.xpose.msra.mxu0 0.0
        %3837 = vmatpush.xpose.msra.mxu0 0.0
        %3838 = vmatpush.xpose.msra.mxu0 0.0
        %3839 = vmatpush.xpose.msra.mxu0 0.0
        %3840 = vmatpush.xpose.msra.mxu0 0.0
        %3841 = vmatpush.xpose.msra.mxu0 0.0
        %3842 = vmatpush.xpose.msra.mxu0 0.0
        %3843 = vmatpush.xpose.msra.mxu0 0.0
        %3844 = vmatpush.xpose.msra.mxu0 0.0
        %3845 = vmatpush.xpose.msra.mxu0 0.0
        %3846 = vmatpush.xpose.msra.mxu0 0.0
        %3847 = vmatpush.xpose.msra.mxu0 0.0
        %3848 = vmatpush.xpose.msra.mxu0 %v3831
        %3849 = vmatmul.f32.gmra.mxu0 %v3828
        %v3850 = vpop.f32.mrf.mxu0
        %v3851 = vadd.f32 0.0, %v3850
        %3852 = vdwg.mxu0
        %v3853 = vmul.f32 %v3851, 0.35355338
        %s3854 = scalar_lea.vmem %s15, 32
        %v3855 = vld [vmem:[%s3854] sm:$0xff]
        %v3857 = vsel %vm1030, %v3855, 0
        %3859 = vmatpush.xpose.msra.mxu0 0.0
        %3860 = vmatpush.xpose.msra.mxu0 0.0
        %3861 = vmatpush.xpose.msra.mxu0 0.0
        %3862 = vmatpush.xpose.msra.mxu0 0.0
        %3863 = vmatpush.xpose.msra.mxu0 0.0
        %3864 = vmatpush.xpose.msra.mxu0 0.0
        %3865 = vmatpush.xpose.msra.mxu0 0.0
        %3866 = vmatpush.xpose.msra.mxu0 0.0
        %3867 = vmatpush.xpose.msra.mxu0 0.0
        %3868 = vmatpush.xpose.msra.mxu0 0.0
        %3869 = vmatpush.xpose.msra.mxu0 0.0
        %3870 = vmatpush.xpose.msra.mxu0 0.0
        %3871 = vmatpush.xpose.msra.mxu0 0.0
        %3872 = vmatpush.xpose.msra.mxu0 0.0
        %3873 = vmatpush.xpose.msra.mxu0 0.0
        %3874 = vmatpush.xpose.msra.mxu0 %v3857
        %3875 = vmatmul.f32.gmra.mxu0 %v1967
        %v3876 = vpop.f32.mrf.mxu0
        %v3877 = vadd.f32 0.0, %v3876
        %3878 = vmatmul.f32.gmra.mxu0 %v1970
        %v3879 = vpop.f32.mrf.mxu0
        %v3880 = vadd.f32 0.0, %v3879
        %3881 = vdwg.mxu0
        %s3882 = scalar_lea.vmem [#allocation14], 32
        %v3883 = vld [vmem:[%s3882] sm:$0xff]
        %v3885 = vsel %vm1030, %v3883, 0
        %3887 = vmatpush.xpose.msra.mxu0 0.0
        %3888 = vmatpush.xpose.msra.mxu0 0.0
        %3889 = vmatpush.xpose.msra.mxu0 0.0
        %3890 = vmatpush.xpose.msra.mxu0 0.0
        %3891 = vmatpush.xpose.msra.mxu0 0.0
        %3892 = vmatpush.xpose.msra.mxu0 0.0
        %3893 = vmatpush.xpose.msra.mxu0 0.0
        %3894 = vmatpush.xpose.msra.mxu0 0.0
        %3895 = vmatpush.xpose.msra.mxu0 0.0
        %3896 = vmatpush.xpose.msra.mxu0 0.0
        %3897 = vmatpush.xpose.msra.mxu0 0.0
        %3898 = vmatpush.xpose.msra.mxu0 0.0
        %3899 = vmatpush.xpose.msra.mxu0 0.0
        %3900 = vmatpush.xpose.msra.mxu0 0.0
        %3901 = vmatpush.xpose.msra.mxu0 0.0
        %3902 = vmatpush.xpose.msra.mxu0 %v3885
        %3903 = vmatmul.f32.gmra.mxu0 %v1967
        %v3904 = vpop.f32.mrf.mxu0
        %v3905 = vadd.f32 0.0, %v3904
        %3906 = vmatmul.f32.gmra.mxu0 %v1970
        %v3907 = vpop.f32.mrf.mxu0
        %v3908 = vadd.f32 0.0, %v3907
        %3909 = vdwg.mxu0
        %v3911 = vsel %vm1199, %v3853, 0
        %v3914 = vsel %vm1199, %v3877, 0
        %v3917 = vsel %vm1199, %v3880, 0
        %3919 = vmatpush.xpose.msra.mxu0 0.0
        %3920 = vmatpush.xpose.msra.mxu0 0.0
        %3921 = vmatpush.xpose.msra.mxu0 0.0
        %3922 = vmatpush.xpose.msra.mxu0 0.0
        %3923 = vmatpush.xpose.msra.mxu0 0.0
        %3924 = vmatpush.xpose.msra.mxu0 0.0
        %3925 = vmatpush.xpose.msra.mxu0 0.0
        %3926 = vmatpush.xpose.msra.mxu0 0.0
        %3927 = vmatpush.xpose.msra.mxu0 0.0
        %3928 = vmatpush.xpose.msra.mxu0 0.0
        %3929 = vmatpush.xpose.msra.mxu0 0.0
        %3930 = vmatpush.xpose.msra.mxu0 0.0
        %3931 = vmatpush.xpose.msra.mxu0 0.0
        %3932 = vmatpush.xpose.msra.mxu0 0.0
        %3933 = vmatpush.xpose.msra.mxu0 %v3917
        %3934 = vmatpush.xpose.msra.mxu0 %v3914
        %3935 = vmatmul.f32.gmra.mxu0 %v3911
        %v3936 = vpop.f32.mrf.mxu0
        %v3937 = vadd.f32 0.0, %v3936
        %3938 = vdwg.mxu0
        %v3939 = vsel %vm2056, -1e+18, %v3937
        %v3940 = vadd.f32 %v3939, 0.0
        %v3941 = vsel %vm2058, %v3939, -inf
        %3942 = vmax.xlane.f32.xlu0 %v3941
        %v3943 = vpop.xlane.xlu0 %3942
        %v3944 = vsub.f32 %v3939, %v3943
        %v3945 = vmul.f32 %v3944, 1.442695
        %v3946 = vpow.pop %v3945
        %v3947 = vsel %vm2058, %v3946, 0.0
        %3948 = vadd.xlane.f32.xlu0 %v3947
        %v3949 = vpop.xlane.xlu0 %3948
        %v3950 = vrcp.pop %v3949
        %v3951 = vmul.f32 %v3949, %v3950
        %v3952 = vsub.f32 1.0, %v3951
        %v3953 = vmul.f32 %v3950, %v3952
        %v3954 = vadd.f32 %v3950, %v3953
        %vm3955 = vweird.f32 %v3949
        %vm3956 = vweird.f32 %v3950
        %vm3957 = vmor %vm3955, %vm3956
        %v3958 = vsel %vm3957, %v3950, %v3954
        %v3959 = vand.u32 2147483647, %v3949
        %vm3960 = vcmp.eq.f32.partialorder %v3959, 8.507059e+37
        %v3961 = vand.u32 %v3949, 2147483648
        %v3962 = vor.u32 1.1754944e-38, %v3961
        %v3963 = vsel %vm3960, %v3962, %v3958
        %v3964 = vmul.f32 %v3946, %v3963
        %v3966 = vsel %vm2058, %v3964, 0
        %3968 = vmatpush.msra.mxu0 0.0
        %3969 = vmatpush.msra.mxu0 0.0
        %3970 = vmatpush.msra.mxu0 0.0
        %3971 = vmatpush.msra.mxu0 0.0
        %3972 = vmatpush.msra.mxu0 0.0
        %3973 = vmatpush.msra.mxu0 0.0
        %3974 = vmatpush.msra.mxu0 0.0
        %3975 = vmatpush.msra.mxu0 0.0
        %3976 = vmatpush.msra.mxu0 0.0
        %3977 = vmatpush.msra.mxu0 0.0
        %3978 = vmatpush.msra.mxu0 0.0
        %3979 = vmatpush.msra.mxu0 0.0
        %3980 = vmatpush.msra.mxu0 0.0
        %3981 = vmatpush.msra.mxu0 0.0
        %3982 = vmatpush.msra.mxu0 %v3908
        %3983 = vmatpush.msra.mxu0 %v3905
        %3984 = vmatmul.f32.gmra.mxu0 %v3966
        %v3985 = vpop.f32.mrf.mxu0
        %v3986 = vadd.f32 0.0, %v3985
        %3987 = vdwg.mxu0
        %s3988 = scalar_lea.vmem %s17, 128
        %v3989 = vld [vmem:[%s3988] sm:$0xff]
        %v3990 = vld [vmem:[%s3988 + $0x8] sm:$0xff]
        %v3991 = vld [vmem:[%s3988 + $0x10] sm:$0xff]
        %v3992 = vld [vmem:[%s3988 + $0x18] sm:$0xff]
        %s3993 = scalar_lea.vmem %s14, 40
        %v3994 = vld [vmem:[%s3993] sm:$0xff]
        %v3996 = vsel %vm1030, %v3994, 0
        %3998 = vmatpush.xpose.msra.mxu0 0.0
        %3999 = vmatpush.xpose.msra.mxu0 0.0
        %4000 = vmatpush.xpose.msra.mxu0 0.0
        %4001 = vmatpush.xpose.msra.mxu0 0.0
        %4002 = vmatpush.xpose.msra.mxu0 0.0
        %4003 = vmatpush.xpose.msra.mxu0 0.0
        %4004 = vmatpush.xpose.msra.mxu0 0.0
        %4005 = vmatpush.xpose.msra.mxu0 0.0
        %4006 = vmatpush.xpose.msra.mxu0 0.0
        %4007 = vmatpush.xpose.msra.mxu0 0.0
        %4008 = vmatpush.xpose.msra.mxu0 0.0
        %4009 = vmatpush.xpose.msra.mxu0 0.0
        %4010 = vmatpush.xpose.msra.mxu0 0.0
        %4011 = vmatpush.xpose.msra.mxu0 0.0
        %4012 = vmatpush.xpose.msra.mxu0 0.0
        %4013 = vmatpush.xpose.msra.mxu0 %v3996
        %4014 = vmatmul.f32.gmra.mxu0 %v3828
        %v4015 = vpop.f32.mrf.mxu0
        %v4016 = vadd.f32 0.0, %v4015
        %4017 = vdwg.mxu0
        %v4018 = vmul.f32 %v4016, 0.35355338
        %s4019 = scalar_lea.vmem %s15, 40
        %v4020 = vld [vmem:[%s4019] sm:$0xff]
        %v4022 = vsel %vm1030, %v4020, 0
        %4024 = vmatpush.xpose.msra.mxu0 0.0
        %4025 = vmatpush.xpose.msra.mxu0 0.0
        %4026 = vmatpush.xpose.msra.mxu0 0.0
        %4027 = vmatpush.xpose.msra.mxu0 0.0
        %4028 = vmatpush.xpose.msra.mxu0 0.0
        %4029 = vmatpush.xpose.msra.mxu0 0.0
        %4030 = vmatpush.xpose.msra.mxu0 0.0
        %4031 = vmatpush.xpose.msra.mxu0 0.0
        %4032 = vmatpush.xpose.msra.mxu0 0.0
        %4033 = vmatpush.xpose.msra.mxu0 0.0
        %4034 = vmatpush.xpose.msra.mxu0 0.0
        %4035 = vmatpush.xpose.msra.mxu0 0.0
        %4036 = vmatpush.xpose.msra.mxu0 0.0
        %4037 = vmatpush.xpose.msra.mxu0 0.0
        %4038 = vmatpush.xpose.msra.mxu0 0.0
        %4039 = vmatpush.xpose.msra.mxu0 %v4022
        %4040 = vmatmul.f32.gmra.mxu0 %v1967
        %v4041 = vpop.f32.mrf.mxu0
        %v4042 = vadd.f32 0.0, %v4041
        %4043 = vmatmul.f32.gmra.mxu0 %v1970
        %v4044 = vpop.f32.mrf.mxu0
        %v4045 = vadd.f32 0.0, %v4044
        %4046 = vdwg.mxu0
        %s4047 = scalar_lea.vmem [#allocation14], 40
        %v4048 = vld [vmem:[%s4047] sm:$0xff]
        %v4050 = vsel %vm1030, %v4048, 0
        %4052 = vmatpush.xpose.msra.mxu0 0.0
        %4053 = vmatpush.xpose.msra.mxu0 0.0
        %4054 = vmatpush.xpose.msra.mxu0 0.0
        %4055 = vmatpush.xpose.msra.mxu0 0.0
        %4056 = vmatpush.xpose.msra.mxu0 0.0
        %4057 = vmatpush.xpose.msra.mxu0 0.0
        %4058 = vmatpush.xpose.msra.mxu0 0.0
        %4059 = vmatpush.xpose.msra.mxu0 0.0
        %4060 = vmatpush.xpose.msra.mxu0 0.0
        %4061 = vmatpush.xpose.msra.mxu0 0.0
        %4062 = vmatpush.xpose.msra.mxu0 0.0
        %4063 = vmatpush.xpose.msra.mxu0 0.0
        %4064 = vmatpush.xpose.msra.mxu0 0.0
        %4065 = vmatpush.xpose.msra.mxu0 0.0
        %4066 = vmatpush.xpose.msra.mxu0 0.0
        %4067 = vmatpush.xpose.msra.mxu0 %v4050
        %4068 = vmatmul.f32.gmra.mxu0 %v1967
        %v4069 = vpop.f32.mrf.mxu0
        %v4070 = vadd.f32 0.0, %v4069
        %4071 = vmatmul.f32.gmra.mxu0 %v1970
        %v4072 = vpop.f32.mrf.mxu0
        %v4073 = vadd.f32 0.0, %v4072
        %4074 = vdwg.mxu0
        %v4076 = vsel %vm1199, %v4018, 0
        %v4079 = vsel %vm1199, %v4042, 0
        %v4082 = vsel %vm1199, %v4045, 0
        %4084 = vmatpush.xpose.msra.mxu0 0.0
        %4085 = vmatpush.xpose.msra.mxu0 0.0
        %4086 = vmatpush.xpose.msra.mxu0 0.0
        %4087 = vmatpush.xpose.msra.mxu0 0.0
        %4088 = vmatpush.xpose.msra.mxu0 0.0
        %4089 = vmatpush.xpose.msra.mxu0 0.0
        %4090 = vmatpush.xpose.msra.mxu0 0.0
        %4091 = vmatpush.xpose.msra.mxu0 0.0
        %4092 = vmatpush.xpose.msra.mxu0 0.0
        %4093 = vmatpush.xpose.msra.mxu0 0.0
        %4094 = vmatpush.xpose.msra.mxu0 0.0
        %4095 = vmatpush.xpose.msra.mxu0 0.0
        %4096 = vmatpush.xpose.msra.mxu0 0.0
        %4097 = vmatpush.xpose.msra.mxu0 0.0
        %4098 = vmatpush.xpose.msra.mxu0 %v4082
        %4099 = vmatpush.xpose.msra.mxu0 %v4079
        %4100 = vmatmul.f32.gmra.mxu0 %v4076
        %v4101 = vpop.f32.mrf.mxu0
        %v4102 = vadd.f32 0.0, %v4101
        %4103 = vdwg.mxu0
        %v4104 = vsel %vm2056, -1e+18, %v4102
        %v4105 = vadd.f32 %v3940, %v4104
        %v4106 = vsel %vm2058, %v4104, -inf
        %4107 = vmax.xlane.f32.xlu0 %v4106
        %v4108 = vpop.xlane.xlu0 %4107
        %v4109 = vsub.f32 %v4104, %v4108
        %v4110 = vmul.f32 %v4109, 1.442695
        %v4111 = vpow.pop %v4110
        %v4112 = vsel %vm2058, %v4111, 0.0
        %4113 = vadd.xlane.f32.xlu0 %v4112
        %v4114 = vpop.xlane.xlu0 %4113
        %v4115 = vrcp.pop %v4114
        %v4116 = vmul.f32 %v4114, %v4115
        %v4117 = vsub.f32 1.0, %v4116
        %v4118 = vmul.f32 %v4115, %v4117
        %v4119 = vadd.f32 %v4115, %v4118
        %vm4120 = vweird.f32 %v4114
        %vm4121 = vweird.f32 %v4115
        %vm4122 = vmor %vm4120, %vm4121
        %v4123 = vsel %vm4122, %v4115, %v4119
        %v4124 = vand.u32 2147483647, %v4114
        %vm4125 = vcmp.eq.f32.partialorder %v4124, 8.507059e+37
        %v4126 = vand.u32 %v4114, 2147483648
        %v4127 = vor.u32 1.1754944e-38, %v4126
        %v4128 = vsel %vm4125, %v4127, %v4123
        %v4129 = vmul.f32 %v4111, %v4128
        %v4131 = vsel %vm2058, %v4129, 0
        %4133 = vmatpush.msra.mxu0 0.0
        %4134 = vmatpush.msra.mxu0 0.0
        %4135 = vmatpush.msra.mxu0 0.0
        %4136 = vmatpush.msra.mxu0 0.0
        %4137 = vmatpush.msra.mxu0 0.0
        %4138 = vmatpush.msra.mxu0 0.0
        %4139 = vmatpush.msra.mxu0 0.0
        %4140 = vmatpush.msra.mxu0 0.0
        %4141 = vmatpush.msra.mxu0 0.0
        %4142 = vmatpush.msra.mxu0 0.0
        %4143 = vmatpush.msra.mxu0 0.0
        %4144 = vmatpush.msra.mxu0 0.0
        %4145 = vmatpush.msra.mxu0 0.0
        %4146 = vmatpush.msra.mxu0 0.0
        %4147 = vmatpush.msra.mxu0 %v4073
        %4148 = vmatpush.msra.mxu0 %v4070
        %4149 = vmatmul.f32.gmra.mxu0 %v4131
        %v4150 = vpop.f32.mrf.mxu0
        %v4151 = vadd.f32 0.0, %v4150
        %4152 = vdwg.mxu0
        %s4153 = scalar_lea.vmem %s17, 160
        %v4154 = vld [vmem:[%s4153] sm:$0xff]
        %v4155 = vld [vmem:[%s4153 + $0x8] sm:$0xff]
        %v4156 = vld [vmem:[%s4153 + $0x10] sm:$0xff]
        %v4157 = vld [vmem:[%s4153 + $0x18] sm:$0xff]
        %v4159 = vsel %vm1199, %v4151, 0
        %v4162 = vsel %vm1199, %v4154, 0
        %v4165 = vsel %vm1199, %v4155, 0
        %v4168 = vsel %vm1199, %v4156, 0
        %v4171 = vsel %vm1199, %v4157, 0
        %4173 = vmatpush.xpose.msra.mxu0 0.0
        %4174 = vmatpush.xpose.msra.mxu0 0.0
        %4175 = vmatpush.xpose.msra.mxu0 0.0
        %4176 = vmatpush.xpose.msra.mxu0 0.0
        %4177 = vmatpush.xpose.msra.mxu0 0.0
        %4178 = vmatpush.xpose.msra.mxu0 0.0
        %4179 = vmatpush.xpose.msra.mxu0 0.0
        %4180 = vmatpush.xpose.msra.mxu0 0.0
        %4181 = vmatpush.xpose.msra.mxu0 0.0
        %4182 = vmatpush.xpose.msra.mxu0 0.0
        %4183 = vmatpush.xpose.msra.mxu0 0.0
        %4184 = vmatpush.xpose.msra.mxu0 0.0
        %4185 = vmatpush.xpose.msra.mxu0 %v4171
        %4186 = vmatpush.xpose.msra.mxu0 %v4168
        %4187 = vmatpush.xpose.msra.mxu0 %v4165
        %4188 = vmatpush.xpose.msra.mxu0 %v4162
        %4189 = vmatmul.f32.gmra.mxu0 %v4159
        %v4190 = vpop.f32.mrf.mxu0
        %v4191 = vadd.f32 0.0, %v4190
        %4192 = vdwg.mxu0
        %v4194 = vsel %vm1199, %v3986, 0
        %v4197 = vsel %vm1199, %v3989, 0
        %v4200 = vsel %vm1199, %v3990, 0
        %v4203 = vsel %vm1199, %v3991, 0
        %v4206 = vsel %vm1199, %v3992, 0
        %4208 = vmatpush.xpose.msra.mxu0 0.0
        %4209 = vmatpush.xpose.msra.mxu0 0.0
        %4210 = vmatpush.xpose.msra.mxu0 0.0
        %4211 = vmatpush.xpose.msra.mxu0 0.0
        %4212 = vmatpush.xpose.msra.mxu0 0.0
        %4213 = vmatpush.xpose.msra.mxu0 0.0
        %4214 = vmatpush.xpose.msra.mxu0 0.0
        %4215 = vmatpush.xpose.msra.mxu0 0.0
        %4216 = vmatpush.xpose.msra.mxu0 0.0
        %4217 = vmatpush.xpose.msra.mxu0 0.0
        %4218 = vmatpush.xpose.msra.mxu0 0.0
        %4219 = vmatpush.xpose.msra.mxu0 0.0
        %4220 = vmatpush.xpose.msra.mxu0 %v4206
        %4221 = vmatpush.xpose.msra.mxu0 %v4203
        %4222 = vmatpush.xpose.msra.mxu0 %v4200
        %4223 = vmatpush.xpose.msra.mxu0 %v4197
        %4224 = vmatmul.f32.gmra.mxu0 %v4194
        %v4225 = vpop.f32.mrf.mxu0
        %v4226 = vadd.f32 %v4191, %v4225
        %4227 = vdwg.mxu0
        %s4228 = scalar_lea.vmem %s14, 48
        %v4229 = vld [vmem:[%s4228] sm:$0xff]
        %v4231 = vsel %vm1030, %v4229, 0
        %4233 = vmatpush.xpose.msra.mxu0 0.0
        %4234 = vmatpush.xpose.msra.mxu0 0.0
        %4235 = vmatpush.xpose.msra.mxu0 0.0
        %4236 = vmatpush.xpose.msra.mxu0 0.0
        %4237 = vmatpush.xpose.msra.mxu0 0.0
        %4238 = vmatpush.xpose.msra.mxu0 0.0
        %4239 = vmatpush.xpose.msra.mxu0 0.0
        %4240 = vmatpush.xpose.msra.mxu0 0.0
        %4241 = vmatpush.xpose.msra.mxu0 0.0
        %4242 = vmatpush.xpose.msra.mxu0 0.0
        %4243 = vmatpush.xpose.msra.mxu0 0.0
        %4244 = vmatpush.xpose.msra.mxu0 0.0
        %4245 = vmatpush.xpose.msra.mxu0 0.0
        %4246 = vmatpush.xpose.msra.mxu0 0.0
        %4247 = vmatpush.xpose.msra.mxu0 0.0
        %4248 = vmatpush.xpose.msra.mxu0 %v4231
        %4249 = vmatmul.f32.gmra.mxu0 %v3828
        %v4250 = vpop.f32.mrf.mxu0
        %v4251 = vadd.f32 0.0, %v4250
        %4252 = vdwg.mxu0
        %v4253 = vmul.f32 %v4251, 0.35355338
        %s4254 = scalar_lea.vmem %s15, 48
        %v4255 = vld [vmem:[%s4254] sm:$0xff]
        %v4257 = vsel %vm1030, %v4255, 0
        %4259 = vmatpush.xpose.msra.mxu0 0.0
        %4260 = vmatpush.xpose.msra.mxu0 0.0
        %4261 = vmatpush.xpose.msra.mxu0 0.0
        %4262 = vmatpush.xpose.msra.mxu0 0.0
        %4263 = vmatpush.xpose.msra.mxu0 0.0
        %4264 = vmatpush.xpose.msra.mxu0 0.0
        %4265 = vmatpush.xpose.msra.mxu0 0.0
        %4266 = vmatpush.xpose.msra.mxu0 0.0
        %4267 = vmatpush.xpose.msra.mxu0 0.0
        %4268 = vmatpush.xpose.msra.mxu0 0.0
        %4269 = vmatpush.xpose.msra.mxu0 0.0
        %4270 = vmatpush.xpose.msra.mxu0 0.0
        %4271 = vmatpush.xpose.msra.mxu0 0.0
        %4272 = vmatpush.xpose.msra.mxu0 0.0
        %4273 = vmatpush.xpose.msra.mxu0 0.0
        %4274 = vmatpush.xpose.msra.mxu0 %v4257
        %4275 = vmatmul.f32.gmra.mxu0 %v1967
        %v4276 = vpop.f32.mrf.mxu0
        %v4277 = vadd.f32 0.0, %v4276
        %4278 = vmatmul.f32.gmra.mxu0 %v1970
        %v4279 = vpop.f32.mrf.mxu0
        %v4280 = vadd.f32 0.0, %v4279
        %4281 = vdwg.mxu0
        %s4282 = scalar_lea.vmem [#allocation14], 48
        %v4283 = vld [vmem:[%s4282] sm:$0xff]
        %v4285 = vsel %vm1030, %v4283, 0
        %4287 = vmatpush.xpose.msra.mxu0 0.0
        %4288 = vmatpush.xpose.msra.mxu0 0.0
        %4289 = vmatpush.xpose.msra.mxu0 0.0
        %4290 = vmatpush.xpose.msra.mxu0 0.0
        %4291 = vmatpush.xpose.msra.mxu0 0.0
        %4292 = vmatpush.xpose.msra.mxu0 0.0
        %4293 = vmatpush.xpose.msra.mxu0 0.0
        %4294 = vmatpush.xpose.msra.mxu0 0.0
        %4295 = vmatpush.xpose.msra.mxu0 0.0
        %4296 = vmatpush.xpose.msra.mxu0 0.0
        %4297 = vmatpush.xpose.msra.mxu0 0.0
        %4298 = vmatpush.xpose.msra.mxu0 0.0
        %4299 = vmatpush.xpose.msra.mxu0 0.0
        %4300 = vmatpush.xpose.msra.mxu0 0.0
        %4301 = vmatpush.xpose.msra.mxu0 0.0
        %4302 = vmatpush.xpose.msra.mxu0 %v4285
        %4303 = vmatmul.f32.gmra.mxu0 %v1967
        %v4304 = vpop.f32.mrf.mxu0
        %v4305 = vadd.f32 0.0, %v4304
        %4306 = vmatmul.f32.gmra.mxu0 %v1970
        %v4307 = vpop.f32.mrf.mxu0
        %v4308 = vadd.f32 0.0, %v4307
        %4309 = vdwg.mxu0
        %v4311 = vsel %vm1199, %v4253, 0
        %v4314 = vsel %vm1199, %v4277, 0
        %v4317 = vsel %vm1199, %v4280, 0
        %4319 = vmatpush.xpose.msra.mxu0 0.0
        %4320 = vmatpush.xpose.msra.mxu0 0.0
        %4321 = vmatpush.xpose.msra.mxu0 0.0
        %4322 = vmatpush.xpose.msra.mxu0 0.0
        %4323 = vmatpush.xpose.msra.mxu0 0.0
        %4324 = vmatpush.xpose.msra.mxu0 0.0
        %4325 = vmatpush.xpose.msra.mxu0 0.0
        %4326 = vmatpush.xpose.msra.mxu0 0.0
        %4327 = vmatpush.xpose.msra.mxu0 0.0
        %4328 = vmatpush.xpose.msra.mxu0 0.0
        %4329 = vmatpush.xpose.msra.mxu0 0.0
        %4330 = vmatpush.xpose.msra.mxu0 0.0
        %4331 = vmatpush.xpose.msra.mxu0 0.0
        %4332 = vmatpush.xpose.msra.mxu0 0.0
        %4333 = vmatpush.xpose.msra.mxu0 %v4317
        %4334 = vmatpush.xpose.msra.mxu0 %v4314
        %4335 = vmatmul.f32.gmra.mxu0 %v4311
        %v4336 = vpop.f32.mrf.mxu0
        %v4337 = vadd.f32 0.0, %v4336
        %4338 = vdwg.mxu0
        %v4339 = vsel %vm2056, -1e+18, %v4337
        %v4340 = vadd.f32 %v4105, %v4339
        %v4341 = vsel %vm2058, %v4339, -inf
        %4342 = vmax.xlane.f32.xlu0 %v4341
        %v4343 = vpop.xlane.xlu0 %4342
        %v4344 = vsub.f32 %v4339, %v4343
        %v4345 = vmul.f32 %v4344, 1.442695
        %v4346 = vpow.pop %v4345
        %v4347 = vsel %vm2058, %v4346, 0.0
        %4348 = vadd.xlane.f32.xlu0 %v4347
        %v4349 = vpop.xlane.xlu0 %4348
        %v4350 = vrcp.pop %v4349
        %v4351 = vmul.f32 %v4349, %v4350
        %v4352 = vsub.f32 1.0, %v4351
        %v4353 = vmul.f32 %v4350, %v4352
        %v4354 = vadd.f32 %v4350, %v4353
        %vm4355 = vweird.f32 %v4349
        %vm4356 = vweird.f32 %v4350
        %vm4357 = vmor %vm4355, %vm4356
        %v4358 = vsel %vm4357, %v4350, %v4354
        %v4359 = vand.u32 2147483647, %v4349
        %vm4360 = vcmp.eq.f32.partialorder %v4359, 8.507059e+37
        %v4361 = vand.u32 %v4349, 2147483648
        %v4362 = vor.u32 1.1754944e-38, %v4361
        %v4363 = vsel %vm4360, %v4362, %v4358
        %v4364 = vmul.f32 %v4346, %v4363
        %v4366 = vsel %vm2058, %v4364, 0
        %4368 = vmatpush.msra.mxu0 0.0
        %4369 = vmatpush.msra.mxu0 0.0
        %4370 = vmatpush.msra.mxu0 0.0
        %4371 = vmatpush.msra.mxu0 0.0
        %4372 = vmatpush.msra.mxu0 0.0
        %4373 = vmatpush.msra.mxu0 0.0
        %4374 = vmatpush.msra.mxu0 0.0
        %4375 = vmatpush.msra.mxu0 0.0
        %4376 = vmatpush.msra.mxu0 0.0
        %4377 = vmatpush.msra.mxu0 0.0
        %4378 = vmatpush.msra.mxu0 0.0
        %4379 = vmatpush.msra.mxu0 0.0
        %4380 = vmatpush.msra.mxu0 0.0
        %4381 = vmatpush.msra.mxu0 0.0
        %4382 = vmatpush.msra.mxu0 %v4308
        %4383 = vmatpush.msra.mxu0 %v4305
        %4384 = vmatmul.f32.gmra.mxu0 %v4366
        %v4385 = vpop.f32.mrf.mxu0
        %v4386 = vadd.f32 0.0, %v4385
        %4387 = vdwg.mxu0
        %s4388 = scalar_lea.vmem %s17, 192
        %v4389 = vld [vmem:[%s4388] sm:$0xff]
        %v4390 = vld [vmem:[%s4388 + $0x8] sm:$0xff]
        %v4391 = vld [vmem:[%s4388 + $0x10] sm:$0xff]
        %v4392 = vld [vmem:[%s4388 + $0x18] sm:$0xff]
        %v4394 = vsel %vm1199, %v4386, 0
        %v4397 = vsel %vm1199, %v4389, 0
        %v4400 = vsel %vm1199, %v4390, 0
        %v4403 = vsel %vm1199, %v4391, 0
        %v4406 = vsel %vm1199, %v4392, 0
        %4408 = vmatpush.xpose.msra.mxu0 0.0
        %4409 = vmatpush.xpose.msra.mxu0 0.0
        %4410 = vmatpush.xpose.msra.mxu0 0.0
        %4411 = vmatpush.xpose.msra.mxu0 0.0
        %4412 = vmatpush.xpose.msra.mxu0 0.0
        %4413 = vmatpush.xpose.msra.mxu0 0.0
        %4414 = vmatpush.xpose.msra.mxu0 0.0
        %4415 = vmatpush.xpose.msra.mxu0 0.0
        %4416 = vmatpush.xpose.msra.mxu0 0.0
        %4417 = vmatpush.xpose.msra.mxu0 0.0
        %4418 = vmatpush.xpose.msra.mxu0 0.0
        %4419 = vmatpush.xpose.msra.mxu0 0.0
        %4420 = vmatpush.xpose.msra.mxu0 %v4406
        %4421 = vmatpush.xpose.msra.mxu0 %v4403
        %4422 = vmatpush.xpose.msra.mxu0 %v4400
        %4423 = vmatpush.xpose.msra.mxu0 %v4397
        %4424 = vmatmul.f32.gmra.mxu0 %v4394
        %v4425 = vpop.f32.mrf.mxu0
        %v4426 = vadd.f32 0.0, %v4425
        %4427 = vdwg.mxu0
        %v4428 = vadd.f32 %v4226, %v4426
        %s4429 = scalar_lea.vmem %s14, 56
        %v4430 = vld [vmem:[%s4429] sm:$0xff]
        %v4432 = vsel %vm1030, %v4430, 0
        %4434 = vmatpush.xpose.msra.mxu0 0.0
        %4435 = vmatpush.xpose.msra.mxu0 0.0
        %4436 = vmatpush.xpose.msra.mxu0 0.0
        %4437 = vmatpush.xpose.msra.mxu0 0.0
        %4438 = vmatpush.xpose.msra.mxu0 0.0
        %4439 = vmatpush.xpose.msra.mxu0 0.0
        %4440 = vmatpush.xpose.msra.mxu0 0.0
        %4441 = vmatpush.xpose.msra.mxu0 0.0
        %4442 = vmatpush.xpose.msra.mxu0 0.0
        %4443 = vmatpush.xpose.msra.mxu0 0.0
        %4444 = vmatpush.xpose.msra.mxu0 0.0
        %4445 = vmatpush.xpose.msra.mxu0 0.0
        %4446 = vmatpush.xpose.msra.mxu0 0.0
        %4447 = vmatpush.xpose.msra.mxu0 0.0
        %4448 = vmatpush.xpose.msra.mxu0 0.0
        %4449 = vmatpush.xpose.msra.mxu0 %v4432
        %4450 = vmatmul.f32.gmra.mxu0 %v3828
        %v4451 = vpop.f32.mrf.mxu0
        %v4452 = vadd.f32 0.0, %v4451
        %4453 = vdwg.mxu0
        %v4454 = vmul.f32 %v4452, 0.35355338
        %s4455 = scalar_lea.vmem %s15, 56
        %v4456 = vld [vmem:[%s4455] sm:$0xff]
        %v4458 = vsel %vm1030, %v4456, 0
        %4460 = vmatpush.xpose.msra.mxu0 0.0
        %4461 = vmatpush.xpose.msra.mxu0 0.0
        %4462 = vmatpush.xpose.msra.mxu0 0.0
        %4463 = vmatpush.xpose.msra.mxu0 0.0
        %4464 = vmatpush.xpose.msra.mxu0 0.0
        %4465 = vmatpush.xpose.msra.mxu0 0.0
        %4466 = vmatpush.xpose.msra.mxu0 0.0
        %4467 = vmatpush.xpose.msra.mxu0 0.0
        %4468 = vmatpush.xpose.msra.mxu0 0.0
        %4469 = vmatpush.xpose.msra.mxu0 0.0
        %4470 = vmatpush.xpose.msra.mxu0 0.0
        %4471 = vmatpush.xpose.msra.mxu0 0.0
        %4472 = vmatpush.xpose.msra.mxu0 0.0
        %4473 = vmatpush.xpose.msra.mxu0 0.0
        %4474 = vmatpush.xpose.msra.mxu0 0.0
        %4475 = vmatpush.xpose.msra.mxu0 %v4458
        %4476 = vmatmul.f32.gmra.mxu0 %v1967
        %v4477 = vpop.f32.mrf.mxu0
        %v4478 = vadd.f32 0.0, %v4477
        %4479 = vmatmul.f32.gmra.mxu0 %v1970
        %v4480 = vpop.f32.mrf.mxu0
        %v4481 = vadd.f32 0.0, %v4480
        %4482 = vdwg.mxu0
        %s4483 = scalar_lea.vmem [#allocation14], 56
        %v4484 = vld [vmem:[%s4483] sm:$0xff]
        %v4486 = vsel %vm1030, %v4484, 0
        %4488 = vmatpush.xpose.msra.mxu0 0.0
        %4489 = vmatpush.xpose.msra.mxu0 0.0
        %4490 = vmatpush.xpose.msra.mxu0 0.0
        %4491 = vmatpush.xpose.msra.mxu0 0.0
        %4492 = vmatpush.xpose.msra.mxu0 0.0
        %4493 = vmatpush.xpose.msra.mxu0 0.0
        %4494 = vmatpush.xpose.msra.mxu0 0.0
        %4495 = vmatpush.xpose.msra.mxu0 0.0
        %4496 = vmatpush.xpose.msra.mxu0 0.0
        %4497 = vmatpush.xpose.msra.mxu0 0.0
        %4498 = vmatpush.xpose.msra.mxu0 0.0
        %4499 = vmatpush.xpose.msra.mxu0 0.0
        %4500 = vmatpush.xpose.msra.mxu0 0.0
        %4501 = vmatpush.xpose.msra.mxu0 0.0
        %4502 = vmatpush.xpose.msra.mxu0 0.0
        %4503 = vmatpush.xpose.msra.mxu0 %v4486
        %4504 = vmatmul.f32.gmra.mxu0 %v1967
        %v4505 = vpop.f32.mrf.mxu0
        %v4506 = vadd.f32 0.0, %v4505
        %4507 = vmatmul.f32.gmra.mxu0 %v1970
        %v4508 = vpop.f32.mrf.mxu0
        %v4509 = vadd.f32 0.0, %v4508
        %4510 = vdwg.mxu0
        %v4512 = vsel %vm1199, %v4454, 0
        %v4515 = vsel %vm1199, %v4478, 0
        %v4518 = vsel %vm1199, %v4481, 0
        %4520 = vmatpush.xpose.msra.mxu0 0.0
        %4521 = vmatpush.xpose.msra.mxu0 0.0
        %4522 = vmatpush.xpose.msra.mxu0 0.0
        %4523 = vmatpush.xpose.msra.mxu0 0.0
        %4524 = vmatpush.xpose.msra.mxu0 0.0
        %4525 = vmatpush.xpose.msra.mxu0 0.0
        %4526 = vmatpush.xpose.msra.mxu0 0.0
        %4527 = vmatpush.xpose.msra.mxu0 0.0
        %4528 = vmatpush.xpose.msra.mxu0 0.0
        %4529 = vmatpush.xpose.msra.mxu0 0.0
        %4530 = vmatpush.xpose.msra.mxu0 0.0
        %4531 = vmatpush.xpose.msra.mxu0 0.0
        %4532 = vmatpush.xpose.msra.mxu0 0.0
        %4533 = vmatpush.xpose.msra.mxu0 0.0
        %4534 = vmatpush.xpose.msra.mxu0 %v4518
        %4535 = vmatpush.xpose.msra.mxu0 %v4515
        %4536 = vmatmul.f32.gmra.mxu0 %v4512
        %v4537 = vpop.f32.mrf.mxu0
        %v4538 = vadd.f32 0.0, %v4537
        %4539 = vdwg.mxu0
        %v4540 = vsel %vm2056, -1e+18, %v4538
        %v4541 = vadd.f32 %v4340, %v4540
        %v4542 = vsel %vm2058, %v4540, -inf
        %4543 = vmax.xlane.f32.xlu0 %v4542
        %v4544 = vpop.xlane.xlu0 %4543
        %v4545 = vsub.f32 %v4540, %v4544
        %v4546 = vmul.f32 %v4545, 1.442695
        %v4547 = vpow.pop %v4546
        %v4548 = vsel %vm2058, %v4547, 0.0
        %4549 = vadd.xlane.f32.xlu0 %v4548
        %v4550 = vpop.xlane.xlu0 %4549
        %v4551 = vrcp.pop %v4550
        %v4552 = vmul.f32 %v4550, %v4551
        %v4553 = vsub.f32 1.0, %v4552
        %v4554 = vmul.f32 %v4551, %v4553
        %v4555 = vadd.f32 %v4551, %v4554
        %vm4556 = vweird.f32 %v4550
        %vm4557 = vweird.f32 %v4551
        %vm4558 = vmor %vm4556, %vm4557
        %v4559 = vsel %vm4558, %v4551, %v4555
        %v4560 = vand.u32 2147483647, %v4550
        %vm4561 = vcmp.eq.f32.partialorder %v4560, 8.507059e+37
        %v4562 = vand.u32 %v4550, 2147483648
        %v4563 = vor.u32 1.1754944e-38, %v4562
        %v4564 = vsel %vm4561, %v4563, %v4559
        %v4565 = vmul.f32 %v4547, %v4564
        %v4567 = vsel %vm2058, %v4565, 0
        %4569 = vmatpush.msra.mxu0 0.0
        %4570 = vmatpush.msra.mxu0 0.0
        %4571 = vmatpush.msra.mxu0 0.0
        %4572 = vmatpush.msra.mxu0 0.0
        %4573 = vmatpush.msra.mxu0 0.0
        %4574 = vmatpush.msra.mxu0 0.0
        %4575 = vmatpush.msra.mxu0 0.0
        %4576 = vmatpush.msra.mxu0 0.0
        %4577 = vmatpush.msra.mxu0 0.0
        %4578 = vmatpush.msra.mxu0 0.0
        %4579 = vmatpush.msra.mxu0 0.0
        %4580 = vmatpush.msra.mxu0 0.0
        %4581 = vmatpush.msra.mxu0 0.0
        %4582 = vmatpush.msra.mxu0 0.0
        %4583 = vmatpush.msra.mxu0 %v4509
        %4584 = vmatpush.msra.mxu0 %v4506
        %4585 = vmatmul.f32.gmra.mxu0 %v4567
        %v4586 = vpop.f32.mrf.mxu0
        %v4587 = vadd.f32 0.0, %v4586
        %4588 = vdwg.mxu0
        %s4589 = scalar_lea.vmem %s17, 224
        %v4590 = vld [vmem:[%s4589] sm:$0xff]
        %v4591 = vld [vmem:[%s4589 + $0x8] sm:$0xff]
        %v4592 = vld [vmem:[%s4589 + $0x10] sm:$0xff]
        %v4593 = vld [vmem:[%s4589 + $0x18] sm:$0xff]
        %v4595 = vsel %vm1199, %v4587, 0
        %v4598 = vsel %vm1199, %v4590, 0
        %v4601 = vsel %vm1199, %v4591, 0
        %v4604 = vsel %vm1199, %v4592, 0
        %v4607 = vsel %vm1199, %v4593, 0
        %4609 = vmatpush.xpose.msra.mxu0 0.0
        %4610 = vmatpush.xpose.msra.mxu0 0.0
        %4611 = vmatpush.xpose.msra.mxu0 0.0
        %4612 = vmatpush.xpose.msra.mxu0 0.0
        %4613 = vmatpush.xpose.msra.mxu0 0.0
        %4614 = vmatpush.xpose.msra.mxu0 0.0
        %4615 = vmatpush.xpose.msra.mxu0 0.0
        %4616 = vmatpush.xpose.msra.mxu0 0.0
        %4617 = vmatpush.xpose.msra.mxu0 0.0
        %4618 = vmatpush.xpose.msra.mxu0 0.0
        %4619 = vmatpush.xpose.msra.mxu0 0.0
        %4620 = vmatpush.xpose.msra.mxu0 0.0
        %4621 = vmatpush.xpose.msra.mxu0 %v4607
        %4622 = vmatpush.xpose.msra.mxu0 %v4604
        %4623 = vmatpush.xpose.msra.mxu0 %v4601
        %4624 = vmatpush.xpose.msra.mxu0 %v4598
        %4625 = vmatmul.f32.gmra.mxu0 %v4595
        %v4626 = vpop.f32.mrf.mxu0
        %v4627 = vadd.f32 0.0, %v4626
        %4628 = vdwg.mxu0
        %v4629 = vadd.f32 %v4428, %v4627
        %v4630 = vmul.f32 %v4541, 0.25
        %v4631 = vadd.f32 %v3771, %v4629
        %s4632 = scalar_lea.vmem %s18, 1
        %v4633 = vld [vmem:[%s4632] sm:$0x1]
        %s4634 = scalar_lea.vmem %s19, 1
        %v4635 = vld [vmem:[%s4634] sm:$0x1]
        %v4636 = vsel %vm1030, %v4631, 0.0
        %4637 = vadd.xlane.f32.xlu0 %v4636
        %v4638 = vpop.xlane.xlu0 %4637
        %v4639 = vmul.f32 %v4631, %v4631
        %v4640 = vsel %vm1030, %v4639, 0.0
        %4641 = vadd.xlane.f32.xlu0 %v4640
        %v4642 = vpop.xlane.xlu0 %4641
        %v4643 = vmul.f32 %v4638, 0.03125
        %v4644 = vmul.f32 %v4638, %v4643
        %v4645 = vsub.f32 %v4642, %v4644
        %v4646 = vmax.f32 %v4645, 0.0
        %v4647 = vmul.f32 %v4646, 0.032258064
        %v4648 = vrsqrt.pop %v4647
        %v4649 = vmul.f32 %v4648, %v4647
        %v4650 = vmul.f32 %v4649, %v4648
        %v4651 = vmul.f32 0.5, %v4650
        %v4652 = vsub.f32 1.5, %v4651
        %v4653 = vmul.f32 %v4648, %v4652
        %v4654 = vmul.f32 %v4647, %v4653
        %vm4655 = vcmp.eq.f32.partialorder %v4647, inf
        %v4656 = vsel %vm4655, %v4647, %v4654
        %vm4657 = vcmp.eq.f32.partialorder %v4647, 0.0
        %v4658 = vand.u32 %v4647, 2147483648
        %v4659 = vsel %vm4657, %v4658, %v4656
        %v4660 = vsub.f32 %v4631, %v4643
        %v4662 = vperm.slane %v4633, 0
        %v4664 = vmul.f32 %v4662, %v4660
        %v4665 = vadd.f32 %v4659, 1e-06
        %v4666 = vrcp.pop %v4665
        %v4667 = vmul.f32 %v4665, %v4666
        %v4668 = vsub.f32 1.0, %v4667
        %v4669 = vmul.f32 %v4666, %v4668
        %v4670 = vadd.f32 %v4666, %v4669
        %vm4671 = vweird.f32 %v4665
        %vm4672 = vweird.f32 %v4666
        %vm4673 = vmor %vm4671, %vm4672
        %v4674 = vsel %vm4673, %v4666, %v4670
        %v4675 = vand.u32 2147483647, %v4665
        %vm4676 = vcmp.eq.f32.partialorder %v4675, 8.507059e+37
        %v4677 = vand.u32 %v4665, 2147483648
        %v4678 = vor.u32 1.1754944e-38, %v4677
        %v4679 = vsel %vm4676, %v4678, %v4674
        %v4680 = vmul.f32 %v4664, %v4679
        %v4682 = vperm.slane %v4635, 0
        %v4684 = vadd.f32 %v4680, %v4682
        %s4685 = scalar_lea.vmem %s20, 64
        %v4686 = vld [vmem:[%s4685] sm:$0xff]
        %v4687 = vld [vmem:[%s4685 + $0x8] sm:$0xff]
        %v4688 = vld [vmem:[%s4685 + $0x10] sm:$0xff]
        %v4689 = vld [vmem:[%s4685 + $0x18] sm:$0xff]
        %v4690 = vld [vmem:[%s4685 + $0x20] sm:$0xff]
        %v4691 = vld [vmem:[%s4685 + $0x28] sm:$0xff]
        %v4692 = vld [vmem:[%s4685 + $0x30] sm:$0xff]
        %v4693 = vld [vmem:[%s4685 + $0x38] sm:$0xff]
        %s4694 = scalar_lea.vmem %s21, 1
        %v4695 = vld [vmem:[%s4694] sm:$0x1]
        %v4696 = vrot.slane %v4684, 6
        %v4697 = vsel %vm2808, 0.0, %v4696
        %v4698 = vrot.slane %v4684, 7
        %v4699 = vsel %vm2811, 0.0, %v4698
        %4701 = vrot.lane.b32.xlu0 %v4699, 32
        %v4702 = vpop.permute.xlu0 %4701
        %4705 = vrot.lane.b32.xlu0 %v4684, 64
        %v4706 = vpop.permute.xlu0 %4705
        %v4708 = vsel %vm1030, %v4697, %v4702
        %v4709 = vsel %vm2822, %v4708, %v4706
        %v4711 = vperm.slane %v4695, 0
        %v4714 = vsel %vm2827, %v4709, 0
        %v4717 = vsel %vm2827, %v4686, 0
        %v4720 = vsel %vm2827, %v4687, 0
        %v4723 = vsel %vm2827, %v4688, 0
        %v4726 = vsel %vm2827, %v4689, 0
        %v4729 = vsel %vm2827, %v4690, 0
        %v4732 = vsel %vm2827, %v4691, 0
        %v4735 = vsel %vm2827, %v4692, 0
        %v4738 = vsel %vm2827, %v4693, 0
        %4740 = vmatpush.xpose.msra.mxu0 0.0
        %4741 = vmatpush.xpose.msra.mxu0 0.0
        %4742 = vmatpush.xpose.msra.mxu0 0.0
        %4743 = vmatpush.xpose.msra.mxu0 0.0
        %4744 = vmatpush.xpose.msra.mxu0 0.0
        %4745 = vmatpush.xpose.msra.mxu0 0.0
        %4746 = vmatpush.xpose.msra.mxu0 0.0
        %4747 = vmatpush.xpose.msra.mxu0 0.0
        %4748 = vmatpush.xpose.msra.mxu0 %v4738
        %4749 = vmatpush.xpose.msra.mxu0 %v4735
        %4750 = vmatpush.xpose.msra.mxu0 %v4732
        %4751 = vmatpush.xpose.msra.mxu0 %v4729
        %4752 = vmatpush.xpose.msra.mxu0 %v4726
        %4753 = vmatpush.xpose.msra.mxu0 %v4723
        %4754 = vmatpush.xpose.msra.mxu0 %v4720
        %4755 = vmatpush.xpose.msra.mxu0 %v4717
        %4756 = vmatmul.f32.gmra.mxu0 %v4714
        %v4757 = vpop.f32.mrf.mxu0
        %v4758 = vadd.f32 %v4711, %v4757
        %4759 = vdwg.mxu0
        %v4760 = vmax.f32 %v4758, 0.0
        %s4761 = scalar_lea.vmem %s22, 64
        %v4762 = vld [vmem:[%s4761] sm:$0xff]
        %v4763 = vld [vmem:[%s4761 + $0x8] sm:$0xff]
        %v4764 = vld [vmem:[%s4761 + $0x10] sm:$0xff]
        %v4765 = vld [vmem:[%s4761 + $0x18] sm:$0xff]
        %v4766 = vld [vmem:[%s4761 + $0x20] sm:$0xff]
        %v4767 = vld [vmem:[%s4761 + $0x28] sm:$0xff]
        %v4768 = vld [vmem:[%s4761 + $0x30] sm:$0xff]
        %v4769 = vld [vmem:[%s4761 + $0x38] sm:$0xff]
        %s4770 = scalar_lea.vmem %s23, 1
        %v4771 = vld [vmem:[%s4770] sm:$0x1]
        %v4772 = vrot.slane %v4760, 6
        %v4773 = vsel %vm2808, 0.0, %v4772
        %v4774 = vrot.slane %v4760, 7
        %v4775 = vsel %vm2811, 0.0, %v4774
        %4777 = vrot.lane.b32.xlu0 %v4775, 64
        %v4778 = vpop.permute.xlu0 %4777
        %v4780 = vsel %vm2822, %v4773, %v4778
        %v4782 = vperm.slane %v4771, 0
        %v4785 = vsel %vm2822, %v4760, 0
        %v4788 = vsel %vm2822, %v4763, 0
        %v4791 = vsel %vm2822, %v4765, 0
        %v4794 = vsel %vm2822, %v4767, 0
        %v4797 = vsel %vm2822, %v4769, 0
        %4799 = vmatpush.xpose.msra.mxu0 0.0
        %4800 = vmatpush.xpose.msra.mxu0 0.0
        %4801 = vmatpush.xpose.msra.mxu0 0.0
        %4802 = vmatpush.xpose.msra.mxu0 0.0
        %4803 = vmatpush.xpose.msra.mxu0 0.0
        %4804 = vmatpush.xpose.msra.mxu0 0.0
        %4805 = vmatpush.xpose.msra.mxu0 0.0
        %4806 = vmatpush.xpose.msra.mxu0 0.0
        %4807 = vmatpush.xpose.msra.mxu0 0.0
        %4808 = vmatpush.xpose.msra.mxu0 0.0
        %4809 = vmatpush.xpose.msra.mxu0 0.0
        %4810 = vmatpush.xpose.msra.mxu0 0.0
        %4811 = vmatpush.xpose.msra.mxu0 %v4768
        %4812 = vmatpush.xpose.msra.mxu0 %v4766
        %4813 = vmatpush.xpose.msra.mxu0 %v4764
        %4814 = vmatpush.xpose.msra.mxu0 %v4762
        %4815 = vmatmul.f32.gmra.mxu0 %v4780
        %v4816 = vpop.f32.mrf.mxu0
        %v4817 = vadd.f32 %v4782, %v4816
        %4818 = vdwg.mxu0
        %4819 = vmatpush.xpose.msra.mxu0 0.0
        %4820 = vmatpush.xpose.msra.mxu0 0.0
        %4821 = vmatpush.xpose.msra.mxu0 0.0
        %4822 = vmatpush.xpose.msra.mxu0 0.0
        %4823 = vmatpush.xpose.msra.mxu0 0.0
        %4824 = vmatpush.xpose.msra.mxu0 0.0
        %4825 = vmatpush.xpose.msra.mxu0 0.0
        %4826 = vmatpush.xpose.msra.mxu0 0.0
        %4827 = vmatpush.xpose.msra.mxu0 0.0
        %4828 = vmatpush.xpose.msra.mxu0 0.0
        %4829 = vmatpush.xpose.msra.mxu0 0.0
        %4830 = vmatpush.xpose.msra.mxu0 0.0
        %4831 = vmatpush.xpose.msra.mxu0 %v4797
        %4832 = vmatpush.xpose.msra.mxu0 %v4794
        %4833 = vmatpush.xpose.msra.mxu0 %v4791
        %4834 = vmatpush.xpose.msra.mxu0 %v4788
        %4835 = vmatmul.f32.gmra.mxu0 %v4785
        %v4836 = vpop.f32.mrf.mxu0
        %v4837 = vadd.f32 %v4817, %v4836
        %4838 = vdwg.mxu0
        %v4839 = vadd.f32 %v4631, %v4837
        %v4840 = vld [vmem:[%s24] sm:$0x1]
        %v4841 = vld [vmem:[%s25] sm:$0x1]
        %v4842 = vsel %vm1030, %v4839, 0.0
        %4843 = vadd.xlane.f32.xlu0 %v4842
        %v4844 = vpop.xlane.xlu0 %4843
        %v4845 = vmul.f32 %v4839, %v4839
        %v4846 = vsel %vm1030, %v4845, 0.0
        %4847 = vadd.xlane.f32.xlu0 %v4846
        %v4848 = vpop.xlane.xlu0 %4847
        %v4849 = vmul.f32 %v4844, 0.03125
        %v4850 = vmul.f32 %v4844, %v4849
        %v4851 = vsub.f32 %v4848, %v4850
        %v4852 = vmax.f32 %v4851, 0.0
        %v4853 = vmul.f32 %v4852, 0.032258064
        %v4854 = vrsqrt.pop %v4853
        %v4855 = vmul.f32 %v4854, %v4853
        %v4856 = vmul.f32 %v4855, %v4854
        %v4857 = vmul.f32 0.5, %v4856
        %v4858 = vsub.f32 1.5, %v4857
        %v4859 = vmul.f32 %v4854, %v4858
        %v4860 = vmul.f32 %v4853, %v4859
        %vm4861 = vcmp.eq.f32.partialorder %v4853, inf
        %v4862 = vsel %vm4861, %v4853, %v4860
        %vm4863 = vcmp.eq.f32.partialorder %v4853, 0.0
        %v4864 = vand.u32 %v4853, 2147483648
        %v4865 = vsel %vm4863, %v4864, %v4862
        %v4866 = vsub.f32 %v4839, %v4849
        %v4868 = vperm.slane %v4840, 0
        %v4870 = vmul.f32 %v4868, %v4866
        %v4871 = vadd.f32 %v4865, 1e-06
        %v4872 = vrcp.pop %v4871
        %v4873 = vmul.f32 %v4871, %v4872
        %v4874 = vsub.f32 1.0, %v4873
        %v4875 = vmul.f32 %v4872, %v4874
        %v4876 = vadd.f32 %v4872, %v4875
        %vm4877 = vweird.f32 %v4871
        %vm4878 = vweird.f32 %v4872
        %vm4879 = vmor %vm4877, %vm4878
        %v4880 = vsel %vm4879, %v4872, %v4876
        %v4881 = vand.u32 2147483647, %v4871
        %vm4882 = vcmp.eq.f32.partialorder %v4881, 8.507059e+37
        %v4883 = vand.u32 %v4871, 2147483648
        %v4884 = vor.u32 1.1754944e-38, %v4883
        %v4885 = vsel %vm4882, %v4884, %v4880
        %v4886 = vmul.f32 %v4870, %v4885
        %v4888 = vperm.slane %v4841, 0
        %v4890 = vadd.f32 %v4886, %v4888
        %4891 = vst.msk [vmem:[%s1016] sm:$0xff] %vm1030, %v4890
        %4892 = vst.msk [vmem:[%s1023] sm:$0xff] %vm2058, %v4630
        %s4893 = sand.u32 %s630, 1
        %s4894 = scalar_lea.sflag [#allocation4], %s4893
        %s4895 = sand.u32 %s630, 1
        %s4896 = smul.addr %s4895, 8
        %s4897 = scalar_lea.vmem [#allocation16], %s4896
        %s4898 = sand.u32 %s656, 1
        %s4899 = scalar_lea.sflag [#allocation18], %s4898
        %s4900 = sand.u32 %s656, 1
        %s4901 = smul.addr %s4900, 8
        %s4902 = scalar_lea.vmem [#allocation17], %s4901
        // Predicated region
        $region157: #{tpu_custom_call.1} parent=123 // pred_check
          %p4903 = pneg %p640
        $region158: #{tpu_custom_call.1} parent=123 // pred_check_branch
          %4905 = sbr.rel (%p4903) target = $region160
        $region159: #{tpu_custom_call.1} parent=123 // pred_region
          %4907 = vsyncadd %s4894, 0
          %s4908 = smul.addr %s56, 8
          %s4909 = scalar_lea.hbm %s26, %s4908
          %s4911 = sshll.u32 %s4897, 4
          %s4912 = int_to_ptr.vmem [resolvable:$true] %s4911
          %s4913 = sshll.u32 %s4909, 4
          %s4914 = int_to_ptr.hbm [resolvable:$true] %s4913
          %4916 = dma.vmem_to_hbm [thread:$0]  %s4912, 128, %s4914, %s4894
        $region160: #{tpu_custom_call.1} parent=123 // pred_fallthru
          _
        // Predicated region
        $region161: #{tpu_custom_call.1} parent=123 // pred_check
          %p4917 = pneg %p666
        $region162: #{tpu_custom_call.1} parent=123 // pred_check_branch
          %4919 = sbr.rel (%p4917) target = $region164
        $region163: #{tpu_custom_call.1} parent=123 // pred_region
          %4921 = vsyncadd %s4899, 0
          %s4922 = smul.addr %s56, 8
          %s4923 = scalar_lea.hbm %s27, %s4922
          %s4925 = sshll.u32 %s4902, 4
          %s4926 = int_to_ptr.vmem [resolvable:$true] %s4925
          %s4927 = sshll.u32 %s4923, 4
          %s4928 = int_to_ptr.hbm [resolvable:$true] %s4927
          %4930 = dma.vmem_to_hbm [thread:$0]  %s4926, 128, %s4928, %s4899
        $region164: #{tpu_custom_call.1} parent=123 // pred_fallthru
          _
      $region124: #{tpu_custom_call.1} parent=5 // pred_fallthru
        _
      %p4931 = scmp.le.s32.totalorder 2, %s51
      // Predicated region
      $region165: #{tpu_custom_call.1} parent=5 // pred_check
        %p4932 = pneg %p4931
      $region166: #{tpu_custom_call.1} parent=5 // pred_check_branch
        %4934 = sbr.rel (%p4932) target = $region168
      $region167: #{tpu_custom_call.1} parent=5 // pred_region
        %s4935 = ssub.s32 %s51, 2
        // Predicated region
        $region169: #{tpu_custom_call.1} parent=167 // pred_check
          %p4936 = pneg %p646
        $region170: #{tpu_custom_call.1} parent=167 // pred_check_branch
          %4938 = sbr.rel (%p4936) target = $region172
        $region171: #{tpu_custom_call.1} parent=167 // pred_region
          %s4939 = sand.u32 %s631, 1
          %s4940 = scalar_lea.sflag [#allocation4], %s4939
          %s4941 = sand.u32 %s631, 1
          %s4942 = smul.addr %s4941, 8
          %s4943 = scalar_lea.vmem [#allocation16], %s4942
          %4945 = dma.done %s4940, 128
        $region172: #{tpu_custom_call.1} parent=167 // pred_fallthru
          _
        // Predicated region
        $region173: #{tpu_custom_call.1} parent=167 // pred_check
          %p4946 = pneg %p672
        $region174: #{tpu_custom_call.1} parent=167 // pred_check_branch
          %4948 = sbr.rel (%p4946) target = $region176
        $region175: #{tpu_custom_call.1} parent=167 // pred_region
          %s4949 = sand.u32 %s657, 1
          %s4950 = scalar_lea.sflag [#allocation18], %s4949
          %s4951 = sand.u32 %s657, 1
          %s4952 = smul.addr %s4951, 8
          %s4953 = scalar_lea.vmem [#allocation17], %s4952
          %4955 = dma.done %s4950, 128
        $region176: #{tpu_custom_call.1} parent=167 // pred_fallthru
          _
      $region168: #{tpu_custom_call.1} parent=5 // pred_fallthru
        _
    $region6: #{tpu_custom_call.1} parent=1 // loop_footer
      %s55 = sadd.s32 1, %s51
    $region7: #{tpu_custom_call.1} parent=1 // loop_footer_branch
      %50 = sbr.rel target = $region3
    $region8: #{tpu_custom_call.1} parent=1 // loop_exit
      _
    %4956 = vsyncpa [#allocation3], 1
    %s4957 = scalar_lea.sflag [#allocation3], 1
    %4958 = vsyncpa %s4957, 1
    %4959 = vsyncpa [#allocation6], 1
    %s4960 = scalar_lea.sflag [#allocation6], 1
    %4961 = vsyncpa %s4960, 1
    %4962 = vsyncpa [#allocation9], 1
    %s4963 = scalar_lea.sflag [#allocation9], 1
    %4964 = vsyncpa %s4963, 1
    %4965 = vsyncpa [#allocation12], 1
    %4966 = vsyncpa [#allocation15], 1
    %4967 = vsyncpa [#allocation4], 1
    %s4968 = scalar_lea.sflag [#allocation4], 1
    %4969 = vsyncpa %s4968, 1
    %4970 = vsyncpa [#allocation18], 1
    %s4971 = scalar_lea.sflag [#allocation18], 1
    %4972 = vsyncpa %s4971, 1

</llo_original>
